<compile_context>
chip_gen: v5e
topology: v5e:2x2
jax: 0.10.0
libtpu: 0.0.40
codegen_flags: <defaults>
</compile_context>

<pallas_src>
import functools
import math

import jax
import jax.numpy as jnp
from jax.experimental import pallas as pl
from jax.experimental.pallas import tpu as pltpu
from jax.scipy.special import digamma, gammaln

FUSED_ORDER = (
    "w_nvib", "b_nvib", "w_q", "b_q", "w_kv", "b_kv", "w_o", "b_o",
    "w1", "b1", "w2", "b2", "ln1_w", "ln1_b", "ln2_w", "ln2_b",
)


def _round_up(x, m):
    return (x + m - 1) // m * m


# --------------------------------------------------------------------------------------
# Kernel
# --------------------------------------------------------------------------------------
def _layer_kernel(
    x_ref, pad_ref,
    wnvib_ref, bnvib_ref, wq_ref, bq_ref, wkv_ref, bkv_ref, wo_ref, bo_ref,
    w1_ref, b1_ref, w2_ref, b2_ref,
    ln1w_ref, ln1b_ref, ln2w_ref, ln2b_ref,
    y_ref, attn_ref, lat_ref,
    *, nhead, compress_dim, kappa, eps, ffn_chunk,
):
    f32 = jnp.float32
    S, Bt, D = x_ref.shape
    C = compress_dim
    S1 = S + 1
    Kp = attn_ref.shape[2]          # key axis padded to a multiple of 128 (lane-dense)
    Pp = lat_ref.shape[2]           # packed latent width padded to a multiple of 128
    N = Bt * S
    H = nhead
    dh = D // H
    bf = wo_ref.dtype               # matmul dtype (bf16 by default)

    def mm(a, w_ref, b_ref):
        # bf16 MXU matmul with fp32 accumulation.
        return jnp.dot(a.astype(w_ref.dtype), w_ref[...],
                       preferred_element_type=f32) + b_ref[...]

    # ---- batch-major activations: one in-VMEM transpose (no HBM transpose passes) ----
    xb = jnp.transpose(x_ref[...], (1, 0, 2)).reshape(N, D)      # rows ordered (b, s)
    keep = 1.0 - pad_ref[...].reshape(N, 1)                      # 1.0 = real token

    # ---- fused NVIB projection: [mu | logvar | log_alpha | zero-pad] -----------------
    proj = mm(xb, wnvib_ref, bnvib_ref)                          # (N, Pp)
    # TODO(synk): the ±30 clamp on log-alpha is a numerical safeguard not in the reference.
    la_col = jnp.clip(proj[:, 2 * C:2 * C + 1], -30.0, 30.0)     # (N, 1)
    alpha_col = jnp.exp(la_col) * keep                           # exp on ONE column only
    parts = [proj[:, :2 * C] * keep, alpha_col]
    if Pp > 2 * C + 1:
        parts.append(jnp.zeros((N, Pp - 2 * C - 1), f32))
    packed = jnp.concatenate(parts, axis=1)                      # (N, Pp)

    # prior pseudo-token (mu=0, logvar=0, alpha=kappa) prepended at key position 0
    prior = jnp.where(
        jax.lax.broadcasted_iota(jnp.int32, (Bt, 1, Pp), 2) == 2 * C,
        jnp.float32(kappa), jnp.float32(0.0))
    packed_ext = jnp.concatenate([prior, packed.reshape(Bt, S, Pp)], axis=1)  # (Bt,S1,Pp)
    lat_ref[...] = jnp.transpose(packed_ext, (1, 0, 2))          # (S1, Bt, Pp)

    # ---- q / k / v (W_k|W_v fused; eval-mode z = mu; prior mu = 0 -> k/v = biases) ----
    q = mm(xb, wq_ref, bq_ref)                                   # (N, D)
    mu_ext = packed_ext.reshape(Bt * S1, Pp)[:, :C]
    kv = mm(mu_ext, wkv_ref, bkv_ref).reshape(Bt, S1, 2 * D)     # (Bt, S1, 2D)
    if Kp > S1:                                                  # pad keys; masked below
        kv = jnp.concatenate([kv, jnp.zeros((Bt, Kp - S1, 2 * D), f32)], axis=1)
    qb = q.reshape(Bt, S, D)
    kb = kv[:, :, :D]
    vb = kv[:, :, D:]

    # ---- additive key bias: log(alpha_k); -1e30 for padded tokens / padded keys ------
    la_real = jnp.where(keep > 0.0, la_col, -1e30).reshape(Bt, S, 1)
    bparts = [jnp.full((Bt, 1, 1), math.log(max(kappa, 1e-20)), f32), la_real]
    if Kp > S1:
        bparts.append(jnp.full((Bt, Kp - S1, 1), -1e30, f32))
    bias = jnp.concatenate(bparts, axis=1).reshape(Bt, 1, Kp)    # broadcast over queries

    # ---- denoising multi-head self-attention (eval: pi ∝ alpha, z = mu) ---------------
    # TODO(synk): variance-dependent denoising correction of DenoisingMultiheadAttention
    #             is omitted (source not provided); exact only when logvar == 0.
    scale = 1.0 / math.sqrt(dh)
    inv_h = 1.0 / H
    pv_heads = []
    for h in range(H):                                           # static, small unroll
        lo = h * dh
        qh = (qb[:, :, lo:lo + dh] * scale).astype(bf)
        kh = kb[:, :, lo:lo + dh].astype(bf)
        vh = vb[:, :, lo:lo + dh].astype(bf)
        s = jnp.einsum('bqd,bkd->bqk', qh, kh,
                       preferred_element_type=f32) + bias        # (Bt, S, Kp)
        m = jnp.max(s, axis=-1, keepdims=True)
        p = jnp.exp(s - m)
        p = p * (1.0 / jnp.sum(p, axis=-1, keepdims=True))       # exact (user-visible)
        if h == 0:
            attn_ref[...] = p * inv_h                            # fold 1/H, no extra buf
        else:
            attn_ref[...] = attn_ref[...] + p * inv_h
        pv_heads.append(jnp.einsum('bqk,bkd->bqd', p.astype(bf), vh,
                                   preferred_element_type=f32))  # (Bt, S, dh)
    pv = jnp.concatenate(pv_heads, axis=-1).reshape(N, D)        # lane-concat heads
    sa = mm(pv, wo_ref, bo_ref)                                  # ONE K=D W_o matmul

    # ---- post-norm residual + FFN (eval: dropout = identity) --------------------------
    def layer_norm(hh, w_r, b_r):
        mean = jnp.mean(hh, axis=-1, keepdims=True)
        cent = hh - mean
        var = jnp.mean(cent * cent, axis=-1, keepdims=True)
        return cent * jax.lax.rsqrt(var + eps) * w_r[...] + b_r[...]

    h1 = layer_norm(xb + sa, ln1w_ref, ln1b_ref)
    if ffn_chunk >= N:
        h2 = h1 + mm(jnp.maximum(mm(h1, w1_ref, b1_ref), 0.0), w2_ref, b2_ref)
    else:
        # Row-chunked FFN keeps the (rows, FF) intermediate bounded (v7x 64 MiB VMEM).
        # TODO(synk): a fori_loop + VMEM scratch would bound live ranges more strictly.
        chunks = []
        for c0 in range(0, N, ffn_chunk):
            h1c = h1[c0:c0 + ffn_chunk]
            chunks.append(h1c + mm(jnp.maximum(mm(h1c, w1_ref, b1_ref), 0.0),
                                   w2_ref, b2_ref))
        h2 = jnp.concatenate(chunks, axis=0)
    y = layer_norm(h2, ln2w_ref, ln2b_ref)

    y_ref[...] = jnp.transpose(y.reshape(Bt, S, D), (1, 0, 2))   # seq-first (S, Bt, D)


# --------------------------------------------------------------------------------------
# Generation-aware sizing helpers
# --------------------------------------------------------------------------------------
def _tpu_limits():
    """(physical VMEM bytes, #TensorCores) with conservative fallbacks."""
    vmem_bytes, num_cores = 64 * 1024 * 1024, 1   # safe on every generation
    try:
        info = pltpu.get_tpu_info()
        vmem_bytes = int(getattr(info, "vmem_capacity_bytes", vmem_bytes))
        for attr in ("num_cores", "core_count", "num_tensorcores", "tensorcore_count"):
            v = getattr(info, attr, None)
            if v:
                num_cores = int(v)
                break
    except Exception:
        pass
    return vmem_bytes, num_cores


def _ffn_chunk_rows(n_rows, ff, budget_bytes=8 * 1024 * 1024):
    if n_rows * ff * 4 <= budget_bytes:
        return n_rows
    for ch in (2048, 1024, 512, 256, 128, 64, 32, 16, 8):
        if ch < n_rows and n_rows % ch == 0 and ch * ff * 4 <= budget_bytes:
            return ch
    return n_rows


def _estimate_step_vmem(S, Bt, D, C, FF, Kp, Pp, ffn_chunk, weight_bytes):
    """Rough per-grid-step VMEM working-set estimate (bytes)."""
    S1, N = S + 1, S * Bt
    io = 4 * (2 * S * Bt * D + Bt * S + Bt * S * Kp + S1 * Bt * Pp)
    inter = 4 * (2 * N * D                      # xb, q
                 + N * Pp + Bt * S1 * Pp        # proj/packed, packed_ext
                 + 2 * Bt * Kp * 2 * D          # kv (padded) + k/v views
                 + 3 * Bt * S * Kp              # scores / probs / attn
                 + 4 * N * D                    # pv heads, pv, sa, h1
                 + min(ffn_chunk, N) * FF       # FF chunk intermediate
                 + 2 * N * D)                   # h2, y
    return int(1.3 * (2 * (io + weight_bytes) + inter))


def _pick_batch_tile(B, num_cores, fits):
    """Largest tile (multiple of 8 dividing B, or B itself) whose estimate fits the
    VMEM cap; on multi-TensorCore chips prefer >= 2 grid steps so every core gets work,
    on single-core chips the grid is a serial loop so fewer/larger steps are better."""
    cands = sorted({b for b in range(8, B + 1, 8) if B % b == 0} | {B}, reverse=True)
    ok = [bt for bt in cands if fits(bt)]
    if not ok:
        return cands[-1]
    if num_cores >= 2:
        for bt in ok:
            if B // bt >= 2:
                return bt
    return ok[0]


# --------------------------------------------------------------------------------------
# Parameter fusion & wrapper
# --------------------------------------------------------------------------------------
def fuse_params(params, matmul_dtype=jnp.bfloat16):
    """Fuse the small projections into wide matmul weights.  bf16 by default (the MXU is
    bf16-native on v5e/v6e/v7x; accumulation stays fp32) and lane-pad the packed NVIB
    projection [mu | logvar | log_alpha] out to a multiple of 128 with zero columns."""
    w = lambda a: a.astype(matmul_dtype)
    b = lambda a: a.astype(jnp.float32)
    d_model = params["w_mu"].shape[0]
    C = params["w_mu"].shape[1]
    P = 2 * C + 1
    Pp = _round_up(P, 128)
    w_nvib = jnp.concatenate([params["w_mu"], params["w_lv"], params["w_al"]], axis=1)
    b_nvib = jnp.concatenate([params["b_mu"], params["b_lv"], params["b_al"]], axis=1)
    if Pp > P:
        w_nvib = jnp.concatenate([w_nvib, jnp.zeros((d_model, Pp - P), w_nvib.dtype)], 1)
        b_nvib = jnp.concatenate([b_nvib, jnp.zeros((1, Pp - P), b_nvib.dtype)], 1)
    return {
        "w_nvib": w(w_nvib), "b_nvib": b(b_nvib),
        "w_q": w(params["w_q"]), "b_q": b(params["b_q"]),
        "w_kv": w(jnp.concatenate([params["w_k"], params["w_v"]], 1)),
        "b_kv": b(jnp.concatenate([params["b_k"], params["b_v"]], 1)),
        "w_o": w(params["w_o"]), "b_o": b(params["b_o"]),
        "w1": w(params["w1"]), "b1": b(params["b1"]),
        "w2": w(params["w2"]), "b2": b(params["b2"]),
        "ln1_w": b(params["ln1_w"]), "ln1_b": b(params["ln1_b"]),
        "ln2_w": b(params["ln2_w"]), "ln2_b": b(params["ln2_b"]),
    }


def _kl_dirichlet(alpha, pad_full, delta):
    # alpha: (B, S+1); pad_full: (B, S+1) float, 1.0 = padded.
    # TODO(synk): gammaln/digamma have no Mosaic lowering -> plain JAX epilogue.
    keep = 1.0 - pad_full
    a_safe = jnp.where(keep > 0, alpha, delta)
    alpha0 = jnp.sum(a_safe * keep, axis=-1)
    kcnt = jnp.sum(keep, axis=-1)
    beta = jnp.asarray(delta, jnp.float32)
    beta0 = kcnt * beta
    t1 = gammaln(alpha0) - gammaln(beta0)
    t2 = jnp.sum(keep * (gammaln(beta) - gammaln(a_safe)), axis=-1)
    t3 = jnp.sum(keep * (a_safe - beta) *
                 (digamma(a_safe) - digamma(alpha0)[:, None]), axis=-1)
    return t1 + t2 + t3


def nvib_encoder_layer(src, key_padding_mask, fused, *, nhead,
                       kappa=1.0, delta=1.0, eps=1e-5, batch_tile=None):
    """src: (S, B, D) seq-first (batch_first=False).  Returns the PyTorch module's
    5-tuple: (x, attention, kl_g, kl_d, latent_dict)."""
    S, B, D = src.shape
    C = fused["w_kv"].shape[0]
    P = 2 * C + 1
    Pp = fused["w_nvib"].shape[1]
    S1 = S + 1
    Kp = _round_up(S1, 128)
    FF = fused["w1"].shape[1]
    assert D % nhead == 0

    vmem_phys, num_cores = _tpu_limits()
    vmem_cap = int(0.8 * vmem_phys)                  # headroom for Mosaic scratch/buffers
    weight_bytes = sum(int(v.size) * v.dtype.itemsize for v in fused.values())

    def fits(bt):
        return _estimate_step_vmem(S, bt, D, C, FF, Kp, Pp,
                                   _ffn_chunk_rows(bt * S, FF), weight_bytes) <= vmem_cap

    Bt = _pick_batch_tile(B, num_cores, fits) if batch_tile is None else batch_tile
    assert B % Bt == 0 and (Bt == B or Bt % 8 == 0), (B, Bt)
    grid = (B // Bt,)
    ffn_chunk = _ffn_chunk_rows(Bt * S, FF)

    x = src.astype(jnp.float32)
    pad = key_padding_mask.astype(jnp.float32)[..., None]        # (B, S, 1)

    in_specs = [
        pl.BlockSpec((S, Bt, D), lambda b: (0, b, 0)),           # src tile (seq-first)
        pl.BlockSpec((Bt, S, 1), lambda b: (b, 0, 0)),           # padding mask tile
    ] + [
        # Grid-invariant weights (constant index map).
        # TODO(synk): pipeline_mode=pl.Buffered(1) would drop the redundant second
        #             buffer for these on VMEM-tight chips (v7x); kept default for safety.
        pl.BlockSpec(fused[k].shape, lambda b: (0, 0)) for k in FUSED_ORDER
    ]
    out_shape = [
        jax.ShapeDtypeStruct((S, B, D), jnp.float32),            # y (seq-first)
        jax.ShapeDtypeStruct((B, S, Kp), jnp.float32),           # attention (lane-padded)
        jax.ShapeDtypeStruct((S1, B, Pp), jnp.float32),          # packed latent (padded)
    ]
    out_specs = [
        pl.BlockSpec((S, Bt, D), lambda b: (0, b, 0)),
        pl.BlockSpec((Bt, S, Kp), lambda b: (b, 0, 0)),
        pl.BlockSpec((S1, Bt, Pp), lambda b: (0, b, 0)),
    ]

    dh = D // nhead
    flops = int(2 * B * S * D * (Pp + D) + 2 * B * S1 * C * 2 * D
                + 4 * B * nhead * S * Kp * dh + 2 * B * S * D * D
                + 4 * B * S * D * FF)
    transcendentals = int(B * S + B * nhead * S * Kp + 4 * B * S)
    bytes_accessed = int(4 * (2 * S * B * D + B * S + B * S * Kp + S1 * B * Pp)
                         + weight_bytes)
    cost = pl.CostEstimate(flops=flops, transcendentals=transcendentals,
                           bytes_accessed=bytes_accessed)

    kernel = functools.partial(_layer_kernel, nhead=nhead, compress_dim=C,
                               kappa=float(kappa), eps=float(eps), ffn_chunk=ffn_chunk)

    y, attn_p, lat = pl.pallas_call(
        kernel,
        grid=grid,
        in_specs=in_specs,
        out_specs=out_specs,
        out_shape=out_shape,
        cost_estimate=cost,
        compiler_params=pltpu.CompilerParams(
            dimension_semantics=("parallel",),
            vmem_limit_bytes=vmem_cap,
        ),
    )(x, pad, *[fused[k] for k in FUSED_ORDER])

    # ---- cheap JAX-side epilogue on the (padded) packed latent --------------------------
    attn = attn_p[:, :, :S1]                       # (B, S, S+1), head-averaged weights
    mu = lat[..., :C]                              # (S+1, B, C) seq-first
    lv = lat[..., C:2 * C]
    alpha = lat[..., 2 * C:2 * C + 1]

    mem_mask = jnp.concatenate(
        [jnp.zeros((B, 1), bool), key_padding_mask.astype(bool)], axis=1)   # (B, S+1)

    keep_real = 1.0 - key_padding_mask.astype(jnp.float32)                  # (B, S)
    kl_e = -0.5 * jnp.sum(1.0 + lv - mu * mu - jnp.exp(lv), axis=-1)        # (S+1, B)
    # TODO(synk): averaging convention re-derived (prior pseudo-token, which contributes 0,
    #             is excluded from the denominator).
    kl_g = jnp.sum(kl_e[1:].T * keep_real, axis=-1) / jnp.maximum(
        jnp.sum(keep_real, axis=-1), 1.0)

    kl_d = _kl_dirichlet(alpha[..., 0].T, mem_mask.astype(jnp.float32), delta)

    latent_dict = {
        "mu": mu, "logvar": lv, "alpha": alpha, "z": mu,   # eval: z = posterior mean
        "memory_key_padding_mask": mem_mask, "query": None,
    }
    return y, attn, kl_g, kl_d, latent_dict


def init_params(key, d_model, compress_dim, dim_feedforward):
    ks = jax.random.split(key, 9)

    def lin(k, i, o, scale=0.05):
        return jax.random.normal(k, (i, o), jnp.float32) * scale

    z = lambda n: jnp.zeros((1, n), jnp.float32)
    return {
        "w_mu": lin(ks[0], d_model, compress_dim), "b_mu": z(compress_dim),
        "w_lv": lin(ks[1], d_model, compress_dim), "b_lv": z(compress_dim),
        "w_al": lin(ks[2], d_model, 1), "b_al": z(1),
        "w_q": lin(ks[3], d_model, d_model), "b_q": z(d_model),
        "w_k": lin(ks[4], compress_dim, d_model), "b_k": z(d_model),
        "w_v": lin(ks[5], compress_dim, d_model), "b_v": z(d_model),
        "w_o": lin(ks[6], d_model, d_model), "b_o": z(d_model),
        "w1": lin(ks[7], d_model, dim_feedforward), "b1": z(dim_feedforward),
        "w2": lin(ks[8], dim_feedforward, d_model), "b2": z(d_model),
        "ln1_w": jnp.ones((1, d_model), jnp.float32), "ln1_b": z(d_model),
        "ln2_w": jnp.ones((1, d_model), jnp.float32), "ln2_b": z(d_model),
    }


if __name__ == "__main__":
    S, B, D, C, H, FF = 8, 16, 32, 16, 4, 64     # seq, batch, d_model, compress, heads, ffn
    key = jax.random.PRNGKey(0)
    k_src, k_par = jax.random.split(key)

    src = jax.random.normal(k_src, (S, B, D), jnp.float32)            # (S, B, D) seq-first
    key_padding_mask = (jnp.zeros((B, S), bool)
                        .at[1, -2:].set(True)
                        .at[3, -3:].set(True))                        # pad some tails

    params = init_params(k_par, D, C, FF)
    fused = fuse_params(params)       # bf16 matmul weights by default (fp32 accumulation)

    out = nvib_encoder_layer(src, key_padding_mask, fused, nhead=H, kappa=1.0, delta=1.0)
    out = jax.block_until_ready(out)
    x_out, attn, kl_g, kl_d, latent = out

    assert x_out.shape == (S, B, D)
    assert attn.shape == (B, S, S + 1)
    assert kl_g.shape == (B,) and kl_d.shape == (B,)
    assert latent["mu"].shape == (S + 1, B, C)
    assert latent["logvar"].shape == (S + 1, B, C)
    assert latent["alpha"].shape == (S + 1, B, 1)
    # attention rows must (exactly-reciprocal) sum to ~1
    assert bool(jnp.all(jnp.abs(jnp.sum(attn, axis=-1) - 1.0) < 1e-3))
    for t in (x_out, attn, kl_g, kl_d, latent["mu"], latent["logvar"], latent["alpha"]):
        assert bool(jnp.all(jnp.isfinite(t)))
    print("KERNEL_OK")
</pallas_src>

<mosaic_0001>
module attributes {stable_mosaic.version = 11 : i64} {
  func.func @_layer_kernel(%arg0: i32, %arg1: memref<8x16x32xf32, #tpu.memory_space<vmem>>, %arg2: memref<16x8x1xf32, #tpu.memory_space<vmem>>, %arg3: memref<32x128xbf16, #tpu.memory_space<vmem>>, %arg4: memref<1x128xf32, #tpu.memory_space<vmem>>, %arg5: memref<32x32xbf16, #tpu.memory_space<vmem>>, %arg6: memref<1x32xf32, #tpu.memory_space<vmem>>, %arg7: memref<16x64xbf16, #tpu.memory_space<vmem>>, %arg8: memref<1x64xf32, #tpu.memory_space<vmem>>, %arg9: memref<32x32xbf16, #tpu.memory_space<vmem>>, %arg10: memref<1x32xf32, #tpu.memory_space<vmem>>, %arg11: memref<32x64xbf16, #tpu.memory_space<vmem>>, %arg12: memref<1x64xf32, #tpu.memory_space<vmem>>, %arg13: memref<64x32xbf16, #tpu.memory_space<vmem>>, %arg14: memref<1x32xf32, #tpu.memory_space<vmem>>, %arg15: memref<1x32xf32, #tpu.memory_space<vmem>>, %arg16: memref<1x32xf32, #tpu.memory_space<vmem>>, %arg17: memref<1x32xf32, #tpu.memory_space<vmem>>, %arg18: memref<1x32xf32, #tpu.memory_space<vmem>>, %arg19: memref<8x16x32xf32, #tpu.memory_space<vmem>>, %arg20: memref<16x8x128xf32, #tpu.memory_space<vmem>>, %arg21: memref<9x16x128xf32, #tpu.memory_space<vmem>>) attributes {dimension_semantics = [#tpu.dimension_semantics<parallel>], iteration_bounds = array<i64: 1>, scalar_prefetch = 0 : i64, scratch_operands = 0 : i64, tpu.core_type = #tpu.core_type<tc>, window_params = [{transform_indices = @transform_0, window_bounds = array<i64: 8, 16, 32>}, {transform_indices = @transform_1, window_bounds = array<i64: 16, 8, 1>}, {pipeline_mode = #tpu.pipeline_mode<synchronous>, transform_indices = @transform_2, window_bounds = array<i64: 32, 128>}, {pipeline_mode = #tpu.pipeline_mode<synchronous>, transform_indices = @transform_3, window_bounds = array<i64: 1, 128>}, {pipeline_mode = #tpu.pipeline_mode<synchronous>, transform_indices = @transform_4, window_bounds = array<i64: 32, 32>}, {pipeline_mode = #tpu.pipeline_mode<synchronous>, transform_indices = @transform_5, window_bounds = array<i64: 1, 32>}, {pipeline_mode = #tpu.pipeline_mode<synchronous>, transform_indices = @transform_6, window_bounds = array<i64: 16, 64>}, {pipeline_mode = #tpu.pipeline_mode<synchronous>, transform_indices = @transform_7, window_bounds = array<i64: 1, 64>}, {pipeline_mode = #tpu.pipeline_mode<synchronous>, transform_indices = @transform_8, window_bounds = array<i64: 32, 32>}, {pipeline_mode = #tpu.pipeline_mode<synchronous>, transform_indices = @transform_9, window_bounds = array<i64: 1, 32>}, {pipeline_mode = #tpu.pipeline_mode<synchronous>, transform_indices = @transform_10, window_bounds = array<i64: 32, 64>}, {pipeline_mode = #tpu.pipeline_mode<synchronous>, transform_indices = @transform_11, window_bounds = array<i64: 1, 64>}, {pipeline_mode = #tpu.pipeline_mode<synchronous>, transform_indices = @transform_12, window_bounds = array<i64: 64, 32>}, {pipeline_mode = #tpu.pipeline_mode<synchronous>, transform_indices = @transform_13, window_bounds = array<i64: 1, 32>}, {pipeline_mode = #tpu.pipeline_mode<synchronous>, transform_indices = @transform_14, window_bounds = array<i64: 1, 32>}, {pipeline_mode = #tpu.pipeline_mode<synchronous>, transform_indices = @transform_15, window_bounds = array<i64: 1, 32>}, {pipeline_mode = #tpu.pipeline_mode<synchronous>, transform_indices = @transform_16, window_bounds = array<i64: 1, 32>}, {pipeline_mode = #tpu.pipeline_mode<synchronous>, transform_indices = @transform_17, window_bounds = array<i64: 1, 32>}, {transform_indices = @transform_18, window_bounds = array<i64: 8, 16, 32>}, {transform_indices = @transform_19, window_bounds = array<i64: 16, 8, 128>}, {transform_indices = @transform_20, window_bounds = array<i64: 9, 16, 128>}]} {
    %c0 = arith.constant 0 : index
    %c0_0 = arith.constant 0 : index
    %c0_1 = arith.constant 0 : index
    %0 = vector.load %arg1[%c0, %c0_0, %c0_1] : memref<8x16x32xf32, #tpu.memory_space<vmem>>, vector<8x16x32xf32>
    %1 = tpu.transpose %0, [1, 0, 2] : vector<8x16x32xf32> -> vector<16x8x32xf32>
    %2 = vector.shape_cast %1 : vector<16x8x32xf32> to vector<128x32xf32>
    %c0_2 = arith.constant 0 : index
    %c0_3 = arith.constant 0 : index
    %c0_4 = arith.constant 0 : index
    %3 = vector.load %arg2[%c0_2, %c0_3, %c0_4] : memref<16x8x1xf32, #tpu.memory_space<vmem>>, vector<16x8x1xf32>
    %4 = vector.shape_cast %3 : vector<16x8x1xf32> to vector<128x1xf32>
    %cst = arith.constant 1.000000e+00 : f32
    %5 = vector.broadcast %cst : f32 to vector<128x1xf32>
    %6 = arith.subf %5, %4 : vector<128x1xf32>
    %7 = arith.truncf %2 : vector<128x32xf32> to vector<128x32xbf16>
    %c0_5 = arith.constant 0 : index
    %c0_6 = arith.constant 0 : index
    %8 = vector.load %arg3[%c0_5, %c0_6] : memref<32x128xbf16, #tpu.memory_space<vmem>>, vector<32x128xbf16>
    %cst_7 = arith.constant dense<0.000000e+00> : vector<128x128xf32>
    %9 = tpu.matmul %7, %8, %cst_7 {dimension_numbers = #tpu.dot_dimension_numbers<[1], [0], [0], [1], [0, 0, 1, 1], [], []>} : vector<128x32xbf16>, vector<32x128xbf16>, vector<128x128xf32> -> vector<128x128xf32>
    %c0_8 = arith.constant 0 : index
    %c0_9 = arith.constant 0 : index
    %10 = vector.load %arg4[%c0_8, %c0_9] : memref<1x128xf32, #tpu.memory_space<vmem>>, vector<1x128xf32>
    %11 = vector.broadcast %10 : vector<1x128xf32> to vector<128x128xf32>
    %12 = arith.addf %9, %11 : vector<128x128xf32>
    %13 = vector.extract_strided_slice %12 {offsets = [0, 32], sizes = [128, 1], strides = [1, 1]} : vector<128x128xf32> to vector<128x1xf32>
    %cst_10 = arith.constant -3.000000e+01 : f32
    %cst_11 = arith.constant 3.000000e+01 : f32
    %14 = vector.broadcast %cst_10 : f32 to vector<128x1xf32>
    %15 = arith.maximumf %14, %13 : vector<128x1xf32>
    %16 = vector.broadcast %cst_11 : f32 to vector<128x1xf32>
    %17 = arith.minimumf %16, %15 : vector<128x1xf32>
    %18 = math.exp %17 : vector<128x1xf32>
    %19 = arith.mulf %18, %6 : vector<128x1xf32>
    %20 = vector.extract_strided_slice %12 {offsets = [0, 0], sizes = [128, 32], strides = [1, 1]} : vector<128x128xf32> to vector<128x32xf32>
    %21 = vector.broadcast %6 : vector<128x1xf32> to vector<128x32xf32>
    %22 = arith.mulf %20, %21 : vector<128x32xf32>
    %cst_12 = arith.constant 0.000000e+00 : f32
    %23 = vector.broadcast %cst_12 : f32 to vector<128x95xf32>
    %24 = tpu.concatenate %22, %19, %23 in 1 : vector<128x32xf32>, vector<128x1xf32>, vector<128x95xf32> -> vector<128x128xf32>
    %25 = tpu.iota {dimensions = array<i32: 2>} : vector<16x1x128xi32>
    %c32_i32 = arith.constant 32 : i32
    %26 = vector.broadcast %c32_i32 : i32 to vector<16x1x128xi32>
    %27 = arith.cmpi eq, %25, %26 : vector<16x1x128xi32>
    %cst_13 = arith.constant 1.000000e+00 : f32
    %cst_14 = arith.constant 0.000000e+00 : f32
    %28 = vector.broadcast %cst_13 : f32 to vector<16x1x128xf32>
    %29 = vector.broadcast %cst_14 : f32 to vector<16x1x128xf32>
    %30 = arith.select %27, %28, %29 : vector<16x1x128xi1>, vector<16x1x128xf32>
    %31 = vector.shape_cast %24 : vector<128x128xf32> to vector<16x8x128xf32>
    %32 = tpu.concatenate %30, %31 in 1 : vector<16x1x128xf32>, vector<16x8x128xf32> -> vector<16x9x128xf32>
    %33 = tpu.transpose %32, [1, 0, 2] : vector<16x9x128xf32> -> vector<9x16x128xf32>
    %c0_15 = arith.constant 0 : index
    %c0_16 = arith.constant 0 : index
    %c0_17 = arith.constant 0 : index
    %34 = vector.load %arg21[%c0_15, %c0_16, %c0_17] : memref<9x16x128xf32, #tpu.memory_space<vmem>>, vector<9x16x128xf32>
    tpu.vector_store %arg21[%c0_15, %c0_16, %c0_17], %33 {strides = array<i32>} : memref<9x16x128xf32, #tpu.memory_space<vmem>>, vector<9x16x128xf32>,
    %35 = arith.truncf %2 : vector<128x32xf32> to vector<128x32xbf16>
    %c0_18 = arith.constant 0 : index
    %c0_19 = arith.constant 0 : index
    %36 = vector.load %arg5[%c0_18, %c0_19] : memref<32x32xbf16, #tpu.memory_space<vmem>>, vector<32x32xbf16>
    %cst_20 = arith.constant dense<0.000000e+00> : vector<128x32xf32>
    %37 = tpu.matmul %35, %36, %cst_20 {dimension_numbers = #tpu.dot_dimension_numbers<[1], [0], [0], [1], [0, 0, 1, 1], [], []>} : vector<128x32xbf16>, vector<32x32xbf16>, vector<128x32xf32> -> vector<128x32xf32>
    %c0_21 = arith.constant 0 : index
    %c0_22 = arith.constant 0 : index
    %38 = vector.load %arg6[%c0_21, %c0_22] : memref<1x32xf32, #tpu.memory_space<vmem>>, vector<1x32xf32>
    %39 = vector.broadcast %38 : vector<1x32xf32> to vector<128x32xf32>
    %40 = arith.addf %37, %39 : vector<128x32xf32>
    %41 = vector.shape_cast %32 : vector<16x9x128xf32> to vector<144x128xf32>
    %42 = vector.extract_strided_slice %41 {offsets = [0, 0], sizes = [144, 16], strides = [1, 1]} : vector<144x128xf32> to vector<144x16xf32>
    %43 = arith.truncf %42 : vector<144x16xf32> to vector<144x16xbf16>
    %c0_23 = arith.constant 0 : index
    %c0_24 = arith.constant 0 : index
    %44 = vector.load %arg7[%c0_23, %c0_24] : memref<16x64xbf16, #tpu.memory_space<vmem>>, vector<16x64xbf16>
    %cst_25 = arith.constant dense<0.000000e+00> : vector<144x64xf32>
    %45 = tpu.matmul %43, %44, %cst_25 {dimension_numbers = #tpu.dot_dimension_numbers<[1], [0], [0], [1], [0, 0, 1, 1], [], []>} : vector<144x16xbf16>, vector<16x64xbf16>, vector<144x64xf32> -> vector<144x64xf32>
    %c0_26 = arith.constant 0 : index
    %c0_27 = arith.constant 0 : index
    %46 = vector.load %arg8[%c0_26, %c0_27] : memref<1x64xf32, #tpu.memory_space<vmem>>, vector<1x64xf32>
    %47 = vector.broadcast %46 : vector<1x64xf32> to vector<144x64xf32>
    %48 = arith.addf %45, %47 : vector<144x64xf32>
    %49 = vector.shape_cast %48 : vector<144x64xf32> to vector<16x9x64xf32>
    %cst_28 = arith.constant 0.000000e+00 : f32
    %50 = vector.broadcast %cst_28 : f32 to vector<16x119x64xf32>
    %51 = tpu.concatenate %49, %50 in 1 : vector<16x9x64xf32>, vector<16x119x64xf32> -> vector<16x128x64xf32>
    %52 = vector.shape_cast %40 : vector<128x32xf32> to vector<16x8x32xf32>
    %53 = vector.extract_strided_slice %51 {offsets = [0, 0, 0], sizes = [16, 128, 32], strides = [1, 1, 1]} : vector<16x128x64xf32> to vector<16x128x32xf32>
    %54 = vector.extract_strided_slice %51 {offsets = [0, 0, 32], sizes = [16, 128, 32], strides = [1, 1, 1]} : vector<16x128x64xf32> to vector<16x128x32xf32>
    %cst_29 = arith.constant 0.000000e+00 : f32
    %55 = vector.broadcast %cst_29 : f32 to vector<128x1xf32>
    %56 = arith.cmpf ogt, %6, %55 : vector<128x1xf32>
    %cst_30 = arith.constant -1.000000e+30 : f32
    %57 = vector.broadcast %cst_30 : f32 to vector<128x1xf32>
    %58 = arith.select %56, %17, %57 : vector<128x1xi1>, vector<128x1xf32>
    %59 = vector.shape_cast %58 : vector<128x1xf32> to vector<16x8x1xf32>
    %cst_31 = arith.constant 0.000000e+00 : f32
    %60 = vector.broadcast %cst_31 : f32 to vector<16x1x1xf32>
    %cst_32 = arith.constant -1.000000e+30 : f32
    %61 = vector.broadcast %cst_32 : f32 to vector<16x119x1xf32>
    %62 = tpu.concatenate %60, %59, %61 in 1 : vector<16x1x1xf32>, vector<16x8x1xf32>, vector<16x119x1xf32> -> vector<16x128x1xf32>
    %63 = vector.shape_cast %62 : vector<16x128x1xf32> to vector<16x1x128xf32>
    %64 = vector.extract_strided_slice %52 {offsets = [0, 0, 0], sizes = [16, 8, 8], strides = [1, 1, 1]} : vector<16x8x32xf32> to vector<16x8x8xf32>
    %cst_33 = arith.constant 0.353553385 : f32
    %65 = vector.broadcast %cst_33 : f32 to vector<16x8x8xf32>
    %66 = arith.mulf %64, %65 : vector<16x8x8xf32>
    %67 = arith.truncf %66 : vector<16x8x8xf32> to vector<16x8x8xbf16>
    %68 = vector.extract_strided_slice %53 {offsets = [0, 0, 0], sizes = [16, 128, 8], strides = [1, 1, 1]} : vector<16x128x32xf32> to vector<16x128x8xf32>
    %69 = arith.truncf %68 : vector<16x128x8xf32> to vector<16x128x8xbf16>
    %70 = vector.extract_strided_slice %54 {offsets = [0, 0, 0], sizes = [16, 128, 8], strides = [1, 1, 1]} : vector<16x128x32xf32> to vector<16x128x8xf32>
    %71 = arith.truncf %70 : vector<16x128x8xf32> to vector<16x128x8xbf16>
    "tpu.trace_start"() <{level = 10 : i32, message = "bqd,bkd->bqk"}> : () -> ()
    %cst_34 = arith.constant dense<0.000000e+00> : vector<16x8x128xf32>
    %72 = tpu.matmul %67, %69, %cst_34 {dimension_numbers = #tpu.dot_dimension_numbers<[2], [2], [1], [1], [0, 0, 0, 1, 1, 1], [0], [0]>} : vector<16x8x8xbf16>, vector<16x128x8xbf16>, vector<16x8x128xf32> -> vector<16x8x128xf32>
    "tpu.trace_stop"() : () -> ()
    %73 = vector.broadcast %63 : vector<16x1x128xf32> to vector<16x8x128xf32>
    %74 = arith.addf %72, %73 : vector<16x8x128xf32>
    %cst_35 = arith.constant dense<0xFF800000> : vector<16x8xf32>
    %75 = vector.multi_reduction <maximumf>, %74, %cst_35 [2] : vector<16x8x128xf32> to vector<16x8xf32>
    %76 = vector.shape_cast %75 : vector<16x8xf32> to vector<16x8x1xf32>
    %77 = vector.broadcast %76 : vector<16x8x1xf32> to vector<16x8x128xf32>
    %78 = arith.subf %74, %77 : vector<16x8x128xf32>
    %79 = math.exp %78 : vector<16x8x128xf32>
    %cst_36 = arith.constant dense<0.000000e+00> : vector<16x8xf32>
    %80 = vector.multi_reduction <add>, %79, %cst_36 [2] : vector<16x8x128xf32> to vector<16x8xf32>
    %81 = vector.shape_cast %80 : vector<16x8xf32> to vector<16x8x1xf32>
    %cst_37 = arith.constant 1.000000e+00 : f32
    %82 = vector.broadcast %cst_37 : f32 to vector<16x8x1xf32>
    %83 = arith.divf %82, %81 : vector<16x8x1xf32>
    %84 = vector.broadcast %83 : vector<16x8x1xf32> to vector<16x8x128xf32>
    %85 = arith.mulf %79, %84 : vector<16x8x128xf32>
    %cst_38 = arith.constant 2.500000e-01 : f32
    %86 = vector.broadcast %cst_38 : f32 to vector<16x8x128xf32>
    %87 = arith.mulf %85, %86 : vector<16x8x128xf32>
    %c0_39 = arith.constant 0 : index
    %c0_40 = arith.constant 0 : index
    %c0_41 = arith.constant 0 : index
    %88 = vector.load %arg20[%c0_39, %c0_40, %c0_41] : memref<16x8x128xf32, #tpu.memory_space<vmem>>, vector<16x8x128xf32>
    tpu.vector_store %arg20[%c0_39, %c0_40, %c0_41], %87 {strides = array<i32>} : memref<16x8x128xf32, #tpu.memory_space<vmem>>, vector<16x8x128xf32>,
    %89 = arith.truncf %85 : vector<16x8x128xf32> to vector<16x8x128xbf16>
    "tpu.trace_start"() <{level = 10 : i32, message = "bqk,bkd->bqd"}> : () -> ()
    %cst_42 = arith.constant dense<0.000000e+00> : vector<16x8x8xf32>
    %90 = tpu.matmul %89, %71, %cst_42 {dimension_numbers = #tpu.dot_dimension_numbers<[2], [1], [1], [2], [0, 0, 0, 1, 1, 2], [0], [0]>} : vector<16x8x128xbf16>, vector<16x128x8xbf16>, vector<16x8x8xf32> -> vector<16x8x8xf32>
    "tpu.trace_stop"() : () -> ()
    %91 = vector.extract_strided_slice %52 {offsets = [0, 0, 8], sizes = [16, 8, 8], strides = [1, 1, 1]} : vector<16x8x32xf32> to vector<16x8x8xf32>
    %cst_43 = arith.constant 0.353553385 : f32
    %92 = vector.broadcast %cst_43 : f32 to vector<16x8x8xf32>
    %93 = arith.mulf %91, %92 : vector<16x8x8xf32>
    %94 = arith.truncf %93 : vector<16x8x8xf32> to vector<16x8x8xbf16>
    %95 = vector.extract_strided_slice %53 {offsets = [0, 0, 8], sizes = [16, 128, 8], strides = [1, 1, 1]} : vector<16x128x32xf32> to vector<16x128x8xf32>
    %96 = arith.truncf %95 : vector<16x128x8xf32> to vector<16x128x8xbf16>
    %97 = vector.extract_strided_slice %54 {offsets = [0, 0, 8], sizes = [16, 128, 8], strides = [1, 1, 1]} : vector<16x128x32xf32> to vector<16x128x8xf32>
    %98 = arith.truncf %97 : vector<16x128x8xf32> to vector<16x128x8xbf16>
    "tpu.trace_start"() <{level = 10 : i32, message = "bqd,bkd->bqk"}> : () -> ()
    %cst_44 = arith.constant dense<0.000000e+00> : vector<16x8x128xf32>
    %99 = tpu.matmul %94, %96, %cst_44 {dimension_numbers = #tpu.dot_dimension_numbers<[2], [2], [1], [1], [0, 0, 0, 1, 1, 1], [0], [0]>} : vector<16x8x8xbf16>, vector<16x128x8xbf16>, vector<16x8x128xf32> -> vector<16x8x128xf32>
    "tpu.trace_stop"() : () -> ()
    %100 = vector.broadcast %63 : vector<16x1x128xf32> to vector<16x8x128xf32>
    %101 = arith.addf %99, %100 : vector<16x8x128xf32>
    %cst_45 = arith.constant dense<0xFF800000> : vector<16x8xf32>
    %102 = vector.multi_reduction <maximumf>, %101, %cst_45 [2] : vector<16x8x128xf32> to vector<16x8xf32>
    %103 = vector.shape_cast %102 : vector<16x8xf32> to vector<16x8x1xf32>
    %104 = vector.broadcast %103 : vector<16x8x1xf32> to vector<16x8x128xf32>
    %105 = arith.subf %101, %104 : vector<16x8x128xf32>
    %106 = math.exp %105 : vector<16x8x128xf32>
    %cst_46 = arith.constant dense<0.000000e+00> : vector<16x8xf32>
    %107 = vector.multi_reduction <add>, %106, %cst_46 [2] : vector<16x8x128xf32> to vector<16x8xf32>
    %108 = vector.shape_cast %107 : vector<16x8xf32> to vector<16x8x1xf32>
    %cst_47 = arith.constant 1.000000e+00 : f32
    %109 = vector.broadcast %cst_47 : f32 to vector<16x8x1xf32>
    %110 = arith.divf %109, %108 : vector<16x8x1xf32>
    %111 = vector.broadcast %110 : vector<16x8x1xf32> to vector<16x8x128xf32>
    %112 = arith.mulf %106, %111 : vector<16x8x128xf32>
    %c0_48 = arith.constant 0 : index
    %c0_49 = arith.constant 0 : index
    %c0_50 = arith.constant 0 : index
    %113 = vector.load %arg20[%c0_48, %c0_49, %c0_50] : memref<16x8x128xf32, #tpu.memory_space<vmem>>, vector<16x8x128xf32>
    %cst_51 = arith.constant 2.500000e-01 : f32
    %114 = vector.broadcast %cst_51 : f32 to vector<16x8x128xf32>
    %115 = arith.mulf %112, %114 : vector<16x8x128xf32>
    %116 = arith.addf %113, %115 : vector<16x8x128xf32>
    %c0_52 = arith.constant 0 : index
    %c0_53 = arith.constant 0 : index
    %c0_54 = arith.constant 0 : index
    %117 = vector.load %arg20[%c0_52, %c0_53, %c0_54] : memref<16x8x128xf32, #tpu.memory_space<vmem>>, vector<16x8x128xf32>
    tpu.vector_store %arg20[%c0_52, %c0_53, %c0_54], %116 {strides = array<i32>} : memref<16x8x128xf32, #tpu.memory_space<vmem>>, vector<16x8x128xf32>,
    %118 = arith.truncf %112 : vector<16x8x128xf32> to vector<16x8x128xbf16>
    "tpu.trace_start"() <{level = 10 : i32, message = "bqk,bkd->bqd"}> : () -> ()
    %cst_55 = arith.constant dense<0.000000e+00> : vector<16x8x8xf32>
    %119 = tpu.matmul %118, %98, %cst_55 {dimension_numbers = #tpu.dot_dimension_numbers<[2], [1], [1], [2], [0, 0, 0, 1, 1, 2], [0], [0]>} : vector<16x8x128xbf16>, vector<16x128x8xbf16>, vector<16x8x8xf32> -> vector<16x8x8xf32>
    "tpu.trace_stop"() : () -> ()
    %120 = vector.extract_strided_slice %52 {offsets = [0, 0, 16], sizes = [16, 8, 8], strides = [1, 1, 1]} : vector<16x8x32xf32> to vector<16x8x8xf32>
    %cst_56 = arith.constant 0.353553385 : f32
    %121 = vector.broadcast %cst_56 : f32 to vector<16x8x8xf32>
    %122 = arith.mulf %120, %121 : vector<16x8x8xf32>
    %123 = arith.truncf %122 : vector<16x8x8xf32> to vector<16x8x8xbf16>
    %124 = vector.extract_strided_slice %53 {offsets = [0, 0, 16], sizes = [16, 128, 8], strides = [1, 1, 1]} : vector<16x128x32xf32> to vector<16x128x8xf32>
    %125 = arith.truncf %124 : vector<16x128x8xf32> to vector<16x128x8xbf16>
    %126 = vector.extract_strided_slice %54 {offsets = [0, 0, 16], sizes = [16, 128, 8], strides = [1, 1, 1]} : vector<16x128x32xf32> to vector<16x128x8xf32>
    %127 = arith.truncf %126 : vector<16x128x8xf32> to vector<16x128x8xbf16>
    "tpu.trace_start"() <{level = 10 : i32, message = "bqd,bkd->bqk"}> : () -> ()
    %cst_57 = arith.constant dense<0.000000e+00> : vector<16x8x128xf32>
    %128 = tpu.matmul %123, %125, %cst_57 {dimension_numbers = #tpu.dot_dimension_numbers<[2], [2], [1], [1], [0, 0, 0, 1, 1, 1], [0], [0]>} : vector<16x8x8xbf16>, vector<16x128x8xbf16>, vector<16x8x128xf32> -> vector<16x8x128xf32>
    "tpu.trace_stop"() : () -> ()
    %129 = vector.broadcast %63 : vector<16x1x128xf32> to vector<16x8x128xf32>
    %130 = arith.addf %128, %129 : vector<16x8x128xf32>
    %cst_58 = arith.constant dense<0xFF800000> : vector<16x8xf32>
    %131 = vector.multi_reduction <maximumf>, %130, %cst_58 [2] : vector<16x8x128xf32> to vector<16x8xf32>
    %132 = vector.shape_cast %131 : vector<16x8xf32> to vector<16x8x1xf32>
    %133 = vector.broadcast %132 : vector<16x8x1xf32> to vector<16x8x128xf32>
    %134 = arith.subf %130, %133 : vector<16x8x128xf32>
    %135 = math.exp %134 : vector<16x8x128xf32>
    %cst_59 = arith.constant dense<0.000000e+00> : vector<16x8xf32>
    %136 = vector.multi_reduction <add>, %135, %cst_59 [2] : vector<16x8x128xf32> to vector<16x8xf32>
    %137 = vector.shape_cast %136 : vector<16x8xf32> to vector<16x8x1xf32>
    %cst_60 = arith.constant 1.000000e+00 : f32
    %138 = vector.broadcast %cst_60 : f32 to vector<16x8x1xf32>
    %139 = arith.divf %138, %137 : vector<16x8x1xf32>
    %140 = vector.broadcast %139 : vector<16x8x1xf32> to vector<16x8x128xf32>
    %141 = arith.mulf %135, %140 : vector<16x8x128xf32>
    %c0_61 = arith.constant 0 : index
    %c0_62 = arith.constant 0 : index
    %c0_63 = arith.constant 0 : index
    %142 = vector.load %arg20[%c0_61, %c0_62, %c0_63] : memref<16x8x128xf32, #tpu.memory_space<vmem>>, vector<16x8x128xf32>
    %cst_64 = arith.constant 2.500000e-01 : f32
    %143 = vector.broadcast %cst_64 : f32 to vector<16x8x128xf32>
    %144 = arith.mulf %141, %143 : vector<16x8x128xf32>
    %145 = arith.addf %142, %144 : vector<16x8x128xf32>
    %c0_65 = arith.constant 0 : index
    %c0_66 = arith.constant 0 : index
    %c0_67 = arith.constant 0 : index
    %146 = vector.load %arg20[%c0_65, %c0_66, %c0_67] : memref<16x8x128xf32, #tpu.memory_space<vmem>>, vector<16x8x128xf32>
    tpu.vector_store %arg20[%c0_65, %c0_66, %c0_67], %145 {strides = array<i32>} : memref<16x8x128xf32, #tpu.memory_space<vmem>>, vector<16x8x128xf32>,
    %147 = arith.truncf %141 : vector<16x8x128xf32> to vector<16x8x128xbf16>
    "tpu.trace_start"() <{level = 10 : i32, message = "bqk,bkd->bqd"}> : () -> ()
    %cst_68 = arith.constant dense<0.000000e+00> : vector<16x8x8xf32>
    %148 = tpu.matmul %147, %127, %cst_68 {dimension_numbers = #tpu.dot_dimension_numbers<[2], [1], [1], [2], [0, 0, 0, 1, 1, 2], [0], [0]>} : vector<16x8x128xbf16>, vector<16x128x8xbf16>, vector<16x8x8xf32> -> vector<16x8x8xf32>
    "tpu.trace_stop"() : () -> ()
    %149 = vector.extract_strided_slice %52 {offsets = [0, 0, 24], sizes = [16, 8, 8], strides = [1, 1, 1]} : vector<16x8x32xf32> to vector<16x8x8xf32>
    %cst_69 = arith.constant 0.353553385 : f32
    %150 = vector.broadcast %cst_69 : f32 to vector<16x8x8xf32>
    %151 = arith.mulf %149, %150 : vector<16x8x8xf32>
    %152 = arith.truncf %151 : vector<16x8x8xf32> to vector<16x8x8xbf16>
    %153 = vector.extract_strided_slice %53 {offsets = [0, 0, 24], sizes = [16, 128, 8], strides = [1, 1, 1]} : vector<16x128x32xf32> to vector<16x128x8xf32>
    %154 = arith.truncf %153 : vector<16x128x8xf32> to vector<16x128x8xbf16>
    %155 = vector.extract_strided_slice %54 {offsets = [0, 0, 24], sizes = [16, 128, 8], strides = [1, 1, 1]} : vector<16x128x32xf32> to vector<16x128x8xf32>
    %156 = arith.truncf %155 : vector<16x128x8xf32> to vector<16x128x8xbf16>
    "tpu.trace_start"() <{level = 10 : i32, message = "bqd,bkd->bqk"}> : () -> ()
    %cst_70 = arith.constant dense<0.000000e+00> : vector<16x8x128xf32>
    %157 = tpu.matmul %152, %154, %cst_70 {dimension_numbers = #tpu.dot_dimension_numbers<[2], [2], [1], [1], [0, 0, 0, 1, 1, 1], [0], [0]>} : vector<16x8x8xbf16>, vector<16x128x8xbf16>, vector<16x8x128xf32> -> vector<16x8x128xf32>
    "tpu.trace_stop"() : () -> ()
    %158 = vector.broadcast %63 : vector<16x1x128xf32> to vector<16x8x128xf32>
    %159 = arith.addf %157, %158 : vector<16x8x128xf32>
    %cst_71 = arith.constant dense<0xFF800000> : vector<16x8xf32>
    %160 = vector.multi_reduction <maximumf>, %159, %cst_71 [2] : vector<16x8x128xf32> to vector<16x8xf32>
    %161 = vector.shape_cast %160 : vector<16x8xf32> to vector<16x8x1xf32>
    %162 = vector.broadcast %161 : vector<16x8x1xf32> to vector<16x8x128xf32>
    %163 = arith.subf %159, %162 : vector<16x8x128xf32>
    %164 = math.exp %163 : vector<16x8x128xf32>
    %cst_72 = arith.constant dense<0.000000e+00> : vector<16x8xf32>
    %165 = vector.multi_reduction <add>, %164, %cst_72 [2] : vector<16x8x128xf32> to vector<16x8xf32>
    %166 = vector.shape_cast %165 : vector<16x8xf32> to vector<16x8x1xf32>
    %cst_73 = arith.constant 1.000000e+00 : f32
    %167 = vector.broadcast %cst_73 : f32 to vector<16x8x1xf32>
    %168 = arith.divf %167, %166 : vector<16x8x1xf32>
    %169 = vector.broadcast %168 : vector<16x8x1xf32> to vector<16x8x128xf32>
    %170 = arith.mulf %164, %169 : vector<16x8x128xf32>
    %c0_74 = arith.constant 0 : index
    %c0_75 = arith.constant 0 : index
    %c0_76 = arith.constant 0 : index
    %171 = vector.load %arg20[%c0_74, %c0_75, %c0_76] : memref<16x8x128xf32, #tpu.memory_space<vmem>>, vector<16x8x128xf32>
    %cst_77 = arith.constant 2.500000e-01 : f32
    %172 = vector.broadcast %cst_77 : f32 to vector<16x8x128xf32>
    %173 = arith.mulf %170, %172 : vector<16x8x128xf32>
    %174 = arith.addf %171, %173 : vector<16x8x128xf32>
    %c0_78 = arith.constant 0 : index
    %c0_79 = arith.constant 0 : index
    %c0_80 = arith.constant 0 : index
    %175 = vector.load %arg20[%c0_78, %c0_79, %c0_80] : memref<16x8x128xf32, #tpu.memory_space<vmem>>, vector<16x8x128xf32>
    tpu.vector_store %arg20[%c0_78, %c0_79, %c0_80], %174 {strides = array<i32>} : memref<16x8x128xf32, #tpu.memory_space<vmem>>, vector<16x8x128xf32>,
    %176 = arith.truncf %170 : vector<16x8x128xf32> to vector<16x8x128xbf16>
    "tpu.trace_start"() <{level = 10 : i32, message = "bqk,bkd->bqd"}> : () -> ()
    %cst_81 = arith.constant dense<0.000000e+00> : vector<16x8x8xf32>
    %177 = tpu.matmul %176, %156, %cst_81 {dimension_numbers = #tpu.dot_dimension_numbers<[2], [1], [1], [2], [0, 0, 0, 1, 1, 2], [0], [0]>} : vector<16x8x128xbf16>, vector<16x128x8xbf16>, vector<16x8x8xf32> -> vector<16x8x8xf32>
    "tpu.trace_stop"() : () -> ()
    %178 = tpu.concatenate %90, %119, %148, %177 in 2 : vector<16x8x8xf32>, vector<16x8x8xf32>, vector<16x8x8xf32>, vector<16x8x8xf32> -> vector<16x8x32xf32>
    %179 = vector.shape_cast %178 : vector<16x8x32xf32> to vector<128x32xf32>
    %180 = arith.truncf %179 : vector<128x32xf32> to vector<128x32xbf16>
    %c0_82 = arith.constant 0 : index
    %c0_83 = arith.constant 0 : index
    %181 = vector.load %arg9[%c0_82, %c0_83] : memref<32x32xbf16, #tpu.memory_space<vmem>>, vector<32x32xbf16>
    %cst_84 = arith.constant dense<0.000000e+00> : vector<128x32xf32>
    %182 = tpu.matmul %180, %181, %cst_84 {dimension_numbers = #tpu.dot_dimension_numbers<[1], [0], [0], [1], [0, 0, 1, 1], [], []>} : vector<128x32xbf16>, vector<32x32xbf16>, vector<128x32xf32> -> vector<128x32xf32>
    %c0_85 = arith.constant 0 : index
    %c0_86 = arith.constant 0 : index
    %183 = vector.load %arg10[%c0_85, %c0_86] : memref<1x32xf32, #tpu.memory_space<vmem>>, vector<1x32xf32>
    %184 = vector.broadcast %183 : vector<1x32xf32> to vector<128x32xf32>
    %185 = arith.addf %182, %184 : vector<128x32xf32>
    %186 = arith.addf %2, %185 : vector<128x32xf32>
    %cst_87 = arith.constant dense<0.000000e+00> : vector<128xf32>
    %187 = vector.multi_reduction <add>, %186, %cst_87 [1] : vector<128x32xf32> to vector<128xf32>
    %188 = vector.shape_cast %187 : vector<128xf32> to vector<128x1xf32>
    %cst_88 = arith.constant 3.200000e+01 : f32
    %189 = vector.broadcast %cst_88 : f32 to vector<128x1xf32>
    %190 = arith.divf %188, %189 : vector<128x1xf32>
    %191 = vector.broadcast %190 : vector<128x1xf32> to vector<128x32xf32>
    %192 = arith.subf %186, %191 : vector<128x32xf32>
    %193 = arith.mulf %192, %192 : vector<128x32xf32>
    %cst_89 = arith.constant dense<0.000000e+00> : vector<128xf32>
    %194 = vector.multi_reduction <add>, %193, %cst_89 [1] : vector<128x32xf32> to vector<128xf32>
    %195 = vector.shape_cast %194 : vector<128xf32> to vector<128x1xf32>
    %cst_90 = arith.constant 3.200000e+01 : f32
    %196 = vector.broadcast %cst_90 : f32 to vector<128x1xf32>
    %197 = arith.divf %195, %196 : vector<128x1xf32>
    %cst_91 = arith.constant 9.99999974E-6 : f32
    %198 = vector.broadcast %cst_91 : f32 to vector<128x1xf32>
    %199 = arith.addf %197, %198 : vector<128x1xf32>
    %200 = math.rsqrt %199 : vector<128x1xf32>
    %201 = vector.broadcast %200 : vector<128x1xf32> to vector<128x32xf32>
    %202 = arith.mulf %192, %201 : vector<128x32xf32>
    %c0_92 = arith.constant 0 : index
    %c0_93 = arith.constant 0 : index
    %203 = vector.load %arg15[%c0_92, %c0_93] : memref<1x32xf32, #tpu.memory_space<vmem>>, vector<1x32xf32>
    %204 = vector.broadcast %203 : vector<1x32xf32> to vector<128x32xf32>
    %205 = arith.mulf %202, %204 : vector<128x32xf32>
    %c0_94 = arith.constant 0 : index
    %c0_95 = arith.constant 0 : index
    %206 = vector.load %arg16[%c0_94, %c0_95] : memref<1x32xf32, #tpu.memory_space<vmem>>, vector<1x32xf32>
    %207 = vector.broadcast %206 : vector<1x32xf32> to vector<128x32xf32>
    %208 = arith.addf %205, %207 : vector<128x32xf32>
    %209 = arith.truncf %208 : vector<128x32xf32> to vector<128x32xbf16>
    %c0_96 = arith.constant 0 : index
    %c0_97 = arith.constant 0 : index
    %210 = vector.load %arg11[%c0_96, %c0_97] : memref<32x64xbf16, #tpu.memory_space<vmem>>, vector<32x64xbf16>
    %cst_98 = arith.constant dense<0.000000e+00> : vector<128x64xf32>
    %211 = tpu.matmul %209, %210, %cst_98 {dimension_numbers = #tpu.dot_dimension_numbers<[1], [0], [0], [1], [0, 0, 1, 1], [], []>} : vector<128x32xbf16>, vector<32x64xbf16>, vector<128x64xf32> -> vector<128x64xf32>
    %c0_99 = arith.constant 0 : index
    %c0_100 = arith.constant 0 : index
    %212 = vector.load %arg12[%c0_99, %c0_100] : memref<1x64xf32, #tpu.memory_space<vmem>>, vector<1x64xf32>
    %213 = vector.broadcast %212 : vector<1x64xf32> to vector<128x64xf32>
    %214 = arith.addf %211, %213 : vector<128x64xf32>
    %cst_101 = arith.constant 0.000000e+00 : f32
    %215 = vector.broadcast %cst_101 : f32 to vector<128x64xf32>
    %216 = arith.maximumf %214, %215 : vector<128x64xf32>
    %217 = arith.truncf %216 : vector<128x64xf32> to vector<128x64xbf16>
    %c0_102 = arith.constant 0 : index
    %c0_103 = arith.constant 0 : index
    %218 = vector.load %arg13[%c0_102, %c0_103] : memref<64x32xbf16, #tpu.memory_space<vmem>>, vector<64x32xbf16>
    %cst_104 = arith.constant dense<0.000000e+00> : vector<128x32xf32>
    %219 = tpu.matmul %217, %218, %cst_104 {dimension_numbers = #tpu.dot_dimension_numbers<[1], [0], [0], [1], [0, 0, 1, 1], [], []>} : vector<128x64xbf16>, vector<64x32xbf16>, vector<128x32xf32> -> vector<128x32xf32>
    %c0_105 = arith.constant 0 : index
    %c0_106 = arith.constant 0 : index
    %220 = vector.load %arg14[%c0_105, %c0_106] : memref<1x32xf32, #tpu.memory_space<vmem>>, vector<1x32xf32>
    %221 = vector.broadcast %220 : vector<1x32xf32> to vector<128x32xf32>
    %222 = arith.addf %219, %221 : vector<128x32xf32>
    %223 = arith.addf %208, %222 : vector<128x32xf32>
    %cst_107 = arith.constant dense<0.000000e+00> : vector<128xf32>
    %224 = vector.multi_reduction <add>, %223, %cst_107 [1] : vector<128x32xf32> to vector<128xf32>
    %225 = vector.shape_cast %224 : vector<128xf32> to vector<128x1xf32>
    %cst_108 = arith.constant 3.200000e+01 : f32
    %226 = vector.broadcast %cst_108 : f32 to vector<128x1xf32>
    %227 = arith.divf %225, %226 : vector<128x1xf32>
    %228 = vector.broadcast %227 : vector<128x1xf32> to vector<128x32xf32>
    %229 = arith.subf %223, %228 : vector<128x32xf32>
    %230 = arith.mulf %229, %229 : vector<128x32xf32>
    %cst_109 = arith.constant dense<0.000000e+00> : vector<128xf32>
    %231 = vector.multi_reduction <add>, %230, %cst_109 [1] : vector<128x32xf32> to vector<128xf32>
    %232 = vector.shape_cast %231 : vector<128xf32> to vector<128x1xf32>
    %cst_110 = arith.constant 3.200000e+01 : f32
    %233 = vector.broadcast %cst_110 : f32 to vector<128x1xf32>
    %234 = arith.divf %232, %233 : vector<128x1xf32>
    %cst_111 = arith.constant 9.99999974E-6 : f32
    %235 = vector.broadcast %cst_111 : f32 to vector<128x1xf32>
    %236 = arith.addf %234, %235 : vector<128x1xf32>
    %237 = math.rsqrt %236 : vector<128x1xf32>
    %238 = vector.broadcast %237 : vector<128x1xf32> to vector<128x32xf32>
    %239 = arith.mulf %229, %238 : vector<128x32xf32>
    %c0_112 = arith.constant 0 : index
    %c0_113 = arith.constant 0 : index
    %240 = vector.load %arg17[%c0_112, %c0_113] : memref<1x32xf32, #tpu.memory_space<vmem>>, vector<1x32xf32>
    %241 = vector.broadcast %240 : vector<1x32xf32> to vector<128x32xf32>
    %242 = arith.mulf %239, %241 : vector<128x32xf32>
    %c0_114 = arith.constant 0 : index
    %c0_115 = arith.constant 0 : index
    %243 = vector.load %arg18[%c0_114, %c0_115] : memref<1x32xf32, #tpu.memory_space<vmem>>, vector<1x32xf32>
    %244 = vector.broadcast %243 : vector<1x32xf32> to vector<128x32xf32>
    %245 = arith.addf %242, %244 : vector<128x32xf32>
    %246 = vector.shape_cast %245 : vector<128x32xf32> to vector<16x8x32xf32>
    %247 = tpu.transpose %246, [1, 0, 2] : vector<16x8x32xf32> -> vector<8x16x32xf32>
    %c0_116 = arith.constant 0 : index
    %c0_117 = arith.constant 0 : index
    %c0_118 = arith.constant 0 : index
    %248 = vector.load %arg19[%c0_116, %c0_117, %c0_118] : memref<8x16x32xf32, #tpu.memory_space<vmem>>, vector<8x16x32xf32>
    tpu.vector_store %arg19[%c0_116, %c0_117, %c0_118], %247 {strides = array<i32>} : memref<8x16x32xf32, #tpu.memory_space<vmem>>, vector<8x16x32xf32>,
    return
  }
  func.func @transform_0(%arg0: i32) -> (i32, i32, i32) {
    %c0_i32 = arith.constant 0 : i32
    %c0_i32_0 = arith.constant 0 : i32
    %c0_i32_1 = arith.constant 0 : i32
    return %c0_i32, %arg0, %c0_i32_0 : i32, i32, i32
  }
  func.func @transform_1(%arg0: i32) -> (i32, i32, i32) {
    %c0_i32 = arith.constant 0 : i32
    %c0_i32_0 = arith.constant 0 : i32
    %c0_i32_1 = arith.constant 0 : i32
    return %arg0, %c0_i32, %c0_i32_0 : i32, i32, i32
  }
  func.func @transform_2(%arg0: i32) -> (i32, i32) {
    %c0_i32 = arith.constant 0 : i32
    %c0_i32_0 = arith.constant 0 : i32
    %c0_i32_1 = arith.constant 0 : i32
    return %c0_i32, %c0_i32_0 : i32, i32
  }
  func.func @transform_3(%arg0: i32) -> (i32, i32) {
    %c0_i32 = arith.constant 0 : i32
    %c0_i32_0 = arith.constant 0 : i32
    %c0_i32_1 = arith.constant 0 : i32
    return %c0_i32, %c0_i32_0 : i32, i32
  }
  func.func @transform_4(%arg0: i32) -> (i32, i32) {
    %c0_i32 = arith.constant 0 : i32
    %c0_i32_0 = arith.constant 0 : i32
    %c0_i32_1 = arith.constant 0 : i32
    return %c0_i32, %c0_i32_0 : i32, i32
  }
  func.func @transform_5(%arg0: i32) -> (i32, i32) {
    %c0_i32 = arith.constant 0 : i32
    %c0_i32_0 = arith.constant 0 : i32
    %c0_i32_1 = arith.constant 0 : i32
    return %c0_i32, %c0_i32_0 : i32, i32
  }
  func.func @transform_6(%arg0: i32) -> (i32, i32) {
    %c0_i32 = arith.constant 0 : i32
    %c0_i32_0 = arith.constant 0 : i32
    %c0_i32_1 = arith.constant 0 : i32
    return %c0_i32, %c0_i32_0 : i32, i32
  }
  func.func @transform_7(%arg0: i32) -> (i32, i32) {
    %c0_i32 = arith.constant 0 : i32
    %c0_i32_0 = arith.constant 0 : i32
    %c0_i32_1 = arith.constant 0 : i32
    return %c0_i32, %c0_i32_0 : i32, i32
  }
  func.func @transform_8(%arg0: i32) -> (i32, i32) {
    %c0_i32 = arith.constant 0 : i32
    %c0_i32_0 = arith.constant 0 : i32
    %c0_i32_1 = arith.constant 0 : i32
    return %c0_i32, %c0_i32_0 : i32, i32
  }
  func.func @transform_9(%arg0: i32) -> (i32, i32) {
    %c0_i32 = arith.constant 0 : i32
    %c0_i32_0 = arith.constant 0 : i32
    %c0_i32_1 = arith.constant 0 : i32
    return %c0_i32, %c0_i32_0 : i32, i32
  }
  func.func @transform_10(%arg0: i32) -> (i32, i32) {
    %c0_i32 = arith.constant 0 : i32
    %c0_i32_0 = arith.constant 0 : i32
    %c0_i32_1 = arith.constant 0 : i32
    return %c0_i32, %c0_i32_0 : i32, i32
  }
  func.func @transform_11(%arg0: i32) -> (i32, i32) {
    %c0_i32 = arith.constant 0 : i32
    %c0_i32_0 = arith.constant 0 : i32
    %c0_i32_1 = arith.constant 0 : i32
    return %c0_i32, %c0_i32_0 : i32, i32
  }
  func.func @transform_12(%arg0: i32) -> (i32, i32) {
    %c0_i32 = arith.constant 0 : i32
    %c0_i32_0 = arith.constant 0 : i32
    %c0_i32_1 = arith.constant 0 : i32
    return %c0_i32, %c0_i32_0 : i32, i32
  }
  func.func @transform_13(%arg0: i32) -> (i32, i32) {
    %c0_i32 = arith.constant 0 : i32
    %c0_i32_0 = arith.constant 0 : i32
    %c0_i32_1 = arith.constant 0 : i32
    return %c0_i32, %c0_i32_0 : i32, i32
  }
  func.func @transform_14(%arg0: i32) -> (i32, i32) {
    %c0_i32 = arith.constant 0 : i32
    %c0_i32_0 = arith.constant 0 : i32
    %c0_i32_1 = arith.constant 0 : i32
    return %c0_i32, %c0_i32_0 : i32, i32
  }
  func.func @transform_15(%arg0: i32) -> (i32, i32) {
    %c0_i32 = arith.constant 0 : i32
    %c0_i32_0 = arith.constant 0 : i32
    %c0_i32_1 = arith.constant 0 : i32
    return %c0_i32, %c0_i32_0 : i32, i32
  }
  func.func @transform_16(%arg0: i32) -> (i32, i32) {
    %c0_i32 = arith.constant 0 : i32
    %c0_i32_0 = arith.constant 0 : i32
    %c0_i32_1 = arith.constant 0 : i32
    return %c0_i32, %c0_i32_0 : i32, i32
  }
  func.func @transform_17(%arg0: i32) -> (i32, i32) {
    %c0_i32 = arith.constant 0 : i32
    %c0_i32_0 = arith.constant 0 : i32
    %c0_i32_1 = arith.constant 0 : i32
    return %c0_i32, %c0_i32_0 : i32, i32
  }
  func.func @transform_18(%arg0: i32) -> (i32, i32, i32) {
    %c0_i32 = arith.constant 0 : i32
    %c0_i32_0 = arith.constant 0 : i32
    %c0_i32_1 = arith.constant 0 : i32
    return %c0_i32, %arg0, %c0_i32_0 : i32, i32, i32
  }
  func.func @transform_19(%arg0: i32) -> (i32, i32, i32) {
    %c0_i32 = arith.constant 0 : i32
    %c0_i32_0 = arith.constant 0 : i32
    %c0_i32_1 = arith.constant 0 : i32
    return %arg0, %c0_i32, %c0_i32_0 : i32, i32, i32
  }
  func.func @transform_20(%arg0: i32) -> (i32, i32, i32) {
    %c0_i32 = arith.constant 0 : i32
    %c0_i32_0 = arith.constant 0 : i32
    %c0_i32_1 = arith.constant 0 : i32
    return %c0_i32, %arg0, %c0_i32_0 : i32, i32, i32
  }
}

</mosaic_0001>

<llo_original>
// kernel: tpu_custom_call.1
$region0: #{tpu_custom_call.1}
  #allocation0 [shape = 'u32[]', space=smem, size = 0x4, offset = 0x4, fixed_abs, tag = 'smem constant byte address 0x4 - core index']
  #allocation1 [shape = 'u32[72,128]{1,0:T(1,128)}', space=vmem, size = 0x9000, scoped, tag = 'internal scratch']
  %s0 = inlined_call_operand.vmem [shape: f32[8,16,32], index: 0, kind: input, shape index: {}]
  %s1 = inlined_call_operand.vmem [shape: f32[16,8,1], index: 1, kind: input, shape index: {}]
  %s2 = inlined_call_operand.vmem [shape: bf16[32,128], index: 2, kind: input, shape index: {}]
  %s3 = inlined_call_operand.hbm [shape: f32[1,128], index: 3, kind: input, shape index: {}]
  %s4 = inlined_call_operand.vmem [shape: bf16[32,32], index: 4, kind: input, shape index: {}]
  %s5 = inlined_call_operand.hbm [shape: f32[1,32], index: 5, kind: input, shape index: {}]
  %s6 = inlined_call_operand.hbm [shape: bf16[16,64], index: 6, kind: input, shape index: {}]
  %s7 = inlined_call_operand.hbm [shape: f32[1,64], index: 7, kind: input, shape index: {}]
  %s8 = inlined_call_operand.vmem [shape: bf16[32,32], index: 8, kind: input, shape index: {}]
  %s9 = inlined_call_operand.hbm [shape: f32[1,32], index: 9, kind: input, shape index: {}]
  %s10 = inlined_call_operand.vmem [shape: bf16[32,64], index: 10, kind: input, shape index: {}]
  %s11 = inlined_call_operand.hbm [shape: f32[1,64], index: 11, kind: input, shape index: {}]
  %s12 = inlined_call_operand.vmem [shape: bf16[64,32], index: 12, kind: input, shape index: {}]
  %s13 = inlined_call_operand.vmem [shape: f32[1,32], index: 13, kind: input, shape index: {}]
  %s14 = inlined_call_operand.vmem [shape: f32[1,32], index: 14, kind: input, shape index: {}]
  %s15 = inlined_call_operand.vmem [shape: f32[1,32], index: 15, kind: input, shape index: {}]
  %s16 = inlined_call_operand.vmem [shape: f32[1,32], index: 16, kind: input, shape index: {}]
  %s17 = inlined_call_operand.vmem [shape: f32[1,32], index: 17, kind: input, shape index: {}]
  %s18 = inlined_call_operand.hbm [shape: f32[8,16,32], index: 18, kind: output, shape index: {0}]
  %s19 = inlined_call_operand.hbm [shape: f32[16,8,128], index: 19, kind: output, shape index: {1}]
  %s20 = inlined_call_operand.hbm [shape: f32[9,16,128], index: 20, kind: output, shape index: {2}]
  %21 = xla_tuple %s18, %s19, %s20
  %s22 = sld [smem:[#allocation0]]
  $region122: #{tpu_custom_call.1} parent=0
    _
  %s24 = ssub.s32 1, %s22
  %s25 = scalar_select 0, %s24, %s22
  $region1: #{tpu_custom_call.1} parent=0
    #allocation2 [shape = 'u8[512]{0}', space=vmem, size = 0x400, scoped, tag = 'input window, operand 3, single buffered']
    #allocation3 [shape = 's32[1]{0}', space=sflag, size = 0x4, scoped, tag = 'scoped memory for tpu_custom_call.1']
    #allocation4 [shape = 's32[1]{0}', space=sflag, size = 0x4, scoped, tag = 'scoped memory for tpu_custom_call.1']
    #allocation5 [shape = 'u8[512]{0}', space=vmem, size = 0x400, scoped, tag = 'input window, operand 5, single buffered']
    #allocation6 [shape = 's32[1]{0}', space=sflag, size = 0x4, scoped, tag = 'scoped memory for tpu_custom_call.1']
    #allocation7 [shape = 'u8[4096]{0}', space=vmem, size = 0x1000, scoped, tag = 'input window, operand 6, single buffered']
    #allocation8 [shape = 'u8[512]{0}', space=vmem, size = 0x400, scoped, tag = 'input window, operand 7, single buffered']
    #allocation9 [shape = 's32[1]{0}', space=sflag, size = 0x4, scoped, tag = 'scoped memory for tpu_custom_call.1']
    #allocation10 [shape = 'u8[512]{0}', space=vmem, size = 0x400, scoped, tag = 'input window, operand 9, single buffered']
    #allocation11 [shape = 'u8[512]{0}', space=vmem, size = 0x400, scoped, tag = 'input window, operand 11, single buffered']
    #allocation12 [shape = 's32[1]{0}', space=sflag, size = 0x4, scoped, tag = 'scoped memory for tpu_custom_call.1']
    #allocation13 [shape = 'u8[65536]{0}', space=vmem, size = 0x10000, scoped, tag = 'output window, operand 0, single buffered']
    #allocation14 [shape = 'u8[65536]{0}', space=vmem, size = 0x10000, scoped, tag = 'output window, operand 1, single buffered']
    #allocation15 [shape = 's32[1]{0}', space=sflag, size = 0x4, scoped, tag = 'scoped memory for tpu_custom_call.1']
    #allocation16 [shape = 'u8[73728]{0}', space=vmem, size = 0x12000, scoped, tag = 'output window, operand 2, single buffered']
    %26 = vsyncpa [#allocation3], 0
    %27 = vsyncpa [#allocation6], 0
    %28 = vsyncpa [#allocation9], 0
    %29 = vsyncpa [#allocation12], 0
    %30 = vsyncpa [#allocation4], 0
    %31 = vsyncpa [#allocation15], 0
    // Predicated region
    $region2: #{tpu_custom_call.1} parent=1 // pred_check
      _
    $region3: #{tpu_custom_call.1} parent=1 // pred_check_branch
      %33 = sbr.rel (0) target = $region5
    $region4: #{tpu_custom_call.1} parent=1 // pred_region
      _
    $region5: #{tpu_custom_call.1} parent=1 // pred_fallthru
      _
    // Predicated region
    $region6: #{tpu_custom_call.1} parent=1 // pred_check
      _
    $region7: #{tpu_custom_call.1} parent=1 // pred_check_branch
      %35 = sbr.rel (0) target = $region9
    $region8: #{tpu_custom_call.1} parent=1 // pred_region
      _
    $region9: #{tpu_custom_call.1} parent=1 // pred_fallthru
      _
    // Predicated region
    $region10: #{tpu_custom_call.1} parent=1 // pred_check
      _
    $region11: #{tpu_custom_call.1} parent=1 // pred_check_branch
      %37 = sbr.rel (0) target = $region13
    $region12: #{tpu_custom_call.1} parent=1 // pred_region
      _
    $region13: #{tpu_custom_call.1} parent=1 // pred_fallthru
      _
    // Predicated region
    $region14: #{tpu_custom_call.1} parent=1 // pred_check
      _
    $region15: #{tpu_custom_call.1} parent=1 // pred_check_branch
      %39 = sbr.rel (0) target = $region17
    $region16: #{tpu_custom_call.1} parent=1 // pred_region
      %41 = vsyncadd [#allocation3], 0
      %s43 = sshll.u32 %s3, 4
      %s44 = int_to_ptr.hbm [resolvable:$true] %s43
      %s45 = sshll.u32 [#allocation2], 4
      %s46 = int_to_ptr.vmem [resolvable:$true] %s45
      %48 = dma.hbm_to_vmem [thread:$0]  %s44, 16, %s46, [#allocation3]
    $region17: #{tpu_custom_call.1} parent=1 // pred_fallthru
      _
    // Predicated region
    $region18: #{tpu_custom_call.1} parent=1 // pred_check
      _
    $region19: #{tpu_custom_call.1} parent=1 // pred_check_branch
      %50 = sbr.rel (0) target = $region21
    $region20: #{tpu_custom_call.1} parent=1 // pred_region
      _
    $region21: #{tpu_custom_call.1} parent=1 // pred_fallthru
      _
    // Predicated region
    $region22: #{tpu_custom_call.1} parent=1 // pred_check
      _
    $region23: #{tpu_custom_call.1} parent=1 // pred_check_branch
      %52 = sbr.rel (0) target = $region25
    $region24: #{tpu_custom_call.1} parent=1 // pred_region
      %54 = vsyncadd [#allocation6], 0
      %s56 = sshll.u32 %s5, 4
      %s57 = int_to_ptr.hbm [resolvable:$true] %s56
      %s58 = sshll.u32 [#allocation5], 4
      %s59 = int_to_ptr.vmem [resolvable:$true] %s58
      %61 = dma.hbm_to_vmem [thread:$0]  %s57, 16, %s59, [#allocation6]
    $region25: #{tpu_custom_call.1} parent=1 // pred_fallthru
      _
    // Predicated region
    $region26: #{tpu_custom_call.1} parent=1 // pred_check
      _
    $region27: #{tpu_custom_call.1} parent=1 // pred_check_branch
      %63 = sbr.rel (0) target = $region29
    $region28: #{tpu_custom_call.1} parent=1 // pred_region
      %65 = vsyncadd [#allocation6], 0
      %s66 = sshll.u32 %s6, 4
      %s67 = int_to_ptr.hbm [resolvable:$true] %s66
      %s68 = sshll.u32 [#allocation7], 4
      %s69 = int_to_ptr.vmem [resolvable:$true] %s68
      %74 = dma.hbm_to_vmem [thread:$0]  %s67, 128, %s69, [#allocation6], 64, 64, 4
    $region29: #{tpu_custom_call.1} parent=1 // pred_fallthru
      _
    // Predicated region
    $region30: #{tpu_custom_call.1} parent=1 // pred_check
      _
    $region31: #{tpu_custom_call.1} parent=1 // pred_check_branch
      %76 = sbr.rel (0) target = $region33
    $region32: #{tpu_custom_call.1} parent=1 // pred_region
      %78 = vsyncadd [#allocation9], 0
      %s80 = sshll.u32 %s7, 4
      %s81 = int_to_ptr.hbm [resolvable:$true] %s80
      %s82 = sshll.u32 [#allocation8], 4
      %s83 = int_to_ptr.vmem [resolvable:$true] %s82
      %85 = dma.hbm_to_vmem [thread:$0]  %s81, 16, %s83, [#allocation9]
    $region33: #{tpu_custom_call.1} parent=1 // pred_fallthru
      _
    // Predicated region
    $region34: #{tpu_custom_call.1} parent=1 // pred_check
      _
    $region35: #{tpu_custom_call.1} parent=1 // pred_check_branch
      %87 = sbr.rel (0) target = $region37
    $region36: #{tpu_custom_call.1} parent=1 // pred_region
      _
    $region37: #{tpu_custom_call.1} parent=1 // pred_fallthru
      _
    // Predicated region
    $region38: #{tpu_custom_call.1} parent=1 // pred_check
      _
    $region39: #{tpu_custom_call.1} parent=1 // pred_check_branch
      %89 = sbr.rel (0) target = $region41
    $region40: #{tpu_custom_call.1} parent=1 // pred_region
      %91 = vsyncadd [#allocation9], 0
      %s93 = sshll.u32 %s9, 4
      %s94 = int_to_ptr.hbm [resolvable:$true] %s93
      %s95 = sshll.u32 [#allocation10], 4
      %s96 = int_to_ptr.vmem [resolvable:$true] %s95
      %98 = dma.hbm_to_vmem [thread:$0]  %s94, 16, %s96, [#allocation9]
    $region41: #{tpu_custom_call.1} parent=1 // pred_fallthru
      _
    // Predicated region
    $region42: #{tpu_custom_call.1} parent=1 // pred_check
      _
    $region43: #{tpu_custom_call.1} parent=1 // pred_check_branch
      %100 = sbr.rel (0) target = $region45
    $region44: #{tpu_custom_call.1} parent=1 // pred_region
      _
    $region45: #{tpu_custom_call.1} parent=1 // pred_fallthru
      _
    // Predicated region
    $region46: #{tpu_custom_call.1} parent=1 // pred_check
      _
    $region47: #{tpu_custom_call.1} parent=1 // pred_check_branch
      %102 = sbr.rel (0) target = $region49
    $region48: #{tpu_custom_call.1} parent=1 // pred_region
      %104 = vsyncadd [#allocation12], 0
      %s106 = sshll.u32 %s11, 4
      %s107 = int_to_ptr.hbm [resolvable:$true] %s106
      %s108 = sshll.u32 [#allocation11], 4
      %s109 = int_to_ptr.vmem [resolvable:$true] %s108
      %111 = dma.hbm_to_vmem [thread:$0]  %s107, 16, %s109, [#allocation12]
    $region49: #{tpu_custom_call.1} parent=1 // pred_fallthru
      _
    // Predicated region
    $region50: #{tpu_custom_call.1} parent=1 // pred_check
      _
    $region51: #{tpu_custom_call.1} parent=1 // pred_check_branch
      %113 = sbr.rel (0) target = $region53
    $region52: #{tpu_custom_call.1} parent=1 // pred_region
      _
    $region53: #{tpu_custom_call.1} parent=1 // pred_fallthru
      _
    // Predicated region
    $region54: #{tpu_custom_call.1} parent=1 // pred_check
      _
    $region55: #{tpu_custom_call.1} parent=1 // pred_check_branch
      %115 = sbr.rel (0) target = $region57
    $region56: #{tpu_custom_call.1} parent=1 // pred_region
      _
    $region57: #{tpu_custom_call.1} parent=1 // pred_fallthru
      _
    // Predicated region
    $region58: #{tpu_custom_call.1} parent=1 // pred_check
      _
    $region59: #{tpu_custom_call.1} parent=1 // pred_check_branch
      %117 = sbr.rel (0) target = $region61
    $region60: #{tpu_custom_call.1} parent=1 // pred_region
      _
    $region61: #{tpu_custom_call.1} parent=1 // pred_fallthru
      _
    // Predicated region
    $region62: #{tpu_custom_call.1} parent=1 // pred_check
      _
    $region63: #{tpu_custom_call.1} parent=1 // pred_check_branch
      %119 = sbr.rel (0) target = $region65
    $region64: #{tpu_custom_call.1} parent=1 // pred_region
      _
    $region65: #{tpu_custom_call.1} parent=1 // pred_fallthru
      _
    // Predicated region
    $region66: #{tpu_custom_call.1} parent=1 // pred_check
      _
    $region67: #{tpu_custom_call.1} parent=1 // pred_check_branch
      %121 = sbr.rel (0) target = $region69
    $region68: #{tpu_custom_call.1} parent=1 // pred_region
      _
    $region69: #{tpu_custom_call.1} parent=1 // pred_fallthru
      _
    // Predicated region
    $region70: #{tpu_custom_call.1} parent=1 // pred_check
      _
    $region71: #{tpu_custom_call.1} parent=1 // pred_check_branch
      %123 = sbr.rel (0) target = $region73
    $region72: #{tpu_custom_call.1} parent=1 // pred_region
      _
    $region73: #{tpu_custom_call.1} parent=1 // pred_fallthru
      _
    // Predicated region
    $region74: #{tpu_custom_call.1} parent=1 // pred_check
      _
    $region75: #{tpu_custom_call.1} parent=1 // pred_check_branch
      %125 = sbr.rel (0) target = $region77
    $region76: #{tpu_custom_call.1} parent=1 // pred_region
      %127 = dma.done [#allocation3], 16
    $region77: #{tpu_custom_call.1} parent=1 // pred_fallthru
      _
    // Predicated region
    $region78: #{tpu_custom_call.1} parent=1 // pred_check
      _
    $region79: #{tpu_custom_call.1} parent=1 // pred_check_branch
      %129 = sbr.rel (0) target = $region81
    $region80: #{tpu_custom_call.1} parent=1 // pred_region
      %131 = dma.done [#allocation6], 16
    $region81: #{tpu_custom_call.1} parent=1 // pred_fallthru
      _
    // Predicated region
    $region82: #{tpu_custom_call.1} parent=1 // pred_check
      _
    $region83: #{tpu_custom_call.1} parent=1 // pred_check_branch
      %133 = sbr.rel (0) target = $region85
    $region84: #{tpu_custom_call.1} parent=1 // pred_region
      %135 = dma.done [#allocation6], 128
    $region85: #{tpu_custom_call.1} parent=1 // pred_fallthru
      _
    // Predicated region
    $region86: #{tpu_custom_call.1} parent=1 // pred_check
      _
    $region87: #{tpu_custom_call.1} parent=1 // pred_check_branch
      %137 = sbr.rel (0) target = $region89
    $region88: #{tpu_custom_call.1} parent=1 // pred_region
      %139 = dma.done [#allocation9], 16
    $region89: #{tpu_custom_call.1} parent=1 // pred_fallthru
      _
    // Predicated region
    $region90: #{tpu_custom_call.1} parent=1 // pred_check
      _
    $region91: #{tpu_custom_call.1} parent=1 // pred_check_branch
      %141 = sbr.rel (0) target = $region93
    $region92: #{tpu_custom_call.1} parent=1 // pred_region
      %143 = dma.done [#allocation9], 16
    $region93: #{tpu_custom_call.1} parent=1 // pred_fallthru
      _
    // Predicated region
    $region94: #{tpu_custom_call.1} parent=1 // pred_check
      _
    $region95: #{tpu_custom_call.1} parent=1 // pred_check_branch
      %145 = sbr.rel (0) target = $region97
    $region96: #{tpu_custom_call.1} parent=1 // pred_region
      %147 = dma.done [#allocation12], 16
    $region97: #{tpu_custom_call.1} parent=1 // pred_fallthru
      _
    %v149 = vld [vmem:[%s0] sm:$0xff]
    %v150 = vld [vmem:[%s0 + $0x8] sm:$0xff]
    %v151 = vld [vmem:[%s0 + $0x10] sm:$0xff]
    %v152 = vld [vmem:[%s0 + $0x18] sm:$0xff]
    %v153 = vld [vmem:[%s0 + $0x20] sm:$0xff]
    %v154 = vld [vmem:[%s0 + $0x28] sm:$0xff]
    %v155 = vld [vmem:[%s0 + $0x30] sm:$0xff]
    %v156 = vld [vmem:[%s0 + $0x38] sm:$0xff]
    %v157 = vld [vmem:[%s0 + $0x40] sm:$0xff]
    %v158 = vld [vmem:[%s0 + $0x48] sm:$0xff]
    %v159 = vld [vmem:[%s0 + $0x50] sm:$0xff]
    %v160 = vld [vmem:[%s0 + $0x58] sm:$0xff]
    %v161 = vld [vmem:[%s0 + $0x60] sm:$0xff]
    %v162 = vld [vmem:[%s0 + $0x68] sm:$0xff]
    %v163 = vld [vmem:[%s0 + $0x70] sm:$0xff]
    %v164 = vld [vmem:[%s0 + $0x78] sm:$0xff]
    %v165 = vrot.slane %v153, 4
    %vm166 = vcmask 1047556
    %v167 = vsel %vm166, %v165, %v149
    %v168 = vrot.slane %v149, 4
    %v169 = vsel %vm166, %v153, %v168
    %v171 = vunpack.c.l.s4 1983009808
    %v172 = vunpack.c.0.s8 %v171
    %v173 = vperm.slane %v167, %v172
    %v175 = vunpack.c.l.s4 1983009808
    %v176 = vunpack.c.0.s8 %v175
    %v177 = vperm.slane %v169, %v176
    %v178 = vrot.slane %v155, 4
    %v179 = vsel %vm166, %v178, %v151
    %v180 = vrot.slane %v151, 4
    %v181 = vsel %vm166, %v155, %v180
    %v183 = vunpack.c.l.s4 1983009808
    %v184 = vunpack.c.0.s8 %v183
    %v185 = vperm.slane %v179, %v184
    %v187 = vunpack.c.l.s4 1983009808
    %v188 = vunpack.c.0.s8 %v187
    %v189 = vperm.slane %v181, %v188
    %v190 = vrot.slane %v161, 4
    %v191 = vsel %vm166, %v190, %v157
    %v192 = vrot.slane %v157, 4
    %v193 = vsel %vm166, %v161, %v192
    %v195 = vunpack.c.l.s4 1983009808
    %v196 = vunpack.c.0.s8 %v195
    %v197 = vperm.slane %v191, %v196
    %v199 = vunpack.c.l.s4 1983009808
    %v200 = vunpack.c.0.s8 %v199
    %v201 = vperm.slane %v193, %v200
    %v202 = vrot.slane %v163, 4
    %v203 = vsel %vm166, %v202, %v159
    %v204 = vrot.slane %v159, 4
    %v205 = vsel %vm166, %v163, %v204
    %v207 = vunpack.c.l.s4 1983009808
    %v208 = vunpack.c.0.s8 %v207
    %v209 = vperm.slane %v203, %v208
    %v211 = vunpack.c.l.s4 1983009808
    %v212 = vunpack.c.0.s8 %v211
    %v213 = vperm.slane %v205, %v212
    %v214 = vrot.slane %v185, 4
    %v215 = vsel %vm166, %v214, %v173
    %v216 = vrot.slane %v173, 4
    %v217 = vsel %vm166, %v185, %v216
    %v219 = vunpack.c.l.s4 1934713408
    %v220 = vunpack.c.0.s8 %v219
    %v221 = vperm.slane %v215, %v220
    %v223 = vunpack.c.l.s4 1934713408
    %v224 = vunpack.c.0.s8 %v223
    %v225 = vperm.slane %v217, %v224
    %v226 = vrot.slane %v189, 4
    %v227 = vsel %vm166, %v226, %v177
    %v228 = vrot.slane %v177, 4
    %v229 = vsel %vm166, %v189, %v228
    %v231 = vunpack.c.l.s4 1934713408
    %v232 = vunpack.c.0.s8 %v231
    %v233 = vperm.slane %v227, %v232
    %v235 = vunpack.c.l.s4 1934713408
    %v236 = vunpack.c.0.s8 %v235
    %v237 = vperm.slane %v229, %v236
    %v238 = vrot.slane %v209, 4
    %v239 = vsel %vm166, %v238, %v197
    %v240 = vrot.slane %v197, 4
    %v241 = vsel %vm166, %v209, %v240
    %v243 = vunpack.c.l.s4 1934713408
    %v244 = vunpack.c.0.s8 %v243
    %v245 = vperm.slane %v239, %v244
    %v247 = vunpack.c.l.s4 1934713408
    %v248 = vunpack.c.0.s8 %v247
    %v249 = vperm.slane %v241, %v248
    %v250 = vrot.slane %v213, 4
    %v251 = vsel %vm166, %v250, %v201
    %v252 = vrot.slane %v201, 4
    %v253 = vsel %vm166, %v213, %v252
    %v255 = vunpack.c.l.s4 1934713408
    %v256 = vunpack.c.0.s8 %v255
    %v257 = vperm.slane %v251, %v256
    %v259 = vunpack.c.l.s4 1934713408
    %v260 = vunpack.c.0.s8 %v259
    %v261 = vperm.slane %v253, %v260
    %v262 = vrot.slane %v245, 4
    %v263 = vsel %vm166, %v262, %v221
    %v264 = vrot.slane %v221, 4
    %v265 = vsel %vm166, %v245, %v264
    %v266 = vrot.slane %v249, 4
    %v267 = vsel %vm166, %v266, %v225
    %v268 = vrot.slane %v225, 4
    %v269 = vsel %vm166, %v249, %v268
    %v270 = vrot.slane %v257, 4
    %v271 = vsel %vm166, %v270, %v233
    %v272 = vrot.slane %v233, 4
    %v273 = vsel %vm166, %v257, %v272
    %v274 = vrot.slane %v261, 4
    %v275 = vsel %vm166, %v274, %v237
    %v276 = vrot.slane %v237, 4
    %v277 = vsel %vm166, %v261, %v276
    %v278 = vrot.slane %v154, 4
    %v279 = vsel %vm166, %v278, %v150
    %v280 = vrot.slane %v150, 4
    %v281 = vsel %vm166, %v154, %v280
    %v283 = vunpack.c.l.s4 1983009808
    %v284 = vunpack.c.0.s8 %v283
    %v285 = vperm.slane %v279, %v284
    %v287 = vunpack.c.l.s4 1983009808
    %v288 = vunpack.c.0.s8 %v287
    %v289 = vperm.slane %v281, %v288
    %v290 = vrot.slane %v156, 4
    %v291 = vsel %vm166, %v290, %v152
    %v292 = vrot.slane %v152, 4
    %v293 = vsel %vm166, %v156, %v292
    %v295 = vunpack.c.l.s4 1983009808
    %v296 = vunpack.c.0.s8 %v295
    %v297 = vperm.slane %v291, %v296
    %v299 = vunpack.c.l.s4 1983009808
    %v300 = vunpack.c.0.s8 %v299
    %v301 = vperm.slane %v293, %v300
    %v302 = vrot.slane %v162, 4
    %v303 = vsel %vm166, %v302, %v158
    %v304 = vrot.slane %v158, 4
    %v305 = vsel %vm166, %v162, %v304
    %v307 = vunpack.c.l.s4 1983009808
    %v308 = vunpack.c.0.s8 %v307
    %v309 = vperm.slane %v303, %v308
    %v311 = vunpack.c.l.s4 1983009808
    %v312 = vunpack.c.0.s8 %v311
    %v313 = vperm.slane %v305, %v312
    %v314 = vrot.slane %v164, 4
    %v315 = vsel %vm166, %v314, %v160
    %v316 = vrot.slane %v160, 4
    %v317 = vsel %vm166, %v164, %v316
    %v319 = vunpack.c.l.s4 1983009808
    %v320 = vunpack.c.0.s8 %v319
    %v321 = vperm.slane %v315, %v320
    %v323 = vunpack.c.l.s4 1983009808
    %v324 = vunpack.c.0.s8 %v323
    %v325 = vperm.slane %v317, %v324
    %v326 = vrot.slane %v297, 4
    %v327 = vsel %vm166, %v326, %v285
    %v328 = vrot.slane %v285, 4
    %v329 = vsel %vm166, %v297, %v328
    %v331 = vunpack.c.l.s4 1934713408
    %v332 = vunpack.c.0.s8 %v331
    %v333 = vperm.slane %v327, %v332
    %v335 = vunpack.c.l.s4 1934713408
    %v336 = vunpack.c.0.s8 %v335
    %v337 = vperm.slane %v329, %v336
    %v338 = vrot.slane %v301, 4
    %v339 = vsel %vm166, %v338, %v289
    %v340 = vrot.slane %v289, 4
    %v341 = vsel %vm166, %v301, %v340
    %v343 = vunpack.c.l.s4 1934713408
    %v344 = vunpack.c.0.s8 %v343
    %v345 = vperm.slane %v339, %v344
    %v347 = vunpack.c.l.s4 1934713408
    %v348 = vunpack.c.0.s8 %v347
    %v349 = vperm.slane %v341, %v348
    %v350 = vrot.slane %v321, 4
    %v351 = vsel %vm166, %v350, %v309
    %v352 = vrot.slane %v309, 4
    %v353 = vsel %vm166, %v321, %v352
    %v355 = vunpack.c.l.s4 1934713408
    %v356 = vunpack.c.0.s8 %v355
    %v357 = vperm.slane %v351, %v356
    %v359 = vunpack.c.l.s4 1934713408
    %v360 = vunpack.c.0.s8 %v359
    %v361 = vperm.slane %v353, %v360
    %v362 = vrot.slane %v325, 4
    %v363 = vsel %vm166, %v362, %v313
    %v364 = vrot.slane %v313, 4
    %v365 = vsel %vm166, %v325, %v364
    %v367 = vunpack.c.l.s4 1934713408
    %v368 = vunpack.c.0.s8 %v367
    %v369 = vperm.slane %v363, %v368
    %v371 = vunpack.c.l.s4 1934713408
    %v372 = vunpack.c.0.s8 %v371
    %v373 = vperm.slane %v365, %v372
    %v374 = vrot.slane %v357, 4
    %v375 = vsel %vm166, %v374, %v333
    %v376 = vrot.slane %v333, 4
    %v377 = vsel %vm166, %v357, %v376
    %v378 = vrot.slane %v361, 4
    %v379 = vsel %vm166, %v378, %v337
    %v380 = vrot.slane %v337, 4
    %v381 = vsel %vm166, %v361, %v380
    %v382 = vrot.slane %v369, 4
    %v383 = vsel %vm166, %v382, %v345
    %v384 = vrot.slane %v345, 4
    %v385 = vsel %vm166, %v369, %v384
    %v386 = vrot.slane %v373, 4
    %v387 = vsel %vm166, %v386, %v349
    %v388 = vrot.slane %v349, 4
    %v389 = vsel %vm166, %v373, %v388
    %v390 = vld [vmem:[%s1] sm:$0xff]
    %v391 = vld [vmem:[%s1 + $0x8] sm:$0xff]
    %v392 = vld [vmem:[%s1 + $0x10] sm:$0xff]
    %v393 = vld [vmem:[%s1 + $0x18] sm:$0xff]
    %v394 = vld [vmem:[%s1 + $0x20] sm:$0xff]
    %v395 = vld [vmem:[%s1 + $0x28] sm:$0xff]
    %v396 = vld [vmem:[%s1 + $0x30] sm:$0xff]
    %v397 = vld [vmem:[%s1 + $0x38] sm:$0xff]
    %v398 = vld [vmem:[%s1 + $0x40] sm:$0xff]
    %v399 = vld [vmem:[%s1 + $0x48] sm:$0xff]
    %v400 = vld [vmem:[%s1 + $0x50] sm:$0xff]
    %v401 = vld [vmem:[%s1 + $0x58] sm:$0xff]
    %v402 = vld [vmem:[%s1 + $0x60] sm:$0xff]
    %v403 = vld [vmem:[%s1 + $0x68] sm:$0xff]
    %v404 = vld [vmem:[%s1 + $0x70] sm:$0xff]
    %v405 = vld [vmem:[%s1 + $0x78] sm:$0xff]
    %v406 = vsub.f32 1.0, %v390
    %v407 = vsub.f32 1.0, %v391
    %v408 = vsub.f32 1.0, %v392
    %v409 = vsub.f32 1.0, %v393
    %v410 = vsub.f32 1.0, %v394
    %v411 = vsub.f32 1.0, %v395
    %v412 = vsub.f32 1.0, %v396
    %v413 = vsub.f32 1.0, %v397
    %v414 = vsub.f32 1.0, %v398
    %v415 = vsub.f32 1.0, %v399
    %v416 = vsub.f32 1.0, %v400
    %v417 = vsub.f32 1.0, %v401
    %v418 = vsub.f32 1.0, %v402
    %v419 = vsub.f32 1.0, %v403
    %v420 = vsub.f32 1.0, %v404
    %v421 = vsub.f32 1.0, %v405
    %v422 = vpack.c.bf16 %v265, %v263
    %v423 = vpack.c.bf16 %v269, %v267
    %v424 = vpack.c.bf16 %v273, %v271
    %v425 = vpack.c.bf16 %v277, %v275
    %v426 = vpack.c.bf16 %v377, %v375
    %v427 = vpack.c.bf16 %v381, %v379
    %v428 = vpack.c.bf16 %v385, %v383
    %v429 = vpack.c.bf16 %v389, %v387
    %v430 = vld [vmem:[%s2] sm:$0xf]
    %v431 = vld [vmem:[%s2 + $0x4] sm:$0xf]
    %v432 = vld [vmem:[%s2 + $0x8] sm:$0xf]
    %v433 = vld [vmem:[%s2 + $0xc] sm:$0xf]
    %v434 = vld [vmem:[#allocation2] sm:$0x1]
    %v436 = vperm.slane %v434, 0
    %v442 = vunpack.c.l.b16 %v430
    %v443 = vunpack.c.l.b16 %v431
    %v444 = vunpack.c.l.b16 %v432
    %v445 = vunpack.c.l.b16 %v433
    %v446 = vpack.c.b16 %v443, %v442
    %v447 = vpack.c.b16 %v445, %v444
    %vm450 = vcmask 261120
    %v452 = vsel %vm450, %v422, 0
    %v455 = vsel %vm450, %v423, 0
    %v458 = vsel %vm450, %v424, 0
    %v461 = vsel %vm450, %v425, 0
    %v464 = vsel %vm450, %v426, 0
    %v467 = vsel %vm450, %v427, 0
    %v470 = vsel %vm450, %v428, 0
    %v473 = vsel %vm450, %v429, 0
    %475 = vmatpush.bf16.msra.mxu0 0
    %476 = vmatpush.bf16.msra.mxu0 0
    %477 = vmatpush.bf16.msra.mxu0 0
    %478 = vmatpush.bf16.msra.mxu0 0
    %479 = vmatpush.bf16.msra.mxu0 0
    %480 = vmatpush.bf16.msra.mxu0 0
    %481 = vmatpush.bf16.msra.mxu0 %v447
    %482 = vmatpush.bf16.msra.mxu0 %v446
    %483 = vmatmul.bf16.gmra.mxu0 %v452
    %v484 = vpop.f32.mrf.mxu0
    %v485 = vadd.f32 %v436, %v484
    %v486 = vpop.f32.mrf.mxu0
    %v487 = vadd.f32 %v436, %v486
    %488 = vmatmul.bf16.gmra.mxu0 %v455
    %v489 = vpop.f32.mrf.mxu0
    %v490 = vadd.f32 %v436, %v489
    %v491 = vpop.f32.mrf.mxu0
    %v492 = vadd.f32 %v436, %v491
    %493 = vmatmul.bf16.gmra.mxu0 %v458
    %v494 = vpop.f32.mrf.mxu0
    %v495 = vadd.f32 %v436, %v494
    %v496 = vpop.f32.mrf.mxu0
    %v497 = vadd.f32 %v436, %v496
    %498 = vmatmul.bf16.gmra.mxu0 %v461
    %v499 = vpop.f32.mrf.mxu0
    %v500 = vadd.f32 %v436, %v499
    %v501 = vpop.f32.mrf.mxu0
    %v502 = vadd.f32 %v436, %v501
    %503 = vmatmul.bf16.gmra.mxu0 %v464
    %v504 = vpop.f32.mrf.mxu0
    %v505 = vadd.f32 %v436, %v504
    %v506 = vpop.f32.mrf.mxu0
    %v507 = vadd.f32 %v436, %v506
    %508 = vmatmul.bf16.gmra.mxu0 %v467
    %v509 = vpop.f32.mrf.mxu0
    %v510 = vadd.f32 %v436, %v509
    %v511 = vpop.f32.mrf.mxu0
    %v512 = vadd.f32 %v436, %v511
    %513 = vmatmul.bf16.gmra.mxu0 %v470
    %v514 = vpop.f32.mrf.mxu0
    %v515 = vadd.f32 %v436, %v514
    %v516 = vpop.f32.mrf.mxu0
    %v517 = vadd.f32 %v436, %v516
    %518 = vmatmul.bf16.gmra.mxu0 %v473
    %v519 = vpop.f32.mrf.mxu0
    %v520 = vadd.f32 %v436, %v519
    %v521 = vpop.f32.mrf.mxu0
    %v522 = vadd.f32 %v436, %v521
    %523 = vdwg.mxu0
    %v524 = vmax.f32 %v485, -30.0
    %v525 = vmax.f32 %v487, -30.0
    %v526 = vmax.f32 %v490, -30.0
    %v527 = vmax.f32 %v492, -30.0
    %v528 = vmax.f32 %v495, -30.0
    %v529 = vmax.f32 %v497, -30.0
    %v530 = vmax.f32 %v500, -30.0
    %v531 = vmax.f32 %v502, -30.0
    %v532 = vmax.f32 %v505, -30.0
    %v533 = vmax.f32 %v507, -30.0
    %v534 = vmax.f32 %v510, -30.0
    %v535 = vmax.f32 %v512, -30.0
    %v536 = vmax.f32 %v515, -30.0
    %v537 = vmax.f32 %v517, -30.0
    %v538 = vmax.f32 %v520, -30.0
    %v539 = vmax.f32 %v522, -30.0
    %v540 = vmin.f32 %v524, 30.0
    %v541 = vmin.f32 %v525, 30.0
    %v542 = vmin.f32 %v526, 30.0
    %v543 = vmin.f32 %v527, 30.0
    %v544 = vmin.f32 %v528, 30.0
    %v545 = vmin.f32 %v529, 30.0
    %v546 = vmin.f32 %v530, 30.0
    %v547 = vmin.f32 %v531, 30.0
    %v548 = vmin.f32 %v532, 30.0
    %v549 = vmin.f32 %v533, 30.0
    %v550 = vmin.f32 %v534, 30.0
    %v551 = vmin.f32 %v535, 30.0
    %v552 = vmin.f32 %v536, 30.0
    %v553 = vmin.f32 %v537, 30.0
    %v554 = vmin.f32 %v538, 30.0
    %v555 = vmin.f32 %v539, 30.0
    %v556 = vmul.f32 %v540, 1.442695
    %v557 = vpow.pop %v556
    %v558 = vmul.f32 %v541, 1.442695
    %v559 = vpow.pop %v558
    %v560 = vmul.f32 %v542, 1.442695
    %v561 = vpow.pop %v560
    %v562 = vmul.f32 %v543, 1.442695
    %v563 = vpow.pop %v562
    %v564 = vmul.f32 %v544, 1.442695
    %v565 = vpow.pop %v564
    %v566 = vmul.f32 %v545, 1.442695
    %v567 = vpow.pop %v566
    %v568 = vmul.f32 %v546, 1.442695
    %v569 = vpow.pop %v568
    %v570 = vmul.f32 %v547, 1.442695
    %v571 = vpow.pop %v570
    %v572 = vmul.f32 %v548, 1.442695
    %v573 = vpow.pop %v572
    %v574 = vmul.f32 %v549, 1.442695
    %v575 = vpow.pop %v574
    %v576 = vmul.f32 %v550, 1.442695
    %v577 = vpow.pop %v576
    %v578 = vmul.f32 %v551, 1.442695
    %v579 = vpow.pop %v578
    %v580 = vmul.f32 %v552, 1.442695
    %v581 = vpow.pop %v580
    %v582 = vmul.f32 %v553, 1.442695
    %v583 = vpow.pop %v582
    %v584 = vmul.f32 %v554, 1.442695
    %v585 = vpow.pop %v584
    %v586 = vmul.f32 %v555, 1.442695
    %v587 = vpow.pop %v586
    %604 = vrot.lane.b32.xlu0 %v406, 32
    %v605 = vpop.permute.xlu0 %604
    %606 = vrot.lane.b32.xlu0 %v407, 32
    %v607 = vpop.permute.xlu0 %606
    %608 = vrot.lane.b32.xlu0 %v408, 32
    %v609 = vpop.permute.xlu0 %608
    %610 = vrot.lane.b32.xlu0 %v409, 32
    %v611 = vpop.permute.xlu0 %610
    %612 = vrot.lane.b32.xlu0 %v410, 32
    %v613 = vpop.permute.xlu0 %612
    %614 = vrot.lane.b32.xlu0 %v411, 32
    %v615 = vpop.permute.xlu0 %614
    %616 = vrot.lane.b32.xlu0 %v412, 32
    %v617 = vpop.permute.xlu0 %616
    %618 = vrot.lane.b32.xlu0 %v413, 32
    %v619 = vpop.permute.xlu0 %618
    %620 = vrot.lane.b32.xlu0 %v414, 32
    %v621 = vpop.permute.xlu0 %620
    %622 = vrot.lane.b32.xlu0 %v415, 32
    %v623 = vpop.permute.xlu0 %622
    %624 = vrot.lane.b32.xlu0 %v416, 32
    %v625 = vpop.permute.xlu0 %624
    %626 = vrot.lane.b32.xlu0 %v417, 32
    %v627 = vpop.permute.xlu0 %626
    %628 = vrot.lane.b32.xlu0 %v418, 32
    %v629 = vpop.permute.xlu0 %628
    %630 = vrot.lane.b32.xlu0 %v419, 32
    %v631 = vpop.permute.xlu0 %630
    %632 = vrot.lane.b32.xlu0 %v420, 32
    %v633 = vpop.permute.xlu0 %632
    %634 = vrot.lane.b32.xlu0 %v421, 32
    %v635 = vpop.permute.xlu0 %634
    %v652 = vmul.f32 %v557, %v605
    %v653 = vmul.f32 %v559, %v607
    %v654 = vmul.f32 %v561, %v609
    %v655 = vmul.f32 %v563, %v611
    %v656 = vmul.f32 %v565, %v613
    %v657 = vmul.f32 %v567, %v615
    %v658 = vmul.f32 %v569, %v617
    %v659 = vmul.f32 %v571, %v619
    %v660 = vmul.f32 %v573, %v621
    %v661 = vmul.f32 %v575, %v623
    %v662 = vmul.f32 %v577, %v625
    %v663 = vmul.f32 %v579, %v627
    %v664 = vmul.f32 %v581, %v629
    %v665 = vmul.f32 %v583, %v631
    %v666 = vmul.f32 %v585, %v633
    %v667 = vmul.f32 %v587, %v635
    %668 = vset.pattern.permute.xlu0 0
    %669 = vperm.xlu0 %668, %v406
    %v670 = vpop.permute.xlu0 %669
    %672 = vset.pattern.permute.xlu0 0
    %673 = vperm.xlu0 %672, %v407
    %v674 = vpop.permute.xlu0 %673
    %676 = vset.pattern.permute.xlu0 0
    %677 = vperm.xlu0 %676, %v408
    %v678 = vpop.permute.xlu0 %677
    %680 = vset.pattern.permute.xlu0 0
    %681 = vperm.xlu0 %680, %v409
    %v682 = vpop.permute.xlu0 %681
    %684 = vset.pattern.permute.xlu0 0
    %685 = vperm.xlu0 %684, %v410
    %v686 = vpop.permute.xlu0 %685
    %688 = vset.pattern.permute.xlu0 0
    %689 = vperm.xlu0 %688, %v411
    %v690 = vpop.permute.xlu0 %689
    %692 = vset.pattern.permute.xlu0 0
    %693 = vperm.xlu0 %692, %v412
    %v694 = vpop.permute.xlu0 %693
    %696 = vset.pattern.permute.xlu0 0
    %697 = vperm.xlu0 %696, %v413
    %v698 = vpop.permute.xlu0 %697
    %700 = vset.pattern.permute.xlu0 0
    %701 = vperm.xlu0 %700, %v414
    %v702 = vpop.permute.xlu0 %701
    %704 = vset.pattern.permute.xlu0 0
    %705 = vperm.xlu0 %704, %v415
    %v706 = vpop.permute.xlu0 %705
    %708 = vset.pattern.permute.xlu0 0
    %709 = vperm.xlu0 %708, %v416
    %v710 = vpop.permute.xlu0 %709
    %712 = vset.pattern.permute.xlu0 0
    %713 = vperm.xlu0 %712, %v417
    %v714 = vpop.permute.xlu0 %713
    %716 = vset.pattern.permute.xlu0 0
    %717 = vperm.xlu0 %716, %v418
    %v718 = vpop.permute.xlu0 %717
    %720 = vset.pattern.permute.xlu0 0
    %721 = vperm.xlu0 %720, %v419
    %v722 = vpop.permute.xlu0 %721
    %724 = vset.pattern.permute.xlu0 0
    %725 = vperm.xlu0 %724, %v420
    %v726 = vpop.permute.xlu0 %725
    %728 = vset.pattern.permute.xlu0 0
    %729 = vperm.xlu0 %728, %v421
    %v730 = vpop.permute.xlu0 %729
    %v732 = vmul.f32 %v485, %v670
    %v733 = vmul.f32 %v487, %v674
    %v734 = vmul.f32 %v490, %v678
    %v735 = vmul.f32 %v492, %v682
    %v736 = vmul.f32 %v495, %v686
    %v737 = vmul.f32 %v497, %v690
    %v738 = vmul.f32 %v500, %v694
    %v739 = vmul.f32 %v502, %v698
    %v740 = vmul.f32 %v505, %v702
    %v741 = vmul.f32 %v507, %v706
    %v742 = vmul.f32 %v510, %v710
    %v743 = vmul.f32 %v512, %v714
    %v744 = vmul.f32 %v515, %v718
    %v745 = vmul.f32 %v517, %v722
    %v746 = vmul.f32 %v520, %v726
    %v747 = vmul.f32 %v522, %v730
    %v748 = vsel %vm450, %v732, %v652
    %v749 = vsel %vm450, %v733, %v653
    %v750 = vsel %vm450, %v734, %v654
    %v751 = vsel %vm450, %v735, %v655
    %v752 = vsel %vm450, %v736, %v656
    %v753 = vsel %vm450, %v737, %v657
    %v754 = vsel %vm450, %v738, %v658
    %v755 = vsel %vm450, %v739, %v659
    %v756 = vsel %vm450, %v740, %v660
    %v757 = vsel %vm450, %v741, %v661
    %v758 = vsel %vm450, %v742, %v662
    %v759 = vsel %vm450, %v743, %v663
    %v760 = vsel %vm450, %v744, %v664
    %v761 = vsel %vm450, %v745, %v665
    %v762 = vsel %vm450, %v746, %v666
    %v763 = vsel %vm450, %v747, %v667
    %vm764 = vcmask 269312
    %v765 = vsel %vm764, %v748, 0.0
    %v766 = vsel %vm764, %v749, 0.0
    %v767 = vsel %vm764, %v750, 0.0
    %v768 = vsel %vm764, %v751, 0.0
    %v769 = vsel %vm764, %v752, 0.0
    %v770 = vsel %vm764, %v753, 0.0
    %v771 = vsel %vm764, %v754, 0.0
    %v772 = vsel %vm764, %v755, 0.0
    %v773 = vsel %vm764, %v756, 0.0
    %v774 = vsel %vm764, %v757, 0.0
    %v775 = vsel %vm764, %v758, 0.0
    %v776 = vsel %vm764, %v759, 0.0
    %v777 = vsel %vm764, %v760, 0.0
    %v778 = vsel %vm764, %v761, 0.0
    %v779 = vsel %vm764, %v762, 0.0
    %v780 = vsel %vm764, %v763, 0.0
    %v781 = vlaneseq
    %v782 = vand.u32 %v781, 127
    %vm783 = vcmp.eq.s32.totalorder %v782, 32
    %v784 = vsel %vm783, 1.0, 0.0
    %v801 = vrot.slane %v765, 7
    %v802 = vrot.slane %v766, 7
    %v803 = vrot.slane %v767, 7
    %v804 = vrot.slane %v768, 7
    %v805 = vrot.slane %v769, 7
    %v806 = vrot.slane %v770, 7
    %v807 = vrot.slane %v771, 7
    %v808 = vrot.slane %v772, 7
    %v809 = vrot.slane %v773, 7
    %v810 = vrot.slane %v774, 7
    %v811 = vrot.slane %v775, 7
    %v812 = vrot.slane %v776, 7
    %v813 = vrot.slane %v777, 7
    %v814 = vrot.slane %v778, 7
    %v815 = vrot.slane %v779, 7
    %v816 = vrot.slane %v780, 7
    %vm833 = vcmask 1040384
    %v834 = vsel %vm833, %v784, %v801
    %v835 = vsel %vm833, %v784, %v802
    %v836 = vsel %vm833, %v784, %v803
    %v837 = vsel %vm833, %v784, %v804
    %v838 = vsel %vm833, %v784, %v805
    %v839 = vsel %vm833, %v784, %v806
    %v840 = vsel %vm833, %v784, %v807
    %v841 = vsel %vm833, %v784, %v808
    %v842 = vsel %vm833, %v784, %v809
    %v843 = vsel %vm833, %v784, %v810
    %v844 = vsel %vm833, %v784, %v811
    %v845 = vsel %vm833, %v784, %v812
    %v846 = vsel %vm833, %v784, %v813
    %v847 = vsel %vm833, %v784, %v814
    %v848 = vsel %vm833, %v784, %v815
    %v849 = vsel %vm833, %v784, %v816
    %v850 = vrot.slane %v836, 4
    %v851 = vsel %vm166, %v850, %v834
    %v852 = vrot.slane %v834, 4
    %v853 = vsel %vm166, %v836, %v852
    %v855 = vunpack.c.l.s4 1983009808
    %v856 = vunpack.c.0.s8 %v855
    %v857 = vperm.slane %v851, %v856
    %v859 = vunpack.c.l.s4 1983009808
    %v860 = vunpack.c.0.s8 %v859
    %v861 = vperm.slane %v853, %v860
    %v862 = vrot.slane %v837, 4
    %v863 = vsel %vm166, %v862, %v835
    %v864 = vrot.slane %v835, 4
    %v865 = vsel %vm166, %v837, %v864
    %v867 = vunpack.c.l.s4 1983009808
    %v868 = vunpack.c.0.s8 %v867
    %v869 = vperm.slane %v863, %v868
    %v871 = vunpack.c.l.s4 1983009808
    %v872 = vunpack.c.0.s8 %v871
    %v873 = vperm.slane %v865, %v872
    %v874 = vrot.slane %v840, 4
    %v875 = vsel %vm166, %v874, %v838
    %v876 = vrot.slane %v838, 4
    %v877 = vsel %vm166, %v840, %v876
    %v879 = vunpack.c.l.s4 1983009808
    %v880 = vunpack.c.0.s8 %v879
    %v881 = vperm.slane %v875, %v880
    %v883 = vunpack.c.l.s4 1983009808
    %v884 = vunpack.c.0.s8 %v883
    %v885 = vperm.slane %v877, %v884
    %v886 = vrot.slane %v841, 4
    %v887 = vsel %vm166, %v886, %v839
    %v888 = vrot.slane %v839, 4
    %v889 = vsel %vm166, %v841, %v888
    %v891 = vunpack.c.l.s4 1983009808
    %v892 = vunpack.c.0.s8 %v891
    %v893 = vperm.slane %v887, %v892
    %v895 = vunpack.c.l.s4 1983009808
    %v896 = vunpack.c.0.s8 %v895
    %v897 = vperm.slane %v889, %v896
    %v898 = vrot.slane %v869, 4
    %v899 = vsel %vm166, %v898, %v857
    %v900 = vrot.slane %v857, 4
    %v901 = vsel %vm166, %v869, %v900
    %v903 = vunpack.c.l.s4 1934713408
    %v904 = vunpack.c.0.s8 %v903
    %v905 = vperm.slane %v899, %v904
    %v907 = vunpack.c.l.s4 1934713408
    %v908 = vunpack.c.0.s8 %v907
    %v909 = vperm.slane %v901, %v908
    %v910 = vrot.slane %v873, 4
    %v911 = vsel %vm166, %v910, %v861
    %v912 = vrot.slane %v861, 4
    %v913 = vsel %vm166, %v873, %v912
    %v915 = vunpack.c.l.s4 1934713408
    %v916 = vunpack.c.0.s8 %v915
    %v917 = vperm.slane %v911, %v916
    %v919 = vunpack.c.l.s4 1934713408
    %v920 = vunpack.c.0.s8 %v919
    %v921 = vperm.slane %v913, %v920
    %v922 = vrot.slane %v893, 4
    %v923 = vsel %vm166, %v922, %v881
    %v924 = vrot.slane %v881, 4
    %v925 = vsel %vm166, %v893, %v924
    %v927 = vunpack.c.l.s4 1934713408
    %v928 = vunpack.c.0.s8 %v927
    %v929 = vperm.slane %v923, %v928
    %v931 = vunpack.c.l.s4 1934713408
    %v932 = vunpack.c.0.s8 %v931
    %v933 = vperm.slane %v925, %v932
    %v934 = vrot.slane %v897, 4
    %v935 = vsel %vm166, %v934, %v885
    %v936 = vrot.slane %v885, 4
    %v937 = vsel %vm166, %v897, %v936
    %v939 = vunpack.c.l.s4 1934713408
    %v940 = vunpack.c.0.s8 %v939
    %v941 = vperm.slane %v935, %v940
    %v943 = vunpack.c.l.s4 1934713408
    %v944 = vunpack.c.0.s8 %v943
    %v945 = vperm.slane %v937, %v944
    %v946 = vrot.slane %v929, 4
    %v947 = vsel %vm166, %v946, %v905
    %v948 = vrot.slane %v905, 4
    %v949 = vsel %vm166, %v929, %v948
    %v950 = vrot.slane %v933, 4
    %v951 = vsel %vm166, %v950, %v909
    %v952 = vrot.slane %v909, 4
    %v953 = vsel %vm166, %v933, %v952
    %v954 = vrot.slane %v941, 4
    %v955 = vsel %vm166, %v954, %v917
    %v956 = vrot.slane %v917, 4
    %v957 = vsel %vm166, %v941, %v956
    %v958 = vrot.slane %v945, 4
    %v959 = vsel %vm166, %v958, %v921
    %v960 = vrot.slane %v921, 4
    %v961 = vsel %vm166, %v945, %v960
    %v962 = vrot.slane %v844, 4
    %v963 = vsel %vm166, %v962, %v842
    %v964 = vrot.slane %v842, 4
    %v965 = vsel %vm166, %v844, %v964
    %v967 = vunpack.c.l.s4 1983009808
    %v968 = vunpack.c.0.s8 %v967
    %v969 = vperm.slane %v963, %v968
    %v971 = vunpack.c.l.s4 1983009808
    %v972 = vunpack.c.0.s8 %v971
    %v973 = vperm.slane %v965, %v972
    %v974 = vrot.slane %v845, 4
    %v975 = vsel %vm166, %v974, %v843
    %v976 = vrot.slane %v843, 4
    %v977 = vsel %vm166, %v845, %v976
    %v979 = vunpack.c.l.s4 1983009808
    %v980 = vunpack.c.0.s8 %v979
    %v981 = vperm.slane %v975, %v980
    %v983 = vunpack.c.l.s4 1983009808
    %v984 = vunpack.c.0.s8 %v983
    %v985 = vperm.slane %v977, %v984
    %v986 = vrot.slane %v848, 4
    %v987 = vsel %vm166, %v986, %v846
    %v988 = vrot.slane %v846, 4
    %v989 = vsel %vm166, %v848, %v988
    %v991 = vunpack.c.l.s4 1983009808
    %v992 = vunpack.c.0.s8 %v991
    %v993 = vperm.slane %v987, %v992
    %v995 = vunpack.c.l.s4 1983009808
    %v996 = vunpack.c.0.s8 %v995
    %v997 = vperm.slane %v989, %v996
    %v998 = vrot.slane %v849, 4
    %v999 = vsel %vm166, %v998, %v847
    %v1000 = vrot.slane %v847, 4
    %v1001 = vsel %vm166, %v849, %v1000
    %v1003 = vunpack.c.l.s4 1983009808
    %v1004 = vunpack.c.0.s8 %v1003
    %v1005 = vperm.slane %v999, %v1004
    %v1007 = vunpack.c.l.s4 1983009808
    %v1008 = vunpack.c.0.s8 %v1007
    %v1009 = vperm.slane %v1001, %v1008
    %v1010 = vrot.slane %v981, 4
    %v1011 = vsel %vm166, %v1010, %v969
    %v1012 = vrot.slane %v969, 4
    %v1013 = vsel %vm166, %v981, %v1012
    %v1015 = vunpack.c.l.s4 1934713408
    %v1016 = vunpack.c.0.s8 %v1015
    %v1017 = vperm.slane %v1011, %v1016
    %v1019 = vunpack.c.l.s4 1934713408
    %v1020 = vunpack.c.0.s8 %v1019
    %v1021 = vperm.slane %v1013, %v1020
    %v1022 = vrot.slane %v985, 4
    %v1023 = vsel %vm166, %v1022, %v973
    %v1024 = vrot.slane %v973, 4
    %v1025 = vsel %vm166, %v985, %v1024
    %v1027 = vunpack.c.l.s4 1934713408
    %v1028 = vunpack.c.0.s8 %v1027
    %v1029 = vperm.slane %v1023, %v1028
    %v1031 = vunpack.c.l.s4 1934713408
    %v1032 = vunpack.c.0.s8 %v1031
    %v1033 = vperm.slane %v1025, %v1032
    %v1034 = vrot.slane %v1005, 4
    %v1035 = vsel %vm166, %v1034, %v993
    %v1036 = vrot.slane %v993, 4
    %v1037 = vsel %vm166, %v1005, %v1036
    %v1039 = vunpack.c.l.s4 1934713408
    %v1040 = vunpack.c.0.s8 %v1039
    %v1041 = vperm.slane %v1035, %v1040
    %v1043 = vunpack.c.l.s4 1934713408
    %v1044 = vunpack.c.0.s8 %v1043
    %v1045 = vperm.slane %v1037, %v1044
    %v1046 = vrot.slane %v1009, 4
    %v1047 = vsel %vm166, %v1046, %v997
    %v1048 = vrot.slane %v997, 4
    %v1049 = vsel %vm166, %v1009, %v1048
    %v1051 = vunpack.c.l.s4 1934713408
    %v1052 = vunpack.c.0.s8 %v1051
    %v1053 = vperm.slane %v1047, %v1052
    %v1055 = vunpack.c.l.s4 1934713408
    %v1056 = vunpack.c.0.s8 %v1055
    %v1057 = vperm.slane %v1049, %v1056
    %v1058 = vrot.slane %v1041, 4
    %v1059 = vsel %vm166, %v1058, %v1017
    %v1060 = vrot.slane %v1017, 4
    %v1061 = vsel %vm166, %v1041, %v1060
    %v1062 = vrot.slane %v1045, 4
    %v1063 = vsel %vm166, %v1062, %v1021
    %v1064 = vrot.slane %v1021, 4
    %v1065 = vsel %vm166, %v1045, %v1064
    %v1066 = vrot.slane %v1053, 4
    %v1067 = vsel %vm166, %v1066, %v1029
    %v1068 = vrot.slane %v1029, 4
    %v1069 = vsel %vm166, %v1053, %v1068
    %v1070 = vrot.slane %v1057, 4
    %v1071 = vsel %vm166, %v1070, %v1033
    %v1072 = vrot.slane %v1033, 4
    %v1073 = vsel %vm166, %v1057, %v1072
    %v1074 = vrot.slane %v803, 4
    %v1075 = vsel %vm166, %v1074, %v801
    %v1077 = vunpack.c.l.s4 1983009808
    %v1078 = vunpack.c.0.s8 %v1077
    %v1079 = vperm.slane %v1075, %v1078
    %v1080 = vrot.slane %v804, 4
    %v1081 = vsel %vm166, %v1080, %v802
    %v1083 = vunpack.c.l.s4 1983009808
    %v1084 = vunpack.c.0.s8 %v1083
    %v1085 = vperm.slane %v1081, %v1084
    %v1086 = vrot.slane %v807, 4
    %v1087 = vsel %vm166, %v1086, %v805
    %v1089 = vunpack.c.l.s4 1983009808
    %v1090 = vunpack.c.0.s8 %v1089
    %v1091 = vperm.slane %v1087, %v1090
    %v1092 = vrot.slane %v808, 4
    %v1093 = vsel %vm166, %v1092, %v806
    %v1095 = vunpack.c.l.s4 1983009808
    %v1096 = vunpack.c.0.s8 %v1095
    %v1097 = vperm.slane %v1093, %v1096
    %v1098 = vrot.slane %v1085, 4
    %v1099 = vsel %vm166, %v1098, %v1079
    %v1101 = vunpack.c.l.s4 1934713408
    %v1102 = vunpack.c.0.s8 %v1101
    %v1103 = vperm.slane %v1099, %v1102
    %v1104 = vrot.slane %v1097, 4
    %v1105 = vsel %vm166, %v1104, %v1091
    %v1107 = vunpack.c.l.s4 1934713408
    %v1108 = vunpack.c.0.s8 %v1107
    %v1109 = vperm.slane %v1105, %v1108
    %v1110 = vrot.slane %v1109, 4
    %v1111 = vsel %vm166, %v1110, %v1103
    %v1112 = vrot.slane %v811, 4
    %v1113 = vsel %vm166, %v1112, %v809
    %v1115 = vunpack.c.l.s4 1983009808
    %v1116 = vunpack.c.0.s8 %v1115
    %v1117 = vperm.slane %v1113, %v1116
    %v1118 = vrot.slane %v812, 4
    %v1119 = vsel %vm166, %v1118, %v810
    %v1121 = vunpack.c.l.s4 1983009808
    %v1122 = vunpack.c.0.s8 %v1121
    %v1123 = vperm.slane %v1119, %v1122
    %v1124 = vrot.slane %v815, 4
    %v1125 = vsel %vm166, %v1124, %v813
    %v1127 = vunpack.c.l.s4 1983009808
    %v1128 = vunpack.c.0.s8 %v1127
    %v1129 = vperm.slane %v1125, %v1128
    %v1130 = vrot.slane %v816, 4
    %v1131 = vsel %vm166, %v1130, %v814
    %v1133 = vunpack.c.l.s4 1983009808
    %v1134 = vunpack.c.0.s8 %v1133
    %v1135 = vperm.slane %v1131, %v1134
    %v1136 = vrot.slane %v1123, 4
    %v1137 = vsel %vm166, %v1136, %v1117
    %v1139 = vunpack.c.l.s4 1934713408
    %v1140 = vunpack.c.0.s8 %v1139
    %v1141 = vperm.slane %v1137, %v1140
    %v1142 = vrot.slane %v1135, 4
    %v1143 = vsel %vm166, %v1142, %v1129
    %v1145 = vunpack.c.l.s4 1934713408
    %v1146 = vunpack.c.0.s8 %v1145
    %v1147 = vperm.slane %v1143, %v1146
    %v1148 = vrot.slane %v1147, 4
    %v1149 = vsel %vm166, %v1148, %v1141
    %1150 = vst [vmem:[#allocation16] sm:$0xff] %v947
    %1151 = vst [vmem:[#allocation16 + $0x8] sm:$0xff] %v1059
    %1152 = vst [vmem:[#allocation16 + $0x10] sm:$0xff] %v949
    %1153 = vst [vmem:[#allocation16 + $0x18] sm:$0xff] %v1061
    %1154 = vst [vmem:[#allocation16 + $0x20] sm:$0xff] %v951
    %1155 = vst [vmem:[#allocation16 + $0x28] sm:$0xff] %v1063
    %1156 = vst [vmem:[#allocation16 + $0x30] sm:$0xff] %v953
    %1157 = vst [vmem:[#allocation16 + $0x38] sm:$0xff] %v1065
    %1158 = vst [vmem:[#allocation16 + $0x40] sm:$0xff] %v955
    %1159 = vst [vmem:[#allocation16 + $0x48] sm:$0xff] %v1067
    %1160 = vst [vmem:[#allocation16 + $0x50] sm:$0xff] %v957
    %1161 = vst [vmem:[#allocation16 + $0x58] sm:$0xff] %v1069
    %1162 = vst [vmem:[#allocation16 + $0x60] sm:$0xff] %v959
    %1163 = vst [vmem:[#allocation16 + $0x68] sm:$0xff] %v1071
    %1164 = vst [vmem:[#allocation16 + $0x70] sm:$0xff] %v961
    %1165 = vst [vmem:[#allocation16 + $0x78] sm:$0xff] %v1073
    %1166 = vst [vmem:[#allocation16 + $0x80] sm:$0xff] %v1111
    %1167 = vst [vmem:[#allocation16 + $0x88] sm:$0xff] %v1149
    %v1168 = vld [vmem:[%s4] sm:$0xf]
    %v1169 = vld [vmem:[%s4 + $0x4] sm:$0xf]
    %v1170 = vld [vmem:[%s4 + $0x8] sm:$0xf]
    %v1171 = vld [vmem:[%s4 + $0xc] sm:$0xf]
    %v1172 = vld [vmem:[#allocation5] sm:$0x1]
    %v1174 = vperm.slane %v1172, 0
    %v1180 = vunpack.c.l.b16 %v1168
    %v1181 = vunpack.c.l.b16 %v1169
    %v1182 = vunpack.c.l.b16 %v1170
    %v1183 = vunpack.c.l.b16 %v1171
    %v1184 = vpack.c.b16 %v1181, %v1180
    %v1185 = vpack.c.b16 %v1183, %v1182
    %1188 = vmatpush.bf16.msra.mxu0 0
    %1189 = vmatpush.bf16.msra.mxu0 0
    %1190 = vmatpush.bf16.msra.mxu0 0
    %1191 = vmatpush.bf16.msra.mxu0 0
    %1192 = vmatpush.bf16.msra.mxu0 0
    %1193 = vmatpush.bf16.msra.mxu0 0
    %1194 = vmatpush.bf16.msra.mxu0 %v1185
    %1195 = vmatpush.bf16.msra.mxu0 %v1184
    %1196 = vmatmul.bf16.gmra.mxu0 %v452
    %v1197 = vpop.f32.mrf.mxu0
    %v1198 = vadd.f32 %v1174, %v1197
    %v1199 = vpop.f32.mrf.mxu0
    %v1200 = vadd.f32 %v1174, %v1199
    %1201 = vmatmul.bf16.gmra.mxu0 %v455
    %v1202 = vpop.f32.mrf.mxu0
    %v1203 = vadd.f32 %v1174, %v1202
    %v1204 = vpop.f32.mrf.mxu0
    %v1205 = vadd.f32 %v1174, %v1204
    %1206 = vmatmul.bf16.gmra.mxu0 %v458
    %v1207 = vpop.f32.mrf.mxu0
    %v1208 = vadd.f32 %v1174, %v1207
    %v1209 = vpop.f32.mrf.mxu0
    %v1210 = vadd.f32 %v1174, %v1209
    %1211 = vmatmul.bf16.gmra.mxu0 %v461
    %v1212 = vpop.f32.mrf.mxu0
    %v1213 = vadd.f32 %v1174, %v1212
    %v1214 = vpop.f32.mrf.mxu0
    %v1215 = vadd.f32 %v1174, %v1214
    %1216 = vmatmul.bf16.gmra.mxu0 %v464
    %v1217 = vpop.f32.mrf.mxu0
    %v1218 = vadd.f32 %v1174, %v1217
    %v1219 = vpop.f32.mrf.mxu0
    %v1220 = vadd.f32 %v1174, %v1219
    %1221 = vmatmul.bf16.gmra.mxu0 %v467
    %v1222 = vpop.f32.mrf.mxu0
    %v1223 = vadd.f32 %v1174, %v1222
    %v1224 = vpop.f32.mrf.mxu0
    %v1225 = vadd.f32 %v1174, %v1224
    %1226 = vmatmul.bf16.gmra.mxu0 %v470
    %v1227 = vpop.f32.mrf.mxu0
    %v1228 = vadd.f32 %v1174, %v1227
    %v1229 = vpop.f32.mrf.mxu0
    %v1230 = vadd.f32 %v1174, %v1229
    %1231 = vmatmul.bf16.gmra.mxu0 %v473
    %v1232 = vpop.f32.mrf.mxu0
    %v1233 = vadd.f32 %v1174, %v1232
    %v1234 = vpop.f32.mrf.mxu0
    %v1235 = vadd.f32 %v1174, %v1234
    %1236 = vdwg.mxu0
    %v1253 = vrot.slane %v834, 1
    %v1254 = vrot.slane %v834, 2
    %v1255 = vrot.slane %v834, 3
    %v1256 = vrot.slane %v834, 4
    %v1257 = vrot.slane %v834, 5
    %v1258 = vrot.slane %v834, 6
    %v1259 = vrot.slane %v834, 7
    %v1260 = vrot.slane %v835, 1
    %v1261 = vrot.slane %v835, 2
    %v1262 = vrot.slane %v835, 3
    %v1263 = vrot.slane %v835, 4
    %v1264 = vrot.slane %v835, 5
    %v1265 = vrot.slane %v835, 6
    %v1266 = vrot.slane %v835, 7
    %v1267 = vrot.slane %v836, 1
    %v1268 = vrot.slane %v836, 2
    %v1269 = vrot.slane %v836, 3
    %v1270 = vrot.slane %v836, 4
    %v1271 = vrot.slane %v836, 5
    %v1272 = vrot.slane %v836, 6
    %v1273 = vrot.slane %v836, 7
    %v1274 = vrot.slane %v837, 1
    %v1275 = vrot.slane %v837, 2
    %v1276 = vrot.slane %v837, 3
    %v1277 = vrot.slane %v837, 4
    %v1278 = vrot.slane %v837, 5
    %v1279 = vrot.slane %v837, 6
    %v1280 = vrot.slane %v837, 7
    %v1281 = vrot.slane %v838, 1
    %v1282 = vrot.slane %v838, 2
    %v1283 = vrot.slane %v838, 3
    %v1284 = vrot.slane %v838, 4
    %v1285 = vrot.slane %v838, 5
    %v1286 = vrot.slane %v838, 6
    %v1287 = vrot.slane %v838, 7
    %v1288 = vrot.slane %v839, 1
    %v1289 = vrot.slane %v839, 2
    %v1290 = vrot.slane %v839, 3
    %v1291 = vrot.slane %v839, 4
    %v1292 = vrot.slane %v839, 5
    %v1293 = vrot.slane %v839, 6
    %v1294 = vrot.slane %v839, 7
    %v1295 = vrot.slane %v840, 1
    %v1296 = vrot.slane %v840, 2
    %v1297 = vrot.slane %v840, 3
    %v1298 = vrot.slane %v840, 4
    %v1299 = vrot.slane %v840, 5
    %v1300 = vrot.slane %v840, 6
    %v1301 = vrot.slane %v840, 7
    %v1302 = vrot.slane %v841, 1
    %v1303 = vrot.slane %v841, 2
    %v1304 = vrot.slane %v841, 3
    %v1305 = vrot.slane %v841, 4
    %v1306 = vrot.slane %v841, 5
    %v1307 = vrot.slane %v841, 6
    %v1308 = vrot.slane %v841, 7
    %v1309 = vrot.slane %v842, 1
    %v1310 = vrot.slane %v842, 2
    %v1311 = vrot.slane %v842, 3
    %v1312 = vrot.slane %v842, 4
    %v1313 = vrot.slane %v842, 5
    %v1314 = vrot.slane %v842, 6
    %v1315 = vrot.slane %v842, 7
    %v1316 = vrot.slane %v843, 1
    %v1317 = vrot.slane %v843, 2
    %v1318 = vrot.slane %v843, 3
    %v1319 = vrot.slane %v843, 4
    %v1320 = vrot.slane %v843, 5
    %v1321 = vrot.slane %v843, 6
    %v1322 = vrot.slane %v843, 7
    %v1323 = vrot.slane %v844, 1
    %v1324 = vrot.slane %v844, 2
    %v1325 = vrot.slane %v844, 3
    %v1326 = vrot.slane %v844, 4
    %v1327 = vrot.slane %v844, 5
    %v1328 = vrot.slane %v844, 6
    %v1329 = vrot.slane %v844, 7
    %v1330 = vrot.slane %v845, 1
    %v1331 = vrot.slane %v845, 2
    %v1332 = vrot.slane %v845, 3
    %v1333 = vrot.slane %v845, 4
    %v1334 = vrot.slane %v845, 5
    %v1335 = vrot.slane %v845, 6
    %v1336 = vrot.slane %v845, 7
    %v1337 = vrot.slane %v846, 1
    %v1338 = vrot.slane %v846, 2
    %v1339 = vrot.slane %v846, 3
    %v1340 = vrot.slane %v846, 4
    %v1341 = vrot.slane %v846, 5
    %v1342 = vrot.slane %v846, 6
    %v1343 = vrot.slane %v846, 7
    %v1344 = vrot.slane %v847, 1
    %v1345 = vrot.slane %v847, 2
    %v1346 = vrot.slane %v847, 3
    %v1347 = vrot.slane %v847, 4
    %v1348 = vrot.slane %v847, 5
    %v1349 = vrot.slane %v847, 6
    %v1350 = vrot.slane %v847, 7
    %v1351 = vrot.slane %v848, 1
    %v1352 = vrot.slane %v848, 2
    %v1353 = vrot.slane %v848, 3
    %v1354 = vrot.slane %v848, 4
    %v1355 = vrot.slane %v848, 5
    %v1356 = vrot.slane %v848, 6
    %v1357 = vrot.slane %v848, 7
    %v1358 = vrot.slane %v849, 1
    %v1359 = vrot.slane %v849, 2
    %v1360 = vrot.slane %v849, 3
    %v1361 = vrot.slane %v849, 4
    %v1362 = vrot.slane %v849, 5
    %v1363 = vrot.slane %v849, 6
    %v1364 = vrot.slane %v849, 7
    %1365 = vst [vmem:[#allocation1] ss:$9 sm:$0xff] %v834
    %s1366 = scalar_lea.vmem [#allocation1], 1
    %1367 = vst [vmem:[%s1366] ss:$9 sm:$0xff] %v1253
    %s1368 = scalar_lea.vmem [#allocation1], 2
    %1369 = vst [vmem:[%s1368] ss:$9 sm:$0xff] %v1254
    %s1370 = scalar_lea.vmem [#allocation1], 3
    %1371 = vst [vmem:[%s1370] ss:$9 sm:$0xff] %v1255
    %s1372 = scalar_lea.vmem [#allocation1], 4
    %1373 = vst [vmem:[%s1372] ss:$9 sm:$0xff] %v1256
    %s1374 = scalar_lea.vmem [#allocation1], 5
    %1375 = vst [vmem:[%s1374] ss:$9 sm:$0xff] %v1257
    %s1376 = scalar_lea.vmem [#allocation1], 6
    %1377 = vst [vmem:[%s1376] ss:$9 sm:$0xff] %v1258
    %s1378 = scalar_lea.vmem [#allocation1], 7
    %1379 = vst [vmem:[%s1378] ss:$9 sm:$0xff] %v1259
    %v1380 = vld [vmem:[#allocation1] sm:$0xff]
    %1381 = vst [vmem:[#allocation1] ss:$9 sm:$0xff] %v801
    %1382 = vst [vmem:[%s1366] ss:$9 sm:$0xff] %v835
    %1383 = vst [vmem:[%s1368] ss:$9 sm:$0xff] %v1260
    %1384 = vst [vmem:[%s1370] ss:$9 sm:$0xff] %v1261
    %1385 = vst [vmem:[%s1372] ss:$9 sm:$0xff] %v1262
    %1386 = vst [vmem:[%s1374] ss:$9 sm:$0xff] %v1263
    %1387 = vst [vmem:[%s1376] ss:$9 sm:$0xff] %v1264
    %1388 = vst [vmem:[%s1378] ss:$9 sm:$0xff] %v1265
    %v1389 = vld [vmem:[#allocation1] sm:$0xff]
    %1390 = vst [vmem:[#allocation1] ss:$9 sm:$0xff] %v1266
    %1391 = vst [vmem:[%s1366] ss:$9 sm:$0xff] %v802
    %1392 = vst [vmem:[%s1368] ss:$9 sm:$0xff] %v836
    %1393 = vst [vmem:[%s1370] ss:$9 sm:$0xff] %v1267
    %1394 = vst [vmem:[%s1372] ss:$9 sm:$0xff] %v1268
    %1395 = vst [vmem:[%s1374] ss:$9 sm:$0xff] %v1269
    %1396 = vst [vmem:[%s1376] ss:$9 sm:$0xff] %v1270
    %1397 = vst [vmem:[%s1378] ss:$9 sm:$0xff] %v1271
    %v1398 = vld [vmem:[#allocation1] sm:$0xff]
    %1399 = vst [vmem:[#allocation1] ss:$9 sm:$0xff] %v1272
    %1400 = vst [vmem:[%s1366] ss:$9 sm:$0xff] %v1273
    %1401 = vst [vmem:[%s1368] ss:$9 sm:$0xff] %v803
    %1402 = vst [vmem:[%s1370] ss:$9 sm:$0xff] %v837
    %1403 = vst [vmem:[%s1372] ss:$9 sm:$0xff] %v1274
    %1404 = vst [vmem:[%s1374] ss:$9 sm:$0xff] %v1275
    %1405 = vst [vmem:[%s1376] ss:$9 sm:$0xff] %v1276
    %1406 = vst [vmem:[%s1378] ss:$9 sm:$0xff] %v1277
    %v1407 = vld [vmem:[#allocation1] sm:$0xff]
    %1408 = vst [vmem:[#allocation1] ss:$9 sm:$0xff] %v1278
    %1409 = vst [vmem:[%s1366] ss:$9 sm:$0xff] %v1279
    %1410 = vst [vmem:[%s1368] ss:$9 sm:$0xff] %v1280
    %1411 = vst [vmem:[%s1370] ss:$9 sm:$0xff] %v804
    %1412 = vst [vmem:[%s1372] ss:$9 sm:$0xff] %v838
    %1413 = vst [vmem:[%s1374] ss:$9 sm:$0xff] %v1281
    %1414 = vst [vmem:[%s1376] ss:$9 sm:$0xff] %v1282
    %1415 = vst [vmem:[%s1378] ss:$9 sm:$0xff] %v1283
    %v1416 = vld [vmem:[#allocation1] sm:$0xff]
    %1417 = vst [vmem:[#allocation1] ss:$9 sm:$0xff] %v1284
    %1418 = vst [vmem:[%s1366] ss:$9 sm:$0xff] %v1285
    %1419 = vst [vmem:[%s1368] ss:$9 sm:$0xff] %v1286
    %1420 = vst [vmem:[%s1370] ss:$9 sm:$0xff] %v1287
    %1421 = vst [vmem:[%s1372] ss:$9 sm:$0xff] %v805
    %1422 = vst [vmem:[%s1374] ss:$9 sm:$0xff] %v839
    %1423 = vst [vmem:[%s1376] ss:$9 sm:$0xff] %v1288
    %1424 = vst [vmem:[%s1378] ss:$9 sm:$0xff] %v1289
    %v1425 = vld [vmem:[#allocation1] sm:$0xff]
    %1426 = vst [vmem:[#allocation1] ss:$9 sm:$0xff] %v1290
    %1427 = vst [vmem:[%s1366] ss:$9 sm:$0xff] %v1291
    %1428 = vst [vmem:[%s1368] ss:$9 sm:$0xff] %v1292
    %1429 = vst [vmem:[%s1370] ss:$9 sm:$0xff] %v1293
    %1430 = vst [vmem:[%s1372] ss:$9 sm:$0xff] %v1294
    %1431 = vst [vmem:[%s1374] ss:$9 sm:$0xff] %v806
    %1432 = vst [vmem:[%s1376] ss:$9 sm:$0xff] %v840
    %1433 = vst [vmem:[%s1378] ss:$9 sm:$0xff] %v1295
    %v1434 = vld [vmem:[#allocation1] sm:$0xff]
    %1435 = vst [vmem:[#allocation1] ss:$9 sm:$0xff] %v1296
    %1436 = vst [vmem:[%s1366] ss:$9 sm:$0xff] %v1297
    %1437 = vst [vmem:[%s1368] ss:$9 sm:$0xff] %v1298
    %1438 = vst [vmem:[%s1370] ss:$9 sm:$0xff] %v1299
    %1439 = vst [vmem:[%s1372] ss:$9 sm:$0xff] %v1300
    %1440 = vst [vmem:[%s1374] ss:$9 sm:$0xff] %v1301
    %1441 = vst [vmem:[%s1376] ss:$9 sm:$0xff] %v807
    %1442 = vst [vmem:[%s1378] ss:$9 sm:$0xff] %v841
    %v1443 = vld [vmem:[#allocation1] sm:$0xff]
    %1444 = vst [vmem:[#allocation1] ss:$9 sm:$0xff] %v1302
    %1445 = vst [vmem:[%s1366] ss:$9 sm:$0xff] %v1303
    %1446 = vst [vmem:[%s1368] ss:$9 sm:$0xff] %v1304
    %1447 = vst [vmem:[%s1370] ss:$9 sm:$0xff] %v1305
    %1448 = vst [vmem:[%s1372] ss:$9 sm:$0xff] %v1306
    %1449 = vst [vmem:[%s1374] ss:$9 sm:$0xff] %v1307
    %1450 = vst [vmem:[%s1376] ss:$9 sm:$0xff] %v1308
    %1451 = vst [vmem:[%s1378] ss:$9 sm:$0xff] %v808
    %v1452 = vld [vmem:[#allocation1] sm:$0xff]
    %1453 = vst [vmem:[#allocation1] ss:$9 sm:$0xff] %v842
    %1454 = vst [vmem:[%s1366] ss:$9 sm:$0xff] %v1309
    %1455 = vst [vmem:[%s1368] ss:$9 sm:$0xff] %v1310
    %1456 = vst [vmem:[%s1370] ss:$9 sm:$0xff] %v1311
    %1457 = vst [vmem:[%s1372] ss:$9 sm:$0xff] %v1312
    %1458 = vst [vmem:[%s1374] ss:$9 sm:$0xff] %v1313
    %1459 = vst [vmem:[%s1376] ss:$9 sm:$0xff] %v1314
    %1460 = vst [vmem:[%s1378] ss:$9 sm:$0xff] %v1315
    %v1461 = vld [vmem:[#allocation1] sm:$0xff]
    %1462 = vst [vmem:[#allocation1] ss:$9 sm:$0xff] %v809
    %1463 = vst [vmem:[%s1366] ss:$9 sm:$0xff] %v843
    %1464 = vst [vmem:[%s1368] ss:$9 sm:$0xff] %v1316
    %1465 = vst [vmem:[%s1370] ss:$9 sm:$0xff] %v1317
    %1466 = vst [vmem:[%s1372] ss:$9 sm:$0xff] %v1318
    %1467 = vst [vmem:[%s1374] ss:$9 sm:$0xff] %v1319
    %1468 = vst [vmem:[%s1376] ss:$9 sm:$0xff] %v1320
    %1469 = vst [vmem:[%s1378] ss:$9 sm:$0xff] %v1321
    %v1470 = vld [vmem:[#allocation1] sm:$0xff]
    %1471 = vst [vmem:[#allocation1] ss:$9 sm:$0xff] %v1322
    %1472 = vst [vmem:[%s1366] ss:$9 sm:$0xff] %v810
    %1473 = vst [vmem:[%s1368] ss:$9 sm:$0xff] %v844
    %1474 = vst [vmem:[%s1370] ss:$9 sm:$0xff] %v1323
    %1475 = vst [vmem:[%s1372] ss:$9 sm:$0xff] %v1324
    %1476 = vst [vmem:[%s1374] ss:$9 sm:$0xff] %v1325
    %1477 = vst [vmem:[%s1376] ss:$9 sm:$0xff] %v1326
    %1478 = vst [vmem:[%s1378] ss:$9 sm:$0xff] %v1327
    %v1479 = vld [vmem:[#allocation1] sm:$0xff]
    %1480 = vst [vmem:[#allocation1] ss:$9 sm:$0xff] %v1328
    %1481 = vst [vmem:[%s1366] ss:$9 sm:$0xff] %v1329
    %1482 = vst [vmem:[%s1368] ss:$9 sm:$0xff] %v811
    %1483 = vst [vmem:[%s1370] ss:$9 sm:$0xff] %v845
    %1484 = vst [vmem:[%s1372] ss:$9 sm:$0xff] %v1330
    %1485 = vst [vmem:[%s1374] ss:$9 sm:$0xff] %v1331
    %1486 = vst [vmem:[%s1376] ss:$9 sm:$0xff] %v1332
    %1487 = vst [vmem:[%s1378] ss:$9 sm:$0xff] %v1333
    %v1488 = vld [vmem:[#allocation1] sm:$0xff]
    %1489 = vst [vmem:[#allocation1] ss:$9 sm:$0xff] %v1334
    %1490 = vst [vmem:[%s1366] ss:$9 sm:$0xff] %v1335
    %1491 = vst [vmem:[%s1368] ss:$9 sm:$0xff] %v1336
    %1492 = vst [vmem:[%s1370] ss:$9 sm:$0xff] %v812
    %1493 = vst [vmem:[%s1372] ss:$9 sm:$0xff] %v846
    %1494 = vst [vmem:[%s1374] ss:$9 sm:$0xff] %v1337
    %1495 = vst [vmem:[%s1376] ss:$9 sm:$0xff] %v1338
    %1496 = vst [vmem:[%s1378] ss:$9 sm:$0xff] %v1339
    %v1497 = vld [vmem:[#allocation1] sm:$0xff]
    %1498 = vst [vmem:[#allocation1] ss:$9 sm:$0xff] %v1340
    %1499 = vst [vmem:[%s1366] ss:$9 sm:$0xff] %v1341
    %1500 = vst [vmem:[%s1368] ss:$9 sm:$0xff] %v1342
    %1501 = vst [vmem:[%s1370] ss:$9 sm:$0xff] %v1343
    %1502 = vst [vmem:[%s1372] ss:$9 sm:$0xff] %v813
    %1503 = vst [vmem:[%s1374] ss:$9 sm:$0xff] %v847
    %1504 = vst [vmem:[%s1376] ss:$9 sm:$0xff] %v1344
    %1505 = vst [vmem:[%s1378] ss:$9 sm:$0xff] %v1345
    %v1506 = vld [vmem:[#allocation1] sm:$0xff]
    %1507 = vst [vmem:[#allocation1] ss:$9 sm:$0xff] %v1346
    %1508 = vst [vmem:[%s1366] ss:$9 sm:$0xff] %v1347
    %1509 = vst [vmem:[%s1368] ss:$9 sm:$0xff] %v1348
    %1510 = vst [vmem:[%s1370] ss:$9 sm:$0xff] %v1349
    %1511 = vst [vmem:[%s1372] ss:$9 sm:$0xff] %v1350
    %1512 = vst [vmem:[%s1374] ss:$9 sm:$0xff] %v814
    %1513 = vst [vmem:[%s1376] ss:$9 sm:$0xff] %v848
    %1514 = vst [vmem:[%s1378] ss:$9 sm:$0xff] %v1351
    %v1515 = vld [vmem:[#allocation1] sm:$0xff]
    %1516 = vst [vmem:[#allocation1] ss:$9 sm:$0xff] %v1352
    %1517 = vst [vmem:[%s1366] ss:$9 sm:$0xff] %v1353
    %1518 = vst [vmem:[%s1368] ss:$9 sm:$0xff] %v1354
    %1519 = vst [vmem:[%s1370] ss:$9 sm:$0xff] %v1355
    %1520 = vst [vmem:[%s1372] ss:$9 sm:$0xff] %v1356
    %1521 = vst [vmem:[%s1374] ss:$9 sm:$0xff] %v1357
    %1522 = vst [vmem:[%s1376] ss:$9 sm:$0xff] %v815
    %1523 = vst [vmem:[%s1378] ss:$9 sm:$0xff] %v849
    %v1524 = vld [vmem:[#allocation1] sm:$0xff]
    %1525 = vst [vmem:[#allocation1] ss:$9 sm:$0xff] %v1358
    %1526 = vst [vmem:[%s1366] ss:$9 sm:$0xff] %v1359
    %1527 = vst [vmem:[%s1368] ss:$9 sm:$0xff] %v1360
    %1528 = vst [vmem:[%s1370] ss:$9 sm:$0xff] %v1361
    %1529 = vst [vmem:[%s1372] ss:$9 sm:$0xff] %v1362
    %1530 = vst [vmem:[%s1374] ss:$9 sm:$0xff] %v1363
    %1531 = vst [vmem:[%s1376] ss:$9 sm:$0xff] %v1364
    %1532 = vst [vmem:[%s1378] ss:$9 sm:$0xff] %v816
    %v1533 = vld [vmem:[#allocation1] sm:$0xff]
    %v1552 = vpack.c.bf16 %v1389, %v1380
    %v1553 = vpack.c.bf16 %v1407, %v1398
    %v1554 = vpack.c.bf16 %v1425, %v1416
    %v1555 = vpack.c.bf16 %v1443, %v1434
    %v1556 = vpack.c.bf16 %v1461, %v1452
    %v1557 = vpack.c.bf16 %v1479, %v1470
    %v1558 = vpack.c.bf16 %v1497, %v1488
    %v1559 = vpack.c.bf16 %v1515, %v1506
    %v1560 = vpack.c.bf16 %v1533, %v1524
    %v1561 = vld [vmem:[#allocation7] sm:$0xf]
    %v1562 = vld [vmem:[#allocation7 + $0x4] sm:$0xf]
    %v1563 = vld [vmem:[#allocation8] sm:$0x1]
    %v1565 = vperm.slane %v1563, 0
    %v1569 = vunpack.c.l.b16 %v1561
    %v1570 = vunpack.c.l.b16 %v1562
    %v1571 = vpack.c.b16 %v1570, %v1569
    %vm1573 = vcmask 130048
    %v1575 = vsel %vm1573, %v1552, 0
    %v1578 = vsel %vm1573, %v1553, 0
    %v1581 = vsel %vm1573, %v1554, 0
    %v1584 = vsel %vm1573, %v1555, 0
    %v1587 = vsel %vm1573, %v1556, 0
    %v1590 = vsel %vm1573, %v1557, 0
    %v1593 = vsel %vm1573, %v1558, 0
    %v1596 = vsel %vm1573, %v1559, 0
    %v1599 = vsel %vm1573, %v1560, 0
    %1601 = vmatpush.bf16.msra.mxu0 0
    %1602 = vmatpush.bf16.msra.mxu0 0
    %1603 = vmatpush.bf16.msra.mxu0 0
    %1604 = vmatpush.bf16.msra.mxu0 0
    %1605 = vmatpush.bf16.msra.mxu0 0
    %1606 = vmatpush.bf16.msra.mxu0 0
    %1607 = vmatpush.bf16.msra.mxu0 0
    %1608 = vmatpush.bf16.msra.mxu0 %v1571
    %1609 = vmatmul.bf16.gmra.mxu0 %v1575
    %v1610 = vpop.f32.mrf.mxu0
    %v1611 = vadd.f32 %v1565, %v1610
    %v1612 = vpop.f32.mrf.mxu0
    %v1613 = vadd.f32 %v1565, %v1612
    %1614 = vmatmul.bf16.gmra.mxu0 %v1578
    %v1615 = vpop.f32.mrf.mxu0
    %v1616 = vadd.f32 %v1565, %v1615
    %v1617 = vpop.f32.mrf.mxu0
    %v1618 = vadd.f32 %v1565, %v1617
    %1619 = vmatmul.bf16.gmra.mxu0 %v1581
    %v1620 = vpop.f32.mrf.mxu0
    %v1621 = vadd.f32 %v1565, %v1620
    %v1622 = vpop.f32.mrf.mxu0
    %v1623 = vadd.f32 %v1565, %v1622
    %1624 = vmatmul.bf16.gmra.mxu0 %v1584
    %v1625 = vpop.f32.mrf.mxu0
    %v1626 = vadd.f32 %v1565, %v1625
    %v1627 = vpop.f32.mrf.mxu0
    %v1628 = vadd.f32 %v1565, %v1627
    %1629 = vmatmul.bf16.gmra.mxu0 %v1587
    %v1630 = vpop.f32.mrf.mxu0
    %v1631 = vadd.f32 %v1565, %v1630
    %v1632 = vpop.f32.mrf.mxu0
    %v1633 = vadd.f32 %v1565, %v1632
    %1634 = vmatmul.bf16.gmra.mxu0 %v1590
    %v1635 = vpop.f32.mrf.mxu0
    %v1636 = vadd.f32 %v1565, %v1635
    %v1637 = vpop.f32.mrf.mxu0
    %v1638 = vadd.f32 %v1565, %v1637
    %1639 = vmatmul.bf16.gmra.mxu0 %v1593
    %v1640 = vpop.f32.mrf.mxu0
    %v1641 = vadd.f32 %v1565, %v1640
    %v1642 = vpop.f32.mrf.mxu0
    %v1643 = vadd.f32 %v1565, %v1642
    %1644 = vmatmul.bf16.gmra.mxu0 %v1596
    %v1645 = vpop.f32.mrf.mxu0
    %v1646 = vadd.f32 %v1565, %v1645
    %v1647 = vpop.f32.mrf.mxu0
    %v1648 = vadd.f32 %v1565, %v1647
    %1649 = vmatmul.bf16.gmra.mxu0 %v1599
    %v1650 = vpop.f32.mrf.mxu0
    %v1651 = vadd.f32 %v1565, %v1650
    %v1652 = vpop.f32.mrf.mxu0
    %v1653 = vadd.f32 %v1565, %v1652
    %1654 = vdwg.mxu0
    %v1673 = vrot.slane %v1611, 1
    %v1674 = vrot.slane %v1611, 2
    %v1675 = vrot.slane %v1611, 3
    %v1676 = vrot.slane %v1611, 4
    %v1677 = vrot.slane %v1611, 5
    %v1678 = vrot.slane %v1611, 6
    %v1679 = vrot.slane %v1611, 7
    %v1680 = vrot.slane %v1613, 1
    %v1681 = vrot.slane %v1613, 2
    %v1682 = vrot.slane %v1613, 3
    %v1683 = vrot.slane %v1613, 4
    %v1684 = vrot.slane %v1613, 5
    %v1685 = vrot.slane %v1613, 6
    %v1686 = vrot.slane %v1613, 7
    %v1687 = vrot.slane %v1616, 1
    %v1688 = vrot.slane %v1616, 2
    %v1689 = vrot.slane %v1616, 3
    %v1690 = vrot.slane %v1616, 4
    %v1691 = vrot.slane %v1616, 5
    %v1692 = vrot.slane %v1616, 6
    %v1693 = vrot.slane %v1616, 7
    %v1694 = vrot.slane %v1618, 1
    %v1695 = vrot.slane %v1618, 2
    %v1696 = vrot.slane %v1618, 3
    %v1697 = vrot.slane %v1618, 4
    %v1698 = vrot.slane %v1618, 5
    %v1699 = vrot.slane %v1618, 6
    %v1700 = vrot.slane %v1618, 7
    %v1701 = vrot.slane %v1621, 1
    %v1702 = vrot.slane %v1621, 2
    %v1703 = vrot.slane %v1621, 3
    %v1704 = vrot.slane %v1621, 4
    %v1705 = vrot.slane %v1621, 5
    %v1706 = vrot.slane %v1621, 6
    %v1707 = vrot.slane %v1621, 7
    %v1708 = vrot.slane %v1623, 1
    %v1709 = vrot.slane %v1623, 2
    %v1710 = vrot.slane %v1623, 3
    %v1711 = vrot.slane %v1623, 4
    %v1712 = vrot.slane %v1623, 5
    %v1713 = vrot.slane %v1623, 6
    %v1714 = vrot.slane %v1623, 7
    %v1715 = vrot.slane %v1626, 1
    %v1716 = vrot.slane %v1626, 2
    %v1717 = vrot.slane %v1626, 3
    %v1718 = vrot.slane %v1626, 4
    %v1719 = vrot.slane %v1626, 5
    %v1720 = vrot.slane %v1626, 6
    %v1721 = vrot.slane %v1626, 7
    %v1722 = vrot.slane %v1628, 1
    %v1723 = vrot.slane %v1628, 2
    %v1724 = vrot.slane %v1628, 3
    %v1725 = vrot.slane %v1628, 4
    %v1726 = vrot.slane %v1628, 5
    %v1727 = vrot.slane %v1628, 6
    %v1728 = vrot.slane %v1628, 7
    %v1729 = vrot.slane %v1631, 1
    %v1730 = vrot.slane %v1631, 2
    %v1731 = vrot.slane %v1631, 3
    %v1732 = vrot.slane %v1631, 4
    %v1733 = vrot.slane %v1631, 5
    %v1734 = vrot.slane %v1631, 6
    %v1735 = vrot.slane %v1631, 7
    %v1736 = vrot.slane %v1633, 1
    %v1737 = vrot.slane %v1633, 2
    %v1738 = vrot.slane %v1633, 3
    %v1739 = vrot.slane %v1633, 4
    %v1740 = vrot.slane %v1633, 5
    %v1741 = vrot.slane %v1633, 6
    %v1742 = vrot.slane %v1633, 7
    %v1743 = vrot.slane %v1636, 1
    %v1744 = vrot.slane %v1636, 2
    %v1745 = vrot.slane %v1636, 3
    %v1746 = vrot.slane %v1636, 4
    %v1747 = vrot.slane %v1636, 5
    %v1748 = vrot.slane %v1636, 6
    %v1749 = vrot.slane %v1636, 7
    %v1750 = vrot.slane %v1638, 1
    %v1751 = vrot.slane %v1638, 2
    %v1752 = vrot.slane %v1638, 3
    %v1753 = vrot.slane %v1638, 4
    %v1754 = vrot.slane %v1638, 5
    %v1755 = vrot.slane %v1638, 6
    %v1756 = vrot.slane %v1638, 7
    %v1757 = vrot.slane %v1641, 1
    %v1758 = vrot.slane %v1641, 2
    %v1759 = vrot.slane %v1641, 3
    %v1760 = vrot.slane %v1641, 4
    %v1761 = vrot.slane %v1641, 5
    %v1762 = vrot.slane %v1641, 6
    %v1763 = vrot.slane %v1641, 7
    %v1764 = vrot.slane %v1643, 1
    %v1765 = vrot.slane %v1643, 2
    %v1766 = vrot.slane %v1643, 3
    %v1767 = vrot.slane %v1643, 4
    %v1768 = vrot.slane %v1643, 5
    %v1769 = vrot.slane %v1643, 6
    %v1770 = vrot.slane %v1643, 7
    %v1771 = vrot.slane %v1646, 1
    %v1772 = vrot.slane %v1646, 2
    %v1773 = vrot.slane %v1646, 3
    %v1774 = vrot.slane %v1646, 4
    %v1775 = vrot.slane %v1646, 5
    %v1776 = vrot.slane %v1646, 6
    %v1777 = vrot.slane %v1646, 7
    %v1778 = vrot.slane %v1648, 1
    %v1779 = vrot.slane %v1648, 2
    %v1780 = vrot.slane %v1648, 3
    %v1781 = vrot.slane %v1648, 4
    %v1782 = vrot.slane %v1648, 5
    %v1783 = vrot.slane %v1648, 6
    %v1784 = vrot.slane %v1648, 7
    %v1785 = vrot.slane %v1651, 1
    %v1786 = vrot.slane %v1651, 2
    %v1787 = vrot.slane %v1651, 3
    %v1788 = vrot.slane %v1651, 4
    %v1789 = vrot.slane %v1651, 5
    %v1790 = vrot.slane %v1651, 6
    %v1791 = vrot.slane %v1651, 7
    %v1792 = vrot.slane %v1653, 1
    %v1793 = vrot.slane %v1653, 2
    %v1794 = vrot.slane %v1653, 3
    %v1795 = vrot.slane %v1653, 4
    %v1796 = vrot.slane %v1653, 5
    %v1797 = vrot.slane %v1653, 6
    %v1798 = vrot.slane %v1653, 7
    %1799 = vst [vmem:[#allocation1] ss:$9 sm:$0xff] %v1611
    %s1800 = scalar_lea.vmem [#allocation1], 1
    %1801 = vst [vmem:[%s1800] ss:$9 sm:$0xff] %v1673
    %s1802 = scalar_lea.vmem [#allocation1], 2
    %1803 = vst [vmem:[%s1802] ss:$9 sm:$0xff] %v1674
    %s1804 = scalar_lea.vmem [#allocation1], 3
    %1805 = vst [vmem:[%s1804] ss:$9 sm:$0xff] %v1675
    %s1806 = scalar_lea.vmem [#allocation1], 4
    %1807 = vst [vmem:[%s1806] ss:$9 sm:$0xff] %v1676
    %s1808 = scalar_lea.vmem [#allocation1], 5
    %1809 = vst [vmem:[%s1808] ss:$9 sm:$0xff] %v1677
    %s1810 = scalar_lea.vmem [#allocation1], 6
    %1811 = vst [vmem:[%s1810] ss:$9 sm:$0xff] %v1678
    %s1812 = scalar_lea.vmem [#allocation1], 7
    %1813 = vst [vmem:[%s1812] ss:$9 sm:$0xff] %v1679
    %v1814 = vld [vmem:[#allocation1] sm:$0xff]
    %1815 = vst [vmem:[#allocation1] ss:$9 sm:$0xff] %v1613
    %v1816 = vld [vmem:[#allocation1] sm:$0xff]
    %1817 = vst [vmem:[#allocation1] ss:$9 sm:$0xff] %v1680
    %1818 = vst [vmem:[%s1800] ss:$9 sm:$0xff] %v1681
    %1819 = vst [vmem:[%s1802] ss:$9 sm:$0xff] %v1682
    %1820 = vst [vmem:[%s1804] ss:$9 sm:$0xff] %v1683
    %1821 = vst [vmem:[%s1806] ss:$9 sm:$0xff] %v1684
    %1822 = vst [vmem:[%s1808] ss:$9 sm:$0xff] %v1685
    %1823 = vst [vmem:[%s1810] ss:$9 sm:$0xff] %v1686
    %1824 = vst [vmem:[%s1812] ss:$9 sm:$0xff] %v1616
    %v1825 = vld [vmem:[#allocation1] sm:$0xff]
    %1826 = vst [vmem:[#allocation1] ss:$9 sm:$0xff] %v1687
    %v1827 = vld [vmem:[#allocation1] sm:$0xff]
    %1828 = vst [vmem:[#allocation1] ss:$9 sm:$0xff] %v1688
    %1829 = vst [vmem:[%s1800] ss:$9 sm:$0xff] %v1689
    %1830 = vst [vmem:[%s1802] ss:$9 sm:$0xff] %v1690
    %1831 = vst [vmem:[%s1804] ss:$9 sm:$0xff] %v1691
    %1832 = vst [vmem:[%s1806] ss:$9 sm:$0xff] %v1692
    %1833 = vst [vmem:[%s1808] ss:$9 sm:$0xff] %v1693
    %1834 = vst [vmem:[%s1810] ss:$9 sm:$0xff] %v1618
    %1835 = vst [vmem:[%s1812] ss:$9 sm:$0xff] %v1694
    %v1836 = vld [vmem:[#allocation1] sm:$0xff]
    %1837 = vst [vmem:[#allocation1] ss:$9 sm:$0xff] %v1695
    %v1838 = vld [vmem:[#allocation1] sm:$0xff]
    %1839 = vst [vmem:[#allocation1] ss:$9 sm:$0xff] %v1696
    %1840 = vst [vmem:[%s1800] ss:$9 sm:$0xff] %v1697
    %1841 = vst [vmem:[%s1802] ss:$9 sm:$0xff] %v1698
    %1842 = vst [vmem:[%s1804] ss:$9 sm:$0xff] %v1699
    %1843 = vst [vmem:[%s1806] ss:$9 sm:$0xff] %v1700
    %1844 = vst [vmem:[%s1808] ss:$9 sm:$0xff] %v1621
    %1845 = vst [vmem:[%s1810] ss:$9 sm:$0xff] %v1701
    %1846 = vst [vmem:[%s1812] ss:$9 sm:$0xff] %v1702
    %v1847 = vld [vmem:[#allocation1] sm:$0xff]
    %1848 = vst [vmem:[#allocation1] ss:$9 sm:$0xff] %v1703
    %v1849 = vld [vmem:[#allocation1] sm:$0xff]
    %1850 = vst [vmem:[#allocation1] ss:$9 sm:$0xff] %v1704
    %1851 = vst [vmem:[%s1800] ss:$9 sm:$0xff] %v1705
    %1852 = vst [vmem:[%s1802] ss:$9 sm:$0xff] %v1706
    %1853 = vst [vmem:[%s1804] ss:$9 sm:$0xff] %v1707
    %1854 = vst [vmem:[%s1806] ss:$9 sm:$0xff] %v1623
    %1855 = vst [vmem:[%s1808] ss:$9 sm:$0xff] %v1708
    %1856 = vst [vmem:[%s1810] ss:$9 sm:$0xff] %v1709
    %1857 = vst [vmem:[%s1812] ss:$9 sm:$0xff] %v1710
    %v1858 = vld [vmem:[#allocation1] sm:$0xff]
    %1859 = vst [vmem:[#allocation1] ss:$9 sm:$0xff] %v1711
    %v1860 = vld [vmem:[#allocation1] sm:$0xff]
    %1861 = vst [vmem:[#allocation1] ss:$9 sm:$0xff] %v1712
    %1862 = vst [vmem:[%s1800] ss:$9 sm:$0xff] %v1713
    %1863 = vst [vmem:[%s1802] ss:$9 sm:$0xff] %v1714
    %1864 = vst [vmem:[%s1804] ss:$9 sm:$0xff] %v1626
    %1865 = vst [vmem:[%s1806] ss:$9 sm:$0xff] %v1715
    %1866 = vst [vmem:[%s1808] ss:$9 sm:$0xff] %v1716
    %1867 = vst [vmem:[%s1810] ss:$9 sm:$0xff] %v1717
    %1868 = vst [vmem:[%s1812] ss:$9 sm:$0xff] %v1718
    %v1869 = vld [vmem:[#allocation1] sm:$0xff]
    %1870 = vst [vmem:[#allocation1] ss:$9 sm:$0xff] %v1719
    %v1871 = vld [vmem:[#allocation1] sm:$0xff]
    %1872 = vst [vmem:[#allocation1] ss:$9 sm:$0xff] %v1720
    %1873 = vst [vmem:[%s1800] ss:$9 sm:$0xff] %v1721
    %1874 = vst [vmem:[%s1802] ss:$9 sm:$0xff] %v1628
    %1875 = vst [vmem:[%s1804] ss:$9 sm:$0xff] %v1722
    %1876 = vst [vmem:[%s1806] ss:$9 sm:$0xff] %v1723
    %1877 = vst [vmem:[%s1808] ss:$9 sm:$0xff] %v1724
    %1878 = vst [vmem:[%s1810] ss:$9 sm:$0xff] %v1725
    %1879 = vst [vmem:[%s1812] ss:$9 sm:$0xff] %v1726
    %v1880 = vld [vmem:[#allocation1] sm:$0xff]
    %1881 = vst [vmem:[#allocation1] ss:$9 sm:$0xff] %v1727
    %v1882 = vld [vmem:[#allocation1] sm:$0xff]
    %1883 = vst [vmem:[#allocation1] ss:$9 sm:$0xff] %v1728
    %1884 = vst [vmem:[%s1800] ss:$9 sm:$0xff] %v1631
    %1885 = vst [vmem:[%s1802] ss:$9 sm:$0xff] %v1729
    %1886 = vst [vmem:[%s1804] ss:$9 sm:$0xff] %v1730
    %1887 = vst [vmem:[%s1806] ss:$9 sm:$0xff] %v1731
    %1888 = vst [vmem:[%s1808] ss:$9 sm:$0xff] %v1732
    %1889 = vst [vmem:[%s1810] ss:$9 sm:$0xff] %v1733
    %1890 = vst [vmem:[%s1812] ss:$9 sm:$0xff] %v1734
    %v1891 = vld [vmem:[#allocation1] sm:$0xff]
    %1892 = vst [vmem:[#allocation1] ss:$9 sm:$0xff] %v1735
    %v1893 = vld [vmem:[#allocation1] sm:$0xff]
    %1894 = vst [vmem:[#allocation1] ss:$9 sm:$0xff] %v1633
    %1895 = vst [vmem:[%s1800] ss:$9 sm:$0xff] %v1736
    %1896 = vst [vmem:[%s1802] ss:$9 sm:$0xff] %v1737
    %1897 = vst [vmem:[%s1804] ss:$9 sm:$0xff] %v1738
    %1898 = vst [vmem:[%s1806] ss:$9 sm:$0xff] %v1739
    %1899 = vst [vmem:[%s1808] ss:$9 sm:$0xff] %v1740
    %1900 = vst [vmem:[%s1810] ss:$9 sm:$0xff] %v1741
    %1901 = vst [vmem:[%s1812] ss:$9 sm:$0xff] %v1742
    %v1902 = vld [vmem:[#allocation1] sm:$0xff]
    %1903 = vst [vmem:[#allocation1] ss:$9 sm:$0xff] %v1636
    %v1904 = vld [vmem:[#allocation1] sm:$0xff]
    %1905 = vst [vmem:[#allocation1] ss:$9 sm:$0xff] %v1743
    %1906 = vst [vmem:[%s1800] ss:$9 sm:$0xff] %v1744
    %1907 = vst [vmem:[%s1802] ss:$9 sm:$0xff] %v1745
    %1908 = vst [vmem:[%s1804] ss:$9 sm:$0xff] %v1746
    %1909 = vst [vmem:[%s1806] ss:$9 sm:$0xff] %v1747
    %1910 = vst [vmem:[%s1808] ss:$9 sm:$0xff] %v1748
    %1911 = vst [vmem:[%s1810] ss:$9 sm:$0xff] %v1749
    %1912 = vst [vmem:[%s1812] ss:$9 sm:$0xff] %v1638
    %v1913 = vld [vmem:[#allocation1] sm:$0xff]
    %1914 = vst [vmem:[#allocation1] ss:$9 sm:$0xff] %v1750
    %v1915 = vld [vmem:[#allocation1] sm:$0xff]
    %1916 = vst [vmem:[#allocation1] ss:$9 sm:$0xff] %v1751
    %1917 = vst [vmem:[%s1800] ss:$9 sm:$0xff] %v1752
    %1918 = vst [vmem:[%s1802] ss:$9 sm:$0xff] %v1753
    %1919 = vst [vmem:[%s1804] ss:$9 sm:$0xff] %v1754
    %1920 = vst [vmem:[%s1806] ss:$9 sm:$0xff] %v1755
    %1921 = vst [vmem:[%s1808] ss:$9 sm:$0xff] %v1756
    %1922 = vst [vmem:[%s1810] ss:$9 sm:$0xff] %v1641
    %1923 = vst [vmem:[%s1812] ss:$9 sm:$0xff] %v1757
    %v1924 = vld [vmem:[#allocation1] sm:$0xff]
    %1925 = vst [vmem:[#allocation1] ss:$9 sm:$0xff] %v1758
    %v1926 = vld [vmem:[#allocation1] sm:$0xff]
    %1927 = vst [vmem:[#allocation1] ss:$9 sm:$0xff] %v1759
    %1928 = vst [vmem:[%s1800] ss:$9 sm:$0xff] %v1760
    %1929 = vst [vmem:[%s1802] ss:$9 sm:$0xff] %v1761
    %1930 = vst [vmem:[%s1804] ss:$9 sm:$0xff] %v1762
    %1931 = vst [vmem:[%s1806] ss:$9 sm:$0xff] %v1763
    %1932 = vst [vmem:[%s1808] ss:$9 sm:$0xff] %v1643
    %1933 = vst [vmem:[%s1810] ss:$9 sm:$0xff] %v1764
    %1934 = vst [vmem:[%s1812] ss:$9 sm:$0xff] %v1765
    %v1935 = vld [vmem:[#allocation1] sm:$0xff]
    %1936 = vst [vmem:[#allocation1] ss:$9 sm:$0xff] %v1766
    %v1937 = vld [vmem:[#allocation1] sm:$0xff]
    %1938 = vst [vmem:[#allocation1] ss:$9 sm:$0xff] %v1767
    %1939 = vst [vmem:[%s1800] ss:$9 sm:$0xff] %v1768
    %1940 = vst [vmem:[%s1802] ss:$9 sm:$0xff] %v1769
    %1941 = vst [vmem:[%s1804] ss:$9 sm:$0xff] %v1770
    %1942 = vst [vmem:[%s1806] ss:$9 sm:$0xff] %v1646
    %1943 = vst [vmem:[%s1808] ss:$9 sm:$0xff] %v1771
    %1944 = vst [vmem:[%s1810] ss:$9 sm:$0xff] %v1772
    %1945 = vst [vmem:[%s1812] ss:$9 sm:$0xff] %v1773
    %v1946 = vld [vmem:[#allocation1] sm:$0xff]
    %1947 = vst [vmem:[#allocation1] ss:$9 sm:$0xff] %v1774
    %v1948 = vld [vmem:[#allocation1] sm:$0xff]
    %1949 = vst [vmem:[#allocation1] ss:$9 sm:$0xff] %v1775
    %1950 = vst [vmem:[%s1800] ss:$9 sm:$0xff] %v1776
    %1951 = vst [vmem:[%s1802] ss:$9 sm:$0xff] %v1777
    %1952 = vst [vmem:[%s1804] ss:$9 sm:$0xff] %v1648
    %1953 = vst [vmem:[%s1806] ss:$9 sm:$0xff] %v1778
    %1954 = vst [vmem:[%s1808] ss:$9 sm:$0xff] %v1779
    %1955 = vst [vmem:[%s1810] ss:$9 sm:$0xff] %v1780
    %1956 = vst [vmem:[%s1812] ss:$9 sm:$0xff] %v1781
    %v1957 = vld [vmem:[#allocation1] sm:$0xff]
    %1958 = vst [vmem:[#allocation1] ss:$9 sm:$0xff] %v1782
    %v1959 = vld [vmem:[#allocation1] sm:$0xff]
    %1960 = vst [vmem:[#allocation1] ss:$9 sm:$0xff] %v1783
    %1961 = vst [vmem:[%s1800] ss:$9 sm:$0xff] %v1784
    %1962 = vst [vmem:[%s1802] ss:$9 sm:$0xff] %v1651
    %1963 = vst [vmem:[%s1804] ss:$9 sm:$0xff] %v1785
    %1964 = vst [vmem:[%s1806] ss:$9 sm:$0xff] %v1786
    %1965 = vst [vmem:[%s1808] ss:$9 sm:$0xff] %v1787
    %1966 = vst [vmem:[%s1810] ss:$9 sm:$0xff] %v1788
    %1967 = vst [vmem:[%s1812] ss:$9 sm:$0xff] %v1789
    %v1968 = vld [vmem:[#allocation1] sm:$0xff]
    %1969 = vst [vmem:[#allocation1] ss:$9 sm:$0xff] %v1790
    %v1970 = vld [vmem:[#allocation1] sm:$0xff]
    %1971 = vst [vmem:[#allocation1] ss:$9 sm:$0xff] %v1791
    %1972 = vst [vmem:[%s1800] ss:$9 sm:$0xff] %v1653
    %1973 = vst [vmem:[%s1802] ss:$9 sm:$0xff] %v1792
    %1974 = vst [vmem:[%s1804] ss:$9 sm:$0xff] %v1793
    %1975 = vst [vmem:[%s1806] ss:$9 sm:$0xff] %v1794
    %1976 = vst [vmem:[%s1808] ss:$9 sm:$0xff] %v1795
    %1977 = vst [vmem:[%s1810] ss:$9 sm:$0xff] %v1796
    %1978 = vst [vmem:[%s1812] ss:$9 sm:$0xff] %v1797
    %v1979 = vld [vmem:[#allocation1] sm:$0xff]
    %1980 = vst [vmem:[#allocation1] ss:$9 sm:$0xff] %v1798
    %v1981 = vld [vmem:[#allocation1] sm:$0xff]
    %v2014 = vsel %vm833, %v1816, 0.0
    %v2015 = vsel %vm833, %v1827, 0.0
    %v2016 = vsel %vm833, %v1838, 0.0
    %v2017 = vsel %vm833, %v1849, 0.0
    %v2018 = vsel %vm833, %v1860, 0.0
    %v2019 = vsel %vm833, %v1871, 0.0
    %v2020 = vsel %vm833, %v1882, 0.0
    %v2021 = vsel %vm833, %v1893, 0.0
    %v2022 = vsel %vm833, %v1904, 0.0
    %v2023 = vsel %vm833, %v1915, 0.0
    %v2024 = vsel %vm833, %v1926, 0.0
    %v2025 = vsel %vm833, %v1937, 0.0
    %v2026 = vsel %vm833, %v1948, 0.0
    %v2027 = vsel %vm833, %v1959, 0.0
    %v2028 = vsel %vm833, %v1970, 0.0
    %v2029 = vsel %vm833, %v1981, 0.0
    %vm2030 = vcmp.gt.f32.partialorder %v406, 0.0
    %vm2031 = vcmp.gt.f32.partialorder %v407, 0.0
    %vm2032 = vcmp.gt.f32.partialorder %v408, 0.0
    %vm2033 = vcmp.gt.f32.partialorder %v409, 0.0
    %vm2034 = vcmp.gt.f32.partialorder %v410, 0.0
    %vm2035 = vcmp.gt.f32.partialorder %v411, 0.0
    %vm2036 = vcmp.gt.f32.partialorder %v412, 0.0
    %vm2037 = vcmp.gt.f32.partialorder %v413, 0.0
    %vm2038 = vcmp.gt.f32.partialorder %v414, 0.0
    %vm2039 = vcmp.gt.f32.partialorder %v415, 0.0
    %vm2040 = vcmp.gt.f32.partialorder %v416, 0.0
    %vm2041 = vcmp.gt.f32.partialorder %v417, 0.0
    %vm2042 = vcmp.gt.f32.partialorder %v418, 0.0
    %vm2043 = vcmp.gt.f32.partialorder %v419, 0.0
    %vm2044 = vcmp.gt.f32.partialorder %v420, 0.0
    %vm2045 = vcmp.gt.f32.partialorder %v421, 0.0
    %2062 = vrot.lane.b32.xlu0 %v540, 96
    %v2063 = vpop.permute.xlu0 %2062
    %2064 = vrot.lane.b32.xlu0 %v541, 96
    %v2065 = vpop.permute.xlu0 %2064
    %2066 = vrot.lane.b32.xlu0 %v542, 96
    %v2067 = vpop.permute.xlu0 %2066
    %2068 = vrot.lane.b32.xlu0 %v543, 96
    %v2069 = vpop.permute.xlu0 %2068
    %2070 = vrot.lane.b32.xlu0 %v544, 96
    %v2071 = vpop.permute.xlu0 %2070
    %2072 = vrot.lane.b32.xlu0 %v545, 96
    %v2073 = vpop.permute.xlu0 %2072
    %2074 = vrot.lane.b32.xlu0 %v546, 96
    %v2075 = vpop.permute.xlu0 %2074
    %2076 = vrot.lane.b32.xlu0 %v547, 96
    %v2077 = vpop.permute.xlu0 %2076
    %2078 = vrot.lane.b32.xlu0 %v548, 96
    %v2079 = vpop.permute.xlu0 %2078
    %2080 = vrot.lane.b32.xlu0 %v549, 96
    %v2081 = vpop.permute.xlu0 %2080
    %2082 = vrot.lane.b32.xlu0 %v550, 96
    %v2083 = vpop.permute.xlu0 %2082
    %2084 = vrot.lane.b32.xlu0 %v551, 96
    %v2085 = vpop.permute.xlu0 %2084
    %2086 = vrot.lane.b32.xlu0 %v552, 96
    %v2087 = vpop.permute.xlu0 %2086
    %2088 = vrot.lane.b32.xlu0 %v553, 96
    %v2089 = vpop.permute.xlu0 %2088
    %2090 = vrot.lane.b32.xlu0 %v554, 96
    %v2091 = vpop.permute.xlu0 %2090
    %2092 = vrot.lane.b32.xlu0 %v555, 96
    %v2093 = vpop.permute.xlu0 %2092
    %v2110 = vsel %vm2030, %v2063, -1e+30
    %v2111 = vsel %vm2031, %v2065, -1e+30
    %v2112 = vsel %vm2032, %v2067, -1e+30
    %v2113 = vsel %vm2033, %v2069, -1e+30
    %v2114 = vsel %vm2034, %v2071, -1e+30
    %v2115 = vsel %vm2035, %v2073, -1e+30
    %v2116 = vsel %vm2036, %v2075, -1e+30
    %v2117 = vsel %vm2037, %v2077, -1e+30
    %v2118 = vsel %vm2038, %v2079, -1e+30
    %v2119 = vsel %vm2039, %v2081, -1e+30
    %v2120 = vsel %vm2040, %v2083, -1e+30
    %v2121 = vsel %vm2041, %v2085, -1e+30
    %v2122 = vsel %vm2042, %v2087, -1e+30
    %v2123 = vsel %vm2043, %v2089, -1e+30
    %v2124 = vsel %vm2044, %v2091, -1e+30
    %v2125 = vsel %vm2045, %v2093, -1e+30
    %v2142 = vrot.slane %v2110, 7
    %v2143 = vrot.slane %v2111, 7
    %v2144 = vrot.slane %v2112, 7
    %v2145 = vrot.slane %v2113, 7
    %v2146 = vrot.slane %v2114, 7
    %v2147 = vrot.slane %v2115, 7
    %v2148 = vrot.slane %v2116, 7
    %v2149 = vrot.slane %v2117, 7
    %v2150 = vrot.slane %v2118, 7
    %v2151 = vrot.slane %v2119, 7
    %v2152 = vrot.slane %v2120, 7
    %v2153 = vrot.slane %v2121, 7
    %v2154 = vrot.slane %v2122, 7
    %v2155 = vrot.slane %v2123, 7
    %v2156 = vrot.slane %v2124, 7
    %v2157 = vrot.slane %v2125, 7
    %v2174 = vsel %vm833, 0.0, %v2142
    %v2175 = vsel %vm833, 0.0, %v2143
    %v2176 = vsel %vm833, 0.0, %v2144
    %v2177 = vsel %vm833, 0.0, %v2145
    %v2178 = vsel %vm833, 0.0, %v2146
    %v2179 = vsel %vm833, 0.0, %v2147
    %v2180 = vsel %vm833, 0.0, %v2148
    %v2181 = vsel %vm833, 0.0, %v2149
    %v2182 = vsel %vm833, 0.0, %v2150
    %v2183 = vsel %vm833, 0.0, %v2151
    %v2184 = vsel %vm833, 0.0, %v2152
    %v2185 = vsel %vm833, 0.0, %v2153
    %v2186 = vsel %vm833, 0.0, %v2154
    %v2187 = vsel %vm833, 0.0, %v2155
    %v2188 = vsel %vm833, 0.0, %v2156
    %v2189 = vsel %vm833, 0.0, %v2157
    %v2190 = vsel %vm833, %v2142, -1e+30
    %v2191 = vsel %vm833, %v2143, -1e+30
    %v2192 = vsel %vm833, %v2144, -1e+30
    %v2193 = vsel %vm833, %v2145, -1e+30
    %v2194 = vsel %vm833, %v2146, -1e+30
    %v2195 = vsel %vm833, %v2147, -1e+30
    %v2196 = vsel %vm833, %v2148, -1e+30
    %v2197 = vsel %vm833, %v2149, -1e+30
    %v2198 = vsel %vm833, %v2150, -1e+30
    %v2199 = vsel %vm833, %v2151, -1e+30
    %v2200 = vsel %vm833, %v2152, -1e+30
    %v2201 = vsel %vm833, %v2153, -1e+30
    %v2202 = vsel %vm833, %v2154, -1e+30
    %v2203 = vsel %vm833, %v2155, -1e+30
    %v2204 = vsel %vm833, %v2156, -1e+30
    %v2205 = vsel %vm833, %v2157, -1e+30
    %v2206 = vmul.f32 %v1198, 0.35355338
    %v2207 = vmul.f32 %v1200, 0.35355338
    %v2208 = vmul.f32 %v1203, 0.35355338
    %v2209 = vmul.f32 %v1205, 0.35355338
    %v2210 = vmul.f32 %v1208, 0.35355338
    %v2211 = vmul.f32 %v1210, 0.35355338
    %v2212 = vmul.f32 %v1213, 0.35355338
    %v2213 = vmul.f32 %v1215, 0.35355338
    %v2214 = vmul.f32 %v1218, 0.35355338
    %v2215 = vmul.f32 %v1220, 0.35355338
    %v2216 = vmul.f32 %v1223, 0.35355338
    %v2217 = vmul.f32 %v1225, 0.35355338
    %v2218 = vmul.f32 %v1228, 0.35355338
    %v2219 = vmul.f32 %v1230, 0.35355338
    %v2220 = vmul.f32 %v1233, 0.35355338
    %v2221 = vmul.f32 %v1235, 0.35355338
    %v2222 = vpack.c.bf16 %v2206, %v2206
    %v2223 = vpack.c.bf16 %v2207, %v2207
    %v2224 = vpack.c.bf16 %v2208, %v2208
    %v2225 = vpack.c.bf16 %v2209, %v2209
    %v2226 = vpack.c.bf16 %v2210, %v2210
    %v2227 = vpack.c.bf16 %v2211, %v2211
    %v2228 = vpack.c.bf16 %v2212, %v2212
    %v2229 = vpack.c.bf16 %v2213, %v2213
    %v2230 = vpack.c.bf16 %v2214, %v2214
    %v2231 = vpack.c.bf16 %v2215, %v2215
    %v2232 = vpack.c.bf16 %v2216, %v2216
    %v2233 = vpack.c.bf16 %v2217, %v2217
    %v2234 = vpack.c.bf16 %v2218, %v2218
    %v2235 = vpack.c.bf16 %v2219, %v2219
    %v2236 = vpack.c.bf16 %v2220, %v2220
    %v2237 = vpack.c.bf16 %v2221, %v2221
    %v2238 = vpack.c.bf16 %v1814, %v1814
    %v2239 = vpack.c.bf16 %v2014, %v2014
    %v2240 = vpack.c.bf16 0.0, 0.0
    %v2241 = vpack.c.bf16 %v1825, %v1825
    %v2242 = vpack.c.bf16 %v2015, %v2015
    %v2243 = vpack.c.bf16 %v1836, %v1836
    %v2244 = vpack.c.bf16 %v2016, %v2016
    %v2245 = vpack.c.bf16 %v1847, %v1847
    %v2246 = vpack.c.bf16 %v2017, %v2017
    %v2247 = vpack.c.bf16 %v1858, %v1858
    %v2248 = vpack.c.bf16 %v2018, %v2018
    %v2249 = vpack.c.bf16 %v1869, %v1869
    %v2250 = vpack.c.bf16 %v2019, %v2019
    %v2251 = vpack.c.bf16 %v1880, %v1880
    %v2252 = vpack.c.bf16 %v2020, %v2020
    %v2253 = vpack.c.bf16 %v1891, %v1891
    %v2254 = vpack.c.bf16 %v2021, %v2021
    %v2255 = vpack.c.bf16 %v1902, %v1902
    %v2256 = vpack.c.bf16 %v2022, %v2022
    %v2257 = vpack.c.bf16 %v1913, %v1913
    %v2258 = vpack.c.bf16 %v2023, %v2023
    %v2259 = vpack.c.bf16 %v1924, %v1924
    %v2260 = vpack.c.bf16 %v2024, %v2024
    %v2261 = vpack.c.bf16 %v1935, %v1935
    %v2262 = vpack.c.bf16 %v2025, %v2025
    %v2263 = vpack.c.bf16 %v1946, %v1946
    %v2264 = vpack.c.bf16 %v2026, %v2026
    %v2265 = vpack.c.bf16 %v1957, %v1957
    %v2266 = vpack.c.bf16 %v2027, %v2027
    %v2267 = vpack.c.bf16 %v1968, %v1968
    %v2268 = vpack.c.bf16 %v2028, %v2028
    %v2269 = vpack.c.bf16 %v1979, %v1979
    %v2270 = vpack.c.bf16 %v2029, %v2029
    %v2274 = vunpack.c.l.b16 %v2238
    %v2275 = vunpack.c.l.b16 %v2239
    %v2276 = vunpack.c.l.b16 %v2240
    %v2277 = vpack.c.b16 %v2275, %v2274
    %v2278 = vpack.c.b16 %v2276, %v2276
    %2282 = vset.pattern.permute.xlu0 0
    %2283 = vperm.xlu0 %2282, %v2174
    %v2284 = vpop.permute.xlu0 %2283
    %2285 = vset.pattern.permute.xlu0 0
    %2286 = vperm.xlu0 %2285, %v2190
    %v2287 = vpop.permute.xlu0 %2286
    %2288 = vset.pattern.permute.xlu0 0
    %2289 = vperm.xlu0 %2288, -1e+30
    %v2290 = vpop.permute.xlu0 %2289
    %v2291 = vperm.slane %v2284, %v782
    %v2292 = vadd.s32 %v782, 4294967288
    %v2293 = vperm.slane %v2287, %v2292
    %vm2294 = vcmask 130112
    %v2295 = vsel %vm2294, %v2293, %v2291
    %v2296 = vadd.s32 %v782, 4294967280
    %v2297 = vperm.slane %v2290, %v2296
    %vm2298 = vcmask 195712
    %v2299 = vsel %vm2298, %v2297, %v2295
    %v2300 = vadd.s32 %v782, 4294967272
    %v2301 = vperm.slane %v2290, %v2300
    %vm2302 = vcmask 261312
    %v2303 = vsel %vm2302, %v2301, %v2299
    %v2304 = vadd.s32 %v782, 4294967264
    %v2305 = vperm.slane %v2290, %v2304
    %vm2306 = vcmask 326912
    %v2307 = vsel %vm2306, %v2305, %v2303
    %v2308 = vadd.s32 %v782, 4294967256
    %v2309 = vperm.slane %v2290, %v2308
    %vm2310 = vcmask 392512
    %v2311 = vsel %vm2310, %v2309, %v2307
    %v2312 = vadd.s32 %v782, 4294967248
    %v2313 = vperm.slane %v2290, %v2312
    %vm2314 = vcmask 458112
    %v2315 = vsel %vm2314, %v2313, %v2311
    %v2316 = vadd.s32 %v782, 4294967240
    %v2317 = vperm.slane %v2290, %v2316
    %vm2318 = vcmask 523712
    %v2319 = vsel %vm2318, %v2317, %v2315
    %v2320 = vadd.s32 %v782, 4294967232
    %v2321 = vperm.slane %v2290, %v2320
    %vm2322 = vcmask 589312
    %v2323 = vsel %vm2322, %v2321, %v2319
    %v2324 = vadd.s32 %v782, 4294967224
    %v2325 = vperm.slane %v2290, %v2324
    %vm2326 = vcmask 654912
    %v2327 = vsel %vm2326, %v2325, %v2323
    %v2328 = vadd.s32 %v782, 4294967216
    %v2329 = vperm.slane %v2290, %v2328
    %vm2330 = vcmask 720512
    %v2331 = vsel %vm2330, %v2329, %v2327
    %v2332 = vadd.s32 %v782, 4294967208
    %v2333 = vperm.slane %v2290, %v2332
    %vm2334 = vcmask 786112
    %v2335 = vsel %vm2334, %v2333, %v2331
    %v2336 = vadd.s32 %v782, 4294967200
    %v2337 = vperm.slane %v2290, %v2336
    %vm2338 = vcmask 851712
    %v2339 = vsel %vm2338, %v2337, %v2335
    %v2340 = vadd.s32 %v782, 4294967192
    %v2341 = vperm.slane %v2290, %v2340
    %vm2342 = vcmask 917312
    %v2343 = vsel %vm2342, %v2341, %v2339
    %v2344 = vadd.s32 %v782, 4294967184
    %v2345 = vperm.slane %v2290, %v2344
    %vm2346 = vcmask 982912
    %v2347 = vsel %vm2346, %v2345, %v2343
    %v2348 = vadd.s32 %v782, 4294967176
    %v2349 = vperm.slane %v2290, %v2348
    %vm2350 = vcmask 1048512
    %v2351 = vsel %vm2350, %v2349, %v2347
    %vm2352 = vcmask 1042434
    %v2353 = vsel %vm2352, %v2351, %v2351
    %vm2354 = vcmask 1043459
    %v2355 = vsel %vm2354, %v2351, %v2353
    %vm2356 = vcmask 1044484
    %v2357 = vsel %vm2356, %v2351, %v2355
    %vm2358 = vcmask 1045509
    %v2359 = vsel %vm2358, %v2351, %v2357
    %vm2360 = vcmask 1046534
    %v2361 = vsel %vm2360, %v2351, %v2359
    %vm2362 = vcmask 1047559
    %v2363 = vsel %vm2362, %v2351, %v2361
    %vm2365 = vcmask 64512
    %v2367 = vsel %vm2365, %v2222, 0
    %v2370 = vsel %vm2365, %v2277, 0
    %v2373 = vsel %vm2365, %v2278, 0
    %2375 = vmatpush.bf16.xpose.msra.mxu0 %v2373
    %2376 = vmatpush.bf16.xpose.msra.mxu0 %v2373
    %2377 = vmatpush.bf16.xpose.msra.mxu0 %v2373
    %2378 = vmatpush.bf16.xpose.msra.mxu0 %v2373
    %2379 = vmatpush.bf16.xpose.msra.mxu0 %v2373
    %2380 = vmatpush.bf16.xpose.msra.mxu0 %v2373
    %2381 = vmatpush.bf16.xpose.msra.mxu0 %v2373
    %2382 = vmatpush.bf16.xpose.msra.mxu0 %v2370
    %2383 = vmatmul.bf16.gmra.mxu0 %v2367
    %v2384 = vpop.f32.mrf.mxu0
    %v2385 = vadd.f32 %v2363, %v2384
    %v2386 = vpop.f32.mrf.mxu0
    %2387 = vdwg.mxu0
    %v2390 = vunpack.c.l.b16 %v2241
    %v2391 = vunpack.c.l.b16 %v2242
    %v2392 = vpack.c.b16 %v2391, %v2390
    %2395 = vset.pattern.permute.xlu0 0
    %2396 = vperm.xlu0 %2395, %v2175
    %v2397 = vpop.permute.xlu0 %2396
    %2398 = vset.pattern.permute.xlu0 0
    %2399 = vperm.xlu0 %2398, %v2191
    %v2400 = vpop.permute.xlu0 %2399
    %v2401 = vperm.slane %v2397, %v782
    %v2402 = vperm.slane %v2400, %v2292
    %v2403 = vsel %vm2294, %v2402, %v2401
    %v2404 = vsel %vm2298, %v2297, %v2403
    %v2405 = vsel %vm2302, %v2301, %v2404
    %v2406 = vsel %vm2306, %v2305, %v2405
    %v2407 = vsel %vm2310, %v2309, %v2406
    %v2408 = vsel %vm2314, %v2313, %v2407
    %v2409 = vsel %vm2318, %v2317, %v2408
    %v2410 = vsel %vm2322, %v2321, %v2409
    %v2411 = vsel %vm2326, %v2325, %v2410
    %v2412 = vsel %vm2330, %v2329, %v2411
    %v2413 = vsel %vm2334, %v2333, %v2412
    %v2414 = vsel %vm2338, %v2337, %v2413
    %v2415 = vsel %vm2342, %v2341, %v2414
    %v2416 = vsel %vm2346, %v2345, %v2415
    %v2417 = vsel %vm2350, %v2349, %v2416
    %v2418 = vsel %vm2352, %v2417, %v2417
    %v2419 = vsel %vm2354, %v2417, %v2418
    %v2420 = vsel %vm2356, %v2417, %v2419
    %v2421 = vsel %vm2358, %v2417, %v2420
    %v2422 = vsel %vm2360, %v2417, %v2421
    %v2423 = vsel %vm2362, %v2417, %v2422
    %v2426 = vsel %vm2365, %v2223, 0
    %v2429 = vsel %vm2365, %v2392, 0
    %2431 = vmatpush.bf16.xpose.msra.mxu0 %v2373
    %2432 = vmatpush.bf16.xpose.msra.mxu0 %v2373
    %2433 = vmatpush.bf16.xpose.msra.mxu0 %v2373
    %2434 = vmatpush.bf16.xpose.msra.mxu0 %v2373
    %2435 = vmatpush.bf16.xpose.msra.mxu0 %v2373
    %2436 = vmatpush.bf16.xpose.msra.mxu0 %v2373
    %2437 = vmatpush.bf16.xpose.msra.mxu0 %v2373
    %2438 = vmatpush.bf16.xpose.msra.mxu0 %v2429
    %2439 = vmatmul.bf16.gmra.mxu0 %v2426
    %v2440 = vpop.f32.mrf.mxu0
    %v2441 = vadd.f32 %v2423, %v2440
    %v2442 = vpop.f32.mrf.mxu0
    %2443 = vdwg.mxu0
    %v2446 = vunpack.c.l.b16 %v2243
    %v2447 = vunpack.c.l.b16 %v2244
    %v2448 = vpack.c.b16 %v2447, %v2446
    %2451 = vset.pattern.permute.xlu0 0
    %2452 = vperm.xlu0 %2451, %v2176
    %v2453 = vpop.permute.xlu0 %2452
    %2454 = vset.pattern.permute.xlu0 0
    %2455 = vperm.xlu0 %2454, %v2192
    %v2456 = vpop.permute.xlu0 %2455
    %v2457 = vperm.slane %v2453, %v782
    %v2458 = vperm.slane %v2456, %v2292
    %v2459 = vsel %vm2294, %v2458, %v2457
    %v2460 = vsel %vm2298, %v2297, %v2459
    %v2461 = vsel %vm2302, %v2301, %v2460
    %v2462 = vsel %vm2306, %v2305, %v2461
    %v2463 = vsel %vm2310, %v2309, %v2462
    %v2464 = vsel %vm2314, %v2313, %v2463
    %v2465 = vsel %vm2318, %v2317, %v2464
    %v2466 = vsel %vm2322, %v2321, %v2465
    %v2467 = vsel %vm2326, %v2325, %v2466
    %v2468 = vsel %vm2330, %v2329, %v2467
    %v2469 = vsel %vm2334, %v2333, %v2468
    %v2470 = vsel %vm2338, %v2337, %v2469
    %v2471 = vsel %vm2342, %v2341, %v2470
    %v2472 = vsel %vm2346, %v2345, %v2471
    %v2473 = vsel %vm2350, %v2349, %v2472
    %v2474 = vsel %vm2352, %v2473, %v2473
    %v2475 = vsel %vm2354, %v2473, %v2474
    %v2476 = vsel %vm2356, %v2473, %v2475
    %v2477 = vsel %vm2358, %v2473, %v2476
    %v2478 = vsel %vm2360, %v2473, %v2477
    %v2479 = vsel %vm2362, %v2473, %v2478
    %v2482 = vsel %vm2365, %v2224, 0
    %v2485 = vsel %vm2365, %v2448, 0
    %2487 = vmatpush.bf16.xpose.msra.mxu0 %v2373
    %2488 = vmatpush.bf16.xpose.msra.mxu0 %v2373
    %2489 = vmatpush.bf16.xpose.msra.mxu0 %v2373
    %2490 = vmatpush.bf16.xpose.msra.mxu0 %v2373
    %2491 = vmatpush.bf16.xpose.msra.mxu0 %v2373
    %2492 = vmatpush.bf16.xpose.msra.mxu0 %v2373
    %2493 = vmatpush.bf16.xpose.msra.mxu0 %v2373
    %2494 = vmatpush.bf16.xpose.msra.mxu0 %v2485
    %2495 = vmatmul.bf16.gmra.mxu0 %v2482
    %v2496 = vpop.f32.mrf.mxu0
    %v2497 = vadd.f32 %v2479, %v2496
    %v2498 = vpop.f32.mrf.mxu0
    %2499 = vdwg.mxu0
    %v2502 = vunpack.c.l.b16 %v2245
    %v2503 = vunpack.c.l.b16 %v2246
    %v2504 = vpack.c.b16 %v2503, %v2502
    %2507 = vset.pattern.permute.xlu0 0
    %2508 = vperm.xlu0 %2507, %v2177
    %v2509 = vpop.permute.xlu0 %2508
    %2510 = vset.pattern.permute.xlu0 0
    %2511 = vperm.xlu0 %2510, %v2193
    %v2512 = vpop.permute.xlu0 %2511
    %v2513 = vperm.slane %v2509, %v782
    %v2514 = vperm.slane %v2512, %v2292
    %v2515 = vsel %vm2294, %v2514, %v2513
    %v2516 = vsel %vm2298, %v2297, %v2515
    %v2517 = vsel %vm2302, %v2301, %v2516
    %v2518 = vsel %vm2306, %v2305, %v2517
    %v2519 = vsel %vm2310, %v2309, %v2518
    %v2520 = vsel %vm2314, %v2313, %v2519
    %v2521 = vsel %vm2318, %v2317, %v2520
    %v2522 = vsel %vm2322, %v2321, %v2521
    %v2523 = vsel %vm2326, %v2325, %v2522
    %v2524 = vsel %vm2330, %v2329, %v2523
    %v2525 = vsel %vm2334, %v2333, %v2524
    %v2526 = vsel %vm2338, %v2337, %v2525
    %v2527 = vsel %vm2342, %v2341, %v2526
    %v2528 = vsel %vm2346, %v2345, %v2527
    %v2529 = vsel %vm2350, %v2349, %v2528
    %v2530 = vsel %vm2352, %v2529, %v2529
    %v2531 = vsel %vm2354, %v2529, %v2530
    %v2532 = vsel %vm2356, %v2529, %v2531
    %v2533 = vsel %vm2358, %v2529, %v2532
    %v2534 = vsel %vm2360, %v2529, %v2533
    %v2535 = vsel %vm2362, %v2529, %v2534
    %v2538 = vsel %vm2365, %v2225, 0
    %v2541 = vsel %vm2365, %v2504, 0
    %2543 = vmatpush.bf16.xpose.msra.mxu0 %v2373
    %2544 = vmatpush.bf16.xpose.msra.mxu0 %v2373
    %2545 = vmatpush.bf16.xpose.msra.mxu0 %v2373
    %2546 = vmatpush.bf16.xpose.msra.mxu0 %v2373
    %2547 = vmatpush.bf16.xpose.msra.mxu0 %v2373
    %2548 = vmatpush.bf16.xpose.msra.mxu0 %v2373
    %2549 = vmatpush.bf16.xpose.msra.mxu0 %v2373
    %2550 = vmatpush.bf16.xpose.msra.mxu0 %v2541
    %2551 = vmatmul.bf16.gmra.mxu0 %v2538
    %v2552 = vpop.f32.mrf.mxu0
    %v2553 = vadd.f32 %v2535, %v2552
    %v2554 = vpop.f32.mrf.mxu0
    %2555 = vdwg.mxu0
    %v2558 = vunpack.c.l.b16 %v2247
    %v2559 = vunpack.c.l.b16 %v2248
    %v2560 = vpack.c.b16 %v2559, %v2558
    %2563 = vset.pattern.permute.xlu0 0
    %2564 = vperm.xlu0 %2563, %v2178
    %v2565 = vpop.permute.xlu0 %2564
    %2566 = vset.pattern.permute.xlu0 0
    %2567 = vperm.xlu0 %2566, %v2194
    %v2568 = vpop.permute.xlu0 %2567
    %v2569 = vperm.slane %v2565, %v782
    %v2570 = vperm.slane %v2568, %v2292
    %v2571 = vsel %vm2294, %v2570, %v2569
    %v2572 = vsel %vm2298, %v2297, %v2571
    %v2573 = vsel %vm2302, %v2301, %v2572
    %v2574 = vsel %vm2306, %v2305, %v2573
    %v2575 = vsel %vm2310, %v2309, %v2574
    %v2576 = vsel %vm2314, %v2313, %v2575
    %v2577 = vsel %vm2318, %v2317, %v2576
    %v2578 = vsel %vm2322, %v2321, %v2577
    %v2579 = vsel %vm2326, %v2325, %v2578
    %v2580 = vsel %vm2330, %v2329, %v2579
    %v2581 = vsel %vm2334, %v2333, %v2580
    %v2582 = vsel %vm2338, %v2337, %v2581
    %v2583 = vsel %vm2342, %v2341, %v2582
    %v2584 = vsel %vm2346, %v2345, %v2583
    %v2585 = vsel %vm2350, %v2349, %v2584
    %v2586 = vsel %vm2352, %v2585, %v2585
    %v2587 = vsel %vm2354, %v2585, %v2586
    %v2588 = vsel %vm2356, %v2585, %v2587
    %v2589 = vsel %vm2358, %v2585, %v2588
    %v2590 = vsel %vm2360, %v2585, %v2589
    %v2591 = vsel %vm2362, %v2585, %v2590
    %v2594 = vsel %vm2365, %v2226, 0
    %v2597 = vsel %vm2365, %v2560, 0
    %2599 = vmatpush.bf16.xpose.msra.mxu0 %v2373
    %2600 = vmatpush.bf16.xpose.msra.mxu0 %v2373
    %2601 = vmatpush.bf16.xpose.msra.mxu0 %v2373
    %2602 = vmatpush.bf16.xpose.msra.mxu0 %v2373
    %2603 = vmatpush.bf16.xpose.msra.mxu0 %v2373
    %2604 = vmatpush.bf16.xpose.msra.mxu0 %v2373
    %2605 = vmatpush.bf16.xpose.msra.mxu0 %v2373
    %2606 = vmatpush.bf16.xpose.msra.mxu0 %v2597
    %2607 = vmatmul.bf16.gmra.mxu0 %v2594
    %v2608 = vpop.f32.mrf.mxu0
    %v2609 = vadd.f32 %v2591, %v2608
    %v2610 = vpop.f32.mrf.mxu0
    %2611 = vdwg.mxu0
    %v2614 = vunpack.c.l.b16 %v2249
    %v2615 = vunpack.c.l.b16 %v2250
    %v2616 = vpack.c.b16 %v2615, %v2614
    %2619 = vset.pattern.permute.xlu0 0
    %2620 = vperm.xlu0 %2619, %v2179
    %v2621 = vpop.permute.xlu0 %2620
    %2622 = vset.pattern.permute.xlu0 0
    %2623 = vperm.xlu0 %2622, %v2195
    %v2624 = vpop.permute.xlu0 %2623
    %v2625 = vperm.slane %v2621, %v782
    %v2626 = vperm.slane %v2624, %v2292
    %v2627 = vsel %vm2294, %v2626, %v2625
    %v2628 = vsel %vm2298, %v2297, %v2627
    %v2629 = vsel %vm2302, %v2301, %v2628
    %v2630 = vsel %vm2306, %v2305, %v2629
    %v2631 = vsel %vm2310, %v2309, %v2630
    %v2632 = vsel %vm2314, %v2313, %v2631
    %v2633 = vsel %vm2318, %v2317, %v2632
    %v2634 = vsel %vm2322, %v2321, %v2633
    %v2635 = vsel %vm2326, %v2325, %v2634
    %v2636 = vsel %vm2330, %v2329, %v2635
    %v2637 = vsel %vm2334, %v2333, %v2636
    %v2638 = vsel %vm2338, %v2337, %v2637
    %v2639 = vsel %vm2342, %v2341, %v2638
    %v2640 = vsel %vm2346, %v2345, %v2639
    %v2641 = vsel %vm2350, %v2349, %v2640
    %v2642 = vsel %vm2352, %v2641, %v2641
    %v2643 = vsel %vm2354, %v2641, %v2642
    %v2644 = vsel %vm2356, %v2641, %v2643
    %v2645 = vsel %vm2358, %v2641, %v2644
    %v2646 = vsel %vm2360, %v2641, %v2645
    %v2647 = vsel %vm2362, %v2641, %v2646
    %v2650 = vsel %vm2365, %v2227, 0
    %v2653 = vsel %vm2365, %v2616, 0
    %2655 = vmatpush.bf16.xpose.msra.mxu0 %v2373
    %2656 = vmatpush.bf16.xpose.msra.mxu0 %v2373
    %2657 = vmatpush.bf16.xpose.msra.mxu0 %v2373
    %2658 = vmatpush.bf16.xpose.msra.mxu0 %v2373
    %2659 = vmatpush.bf16.xpose.msra.mxu0 %v2373
    %2660 = vmatpush.bf16.xpose.msra.mxu0 %v2373
    %2661 = vmatpush.bf16.xpose.msra.mxu0 %v2373
    %2662 = vmatpush.bf16.xpose.msra.mxu0 %v2653
    %2663 = vmatmul.bf16.gmra.mxu0 %v2650
    %v2664 = vpop.f32.mrf.mxu0
    %v2665 = vadd.f32 %v2647, %v2664
    %v2666 = vpop.f32.mrf.mxu0
    %2667 = vdwg.mxu0
    %v2670 = vunpack.c.l.b16 %v2251
    %v2671 = vunpack.c.l.b16 %v2252
    %v2672 = vpack.c.b16 %v2671, %v2670
    %2675 = vset.pattern.permute.xlu0 0
    %2676 = vperm.xlu0 %2675, %v2180
    %v2677 = vpop.permute.xlu0 %2676
    %2678 = vset.pattern.permute.xlu0 0
    %2679 = vperm.xlu0 %2678, %v2196
    %v2680 = vpop.permute.xlu0 %2679
    %v2681 = vperm.slane %v2677, %v782
    %v2682 = vperm.slane %v2680, %v2292
    %v2683 = vsel %vm2294, %v2682, %v2681
    %v2684 = vsel %vm2298, %v2297, %v2683
    %v2685 = vsel %vm2302, %v2301, %v2684
    %v2686 = vsel %vm2306, %v2305, %v2685
    %v2687 = vsel %vm2310, %v2309, %v2686
    %v2688 = vsel %vm2314, %v2313, %v2687
    %v2689 = vsel %vm2318, %v2317, %v2688
    %v2690 = vsel %vm2322, %v2321, %v2689
    %v2691 = vsel %vm2326, %v2325, %v2690
    %v2692 = vsel %vm2330, %v2329, %v2691
    %v2693 = vsel %vm2334, %v2333, %v2692
    %v2694 = vsel %vm2338, %v2337, %v2693
    %v2695 = vsel %vm2342, %v2341, %v2694
    %v2696 = vsel %vm2346, %v2345, %v2695
    %v2697 = vsel %vm2350, %v2349, %v2696
    %v2698 = vsel %vm2352, %v2697, %v2697
    %v2699 = vsel %vm2354, %v2697, %v2698
    %v2700 = vsel %vm2356, %v2697, %v2699
    %v2701 = vsel %vm2358, %v2697, %v2700
    %v2702 = vsel %vm2360, %v2697, %v2701
    %v2703 = vsel %vm2362, %v2697, %v2702
    %v2706 = vsel %vm2365, %v2228, 0
    %v2709 = vsel %vm2365, %v2672, 0
    %2711 = vmatpush.bf16.xpose.msra.mxu0 %v2373
    %2712 = vmatpush.bf16.xpose.msra.mxu0 %v2373
    %2713 = vmatpush.bf16.xpose.msra.mxu0 %v2373
    %2714 = vmatpush.bf16.xpose.msra.mxu0 %v2373
    %2715 = vmatpush.bf16.xpose.msra.mxu0 %v2373
    %2716 = vmatpush.bf16.xpose.msra.mxu0 %v2373
    %2717 = vmatpush.bf16.xpose.msra.mxu0 %v2373
    %2718 = vmatpush.bf16.xpose.msra.mxu0 %v2709
    %2719 = vmatmul.bf16.gmra.mxu0 %v2706
    %v2720 = vpop.f32.mrf.mxu0
    %v2721 = vadd.f32 %v2703, %v2720
    %v2722 = vpop.f32.mrf.mxu0
    %2723 = vdwg.mxu0
    %v2726 = vunpack.c.l.b16 %v2253
    %v2727 = vunpack.c.l.b16 %v2254
    %v2728 = vpack.c.b16 %v2727, %v2726
    %2731 = vset.pattern.permute.xlu0 0
    %2732 = vperm.xlu0 %2731, %v2181
    %v2733 = vpop.permute.xlu0 %2732
    %2734 = vset.pattern.permute.xlu0 0
    %2735 = vperm.xlu0 %2734, %v2197
    %v2736 = vpop.permute.xlu0 %2735
    %v2737 = vperm.slane %v2733, %v782
    %v2738 = vperm.slane %v2736, %v2292
    %v2739 = vsel %vm2294, %v2738, %v2737
    %v2740 = vsel %vm2298, %v2297, %v2739
    %v2741 = vsel %vm2302, %v2301, %v2740
    %v2742 = vsel %vm2306, %v2305, %v2741
    %v2743 = vsel %vm2310, %v2309, %v2742
    %v2744 = vsel %vm2314, %v2313, %v2743
    %v2745 = vsel %vm2318, %v2317, %v2744
    %v2746 = vsel %vm2322, %v2321, %v2745
    %v2747 = vsel %vm2326, %v2325, %v2746
    %v2748 = vsel %vm2330, %v2329, %v2747
    %v2749 = vsel %vm2334, %v2333, %v2748
    %v2750 = vsel %vm2338, %v2337, %v2749
    %v2751 = vsel %vm2342, %v2341, %v2750
    %v2752 = vsel %vm2346, %v2345, %v2751
    %v2753 = vsel %vm2350, %v2349, %v2752
    %v2754 = vsel %vm2352, %v2753, %v2753
    %v2755 = vsel %vm2354, %v2753, %v2754
    %v2756 = vsel %vm2356, %v2753, %v2755
    %v2757 = vsel %vm2358, %v2753, %v2756
    %v2758 = vsel %vm2360, %v2753, %v2757
    %v2759 = vsel %vm2362, %v2753, %v2758
    %v2762 = vsel %vm2365, %v2229, 0
    %v2765 = vsel %vm2365, %v2728, 0
    %2767 = vmatpush.bf16.xpose.msra.mxu0 %v2373
    %2768 = vmatpush.bf16.xpose.msra.mxu0 %v2373
    %2769 = vmatpush.bf16.xpose.msra.mxu0 %v2373
    %2770 = vmatpush.bf16.xpose.msra.mxu0 %v2373
    %2771 = vmatpush.bf16.xpose.msra.mxu0 %v2373
    %2772 = vmatpush.bf16.xpose.msra.mxu0 %v2373
    %2773 = vmatpush.bf16.xpose.msra.mxu0 %v2373
    %2774 = vmatpush.bf16.xpose.msra.mxu0 %v2765
    %2775 = vmatmul.bf16.gmra.mxu0 %v2762
    %v2776 = vpop.f32.mrf.mxu0
    %v2777 = vadd.f32 %v2759, %v2776
    %v2778 = vpop.f32.mrf.mxu0
    %2779 = vdwg.mxu0
    %v2782 = vunpack.c.l.b16 %v2255
    %v2783 = vunpack.c.l.b16 %v2256
    %v2784 = vpack.c.b16 %v2783, %v2782
    %2787 = vset.pattern.permute.xlu0 0
    %2788 = vperm.xlu0 %2787, %v2182
    %v2789 = vpop.permute.xlu0 %2788
    %2790 = vset.pattern.permute.xlu0 0
    %2791 = vperm.xlu0 %2790, %v2198
    %v2792 = vpop.permute.xlu0 %2791
    %v2793 = vperm.slane %v2789, %v782
    %v2794 = vperm.slane %v2792, %v2292
    %v2795 = vsel %vm2294, %v2794, %v2793
    %v2796 = vsel %vm2298, %v2297, %v2795
    %v2797 = vsel %vm2302, %v2301, %v2796
    %v2798 = vsel %vm2306, %v2305, %v2797
    %v2799 = vsel %vm2310, %v2309, %v2798
    %v2800 = vsel %vm2314, %v2313, %v2799
    %v2801 = vsel %vm2318, %v2317, %v2800
    %v2802 = vsel %vm2322, %v2321, %v2801
    %v2803 = vsel %vm2326, %v2325, %v2802
    %v2804 = vsel %vm2330, %v2329, %v2803
    %v2805 = vsel %vm2334, %v2333, %v2804
    %v2806 = vsel %vm2338, %v2337, %v2805
    %v2807 = vsel %vm2342, %v2341, %v2806
    %v2808 = vsel %vm2346, %v2345, %v2807
    %v2809 = vsel %vm2350, %v2349, %v2808
    %v2810 = vsel %vm2352, %v2809, %v2809
    %v2811 = vsel %vm2354, %v2809, %v2810
    %v2812 = vsel %vm2356, %v2809, %v2811
    %v2813 = vsel %vm2358, %v2809, %v2812
    %v2814 = vsel %vm2360, %v2809, %v2813
    %v2815 = vsel %vm2362, %v2809, %v2814
    %v2818 = vsel %vm2365, %v2230, 0
    %v2821 = vsel %vm2365, %v2784, 0
    %2823 = vmatpush.bf16.xpose.msra.mxu0 %v2373
    %2824 = vmatpush.bf16.xpose.msra.mxu0 %v2373
    %2825 = vmatpush.bf16.xpose.msra.mxu0 %v2373
    %2826 = vmatpush.bf16.xpose.msra.mxu0 %v2373
    %2827 = vmatpush.bf16.xpose.msra.mxu0 %v2373
    %2828 = vmatpush.bf16.xpose.msra.mxu0 %v2373
    %2829 = vmatpush.bf16.xpose.msra.mxu0 %v2373
    %2830 = vmatpush.bf16.xpose.msra.mxu0 %v2821
    %2831 = vmatmul.bf16.gmra.mxu0 %v2818
    %v2832 = vpop.f32.mrf.mxu0
    %v2833 = vadd.f32 %v2815, %v2832
    %v2834 = vpop.f32.mrf.mxu0
    %2835 = vdwg.mxu0
    %v2838 = vunpack.c.l.b16 %v2257
    %v2839 = vunpack.c.l.b16 %v2258
    %v2840 = vpack.c.b16 %v2839, %v2838
    %2843 = vset.pattern.permute.xlu0 0
    %2844 = vperm.xlu0 %2843, %v2183
    %v2845 = vpop.permute.xlu0 %2844
    %2846 = vset.pattern.permute.xlu0 0
    %2847 = vperm.xlu0 %2846, %v2199
    %v2848 = vpop.permute.xlu0 %2847
    %v2849 = vperm.slane %v2845, %v782
    %v2850 = vperm.slane %v2848, %v2292
    %v2851 = vsel %vm2294, %v2850, %v2849
    %v2852 = vsel %vm2298, %v2297, %v2851
    %v2853 = vsel %vm2302, %v2301, %v2852
    %v2854 = vsel %vm2306, %v2305, %v2853
    %v2855 = vsel %vm2310, %v2309, %v2854
    %v2856 = vsel %vm2314, %v2313, %v2855
    %v2857 = vsel %vm2318, %v2317, %v2856
    %v2858 = vsel %vm2322, %v2321, %v2857
    %v2859 = vsel %vm2326, %v2325, %v2858
    %v2860 = vsel %vm2330, %v2329, %v2859
    %v2861 = vsel %vm2334, %v2333, %v2860
    %v2862 = vsel %vm2338, %v2337, %v2861
    %v2863 = vsel %vm2342, %v2341, %v2862
    %v2864 = vsel %vm2346, %v2345, %v2863
    %v2865 = vsel %vm2350, %v2349, %v2864
    %v2866 = vsel %vm2352, %v2865, %v2865
    %v2867 = vsel %vm2354, %v2865, %v2866
    %v2868 = vsel %vm2356, %v2865, %v2867
    %v2869 = vsel %vm2358, %v2865, %v2868
    %v2870 = vsel %vm2360, %v2865, %v2869
    %v2871 = vsel %vm2362, %v2865, %v2870
    %v2874 = vsel %vm2365, %v2231, 0
    %v2877 = vsel %vm2365, %v2840, 0
    %2879 = vmatpush.bf16.xpose.msra.mxu0 %v2373
    %2880 = vmatpush.bf16.xpose.msra.mxu0 %v2373
    %2881 = vmatpush.bf16.xpose.msra.mxu0 %v2373
    %2882 = vmatpush.bf16.xpose.msra.mxu0 %v2373
    %2883 = vmatpush.bf16.xpose.msra.mxu0 %v2373
    %2884 = vmatpush.bf16.xpose.msra.mxu0 %v2373
    %2885 = vmatpush.bf16.xpose.msra.mxu0 %v2373
    %2886 = vmatpush.bf16.xpose.msra.mxu0 %v2877
    %2887 = vmatmul.bf16.gmra.mxu0 %v2874
    %v2888 = vpop.f32.mrf.mxu0
    %v2889 = vadd.f32 %v2871, %v2888
    %v2890 = vpop.f32.mrf.mxu0
    %2891 = vdwg.mxu0
    %v2894 = vunpack.c.l.b16 %v2259
    %v2895 = vunpack.c.l.b16 %v2260
    %v2896 = vpack.c.b16 %v2895, %v2894
    %2899 = vset.pattern.permute.xlu0 0
    %2900 = vperm.xlu0 %2899, %v2184
    %v2901 = vpop.permute.xlu0 %2900
    %2902 = vset.pattern.permute.xlu0 0
    %2903 = vperm.xlu0 %2902, %v2200
    %v2904 = vpop.permute.xlu0 %2903
    %v2905 = vperm.slane %v2901, %v782
    %v2906 = vperm.slane %v2904, %v2292
    %v2907 = vsel %vm2294, %v2906, %v2905
    %v2908 = vsel %vm2298, %v2297, %v2907
    %v2909 = vsel %vm2302, %v2301, %v2908
    %v2910 = vsel %vm2306, %v2305, %v2909
    %v2911 = vsel %vm2310, %v2309, %v2910
    %v2912 = vsel %vm2314, %v2313, %v2911
    %v2913 = vsel %vm2318, %v2317, %v2912
    %v2914 = vsel %vm2322, %v2321, %v2913
    %v2915 = vsel %vm2326, %v2325, %v2914
    %v2916 = vsel %vm2330, %v2329, %v2915
    %v2917 = vsel %vm2334, %v2333, %v2916
    %v2918 = vsel %vm2338, %v2337, %v2917
    %v2919 = vsel %vm2342, %v2341, %v2918
    %v2920 = vsel %vm2346, %v2345, %v2919
    %v2921 = vsel %vm2350, %v2349, %v2920
    %v2922 = vsel %vm2352, %v2921, %v2921
    %v2923 = vsel %vm2354, %v2921, %v2922
    %v2924 = vsel %vm2356, %v2921, %v2923
    %v2925 = vsel %vm2358, %v2921, %v2924
    %v2926 = vsel %vm2360, %v2921, %v2925
    %v2927 = vsel %vm2362, %v2921, %v2926
    %v2930 = vsel %vm2365, %v2232, 0
    %v2933 = vsel %vm2365, %v2896, 0
    %2935 = vmatpush.bf16.xpose.msra.mxu0 %v2373
    %2936 = vmatpush.bf16.xpose.msra.mxu0 %v2373
    %2937 = vmatpush.bf16.xpose.msra.mxu0 %v2373
    %2938 = vmatpush.bf16.xpose.msra.mxu0 %v2373
    %2939 = vmatpush.bf16.xpose.msra.mxu0 %v2373
    %2940 = vmatpush.bf16.xpose.msra.mxu0 %v2373
    %2941 = vmatpush.bf16.xpose.msra.mxu0 %v2373
    %2942 = vmatpush.bf16.xpose.msra.mxu0 %v2933
    %2943 = vmatmul.bf16.gmra.mxu0 %v2930
    %v2944 = vpop.f32.mrf.mxu0
    %v2945 = vadd.f32 %v2927, %v2944
    %v2946 = vpop.f32.mrf.mxu0
    %2947 = vdwg.mxu0
    %v2950 = vunpack.c.l.b16 %v2261
    %v2951 = vunpack.c.l.b16 %v2262
    %v2952 = vpack.c.b16 %v2951, %v2950
    %2955 = vset.pattern.permute.xlu0 0
    %2956 = vperm.xlu0 %2955, %v2185
    %v2957 = vpop.permute.xlu0 %2956
    %2958 = vset.pattern.permute.xlu0 0
    %2959 = vperm.xlu0 %2958, %v2201
    %v2960 = vpop.permute.xlu0 %2959
    %v2961 = vperm.slane %v2957, %v782
    %v2962 = vperm.slane %v2960, %v2292
    %v2963 = vsel %vm2294, %v2962, %v2961
    %v2964 = vsel %vm2298, %v2297, %v2963
    %v2965 = vsel %vm2302, %v2301, %v2964
    %v2966 = vsel %vm2306, %v2305, %v2965
    %v2967 = vsel %vm2310, %v2309, %v2966
    %v2968 = vsel %vm2314, %v2313, %v2967
    %v2969 = vsel %vm2318, %v2317, %v2968
    %v2970 = vsel %vm2322, %v2321, %v2969
    %v2971 = vsel %vm2326, %v2325, %v2970
    %v2972 = vsel %vm2330, %v2329, %v2971
    %v2973 = vsel %vm2334, %v2333, %v2972
    %v2974 = vsel %vm2338, %v2337, %v2973
    %v2975 = vsel %vm2342, %v2341, %v2974
    %v2976 = vsel %vm2346, %v2345, %v2975
    %v2977 = vsel %vm2350, %v2349, %v2976
    %v2978 = vsel %vm2352, %v2977, %v2977
    %v2979 = vsel %vm2354, %v2977, %v2978
    %v2980 = vsel %vm2356, %v2977, %v2979
    %v2981 = vsel %vm2358, %v2977, %v2980
    %v2982 = vsel %vm2360, %v2977, %v2981
    %v2983 = vsel %vm2362, %v2977, %v2982
    %v2986 = vsel %vm2365, %v2233, 0
    %v2989 = vsel %vm2365, %v2952, 0
    %2991 = vmatpush.bf16.xpose.msra.mxu0 %v2373
    %2992 = vmatpush.bf16.xpose.msra.mxu0 %v2373
    %2993 = vmatpush.bf16.xpose.msra.mxu0 %v2373
    %2994 = vmatpush.bf16.xpose.msra.mxu0 %v2373
    %2995 = vmatpush.bf16.xpose.msra.mxu0 %v2373
    %2996 = vmatpush.bf16.xpose.msra.mxu0 %v2373
    %2997 = vmatpush.bf16.xpose.msra.mxu0 %v2373
    %2998 = vmatpush.bf16.xpose.msra.mxu0 %v2989
    %2999 = vmatmul.bf16.gmra.mxu0 %v2986
    %v3000 = vpop.f32.mrf.mxu0
    %v3001 = vadd.f32 %v2983, %v3000
    %v3002 = vpop.f32.mrf.mxu0
    %3003 = vdwg.mxu0
    %v3006 = vunpack.c.l.b16 %v2263
    %v3007 = vunpack.c.l.b16 %v2264
    %v3008 = vpack.c.b16 %v3007, %v3006
    %3011 = vset.pattern.permute.xlu0 0
    %3012 = vperm.xlu0 %3011, %v2186
    %v3013 = vpop.permute.xlu0 %3012
    %3014 = vset.pattern.permute.xlu0 0
    %3015 = vperm.xlu0 %3014, %v2202
    %v3016 = vpop.permute.xlu0 %3015
    %v3017 = vperm.slane %v3013, %v782
    %v3018 = vperm.slane %v3016, %v2292
    %v3019 = vsel %vm2294, %v3018, %v3017
    %v3020 = vsel %vm2298, %v2297, %v3019
    %v3021 = vsel %vm2302, %v2301, %v3020
    %v3022 = vsel %vm2306, %v2305, %v3021
    %v3023 = vsel %vm2310, %v2309, %v3022
    %v3024 = vsel %vm2314, %v2313, %v3023
    %v3025 = vsel %vm2318, %v2317, %v3024
    %v3026 = vsel %vm2322, %v2321, %v3025
    %v3027 = vsel %vm2326, %v2325, %v3026
    %v3028 = vsel %vm2330, %v2329, %v3027
    %v3029 = vsel %vm2334, %v2333, %v3028
    %v3030 = vsel %vm2338, %v2337, %v3029
    %v3031 = vsel %vm2342, %v2341, %v3030
    %v3032 = vsel %vm2346, %v2345, %v3031
    %v3033 = vsel %vm2350, %v2349, %v3032
    %v3034 = vsel %vm2352, %v3033, %v3033
    %v3035 = vsel %vm2354, %v3033, %v3034
    %v3036 = vsel %vm2356, %v3033, %v3035
    %v3037 = vsel %vm2358, %v3033, %v3036
    %v3038 = vsel %vm2360, %v3033, %v3037
    %v3039 = vsel %vm2362, %v3033, %v3038
    %v3042 = vsel %vm2365, %v2234, 0
    %v3045 = vsel %vm2365, %v3008, 0
    %3047 = vmatpush.bf16.xpose.msra.mxu0 %v2373
    %3048 = vmatpush.bf16.xpose.msra.mxu0 %v2373
    %3049 = vmatpush.bf16.xpose.msra.mxu0 %v2373
    %3050 = vmatpush.bf16.xpose.msra.mxu0 %v2373
    %3051 = vmatpush.bf16.xpose.msra.mxu0 %v2373
    %3052 = vmatpush.bf16.xpose.msra.mxu0 %v2373
    %3053 = vmatpush.bf16.xpose.msra.mxu0 %v2373
    %3054 = vmatpush.bf16.xpose.msra.mxu0 %v3045
    %3055 = vmatmul.bf16.gmra.mxu0 %v3042
    %v3056 = vpop.f32.mrf.mxu0
    %v3057 = vadd.f32 %v3039, %v3056
    %v3058 = vpop.f32.mrf.mxu0
    %3059 = vdwg.mxu0
    %v3062 = vunpack.c.l.b16 %v2265
    %v3063 = vunpack.c.l.b16 %v2266
    %v3064 = vpack.c.b16 %v3063, %v3062
    %3067 = vset.pattern.permute.xlu0 0
    %3068 = vperm.xlu0 %3067, %v2187
    %v3069 = vpop.permute.xlu0 %3068
    %3070 = vset.pattern.permute.xlu0 0
    %3071 = vperm.xlu0 %3070, %v2203
    %v3072 = vpop.permute.xlu0 %3071
    %v3073 = vperm.slane %v3069, %v782
    %v3074 = vperm.slane %v3072, %v2292
    %v3075 = vsel %vm2294, %v3074, %v3073
    %v3076 = vsel %vm2298, %v2297, %v3075
    %v3077 = vsel %vm2302, %v2301, %v3076
    %v3078 = vsel %vm2306, %v2305, %v3077
    %v3079 = vsel %vm2310, %v2309, %v3078
    %v3080 = vsel %vm2314, %v2313, %v3079
    %v3081 = vsel %vm2318, %v2317, %v3080
    %v3082 = vsel %vm2322, %v2321, %v3081
    %v3083 = vsel %vm2326, %v2325, %v3082
    %v3084 = vsel %vm2330, %v2329, %v3083
    %v3085 = vsel %vm2334, %v2333, %v3084
    %v3086 = vsel %vm2338, %v2337, %v3085
    %v3087 = vsel %vm2342, %v2341, %v3086
    %v3088 = vsel %vm2346, %v2345, %v3087
    %v3089 = vsel %vm2350, %v2349, %v3088
    %v3090 = vsel %vm2352, %v3089, %v3089
    %v3091 = vsel %vm2354, %v3089, %v3090
    %v3092 = vsel %vm2356, %v3089, %v3091
    %v3093 = vsel %vm2358, %v3089, %v3092
    %v3094 = vsel %vm2360, %v3089, %v3093
    %v3095 = vsel %vm2362, %v3089, %v3094
    %v3098 = vsel %vm2365, %v2235, 0
    %v3101 = vsel %vm2365, %v3064, 0
    %3103 = vmatpush.bf16.xpose.msra.mxu0 %v2373
    %3104 = vmatpush.bf16.xpose.msra.mxu0 %v2373
    %3105 = vmatpush.bf16.xpose.msra.mxu0 %v2373
    %3106 = vmatpush.bf16.xpose.msra.mxu0 %v2373
    %3107 = vmatpush.bf16.xpose.msra.mxu0 %v2373
    %3108 = vmatpush.bf16.xpose.msra.mxu0 %v2373
    %3109 = vmatpush.bf16.xpose.msra.mxu0 %v2373
    %3110 = vmatpush.bf16.xpose.msra.mxu0 %v3101
    %3111 = vmatmul.bf16.gmra.mxu0 %v3098
    %v3112 = vpop.f32.mrf.mxu0
    %v3113 = vadd.f32 %v3095, %v3112
    %v3114 = vpop.f32.mrf.mxu0
    %3115 = vdwg.mxu0
    %v3118 = vunpack.c.l.b16 %v2267
    %v3119 = vunpack.c.l.b16 %v2268
    %v3120 = vpack.c.b16 %v3119, %v3118
    %3123 = vset.pattern.permute.xlu0 0
    %3124 = vperm.xlu0 %3123, %v2188
    %v3125 = vpop.permute.xlu0 %3124
    %3126 = vset.pattern.permute.xlu0 0
    %3127 = vperm.xlu0 %3126, %v2204
    %v3128 = vpop.permute.xlu0 %3127
    %v3129 = vperm.slane %v3125, %v782
    %v3130 = vperm.slane %v3128, %v2292
    %v3131 = vsel %vm2294, %v3130, %v3129
    %v3132 = vsel %vm2298, %v2297, %v3131
    %v3133 = vsel %vm2302, %v2301, %v3132
    %v3134 = vsel %vm2306, %v2305, %v3133
    %v3135 = vsel %vm2310, %v2309, %v3134
    %v3136 = vsel %vm2314, %v2313, %v3135
    %v3137 = vsel %vm2318, %v2317, %v3136
    %v3138 = vsel %vm2322, %v2321, %v3137
    %v3139 = vsel %vm2326, %v2325, %v3138
    %v3140 = vsel %vm2330, %v2329, %v3139
    %v3141 = vsel %vm2334, %v2333, %v3140
    %v3142 = vsel %vm2338, %v2337, %v3141
    %v3143 = vsel %vm2342, %v2341, %v3142
    %v3144 = vsel %vm2346, %v2345, %v3143
    %v3145 = vsel %vm2350, %v2349, %v3144
    %v3146 = vsel %vm2352, %v3145, %v3145
    %v3147 = vsel %vm2354, %v3145, %v3146
    %v3148 = vsel %vm2356, %v3145, %v3147
    %v3149 = vsel %vm2358, %v3145, %v3148
    %v3150 = vsel %vm2360, %v3145, %v3149
    %v3151 = vsel %vm2362, %v3145, %v3150
    %v3154 = vsel %vm2365, %v2236, 0
    %v3157 = vsel %vm2365, %v3120, 0
    %3159 = vmatpush.bf16.xpose.msra.mxu0 %v2373
    %3160 = vmatpush.bf16.xpose.msra.mxu0 %v2373
    %3161 = vmatpush.bf16.xpose.msra.mxu0 %v2373
    %3162 = vmatpush.bf16.xpose.msra.mxu0 %v2373
    %3163 = vmatpush.bf16.xpose.msra.mxu0 %v2373
    %3164 = vmatpush.bf16.xpose.msra.mxu0 %v2373
    %3165 = vmatpush.bf16.xpose.msra.mxu0 %v2373
    %3166 = vmatpush.bf16.xpose.msra.mxu0 %v3157
    %3167 = vmatmul.bf16.gmra.mxu0 %v3154
    %v3168 = vpop.f32.mrf.mxu0
    %v3169 = vadd.f32 %v3151, %v3168
    %v3170 = vpop.f32.mrf.mxu0
    %3171 = vdwg.mxu0
    %v3174 = vunpack.c.l.b16 %v2269
    %v3175 = vunpack.c.l.b16 %v2270
    %v3176 = vpack.c.b16 %v3175, %v3174
    %3179 = vset.pattern.permute.xlu0 0
    %3180 = vperm.xlu0 %3179, %v2189
    %v3181 = vpop.permute.xlu0 %3180
    %3182 = vset.pattern.permute.xlu0 0
    %3183 = vperm.xlu0 %3182, %v2205
    %v3184 = vpop.permute.xlu0 %3183
    %v3185 = vperm.slane %v3181, %v782
    %v3186 = vperm.slane %v3184, %v2292
    %v3187 = vsel %vm2294, %v3186, %v3185
    %v3188 = vsel %vm2298, %v2297, %v3187
    %v3189 = vsel %vm2302, %v2301, %v3188
    %v3190 = vsel %vm2306, %v2305, %v3189
    %v3191 = vsel %vm2310, %v2309, %v3190
    %v3192 = vsel %vm2314, %v2313, %v3191
    %v3193 = vsel %vm2318, %v2317, %v3192
    %v3194 = vsel %vm2322, %v2321, %v3193
    %v3195 = vsel %vm2326, %v2325, %v3194
    %v3196 = vsel %vm2330, %v2329, %v3195
    %v3197 = vsel %vm2334, %v2333, %v3196
    %v3198 = vsel %vm2338, %v2337, %v3197
    %v3199 = vsel %vm2342, %v2341, %v3198
    %v3200 = vsel %vm2346, %v2345, %v3199
    %v3201 = vsel %vm2350, %v2349, %v3200
    %v3202 = vsel %vm2352, %v3201, %v3201
    %v3203 = vsel %vm2354, %v3201, %v3202
    %v3204 = vsel %vm2356, %v3201, %v3203
    %v3205 = vsel %vm2358, %v3201, %v3204
    %v3206 = vsel %vm2360, %v3201, %v3205
    %v3207 = vsel %vm2362, %v3201, %v3206
    %v3210 = vsel %vm2365, %v2237, 0
    %v3213 = vsel %vm2365, %v3176, 0
    %3215 = vmatpush.bf16.xpose.msra.mxu0 %v2373
    %3216 = vmatpush.bf16.xpose.msra.mxu0 %v2373
    %3217 = vmatpush.bf16.xpose.msra.mxu0 %v2373
    %3218 = vmatpush.bf16.xpose.msra.mxu0 %v2373
    %3219 = vmatpush.bf16.xpose.msra.mxu0 %v2373
    %3220 = vmatpush.bf16.xpose.msra.mxu0 %v2373
    %3221 = vmatpush.bf16.xpose.msra.mxu0 %v2373
    %3222 = vmatpush.bf16.xpose.msra.mxu0 %v3213
    %3223 = vmatmul.bf16.gmra.mxu0 %v3210
    %v3224 = vpop.f32.mrf.mxu0
    %v3225 = vadd.f32 %v3207, %v3224
    %v3226 = vpop.f32.mrf.mxu0
    %3227 = vdwg.mxu0
    %3228 = vmax.xlane.f32.xlu0 %v2385
    %v3229 = vpop.xlane.xlu0 %3228
    %3230 = vmax.xlane.f32.xlu0 %v2441
    %v3231 = vpop.xlane.xlu0 %3230
    %3232 = vmax.xlane.f32.xlu0 %v2497
    %v3233 = vpop.xlane.xlu0 %3232
    %3234 = vmax.xlane.f32.xlu0 %v2553
    %v3235 = vpop.xlane.xlu0 %3234
    %3236 = vmax.xlane.f32.xlu0 %v2609
    %v3237 = vpop.xlane.xlu0 %3236
    %3238 = vmax.xlane.f32.xlu0 %v2665
    %v3239 = vpop.xlane.xlu0 %3238
    %3240 = vmax.xlane.f32.xlu0 %v2721
    %v3241 = vpop.xlane.xlu0 %3240
    %3242 = vmax.xlane.f32.xlu0 %v2777
    %v3243 = vpop.xlane.xlu0 %3242
    %3244 = vmax.xlane.f32.xlu0 %v2833
    %v3245 = vpop.xlane.xlu0 %3244
    %3246 = vmax.xlane.f32.xlu0 %v2889
    %v3247 = vpop.xlane.xlu0 %3246
    %3248 = vmax.xlane.f32.xlu0 %v2945
    %v3249 = vpop.xlane.xlu0 %3248
    %3250 = vmax.xlane.f32.xlu0 %v3001
    %v3251 = vpop.xlane.xlu0 %3250
    %3252 = vmax.xlane.f32.xlu0 %v3057
    %v3253 = vpop.xlane.xlu0 %3252
    %3254 = vmax.xlane.f32.xlu0 %v3113
    %v3255 = vpop.xlane.xlu0 %3254
    %3256 = vmax.xlane.f32.xlu0 %v3169
    %v3257 = vpop.xlane.xlu0 %3256
    %3258 = vmax.xlane.f32.xlu0 %v3225
    %v3259 = vpop.xlane.xlu0 %3258
    %v3260 = vsub.f32 %v2385, %v3229
    %v3261 = vsub.f32 %v2441, %v3231
    %v3262 = vsub.f32 %v2497, %v3233
    %v3263 = vsub.f32 %v2553, %v3235
    %v3264 = vsub.f32 %v2609, %v3237
    %v3265 = vsub.f32 %v2665, %v3239
    %v3266 = vsub.f32 %v2721, %v3241
    %v3267 = vsub.f32 %v2777, %v3243
    %v3268 = vsub.f32 %v2833, %v3245
    %v3269 = vsub.f32 %v2889, %v3247
    %v3270 = vsub.f32 %v2945, %v3249
    %v3271 = vsub.f32 %v3001, %v3251
    %v3272 = vsub.f32 %v3057, %v3253
    %v3273 = vsub.f32 %v3113, %v3255
    %v3274 = vsub.f32 %v3169, %v3257
    %v3275 = vsub.f32 %v3225, %v3259
    %v3276 = vmul.f32 %v3260, 1.442695
    %v3277 = vpow.pop %v3276
    %v3278 = vmul.f32 %v3261, 1.442695
    %v3279 = vpow.pop %v3278
    %v3280 = vmul.f32 %v3262, 1.442695
    %v3281 = vpow.pop %v3280
    %v3282 = vmul.f32 %v3263, 1.442695
    %v3283 = vpow.pop %v3282
    %v3284 = vmul.f32 %v3264, 1.442695
    %v3285 = vpow.pop %v3284
    %v3286 = vmul.f32 %v3265, 1.442695
    %v3287 = vpow.pop %v3286
    %v3288 = vmul.f32 %v3266, 1.442695
    %v3289 = vpow.pop %v3288
    %v3290 = vmul.f32 %v3267, 1.442695
    %v3291 = vpow.pop %v3290
    %v3292 = vmul.f32 %v3268, 1.442695
    %v3293 = vpow.pop %v3292
    %v3294 = vmul.f32 %v3269, 1.442695
    %v3295 = vpow.pop %v3294
    %v3296 = vmul.f32 %v3270, 1.442695
    %v3297 = vpow.pop %v3296
    %v3298 = vmul.f32 %v3271, 1.442695
    %v3299 = vpow.pop %v3298
    %v3300 = vmul.f32 %v3272, 1.442695
    %v3301 = vpow.pop %v3300
    %v3302 = vmul.f32 %v3273, 1.442695
    %v3303 = vpow.pop %v3302
    %v3304 = vmul.f32 %v3274, 1.442695
    %v3305 = vpow.pop %v3304
    %v3306 = vmul.f32 %v3275, 1.442695
    %v3307 = vpow.pop %v3306
    %3308 = vadd.xlane.f32.xlu0 %v3277
    %v3309 = vpop.xlane.xlu0 %3308
    %3310 = vadd.xlane.f32.xlu0 %v3279
    %v3311 = vpop.xlane.xlu0 %3310
    %3312 = vadd.xlane.f32.xlu0 %v3281
    %v3313 = vpop.xlane.xlu0 %3312
    %3314 = vadd.xlane.f32.xlu0 %v3283
    %v3315 = vpop.xlane.xlu0 %3314
    %3316 = vadd.xlane.f32.xlu0 %v3285
    %v3317 = vpop.xlane.xlu0 %3316
    %3318 = vadd.xlane.f32.xlu0 %v3287
    %v3319 = vpop.xlane.xlu0 %3318
    %3320 = vadd.xlane.f32.xlu0 %v3289
    %v3321 = vpop.xlane.xlu0 %3320
    %3322 = vadd.xlane.f32.xlu0 %v3291
    %v3323 = vpop.xlane.xlu0 %3322
    %3324 = vadd.xlane.f32.xlu0 %v3293
    %v3325 = vpop.xlane.xlu0 %3324
    %3326 = vadd.xlane.f32.xlu0 %v3295
    %v3327 = vpop.xlane.xlu0 %3326
    %3328 = vadd.xlane.f32.xlu0 %v3297
    %v3329 = vpop.xlane.xlu0 %3328
    %3330 = vadd.xlane.f32.xlu0 %v3299
    %v3331 = vpop.xlane.xlu0 %3330
    %3332 = vadd.xlane.f32.xlu0 %v3301
    %v3333 = vpop.xlane.xlu0 %3332
    %3334 = vadd.xlane.f32.xlu0 %v3303
    %v3335 = vpop.xlane.xlu0 %3334
    %3336 = vadd.xlane.f32.xlu0 %v3305
    %v3337 = vpop.xlane.xlu0 %3336
    %3338 = vadd.xlane.f32.xlu0 %v3307
    %v3339 = vpop.xlane.xlu0 %3338
    %v3340 = vrcp.pop %v3309
    %v3341 = vmul.f32 %v3309, %v3340
    %v3342 = vsub.f32 1.0, %v3341
    %v3343 = vmul.f32 %v3340, %v3342
    %v3344 = vadd.f32 %v3340, %v3343
    %vm3345 = vweird.f32 %v3309
    %vm3346 = vweird.f32 %v3340
    %vm3347 = vmor %vm3345, %vm3346
    %v3348 = vsel %vm3347, %v3340, %v3344
    %v3349 = vand.u32 2147483647, %v3309
    %vm3350 = vcmp.eq.f32.partialorder %v3349, 8.507059e+37
    %v3351 = vand.u32 %v3309, 2147483648
    %v3352 = vor.u32 1.1754944e-38, %v3351
    %v3353 = vsel %vm3350, %v3352, %v3348
    %v3354 = vmul.f32 1.0, %v3353
    %v3355 = vrcp.pop %v3311
    %v3356 = vmul.f32 %v3311, %v3355
    %v3357 = vsub.f32 1.0, %v3356
    %v3358 = vmul.f32 %v3355, %v3357
    %v3359 = vadd.f32 %v3355, %v3358
    %vm3360 = vweird.f32 %v3311
    %vm3361 = vweird.f32 %v3355
    %vm3362 = vmor %vm3360, %vm3361
    %v3363 = vsel %vm3362, %v3355, %v3359
    %v3364 = vand.u32 2147483647, %v3311
    %vm3365 = vcmp.eq.f32.partialorder %v3364, 8.507059e+37
    %v3366 = vand.u32 %v3311, 2147483648
    %v3367 = vor.u32 1.1754944e-38, %v3366
    %v3368 = vsel %vm3365, %v3367, %v3363
    %v3369 = vmul.f32 1.0, %v3368
    %v3370 = vrcp.pop %v3313
    %v3371 = vmul.f32 %v3313, %v3370
    %v3372 = vsub.f32 1.0, %v3371
    %v3373 = vmul.f32 %v3370, %v3372
    %v3374 = vadd.f32 %v3370, %v3373
    %vm3375 = vweird.f32 %v3313
    %vm3376 = vweird.f32 %v3370
    %vm3377 = vmor %vm3375, %vm3376
    %v3378 = vsel %vm3377, %v3370, %v3374
    %v3379 = vand.u32 2147483647, %v3313
    %vm3380 = vcmp.eq.f32.partialorder %v3379, 8.507059e+37
    %v3381 = vand.u32 %v3313, 2147483648
    %v3382 = vor.u32 1.1754944e-38, %v3381
    %v3383 = vsel %vm3380, %v3382, %v3378
    %v3384 = vmul.f32 1.0, %v3383
    %v3385 = vrcp.pop %v3315
    %v3386 = vmul.f32 %v3315, %v3385
    %v3387 = vsub.f32 1.0, %v3386
    %v3388 = vmul.f32 %v3385, %v3387
    %v3389 = vadd.f32 %v3385, %v3388
    %vm3390 = vweird.f32 %v3315
    %vm3391 = vweird.f32 %v3385
    %vm3392 = vmor %vm3390, %vm3391
    %v3393 = vsel %vm3392, %v3385, %v3389
    %v3394 = vand.u32 2147483647, %v3315
    %vm3395 = vcmp.eq.f32.partialorder %v3394, 8.507059e+37
    %v3396 = vand.u32 %v3315, 2147483648
    %v3397 = vor.u32 1.1754944e-38, %v3396
    %v3398 = vsel %vm3395, %v3397, %v3393
    %v3399 = vmul.f32 1.0, %v3398
    %v3400 = vrcp.pop %v3317
    %v3401 = vmul.f32 %v3317, %v3400
    %v3402 = vsub.f32 1.0, %v3401
    %v3403 = vmul.f32 %v3400, %v3402
    %v3404 = vadd.f32 %v3400, %v3403
    %vm3405 = vweird.f32 %v3317
    %vm3406 = vweird.f32 %v3400
    %vm3407 = vmor %vm3405, %vm3406
    %v3408 = vsel %vm3407, %v3400, %v3404
    %v3409 = vand.u32 2147483647, %v3317
    %vm3410 = vcmp.eq.f32.partialorder %v3409, 8.507059e+37
    %v3411 = vand.u32 %v3317, 2147483648
    %v3412 = vor.u32 1.1754944e-38, %v3411
    %v3413 = vsel %vm3410, %v3412, %v3408
    %v3414 = vmul.f32 1.0, %v3413
    %v3415 = vrcp.pop %v3319
    %v3416 = vmul.f32 %v3319, %v3415
    %v3417 = vsub.f32 1.0, %v3416
    %v3418 = vmul.f32 %v3415, %v3417
    %v3419 = vadd.f32 %v3415, %v3418
    %vm3420 = vweird.f32 %v3319
    %vm3421 = vweird.f32 %v3415
    %vm3422 = vmor %vm3420, %vm3421
    %v3423 = vsel %vm3422, %v3415, %v3419
    %v3424 = vand.u32 2147483647, %v3319
    %vm3425 = vcmp.eq.f32.partialorder %v3424, 8.507059e+37
    %v3426 = vand.u32 %v3319, 2147483648
    %v3427 = vor.u32 1.1754944e-38, %v3426
    %v3428 = vsel %vm3425, %v3427, %v3423
    %v3429 = vmul.f32 1.0, %v3428
    %v3430 = vrcp.pop %v3321
    %v3431 = vmul.f32 %v3321, %v3430
    %v3432 = vsub.f32 1.0, %v3431
    %v3433 = vmul.f32 %v3430, %v3432
    %v3434 = vadd.f32 %v3430, %v3433
    %vm3435 = vweird.f32 %v3321
    %vm3436 = vweird.f32 %v3430
    %vm3437 = vmor %vm3435, %vm3436
    %v3438 = vsel %vm3437, %v3430, %v3434
    %v3439 = vand.u32 2147483647, %v3321
    %vm3440 = vcmp.eq.f32.partialorder %v3439, 8.507059e+37
    %v3441 = vand.u32 %v3321, 2147483648
    %v3442 = vor.u32 1.1754944e-38, %v3441
    %v3443 = vsel %vm3440, %v3442, %v3438
    %v3444 = vmul.f32 1.0, %v3443
    %v3445 = vrcp.pop %v3323
    %v3446 = vmul.f32 %v3323, %v3445
    %v3447 = vsub.f32 1.0, %v3446
    %v3448 = vmul.f32 %v3445, %v3447
    %v3449 = vadd.f32 %v3445, %v3448
    %vm3450 = vweird.f32 %v3323
    %vm3451 = vweird.f32 %v3445
    %vm3452 = vmor %vm3450, %vm3451
    %v3453 = vsel %vm3452, %v3445, %v3449
    %v3454 = vand.u32 2147483647, %v3323
    %vm3455 = vcmp.eq.f32.partialorder %v3454, 8.507059e+37
    %v3456 = vand.u32 %v3323, 2147483648
    %v3457 = vor.u32 1.1754944e-38, %v3456
    %v3458 = vsel %vm3455, %v3457, %v3453
    %v3459 = vmul.f32 1.0, %v3458
    %v3460 = vrcp.pop %v3325
    %v3461 = vmul.f32 %v3325, %v3460
    %v3462 = vsub.f32 1.0, %v3461
    %v3463 = vmul.f32 %v3460, %v3462
    %v3464 = vadd.f32 %v3460, %v3463
    %vm3465 = vweird.f32 %v3325
    %vm3466 = vweird.f32 %v3460
    %vm3467 = vmor %vm3465, %vm3466
    %v3468 = vsel %vm3467, %v3460, %v3464
    %v3469 = vand.u32 2147483647, %v3325
    %vm3470 = vcmp.eq.f32.partialorder %v3469, 8.507059e+37
    %v3471 = vand.u32 %v3325, 2147483648
    %v3472 = vor.u32 1.1754944e-38, %v3471
    %v3473 = vsel %vm3470, %v3472, %v3468
    %v3474 = vmul.f32 1.0, %v3473
    %v3475 = vrcp.pop %v3327
    %v3476 = vmul.f32 %v3327, %v3475
    %v3477 = vsub.f32 1.0, %v3476
    %v3478 = vmul.f32 %v3475, %v3477
    %v3479 = vadd.f32 %v3475, %v3478
    %vm3480 = vweird.f32 %v3327
    %vm3481 = vweird.f32 %v3475
    %vm3482 = vmor %vm3480, %vm3481
    %v3483 = vsel %vm3482, %v3475, %v3479
    %v3484 = vand.u32 2147483647, %v3327
    %vm3485 = vcmp.eq.f32.partialorder %v3484, 8.507059e+37
    %v3486 = vand.u32 %v3327, 2147483648
    %v3487 = vor.u32 1.1754944e-38, %v3486
    %v3488 = vsel %vm3485, %v3487, %v3483
    %v3489 = vmul.f32 1.0, %v3488
    %v3490 = vrcp.pop %v3329
    %v3491 = vmul.f32 %v3329, %v3490
    %v3492 = vsub.f32 1.0, %v3491
    %v3493 = vmul.f32 %v3490, %v3492
    %v3494 = vadd.f32 %v3490, %v3493
    %vm3495 = vweird.f32 %v3329
    %vm3496 = vweird.f32 %v3490
    %vm3497 = vmor %vm3495, %vm3496
    %v3498 = vsel %vm3497, %v3490, %v3494
    %v3499 = vand.u32 2147483647, %v3329
    %vm3500 = vcmp.eq.f32.partialorder %v3499, 8.507059e+37
    %v3501 = vand.u32 %v3329, 2147483648
    %v3502 = vor.u32 1.1754944e-38, %v3501
    %v3503 = vsel %vm3500, %v3502, %v3498
    %v3504 = vmul.f32 1.0, %v3503
    %v3505 = vrcp.pop %v3331
    %v3506 = vmul.f32 %v3331, %v3505
    %v3507 = vsub.f32 1.0, %v3506
    %v3508 = vmul.f32 %v3505, %v3507
    %v3509 = vadd.f32 %v3505, %v3508
    %vm3510 = vweird.f32 %v3331
    %vm3511 = vweird.f32 %v3505
    %vm3512 = vmor %vm3510, %vm3511
    %v3513 = vsel %vm3512, %v3505, %v3509
    %v3514 = vand.u32 2147483647, %v3331
    %vm3515 = vcmp.eq.f32.partialorder %v3514, 8.507059e+37
    %v3516 = vand.u32 %v3331, 2147483648
    %v3517 = vor.u32 1.1754944e-38, %v3516
    %v3518 = vsel %vm3515, %v3517, %v3513
    %v3519 = vmul.f32 1.0, %v3518
    %v3520 = vrcp.pop %v3333
    %v3521 = vmul.f32 %v3333, %v3520
    %v3522 = vsub.f32 1.0, %v3521
    %v3523 = vmul.f32 %v3520, %v3522
    %v3524 = vadd.f32 %v3520, %v3523
    %vm3525 = vweird.f32 %v3333
    %vm3526 = vweird.f32 %v3520
    %vm3527 = vmor %vm3525, %vm3526
    %v3528 = vsel %vm3527, %v3520, %v3524
    %v3529 = vand.u32 2147483647, %v3333
    %vm3530 = vcmp.eq.f32.partialorder %v3529, 8.507059e+37
    %v3531 = vand.u32 %v3333, 2147483648
    %v3532 = vor.u32 1.1754944e-38, %v3531
    %v3533 = vsel %vm3530, %v3532, %v3528
    %v3534 = vmul.f32 1.0, %v3533
    %v3535 = vrcp.pop %v3335
    %v3536 = vmul.f32 %v3335, %v3535
    %v3537 = vsub.f32 1.0, %v3536
    %v3538 = vmul.f32 %v3535, %v3537
    %v3539 = vadd.f32 %v3535, %v3538
    %vm3540 = vweird.f32 %v3335
    %vm3541 = vweird.f32 %v3535
    %vm3542 = vmor %vm3540, %vm3541
    %v3543 = vsel %vm3542, %v3535, %v3539
    %v3544 = vand.u32 2147483647, %v3335
    %vm3545 = vcmp.eq.f32.partialorder %v3544, 8.507059e+37
    %v3546 = vand.u32 %v3335, 2147483648
    %v3547 = vor.u32 1.1754944e-38, %v3546
    %v3548 = vsel %vm3545, %v3547, %v3543
    %v3549 = vmul.f32 1.0, %v3548
    %v3550 = vrcp.pop %v3337
    %v3551 = vmul.f32 %v3337, %v3550
    %v3552 = vsub.f32 1.0, %v3551
    %v3553 = vmul.f32 %v3550, %v3552
    %v3554 = vadd.f32 %v3550, %v3553
    %vm3555 = vweird.f32 %v3337
    %vm3556 = vweird.f32 %v3550
    %vm3557 = vmor %vm3555, %vm3556
    %v3558 = vsel %vm3557, %v3550, %v3554
    %v3559 = vand.u32 2147483647, %v3337
    %vm3560 = vcmp.eq.f32.partialorder %v3559, 8.507059e+37
    %v3561 = vand.u32 %v3337, 2147483648
    %v3562 = vor.u32 1.1754944e-38, %v3561
    %v3563 = vsel %vm3560, %v3562, %v3558
    %v3564 = vmul.f32 1.0, %v3563
    %v3565 = vrcp.pop %v3339
    %v3566 = vmul.f32 %v3339, %v3565
    %v3567 = vsub.f32 1.0, %v3566
    %v3568 = vmul.f32 %v3565, %v3567
    %v3569 = vadd.f32 %v3565, %v3568
    %vm3570 = vweird.f32 %v3339
    %vm3571 = vweird.f32 %v3565
    %vm3572 = vmor %vm3570, %vm3571
    %v3573 = vsel %vm3572, %v3565, %v3569
    %v3574 = vand.u32 2147483647, %v3339
    %vm3575 = vcmp.eq.f32.partialorder %v3574, 8.507059e+37
    %v3576 = vand.u32 %v3339, 2147483648
    %v3577 = vor.u32 1.1754944e-38, %v3576
    %v3578 = vsel %vm3575, %v3577, %v3573
    %v3579 = vmul.f32 1.0, %v3578
    %v3580 = vmul.f32 %v3277, %v3354
    %v3581 = vmul.f32 %v3279, %v3369
    %v3582 = vmul.f32 %v3281, %v3384
    %v3583 = vmul.f32 %v3283, %v3399
    %v3584 = vmul.f32 %v3285, %v3414
    %v3585 = vmul.f32 %v3287, %v3429
    %v3586 = vmul.f32 %v3289, %v3444
    %v3587 = vmul.f32 %v3291, %v3459
    %v3588 = vmul.f32 %v3293, %v3474
    %v3589 = vmul.f32 %v3295, %v3489
    %v3590 = vmul.f32 %v3297, %v3504
    %v3591 = vmul.f32 %v3299, %v3519
    %v3592 = vmul.f32 %v3301, %v3534
    %v3593 = vmul.f32 %v3303, %v3549
    %v3594 = vmul.f32 %v3305, %v3564
    %v3595 = vmul.f32 %v3307, %v3579
    %v3596 = vmul.f32 %v3580, 0.25
    %v3597 = vmul.f32 %v3581, 0.25
    %v3598 = vmul.f32 %v3582, 0.25
    %v3599 = vmul.f32 %v3583, 0.25
    %v3600 = vmul.f32 %v3584, 0.25
    %v3601 = vmul.f32 %v3585, 0.25
    %v3602 = vmul.f32 %v3586, 0.25
    %v3603 = vmul.f32 %v3587, 0.25
    %v3604 = vmul.f32 %v3588, 0.25
    %v3605 = vmul.f32 %v3589, 0.25
    %v3606 = vmul.f32 %v3590, 0.25
    %v3607 = vmul.f32 %v3591, 0.25
    %v3608 = vmul.f32 %v3592, 0.25
    %v3609 = vmul.f32 %v3593, 0.25
    %v3610 = vmul.f32 %v3594, 0.25
    %v3611 = vmul.f32 %v3595, 0.25
    %3612 = vst [vmem:[#allocation14] sm:$0xff] %v3596
    %3613 = vst [vmem:[#allocation14 + $0x8] sm:$0xff] %v3597
    %3614 = vst [vmem:[#allocation14 + $0x10] sm:$0xff] %v3598
    %3615 = vst [vmem:[#allocation14 + $0x18] sm:$0xff] %v3599
    %3616 = vst [vmem:[#allocation14 + $0x20] sm:$0xff] %v3600
    %3617 = vst [vmem:[#allocation14 + $0x28] sm:$0xff] %v3601
    %3618 = vst [vmem:[#allocation14 + $0x30] sm:$0xff] %v3602
    %3619 = vst [vmem:[#allocation14 + $0x38] sm:$0xff] %v3603
    %3620 = vst [vmem:[#allocation14 + $0x40] sm:$0xff] %v3604
    %3621 = vst [vmem:[#allocation14 + $0x48] sm:$0xff] %v3605
    %3622 = vst [vmem:[#allocation14 + $0x50] sm:$0xff] %v3606
    %3623 = vst [vmem:[#allocation14 + $0x58] sm:$0xff] %v3607
    %3624 = vst [vmem:[#allocation14 + $0x60] sm:$0xff] %v3608
    %3625 = vst [vmem:[#allocation14 + $0x68] sm:$0xff] %v3609
    %3626 = vst [vmem:[#allocation14 + $0x70] sm:$0xff] %v3610
    %3627 = vst [vmem:[#allocation14 + $0x78] sm:$0xff] %v3611
    %v3628 = vpack.c.bf16 %v3580, %v3580
    %v3629 = vpack.c.bf16 %v3581, %v3581
    %v3630 = vpack.c.bf16 %v3582, %v3582
    %v3631 = vpack.c.bf16 %v3583, %v3583
    %v3632 = vpack.c.bf16 %v3584, %v3584
    %v3633 = vpack.c.bf16 %v3585, %v3585
    %v3634 = vpack.c.bf16 %v3586, %v3586
    %v3635 = vpack.c.bf16 %v3587, %v3587
    %v3636 = vpack.c.bf16 %v3588, %v3588
    %v3637 = vpack.c.bf16 %v3589, %v3589
    %v3638 = vpack.c.bf16 %v3590, %v3590
    %v3639 = vpack.c.bf16 %v3591, %v3591
    %v3640 = vpack.c.bf16 %v3592, %v3592
    %v3641 = vpack.c.bf16 %v3593, %v3593
    %v3642 = vpack.c.bf16 %v3594, %v3594
    %v3643 = vpack.c.bf16 %v3595, %v3595
    %3644 = vrot.lane.b32.xlu0 %v2277, 96
    %v3645 = vpop.permute.xlu0 %3644
    %3646 = vrot.lane.b32.xlu0 %v2278, 96
    %v3647 = vpop.permute.xlu0 %3646
    %3650 = vmatpush.bf16.msra.mxu0 %v3647
    %3651 = vmatpush.bf16.msra.mxu0 %v3647
    %3652 = vmatpush.bf16.msra.mxu0 %v3647
    %3653 = vmatpush.bf16.msra.mxu0 %v3647
    %3654 = vmatpush.bf16.msra.mxu0 %v3647
    %3655 = vmatpush.bf16.msra.mxu0 %v3647
    %3656 = vmatpush.bf16.msra.mxu0 %v3647
    %3657 = vmatpush.bf16.msra.mxu0 %v3645
    %3658 = vmatmul.bf16.gmra.mxu0 %v3628
    %v3659 = vpop.f32.mrf.mxu0
    %v3660 = vadd.f32 0.0, %v3659
    %v3661 = vpop.f32.mrf.mxu0
    %3662 = vdwg.mxu0
    %3663 = vrot.lane.b32.xlu0 %v2392, 96
    %v3664 = vpop.permute.xlu0 %3663
    %3666 = vmatpush.bf16.msra.mxu0 %v3647
    %3667 = vmatpush.bf16.msra.mxu0 %v3647
    %3668 = vmatpush.bf16.msra.mxu0 %v3647
    %3669 = vmatpush.bf16.msra.mxu0 %v3647
    %3670 = vmatpush.bf16.msra.mxu0 %v3647
    %3671 = vmatpush.bf16.msra.mxu0 %v3647
    %3672 = vmatpush.bf16.msra.mxu0 %v3647
    %3673 = vmatpush.bf16.msra.mxu0 %v3664
    %3674 = vmatmul.bf16.gmra.mxu0 %v3629
    %v3675 = vpop.f32.mrf.mxu0
    %v3676 = vadd.f32 0.0, %v3675
    %v3677 = vpop.f32.mrf.mxu0
    %3678 = vdwg.mxu0
    %3679 = vrot.lane.b32.xlu0 %v2448, 96
    %v3680 = vpop.permute.xlu0 %3679
    %3682 = vmatpush.bf16.msra.mxu0 %v3647
    %3683 = vmatpush.bf16.msra.mxu0 %v3647
    %3684 = vmatpush.bf16.msra.mxu0 %v3647
    %3685 = vmatpush.bf16.msra.mxu0 %v3647
    %3686 = vmatpush.bf16.msra.mxu0 %v3647
    %3687 = vmatpush.bf16.msra.mxu0 %v3647
    %3688 = vmatpush.bf16.msra.mxu0 %v3647
    %3689 = vmatpush.bf16.msra.mxu0 %v3680
    %3690 = vmatmul.bf16.gmra.mxu0 %v3630
    %v3691 = vpop.f32.mrf.mxu0
    %v3692 = vadd.f32 0.0, %v3691
    %v3693 = vpop.f32.mrf.mxu0
    %3694 = vdwg.mxu0
    %3695 = vrot.lane.b32.xlu0 %v2504, 96
    %v3696 = vpop.permute.xlu0 %3695
    %3698 = vmatpush.bf16.msra.mxu0 %v3647
    %3699 = vmatpush.bf16.msra.mxu0 %v3647
    %3700 = vmatpush.bf16.msra.mxu0 %v3647
    %3701 = vmatpush.bf16.msra.mxu0 %v3647
    %3702 = vmatpush.bf16.msra.mxu0 %v3647
    %3703 = vmatpush.bf16.msra.mxu0 %v3647
    %3704 = vmatpush.bf16.msra.mxu0 %v3647
    %3705 = vmatpush.bf16.msra.mxu0 %v3696
    %3706 = vmatmul.bf16.gmra.mxu0 %v3631
    %v3707 = vpop.f32.mrf.mxu0
    %v3708 = vadd.f32 0.0, %v3707
    %v3709 = vpop.f32.mrf.mxu0
    %3710 = vdwg.mxu0
    %3711 = vrot.lane.b32.xlu0 %v2560, 96
    %v3712 = vpop.permute.xlu0 %3711
    %3714 = vmatpush.bf16.msra.mxu0 %v3647
    %3715 = vmatpush.bf16.msra.mxu0 %v3647
    %3716 = vmatpush.bf16.msra.mxu0 %v3647
    %3717 = vmatpush.bf16.msra.mxu0 %v3647
    %3718 = vmatpush.bf16.msra.mxu0 %v3647
    %3719 = vmatpush.bf16.msra.mxu0 %v3647
    %3720 = vmatpush.bf16.msra.mxu0 %v3647
    %3721 = vmatpush.bf16.msra.mxu0 %v3712
    %3722 = vmatmul.bf16.gmra.mxu0 %v3632
    %v3723 = vpop.f32.mrf.mxu0
    %v3724 = vadd.f32 0.0, %v3723
    %v3725 = vpop.f32.mrf.mxu0
    %3726 = vdwg.mxu0
    %3727 = vrot.lane.b32.xlu0 %v2616, 96
    %v3728 = vpop.permute.xlu0 %3727
    %3730 = vmatpush.bf16.msra.mxu0 %v3647
    %3731 = vmatpush.bf16.msra.mxu0 %v3647
    %3732 = vmatpush.bf16.msra.mxu0 %v3647
    %3733 = vmatpush.bf16.msra.mxu0 %v3647
    %3734 = vmatpush.bf16.msra.mxu0 %v3647
    %3735 = vmatpush.bf16.msra.mxu0 %v3647
    %3736 = vmatpush.bf16.msra.mxu0 %v3647
    %3737 = vmatpush.bf16.msra.mxu0 %v3728
    %3738 = vmatmul.bf16.gmra.mxu0 %v3633
    %v3739 = vpop.f32.mrf.mxu0
    %v3740 = vadd.f32 0.0, %v3739
    %v3741 = vpop.f32.mrf.mxu0
    %3742 = vdwg.mxu0
    %3743 = vrot.lane.b32.xlu0 %v2672, 96
    %v3744 = vpop.permute.xlu0 %3743
    %3746 = vmatpush.bf16.msra.mxu0 %v3647
    %3747 = vmatpush.bf16.msra.mxu0 %v3647
    %3748 = vmatpush.bf16.msra.mxu0 %v3647
    %3749 = vmatpush.bf16.msra.mxu0 %v3647
    %3750 = vmatpush.bf16.msra.mxu0 %v3647
    %3751 = vmatpush.bf16.msra.mxu0 %v3647
    %3752 = vmatpush.bf16.msra.mxu0 %v3647
    %3753 = vmatpush.bf16.msra.mxu0 %v3744
    %3754 = vmatmul.bf16.gmra.mxu0 %v3634
    %v3755 = vpop.f32.mrf.mxu0
    %v3756 = vadd.f32 0.0, %v3755
    %v3757 = vpop.f32.mrf.mxu0
    %3758 = vdwg.mxu0
    %3759 = vrot.lane.b32.xlu0 %v2728, 96
    %v3760 = vpop.permute.xlu0 %3759
    %3762 = vmatpush.bf16.msra.mxu0 %v3647
    %3763 = vmatpush.bf16.msra.mxu0 %v3647
    %3764 = vmatpush.bf16.msra.mxu0 %v3647
    %3765 = vmatpush.bf16.msra.mxu0 %v3647
    %3766 = vmatpush.bf16.msra.mxu0 %v3647
    %3767 = vmatpush.bf16.msra.mxu0 %v3647
    %3768 = vmatpush.bf16.msra.mxu0 %v3647
    %3769 = vmatpush.bf16.msra.mxu0 %v3760
    %3770 = vmatmul.bf16.gmra.mxu0 %v3635
    %v3771 = vpop.f32.mrf.mxu0
    %v3772 = vadd.f32 0.0, %v3771
    %v3773 = vpop.f32.mrf.mxu0
    %3774 = vdwg.mxu0
    %3775 = vrot.lane.b32.xlu0 %v2784, 96
    %v3776 = vpop.permute.xlu0 %3775
    %3778 = vmatpush.bf16.msra.mxu0 %v3647
    %3779 = vmatpush.bf16.msra.mxu0 %v3647
    %3780 = vmatpush.bf16.msra.mxu0 %v3647
    %3781 = vmatpush.bf16.msra.mxu0 %v3647
    %3782 = vmatpush.bf16.msra.mxu0 %v3647
    %3783 = vmatpush.bf16.msra.mxu0 %v3647
    %3784 = vmatpush.bf16.msra.mxu0 %v3647
    %3785 = vmatpush.bf16.msra.mxu0 %v3776
    %3786 = vmatmul.bf16.gmra.mxu0 %v3636
    %v3787 = vpop.f32.mrf.mxu0
    %v3788 = vadd.f32 0.0, %v3787
    %v3789 = vpop.f32.mrf.mxu0
    %3790 = vdwg.mxu0
    %3791 = vrot.lane.b32.xlu0 %v2840, 96
    %v3792 = vpop.permute.xlu0 %3791
    %3794 = vmatpush.bf16.msra.mxu0 %v3647
    %3795 = vmatpush.bf16.msra.mxu0 %v3647
    %3796 = vmatpush.bf16.msra.mxu0 %v3647
    %3797 = vmatpush.bf16.msra.mxu0 %v3647
    %3798 = vmatpush.bf16.msra.mxu0 %v3647
    %3799 = vmatpush.bf16.msra.mxu0 %v3647
    %3800 = vmatpush.bf16.msra.mxu0 %v3647
    %3801 = vmatpush.bf16.msra.mxu0 %v3792
    %3802 = vmatmul.bf16.gmra.mxu0 %v3637
    %v3803 = vpop.f32.mrf.mxu0
    %v3804 = vadd.f32 0.0, %v3803
    %v3805 = vpop.f32.mrf.mxu0
    %3806 = vdwg.mxu0
    %3807 = vrot.lane.b32.xlu0 %v2896, 96
    %v3808 = vpop.permute.xlu0 %3807
    %3810 = vmatpush.bf16.msra.mxu0 %v3647
    %3811 = vmatpush.bf16.msra.mxu0 %v3647
    %3812 = vmatpush.bf16.msra.mxu0 %v3647
    %3813 = vmatpush.bf16.msra.mxu0 %v3647
    %3814 = vmatpush.bf16.msra.mxu0 %v3647
    %3815 = vmatpush.bf16.msra.mxu0 %v3647
    %3816 = vmatpush.bf16.msra.mxu0 %v3647
    %3817 = vmatpush.bf16.msra.mxu0 %v3808
    %3818 = vmatmul.bf16.gmra.mxu0 %v3638
    %v3819 = vpop.f32.mrf.mxu0
    %v3820 = vadd.f32 0.0, %v3819
    %v3821 = vpop.f32.mrf.mxu0
    %3822 = vdwg.mxu0
    %3823 = vrot.lane.b32.xlu0 %v2952, 96
    %v3824 = vpop.permute.xlu0 %3823
    %3826 = vmatpush.bf16.msra.mxu0 %v3647
    %3827 = vmatpush.bf16.msra.mxu0 %v3647
    %3828 = vmatpush.bf16.msra.mxu0 %v3647
    %3829 = vmatpush.bf16.msra.mxu0 %v3647
    %3830 = vmatpush.bf16.msra.mxu0 %v3647
    %3831 = vmatpush.bf16.msra.mxu0 %v3647
    %3832 = vmatpush.bf16.msra.mxu0 %v3647
    %3833 = vmatpush.bf16.msra.mxu0 %v3824
    %3834 = vmatmul.bf16.gmra.mxu0 %v3639
    %v3835 = vpop.f32.mrf.mxu0
    %v3836 = vadd.f32 0.0, %v3835
    %v3837 = vpop.f32.mrf.mxu0
    %3838 = vdwg.mxu0
    %3839 = vrot.lane.b32.xlu0 %v3008, 96
    %v3840 = vpop.permute.xlu0 %3839
    %3842 = vmatpush.bf16.msra.mxu0 %v3647
    %3843 = vmatpush.bf16.msra.mxu0 %v3647
    %3844 = vmatpush.bf16.msra.mxu0 %v3647
    %3845 = vmatpush.bf16.msra.mxu0 %v3647
    %3846 = vmatpush.bf16.msra.mxu0 %v3647
    %3847 = vmatpush.bf16.msra.mxu0 %v3647
    %3848 = vmatpush.bf16.msra.mxu0 %v3647
    %3849 = vmatpush.bf16.msra.mxu0 %v3840
    %3850 = vmatmul.bf16.gmra.mxu0 %v3640
    %v3851 = vpop.f32.mrf.mxu0
    %v3852 = vadd.f32 0.0, %v3851
    %v3853 = vpop.f32.mrf.mxu0
    %3854 = vdwg.mxu0
    %3855 = vrot.lane.b32.xlu0 %v3064, 96
    %v3856 = vpop.permute.xlu0 %3855
    %3858 = vmatpush.bf16.msra.mxu0 %v3647
    %3859 = vmatpush.bf16.msra.mxu0 %v3647
    %3860 = vmatpush.bf16.msra.mxu0 %v3647
    %3861 = vmatpush.bf16.msra.mxu0 %v3647
    %3862 = vmatpush.bf16.msra.mxu0 %v3647
    %3863 = vmatpush.bf16.msra.mxu0 %v3647
    %3864 = vmatpush.bf16.msra.mxu0 %v3647
    %3865 = vmatpush.bf16.msra.mxu0 %v3856
    %3866 = vmatmul.bf16.gmra.mxu0 %v3641
    %v3867 = vpop.f32.mrf.mxu0
    %v3868 = vadd.f32 0.0, %v3867
    %v3869 = vpop.f32.mrf.mxu0
    %3870 = vdwg.mxu0
    %3871 = vrot.lane.b32.xlu0 %v3120, 96
    %v3872 = vpop.permute.xlu0 %3871
    %3874 = vmatpush.bf16.msra.mxu0 %v3647
    %3875 = vmatpush.bf16.msra.mxu0 %v3647
    %3876 = vmatpush.bf16.msra.mxu0 %v3647
    %3877 = vmatpush.bf16.msra.mxu0 %v3647
    %3878 = vmatpush.bf16.msra.mxu0 %v3647
    %3879 = vmatpush.bf16.msra.mxu0 %v3647
    %3880 = vmatpush.bf16.msra.mxu0 %v3647
    %3881 = vmatpush.bf16.msra.mxu0 %v3872
    %3882 = vmatmul.bf16.gmra.mxu0 %v3642
    %v3883 = vpop.f32.mrf.mxu0
    %v3884 = vadd.f32 0.0, %v3883
    %v3885 = vpop.f32.mrf.mxu0
    %3886 = vdwg.mxu0
    %3887 = vrot.lane.b32.xlu0 %v3176, 96
    %v3888 = vpop.permute.xlu0 %3887
    %3890 = vmatpush.bf16.msra.mxu0 %v3647
    %3891 = vmatpush.bf16.msra.mxu0 %v3647
    %3892 = vmatpush.bf16.msra.mxu0 %v3647
    %3893 = vmatpush.bf16.msra.mxu0 %v3647
    %3894 = vmatpush.bf16.msra.mxu0 %v3647
    %3895 = vmatpush.bf16.msra.mxu0 %v3647
    %3896 = vmatpush.bf16.msra.mxu0 %v3647
    %3897 = vmatpush.bf16.msra.mxu0 %v3888
    %3898 = vmatmul.bf16.gmra.mxu0 %v3643
    %v3899 = vpop.f32.mrf.mxu0
    %v3900 = vadd.f32 0.0, %v3899
    %v3901 = vpop.f32.mrf.mxu0
    %3902 = vdwg.mxu0
    %v3904 = vunpack.c.l.b16 %v2222
    %v3905 = vpack.c.b16 %v3904, %v3904
    %3906 = vrot.lane.b32.xlu0 %v3905, 120
    %v3907 = vpop.permute.xlu0 %3906
    %3908 = vrot.lane.b32.xlu0 %v2277, 120
    %v3909 = vpop.permute.xlu0 %3908
    %3910 = vrot.lane.b32.xlu0 %v2278, 120
    %v3911 = vpop.permute.xlu0 %3910
    %v3913 = vsel %vm2365, %v3907, 0
    %v3916 = vsel %vm2365, %v3909, 0
    %v3919 = vsel %vm2365, %v3911, 0
    %3921 = vmatpush.bf16.xpose.msra.mxu0 %v3919
    %3922 = vmatpush.bf16.xpose.msra.mxu0 %v3919
    %3923 = vmatpush.bf16.xpose.msra.mxu0 %v3919
    %3924 = vmatpush.bf16.xpose.msra.mxu0 %v3919
    %3925 = vmatpush.bf16.xpose.msra.mxu0 %v3919
    %3926 = vmatpush.bf16.xpose.msra.mxu0 %v3919
    %3927 = vmatpush.bf16.xpose.msra.mxu0 %v3919
    %3928 = vmatpush.bf16.xpose.msra.mxu0 %v3916
    %3929 = vmatmul.bf16.gmra.mxu0 %v3913
    %v3930 = vpop.f32.mrf.mxu0
    %v3931 = vadd.f32 %v2363, %v3930
    %v3932 = vpop.f32.mrf.mxu0
    %3933 = vdwg.mxu0
    %v3935 = vunpack.c.l.b16 %v2223
    %v3936 = vpack.c.b16 %v3935, %v3935
    %3937 = vrot.lane.b32.xlu0 %v3936, 120
    %v3938 = vpop.permute.xlu0 %3937
    %3939 = vrot.lane.b32.xlu0 %v2392, 120
    %v3940 = vpop.permute.xlu0 %3939
    %v3942 = vsel %vm2365, %v3938, 0
    %v3945 = vsel %vm2365, %v3940, 0
    %3947 = vmatpush.bf16.xpose.msra.mxu0 %v3919
    %3948 = vmatpush.bf16.xpose.msra.mxu0 %v3919
    %3949 = vmatpush.bf16.xpose.msra.mxu0 %v3919
    %3950 = vmatpush.bf16.xpose.msra.mxu0 %v3919
    %3951 = vmatpush.bf16.xpose.msra.mxu0 %v3919
    %3952 = vmatpush.bf16.xpose.msra.mxu0 %v3919
    %3953 = vmatpush.bf16.xpose.msra.mxu0 %v3919
    %3954 = vmatpush.bf16.xpose.msra.mxu0 %v3945
    %3955 = vmatmul.bf16.gmra.mxu0 %v3942
    %v3956 = vpop.f32.mrf.mxu0
    %v3957 = vadd.f32 %v2423, %v3956
    %v3958 = vpop.f32.mrf.mxu0
    %3959 = vdwg.mxu0
    %v3961 = vunpack.c.l.b16 %v2224
    %v3962 = vpack.c.b16 %v3961, %v3961
    %3963 = vrot.lane.b32.xlu0 %v3962, 120
    %v3964 = vpop.permute.xlu0 %3963
    %3965 = vrot.lane.b32.xlu0 %v2448, 120
    %v3966 = vpop.permute.xlu0 %3965
    %v3968 = vsel %vm2365, %v3964, 0
    %v3971 = vsel %vm2365, %v3966, 0
    %3973 = vmatpush.bf16.xpose.msra.mxu0 %v3919
    %3974 = vmatpush.bf16.xpose.msra.mxu0 %v3919
    %3975 = vmatpush.bf16.xpose.msra.mxu0 %v3919
    %3976 = vmatpush.bf16.xpose.msra.mxu0 %v3919
    %3977 = vmatpush.bf16.xpose.msra.mxu0 %v3919
    %3978 = vmatpush.bf16.xpose.msra.mxu0 %v3919
    %3979 = vmatpush.bf16.xpose.msra.mxu0 %v3919
    %3980 = vmatpush.bf16.xpose.msra.mxu0 %v3971
    %3981 = vmatmul.bf16.gmra.mxu0 %v3968
    %v3982 = vpop.f32.mrf.mxu0
    %v3983 = vadd.f32 %v2479, %v3982
    %v3984 = vpop.f32.mrf.mxu0
    %3985 = vdwg.mxu0
    %v3987 = vunpack.c.l.b16 %v2225
    %v3988 = vpack.c.b16 %v3987, %v3987
    %3989 = vrot.lane.b32.xlu0 %v3988, 120
    %v3990 = vpop.permute.xlu0 %3989
    %3991 = vrot.lane.b32.xlu0 %v2504, 120
    %v3992 = vpop.permute.xlu0 %3991
    %v3994 = vsel %vm2365, %v3990, 0
    %v3997 = vsel %vm2365, %v3992, 0
    %3999 = vmatpush.bf16.xpose.msra.mxu0 %v3919
    %4000 = vmatpush.bf16.xpose.msra.mxu0 %v3919
    %4001 = vmatpush.bf16.xpose.msra.mxu0 %v3919
    %4002 = vmatpush.bf16.xpose.msra.mxu0 %v3919
    %4003 = vmatpush.bf16.xpose.msra.mxu0 %v3919
    %4004 = vmatpush.bf16.xpose.msra.mxu0 %v3919
    %4005 = vmatpush.bf16.xpose.msra.mxu0 %v3919
    %4006 = vmatpush.bf16.xpose.msra.mxu0 %v3997
    %4007 = vmatmul.bf16.gmra.mxu0 %v3994
    %v4008 = vpop.f32.mrf.mxu0
    %v4009 = vadd.f32 %v2535, %v4008
    %v4010 = vpop.f32.mrf.mxu0
    %4011 = vdwg.mxu0
    %v4013 = vunpack.c.l.b16 %v2226
    %v4014 = vpack.c.b16 %v4013, %v4013
    %4015 = vrot.lane.b32.xlu0 %v4014, 120
    %v4016 = vpop.permute.xlu0 %4015
    %4017 = vrot.lane.b32.xlu0 %v2560, 120
    %v4018 = vpop.permute.xlu0 %4017
    %v4020 = vsel %vm2365, %v4016, 0
    %v4023 = vsel %vm2365, %v4018, 0
    %4025 = vmatpush.bf16.xpose.msra.mxu0 %v3919
    %4026 = vmatpush.bf16.xpose.msra.mxu0 %v3919
    %4027 = vmatpush.bf16.xpose.msra.mxu0 %v3919
    %4028 = vmatpush.bf16.xpose.msra.mxu0 %v3919
    %4029 = vmatpush.bf16.xpose.msra.mxu0 %v3919
    %4030 = vmatpush.bf16.xpose.msra.mxu0 %v3919
    %4031 = vmatpush.bf16.xpose.msra.mxu0 %v3919
    %4032 = vmatpush.bf16.xpose.msra.mxu0 %v4023
    %4033 = vmatmul.bf16.gmra.mxu0 %v4020
    %v4034 = vpop.f32.mrf.mxu0
    %v4035 = vadd.f32 %v2591, %v4034
    %v4036 = vpop.f32.mrf.mxu0
    %4037 = vdwg.mxu0
    %v4039 = vunpack.c.l.b16 %v2227
    %v4040 = vpack.c.b16 %v4039, %v4039
    %4041 = vrot.lane.b32.xlu0 %v4040, 120
    %v4042 = vpop.permute.xlu0 %4041
    %4043 = vrot.lane.b32.xlu0 %v2616, 120
    %v4044 = vpop.permute.xlu0 %4043
    %v4046 = vsel %vm2365, %v4042, 0
    %v4049 = vsel %vm2365, %v4044, 0
    %4051 = vmatpush.bf16.xpose.msra.mxu0 %v3919
    %4052 = vmatpush.bf16.xpose.msra.mxu0 %v3919
    %4053 = vmatpush.bf16.xpose.msra.mxu0 %v3919
    %4054 = vmatpush.bf16.xpose.msra.mxu0 %v3919
    %4055 = vmatpush.bf16.xpose.msra.mxu0 %v3919
    %4056 = vmatpush.bf16.xpose.msra.mxu0 %v3919
    %4057 = vmatpush.bf16.xpose.msra.mxu0 %v3919
    %4058 = vmatpush.bf16.xpose.msra.mxu0 %v4049
    %4059 = vmatmul.bf16.gmra.mxu0 %v4046
    %v4060 = vpop.f32.mrf.mxu0
    %v4061 = vadd.f32 %v2647, %v4060
    %v4062 = vpop.f32.mrf.mxu0
    %4063 = vdwg.mxu0
    %v4065 = vunpack.c.l.b16 %v2228
    %v4066 = vpack.c.b16 %v4065, %v4065
    %4067 = vrot.lane.b32.xlu0 %v4066, 120
    %v4068 = vpop.permute.xlu0 %4067
    %4069 = vrot.lane.b32.xlu0 %v2672, 120
    %v4070 = vpop.permute.xlu0 %4069
    %v4072 = vsel %vm2365, %v4068, 0
    %v4075 = vsel %vm2365, %v4070, 0
    %4077 = vmatpush.bf16.xpose.msra.mxu0 %v3919
    %4078 = vmatpush.bf16.xpose.msra.mxu0 %v3919
    %4079 = vmatpush.bf16.xpose.msra.mxu0 %v3919
    %4080 = vmatpush.bf16.xpose.msra.mxu0 %v3919
    %4081 = vmatpush.bf16.xpose.msra.mxu0 %v3919
    %4082 = vmatpush.bf16.xpose.msra.mxu0 %v3919
    %4083 = vmatpush.bf16.xpose.msra.mxu0 %v3919
    %4084 = vmatpush.bf16.xpose.msra.mxu0 %v4075
    %4085 = vmatmul.bf16.gmra.mxu0 %v4072
    %v4086 = vpop.f32.mrf.mxu0
    %v4087 = vadd.f32 %v2703, %v4086
    %v4088 = vpop.f32.mrf.mxu0
    %4089 = vdwg.mxu0
    %v4091 = vunpack.c.l.b16 %v2229
    %v4092 = vpack.c.b16 %v4091, %v4091
    %4093 = vrot.lane.b32.xlu0 %v4092, 120
    %v4094 = vpop.permute.xlu0 %4093
    %4095 = vrot.lane.b32.xlu0 %v2728, 120
    %v4096 = vpop.permute.xlu0 %4095
    %v4098 = vsel %vm2365, %v4094, 0
    %v4101 = vsel %vm2365, %v4096, 0
    %4103 = vmatpush.bf16.xpose.msra.mxu0 %v3919
    %4104 = vmatpush.bf16.xpose.msra.mxu0 %v3919
    %4105 = vmatpush.bf16.xpose.msra.mxu0 %v3919
    %4106 = vmatpush.bf16.xpose.msra.mxu0 %v3919
    %4107 = vmatpush.bf16.xpose.msra.mxu0 %v3919
    %4108 = vmatpush.bf16.xpose.msra.mxu0 %v3919
    %4109 = vmatpush.bf16.xpose.msra.mxu0 %v3919
    %4110 = vmatpush.bf16.xpose.msra.mxu0 %v4101
    %4111 = vmatmul.bf16.gmra.mxu0 %v4098
    %v4112 = vpop.f32.mrf.mxu0
    %v4113 = vadd.f32 %v2759, %v4112
    %v4114 = vpop.f32.mrf.mxu0
    %4115 = vdwg.mxu0
    %v4117 = vunpack.c.l.b16 %v2230
    %v4118 = vpack.c.b16 %v4117, %v4117
    %4119 = vrot.lane.b32.xlu0 %v4118, 120
    %v4120 = vpop.permute.xlu0 %4119
    %4121 = vrot.lane.b32.xlu0 %v2784, 120
    %v4122 = vpop.permute.xlu0 %4121
    %v4124 = vsel %vm2365, %v4120, 0
    %v4127 = vsel %vm2365, %v4122, 0
    %4129 = vmatpush.bf16.xpose.msra.mxu0 %v3919
    %4130 = vmatpush.bf16.xpose.msra.mxu0 %v3919
    %4131 = vmatpush.bf16.xpose.msra.mxu0 %v3919
    %4132 = vmatpush.bf16.xpose.msra.mxu0 %v3919
    %4133 = vmatpush.bf16.xpose.msra.mxu0 %v3919
    %4134 = vmatpush.bf16.xpose.msra.mxu0 %v3919
    %4135 = vmatpush.bf16.xpose.msra.mxu0 %v3919
    %4136 = vmatpush.bf16.xpose.msra.mxu0 %v4127
    %4137 = vmatmul.bf16.gmra.mxu0 %v4124
    %v4138 = vpop.f32.mrf.mxu0
    %v4139 = vadd.f32 %v2815, %v4138
    %v4140 = vpop.f32.mrf.mxu0
    %4141 = vdwg.mxu0
    %v4143 = vunpack.c.l.b16 %v2231
    %v4144 = vpack.c.b16 %v4143, %v4143
    %4145 = vrot.lane.b32.xlu0 %v4144, 120
    %v4146 = vpop.permute.xlu0 %4145
    %4147 = vrot.lane.b32.xlu0 %v2840, 120
    %v4148 = vpop.permute.xlu0 %4147
    %v4150 = vsel %vm2365, %v4146, 0
    %v4153 = vsel %vm2365, %v4148, 0
    %4155 = vmatpush.bf16.xpose.msra.mxu0 %v3919
    %4156 = vmatpush.bf16.xpose.msra.mxu0 %v3919
    %4157 = vmatpush.bf16.xpose.msra.mxu0 %v3919
    %4158 = vmatpush.bf16.xpose.msra.mxu0 %v3919
    %4159 = vmatpush.bf16.xpose.msra.mxu0 %v3919
    %4160 = vmatpush.bf16.xpose.msra.mxu0 %v3919
    %4161 = vmatpush.bf16.xpose.msra.mxu0 %v3919
    %4162 = vmatpush.bf16.xpose.msra.mxu0 %v4153
    %4163 = vmatmul.bf16.gmra.mxu0 %v4150
    %v4164 = vpop.f32.mrf.mxu0
    %v4165 = vadd.f32 %v2871, %v4164
    %v4166 = vpop.f32.mrf.mxu0
    %4167 = vdwg.mxu0
    %v4169 = vunpack.c.l.b16 %v2232
    %v4170 = vpack.c.b16 %v4169, %v4169
    %4171 = vrot.lane.b32.xlu0 %v4170, 120
    %v4172 = vpop.permute.xlu0 %4171
    %4173 = vrot.lane.b32.xlu0 %v2896, 120
    %v4174 = vpop.permute.xlu0 %4173
    %v4176 = vsel %vm2365, %v4172, 0
    %v4179 = vsel %vm2365, %v4174, 0
    %4181 = vmatpush.bf16.xpose.msra.mxu0 %v3919
    %4182 = vmatpush.bf16.xpose.msra.mxu0 %v3919
    %4183 = vmatpush.bf16.xpose.msra.mxu0 %v3919
    %4184 = vmatpush.bf16.xpose.msra.mxu0 %v3919
    %4185 = vmatpush.bf16.xpose.msra.mxu0 %v3919
    %4186 = vmatpush.bf16.xpose.msra.mxu0 %v3919
    %4187 = vmatpush.bf16.xpose.msra.mxu0 %v3919
    %4188 = vmatpush.bf16.xpose.msra.mxu0 %v4179
    %4189 = vmatmul.bf16.gmra.mxu0 %v4176
    %v4190 = vpop.f32.mrf.mxu0
    %v4191 = vadd.f32 %v2927, %v4190
    %v4192 = vpop.f32.mrf.mxu0
    %4193 = vdwg.mxu0
    %v4195 = vunpack.c.l.b16 %v2233
    %v4196 = vpack.c.b16 %v4195, %v4195
    %4197 = vrot.lane.b32.xlu0 %v4196, 120
    %v4198 = vpop.permute.xlu0 %4197
    %4199 = vrot.lane.b32.xlu0 %v2952, 120
    %v4200 = vpop.permute.xlu0 %4199
    %v4202 = vsel %vm2365, %v4198, 0
    %v4205 = vsel %vm2365, %v4200, 0
    %4207 = vmatpush.bf16.xpose.msra.mxu0 %v3919
    %4208 = vmatpush.bf16.xpose.msra.mxu0 %v3919
    %4209 = vmatpush.bf16.xpose.msra.mxu0 %v3919
    %4210 = vmatpush.bf16.xpose.msra.mxu0 %v3919
    %4211 = vmatpush.bf16.xpose.msra.mxu0 %v3919
    %4212 = vmatpush.bf16.xpose.msra.mxu0 %v3919
    %4213 = vmatpush.bf16.xpose.msra.mxu0 %v3919
    %4214 = vmatpush.bf16.xpose.msra.mxu0 %v4205
    %4215 = vmatmul.bf16.gmra.mxu0 %v4202
    %v4216 = vpop.f32.mrf.mxu0
    %v4217 = vadd.f32 %v2983, %v4216
    %v4218 = vpop.f32.mrf.mxu0
    %4219 = vdwg.mxu0
    %v4221 = vunpack.c.l.b16 %v2234
    %v4222 = vpack.c.b16 %v4221, %v4221
    %4223 = vrot.lane.b32.xlu0 %v4222, 120
    %v4224 = vpop.permute.xlu0 %4223
    %4225 = vrot.lane.b32.xlu0 %v3008, 120
    %v4226 = vpop.permute.xlu0 %4225
    %v4228 = vsel %vm2365, %v4224, 0
    %v4231 = vsel %vm2365, %v4226, 0
    %4233 = vmatpush.bf16.xpose.msra.mxu0 %v3919
    %4234 = vmatpush.bf16.xpose.msra.mxu0 %v3919
    %4235 = vmatpush.bf16.xpose.msra.mxu0 %v3919
    %4236 = vmatpush.bf16.xpose.msra.mxu0 %v3919
    %4237 = vmatpush.bf16.xpose.msra.mxu0 %v3919
    %4238 = vmatpush.bf16.xpose.msra.mxu0 %v3919
    %4239 = vmatpush.bf16.xpose.msra.mxu0 %v3919
    %4240 = vmatpush.bf16.xpose.msra.mxu0 %v4231
    %4241 = vmatmul.bf16.gmra.mxu0 %v4228
    %v4242 = vpop.f32.mrf.mxu0
    %v4243 = vadd.f32 %v3039, %v4242
    %v4244 = vpop.f32.mrf.mxu0
    %4245 = vdwg.mxu0
    %v4247 = vunpack.c.l.b16 %v2235
    %v4248 = vpack.c.b16 %v4247, %v4247
    %4249 = vrot.lane.b32.xlu0 %v4248, 120
    %v4250 = vpop.permute.xlu0 %4249
    %4251 = vrot.lane.b32.xlu0 %v3064, 120
    %v4252 = vpop.permute.xlu0 %4251
    %v4254 = vsel %vm2365, %v4250, 0
    %v4257 = vsel %vm2365, %v4252, 0
    %4259 = vmatpush.bf16.xpose.msra.mxu0 %v3919
    %4260 = vmatpush.bf16.xpose.msra.mxu0 %v3919
    %4261 = vmatpush.bf16.xpose.msra.mxu0 %v3919
    %4262 = vmatpush.bf16.xpose.msra.mxu0 %v3919
    %4263 = vmatpush.bf16.xpose.msra.mxu0 %v3919
    %4264 = vmatpush.bf16.xpose.msra.mxu0 %v3919
    %4265 = vmatpush.bf16.xpose.msra.mxu0 %v3919
    %4266 = vmatpush.bf16.xpose.msra.mxu0 %v4257
    %4267 = vmatmul.bf16.gmra.mxu0 %v4254
    %v4268 = vpop.f32.mrf.mxu0
    %v4269 = vadd.f32 %v3095, %v4268
    %v4270 = vpop.f32.mrf.mxu0
    %4271 = vdwg.mxu0
    %v4273 = vunpack.c.l.b16 %v2236
    %v4274 = vpack.c.b16 %v4273, %v4273
    %4275 = vrot.lane.b32.xlu0 %v4274, 120
    %v4276 = vpop.permute.xlu0 %4275
    %4277 = vrot.lane.b32.xlu0 %v3120, 120
    %v4278 = vpop.permute.xlu0 %4277
    %v4280 = vsel %vm2365, %v4276, 0
    %v4283 = vsel %vm2365, %v4278, 0
    %4285 = vmatpush.bf16.xpose.msra.mxu0 %v3919
    %4286 = vmatpush.bf16.xpose.msra.mxu0 %v3919
    %4287 = vmatpush.bf16.xpose.msra.mxu0 %v3919
    %4288 = vmatpush.bf16.xpose.msra.mxu0 %v3919
    %4289 = vmatpush.bf16.xpose.msra.mxu0 %v3919
    %4290 = vmatpush.bf16.xpose.msra.mxu0 %v3919
    %4291 = vmatpush.bf16.xpose.msra.mxu0 %v3919
    %4292 = vmatpush.bf16.xpose.msra.mxu0 %v4283
    %4293 = vmatmul.bf16.gmra.mxu0 %v4280
    %v4294 = vpop.f32.mrf.mxu0
    %v4295 = vadd.f32 %v3151, %v4294
    %v4296 = vpop.f32.mrf.mxu0
    %4297 = vdwg.mxu0
    %v4299 = vunpack.c.l.b16 %v2237
    %v4300 = vpack.c.b16 %v4299, %v4299
    %4301 = vrot.lane.b32.xlu0 %v4300, 120
    %v4302 = vpop.permute.xlu0 %4301
    %4303 = vrot.lane.b32.xlu0 %v3176, 120
    %v4304 = vpop.permute.xlu0 %4303
    %v4306 = vsel %vm2365, %v4302, 0
    %v4309 = vsel %vm2365, %v4304, 0
    %4311 = vmatpush.bf16.xpose.msra.mxu0 %v3919
    %4312 = vmatpush.bf16.xpose.msra.mxu0 %v3919
    %4313 = vmatpush.bf16.xpose.msra.mxu0 %v3919
    %4314 = vmatpush.bf16.xpose.msra.mxu0 %v3919
    %4315 = vmatpush.bf16.xpose.msra.mxu0 %v3919
    %4316 = vmatpush.bf16.xpose.msra.mxu0 %v3919
    %4317 = vmatpush.bf16.xpose.msra.mxu0 %v3919
    %4318 = vmatpush.bf16.xpose.msra.mxu0 %v4309
    %4319 = vmatmul.bf16.gmra.mxu0 %v4306
    %v4320 = vpop.f32.mrf.mxu0
    %v4321 = vadd.f32 %v3207, %v4320
    %v4322 = vpop.f32.mrf.mxu0
    %4323 = vdwg.mxu0
    %4324 = vmax.xlane.f32.xlu0 %v3931
    %v4325 = vpop.xlane.xlu0 %4324
    %4326 = vmax.xlane.f32.xlu0 %v3957
    %v4327 = vpop.xlane.xlu0 %4326
    %4328 = vmax.xlane.f32.xlu0 %v3983
    %v4329 = vpop.xlane.xlu0 %4328
    %4330 = vmax.xlane.f32.xlu0 %v4009
    %v4331 = vpop.xlane.xlu0 %4330
    %4332 = vmax.xlane.f32.xlu0 %v4035
    %v4333 = vpop.xlane.xlu0 %4332
    %4334 = vmax.xlane.f32.xlu0 %v4061
    %v4335 = vpop.xlane.xlu0 %4334
    %4336 = vmax.xlane.f32.xlu0 %v4087
    %v4337 = vpop.xlane.xlu0 %4336
    %4338 = vmax.xlane.f32.xlu0 %v4113
    %v4339 = vpop.xlane.xlu0 %4338
    %4340 = vmax.xlane.f32.xlu0 %v4139
    %v4341 = vpop.xlane.xlu0 %4340
    %4342 = vmax.xlane.f32.xlu0 %v4165
    %v4343 = vpop.xlane.xlu0 %4342
    %4344 = vmax.xlane.f32.xlu0 %v4191
    %v4345 = vpop.xlane.xlu0 %4344
    %4346 = vmax.xlane.f32.xlu0 %v4217
    %v4347 = vpop.xlane.xlu0 %4346
    %4348 = vmax.xlane.f32.xlu0 %v4243
    %v4349 = vpop.xlane.xlu0 %4348
    %4350 = vmax.xlane.f32.xlu0 %v4269
    %v4351 = vpop.xlane.xlu0 %4350
    %4352 = vmax.xlane.f32.xlu0 %v4295
    %v4353 = vpop.xlane.xlu0 %4352
    %4354 = vmax.xlane.f32.xlu0 %v4321
    %v4355 = vpop.xlane.xlu0 %4354
    %v4356 = vsub.f32 %v3931, %v4325
    %v4357 = vsub.f32 %v3957, %v4327
    %v4358 = vsub.f32 %v3983, %v4329
    %v4359 = vsub.f32 %v4009, %v4331
    %v4360 = vsub.f32 %v4035, %v4333
    %v4361 = vsub.f32 %v4061, %v4335
    %v4362 = vsub.f32 %v4087, %v4337
    %v4363 = vsub.f32 %v4113, %v4339
    %v4364 = vsub.f32 %v4139, %v4341
    %v4365 = vsub.f32 %v4165, %v4343
    %v4366 = vsub.f32 %v4191, %v4345
    %v4367 = vsub.f32 %v4217, %v4347
    %v4368 = vsub.f32 %v4243, %v4349
    %v4369 = vsub.f32 %v4269, %v4351
    %v4370 = vsub.f32 %v4295, %v4353
    %v4371 = vsub.f32 %v4321, %v4355
    %v4372 = vmul.f32 %v4356, 1.442695
    %v4373 = vpow.pop %v4372
    %v4374 = vmul.f32 %v4357, 1.442695
    %v4375 = vpow.pop %v4374
    %v4376 = vmul.f32 %v4358, 1.442695
    %v4377 = vpow.pop %v4376
    %v4378 = vmul.f32 %v4359, 1.442695
    %v4379 = vpow.pop %v4378
    %v4380 = vmul.f32 %v4360, 1.442695
    %v4381 = vpow.pop %v4380
    %v4382 = vmul.f32 %v4361, 1.442695
    %v4383 = vpow.pop %v4382
    %v4384 = vmul.f32 %v4362, 1.442695
    %v4385 = vpow.pop %v4384
    %v4386 = vmul.f32 %v4363, 1.442695
    %v4387 = vpow.pop %v4386
    %v4388 = vmul.f32 %v4364, 1.442695
    %v4389 = vpow.pop %v4388
    %v4390 = vmul.f32 %v4365, 1.442695
    %v4391 = vpow.pop %v4390
    %v4392 = vmul.f32 %v4366, 1.442695
    %v4393 = vpow.pop %v4392
    %v4394 = vmul.f32 %v4367, 1.442695
    %v4395 = vpow.pop %v4394
    %v4396 = vmul.f32 %v4368, 1.442695
    %v4397 = vpow.pop %v4396
    %v4398 = vmul.f32 %v4369, 1.442695
    %v4399 = vpow.pop %v4398
    %v4400 = vmul.f32 %v4370, 1.442695
    %v4401 = vpow.pop %v4400
    %v4402 = vmul.f32 %v4371, 1.442695
    %v4403 = vpow.pop %v4402
    %4404 = vadd.xlane.f32.xlu0 %v4373
    %v4405 = vpop.xlane.xlu0 %4404
    %4406 = vadd.xlane.f32.xlu0 %v4375
    %v4407 = vpop.xlane.xlu0 %4406
    %4408 = vadd.xlane.f32.xlu0 %v4377
    %v4409 = vpop.xlane.xlu0 %4408
    %4410 = vadd.xlane.f32.xlu0 %v4379
    %v4411 = vpop.xlane.xlu0 %4410
    %4412 = vadd.xlane.f32.xlu0 %v4381
    %v4413 = vpop.xlane.xlu0 %4412
    %4414 = vadd.xlane.f32.xlu0 %v4383
    %v4415 = vpop.xlane.xlu0 %4414
    %4416 = vadd.xlane.f32.xlu0 %v4385
    %v4417 = vpop.xlane.xlu0 %4416
    %4418 = vadd.xlane.f32.xlu0 %v4387
    %v4419 = vpop.xlane.xlu0 %4418
    %4420 = vadd.xlane.f32.xlu0 %v4389
    %v4421 = vpop.xlane.xlu0 %4420
    %4422 = vadd.xlane.f32.xlu0 %v4391
    %v4423 = vpop.xlane.xlu0 %4422
    %4424 = vadd.xlane.f32.xlu0 %v4393
    %v4425 = vpop.xlane.xlu0 %4424
    %4426 = vadd.xlane.f32.xlu0 %v4395
    %v4427 = vpop.xlane.xlu0 %4426
    %4428 = vadd.xlane.f32.xlu0 %v4397
    %v4429 = vpop.xlane.xlu0 %4428
    %4430 = vadd.xlane.f32.xlu0 %v4399
    %v4431 = vpop.xlane.xlu0 %4430
    %4432 = vadd.xlane.f32.xlu0 %v4401
    %v4433 = vpop.xlane.xlu0 %4432
    %4434 = vadd.xlane.f32.xlu0 %v4403
    %v4435 = vpop.xlane.xlu0 %4434
    %v4436 = vrcp.pop %v4405
    %v4437 = vmul.f32 %v4405, %v4436
    %v4438 = vsub.f32 1.0, %v4437
    %v4439 = vmul.f32 %v4436, %v4438
    %v4440 = vadd.f32 %v4436, %v4439
    %vm4441 = vweird.f32 %v4405
    %vm4442 = vweird.f32 %v4436
    %vm4443 = vmor %vm4441, %vm4442
    %v4444 = vsel %vm4443, %v4436, %v4440
    %v4445 = vand.u32 2147483647, %v4405
    %vm4446 = vcmp.eq.f32.partialorder %v4445, 8.507059e+37
    %v4447 = vand.u32 %v4405, 2147483648
    %v4448 = vor.u32 1.1754944e-38, %v4447
    %v4449 = vsel %vm4446, %v4448, %v4444
    %v4450 = vmul.f32 1.0, %v4449
    %v4451 = vrcp.pop %v4407
    %v4452 = vmul.f32 %v4407, %v4451
    %v4453 = vsub.f32 1.0, %v4452
    %v4454 = vmul.f32 %v4451, %v4453
    %v4455 = vadd.f32 %v4451, %v4454
    %vm4456 = vweird.f32 %v4407
    %vm4457 = vweird.f32 %v4451
    %vm4458 = vmor %vm4456, %vm4457
    %v4459 = vsel %vm4458, %v4451, %v4455
    %v4460 = vand.u32 2147483647, %v4407
    %vm4461 = vcmp.eq.f32.partialorder %v4460, 8.507059e+37
    %v4462 = vand.u32 %v4407, 2147483648
    %v4463 = vor.u32 1.1754944e-38, %v4462
    %v4464 = vsel %vm4461, %v4463, %v4459
    %v4465 = vmul.f32 1.0, %v4464
    %v4466 = vrcp.pop %v4409
    %v4467 = vmul.f32 %v4409, %v4466
    %v4468 = vsub.f32 1.0, %v4467
    %v4469 = vmul.f32 %v4466, %v4468
    %v4470 = vadd.f32 %v4466, %v4469
    %vm4471 = vweird.f32 %v4409
    %vm4472 = vweird.f32 %v4466
    %vm4473 = vmor %vm4471, %vm4472
    %v4474 = vsel %vm4473, %v4466, %v4470
    %v4475 = vand.u32 2147483647, %v4409
    %vm4476 = vcmp.eq.f32.partialorder %v4475, 8.507059e+37
    %v4477 = vand.u32 %v4409, 2147483648
    %v4478 = vor.u32 1.1754944e-38, %v4477
    %v4479 = vsel %vm4476, %v4478, %v4474
    %v4480 = vmul.f32 1.0, %v4479
    %v4481 = vrcp.pop %v4411
    %v4482 = vmul.f32 %v4411, %v4481
    %v4483 = vsub.f32 1.0, %v4482
    %v4484 = vmul.f32 %v4481, %v4483
    %v4485 = vadd.f32 %v4481, %v4484
    %vm4486 = vweird.f32 %v4411
    %vm4487 = vweird.f32 %v4481
    %vm4488 = vmor %vm4486, %vm4487
    %v4489 = vsel %vm4488, %v4481, %v4485
    %v4490 = vand.u32 2147483647, %v4411
    %vm4491 = vcmp.eq.f32.partialorder %v4490, 8.507059e+37
    %v4492 = vand.u32 %v4411, 2147483648
    %v4493 = vor.u32 1.1754944e-38, %v4492
    %v4494 = vsel %vm4491, %v4493, %v4489
    %v4495 = vmul.f32 1.0, %v4494
    %v4496 = vrcp.pop %v4413
    %v4497 = vmul.f32 %v4413, %v4496
    %v4498 = vsub.f32 1.0, %v4497
    %v4499 = vmul.f32 %v4496, %v4498
    %v4500 = vadd.f32 %v4496, %v4499
    %vm4501 = vweird.f32 %v4413
    %vm4502 = vweird.f32 %v4496
    %vm4503 = vmor %vm4501, %vm4502
    %v4504 = vsel %vm4503, %v4496, %v4500
    %v4505 = vand.u32 2147483647, %v4413
    %vm4506 = vcmp.eq.f32.partialorder %v4505, 8.507059e+37
    %v4507 = vand.u32 %v4413, 2147483648
    %v4508 = vor.u32 1.1754944e-38, %v4507
    %v4509 = vsel %vm4506, %v4508, %v4504
    %v4510 = vmul.f32 1.0, %v4509
    %v4511 = vrcp.pop %v4415
    %v4512 = vmul.f32 %v4415, %v4511
    %v4513 = vsub.f32 1.0, %v4512
    %v4514 = vmul.f32 %v4511, %v4513
    %v4515 = vadd.f32 %v4511, %v4514
    %vm4516 = vweird.f32 %v4415
    %vm4517 = vweird.f32 %v4511
    %vm4518 = vmor %vm4516, %vm4517
    %v4519 = vsel %vm4518, %v4511, %v4515
    %v4520 = vand.u32 2147483647, %v4415
    %vm4521 = vcmp.eq.f32.partialorder %v4520, 8.507059e+37
    %v4522 = vand.u32 %v4415, 2147483648
    %v4523 = vor.u32 1.1754944e-38, %v4522
    %v4524 = vsel %vm4521, %v4523, %v4519
    %v4525 = vmul.f32 1.0, %v4524
    %v4526 = vrcp.pop %v4417
    %v4527 = vmul.f32 %v4417, %v4526
    %v4528 = vsub.f32 1.0, %v4527
    %v4529 = vmul.f32 %v4526, %v4528
    %v4530 = vadd.f32 %v4526, %v4529
    %vm4531 = vweird.f32 %v4417
    %vm4532 = vweird.f32 %v4526
    %vm4533 = vmor %vm4531, %vm4532
    %v4534 = vsel %vm4533, %v4526, %v4530
    %v4535 = vand.u32 2147483647, %v4417
    %vm4536 = vcmp.eq.f32.partialorder %v4535, 8.507059e+37
    %v4537 = vand.u32 %v4417, 2147483648
    %v4538 = vor.u32 1.1754944e-38, %v4537
    %v4539 = vsel %vm4536, %v4538, %v4534
    %v4540 = vmul.f32 1.0, %v4539
    %v4541 = vrcp.pop %v4419
    %v4542 = vmul.f32 %v4419, %v4541
    %v4543 = vsub.f32 1.0, %v4542
    %v4544 = vmul.f32 %v4541, %v4543
    %v4545 = vadd.f32 %v4541, %v4544
    %vm4546 = vweird.f32 %v4419
    %vm4547 = vweird.f32 %v4541
    %vm4548 = vmor %vm4546, %vm4547
    %v4549 = vsel %vm4548, %v4541, %v4545
    %v4550 = vand.u32 2147483647, %v4419
    %vm4551 = vcmp.eq.f32.partialorder %v4550, 8.507059e+37
    %v4552 = vand.u32 %v4419, 2147483648
    %v4553 = vor.u32 1.1754944e-38, %v4552
    %v4554 = vsel %vm4551, %v4553, %v4549
    %v4555 = vmul.f32 1.0, %v4554
    %v4556 = vrcp.pop %v4421
    %v4557 = vmul.f32 %v4421, %v4556
    %v4558 = vsub.f32 1.0, %v4557
    %v4559 = vmul.f32 %v4556, %v4558
    %v4560 = vadd.f32 %v4556, %v4559
    %vm4561 = vweird.f32 %v4421
    %vm4562 = vweird.f32 %v4556
    %vm4563 = vmor %vm4561, %vm4562
    %v4564 = vsel %vm4563, %v4556, %v4560
    %v4565 = vand.u32 2147483647, %v4421
    %vm4566 = vcmp.eq.f32.partialorder %v4565, 8.507059e+37
    %v4567 = vand.u32 %v4421, 2147483648
    %v4568 = vor.u32 1.1754944e-38, %v4567
    %v4569 = vsel %vm4566, %v4568, %v4564
    %v4570 = vmul.f32 1.0, %v4569
    %v4571 = vrcp.pop %v4423
    %v4572 = vmul.f32 %v4423, %v4571
    %v4573 = vsub.f32 1.0, %v4572
    %v4574 = vmul.f32 %v4571, %v4573
    %v4575 = vadd.f32 %v4571, %v4574
    %vm4576 = vweird.f32 %v4423
    %vm4577 = vweird.f32 %v4571
    %vm4578 = vmor %vm4576, %vm4577
    %v4579 = vsel %vm4578, %v4571, %v4575
    %v4580 = vand.u32 2147483647, %v4423
    %vm4581 = vcmp.eq.f32.partialorder %v4580, 8.507059e+37
    %v4582 = vand.u32 %v4423, 2147483648
    %v4583 = vor.u32 1.1754944e-38, %v4582
    %v4584 = vsel %vm4581, %v4583, %v4579
    %v4585 = vmul.f32 1.0, %v4584
    %v4586 = vrcp.pop %v4425
    %v4587 = vmul.f32 %v4425, %v4586
    %v4588 = vsub.f32 1.0, %v4587
    %v4589 = vmul.f32 %v4586, %v4588
    %v4590 = vadd.f32 %v4586, %v4589
    %vm4591 = vweird.f32 %v4425
    %vm4592 = vweird.f32 %v4586
    %vm4593 = vmor %vm4591, %vm4592
    %v4594 = vsel %vm4593, %v4586, %v4590
    %v4595 = vand.u32 2147483647, %v4425
    %vm4596 = vcmp.eq.f32.partialorder %v4595, 8.507059e+37
    %v4597 = vand.u32 %v4425, 2147483648
    %v4598 = vor.u32 1.1754944e-38, %v4597
    %v4599 = vsel %vm4596, %v4598, %v4594
    %v4600 = vmul.f32 1.0, %v4599
    %v4601 = vrcp.pop %v4427
    %v4602 = vmul.f32 %v4427, %v4601
    %v4603 = vsub.f32 1.0, %v4602
    %v4604 = vmul.f32 %v4601, %v4603
    %v4605 = vadd.f32 %v4601, %v4604
    %vm4606 = vweird.f32 %v4427
    %vm4607 = vweird.f32 %v4601
    %vm4608 = vmor %vm4606, %vm4607
    %v4609 = vsel %vm4608, %v4601, %v4605
    %v4610 = vand.u32 2147483647, %v4427
    %vm4611 = vcmp.eq.f32.partialorder %v4610, 8.507059e+37
    %v4612 = vand.u32 %v4427, 2147483648
    %v4613 = vor.u32 1.1754944e-38, %v4612
    %v4614 = vsel %vm4611, %v4613, %v4609
    %v4615 = vmul.f32 1.0, %v4614
    %v4616 = vrcp.pop %v4429
    %v4617 = vmul.f32 %v4429, %v4616
    %v4618 = vsub.f32 1.0, %v4617
    %v4619 = vmul.f32 %v4616, %v4618
    %v4620 = vadd.f32 %v4616, %v4619
    %vm4621 = vweird.f32 %v4429
    %vm4622 = vweird.f32 %v4616
    %vm4623 = vmor %vm4621, %vm4622
    %v4624 = vsel %vm4623, %v4616, %v4620
    %v4625 = vand.u32 2147483647, %v4429
    %vm4626 = vcmp.eq.f32.partialorder %v4625, 8.507059e+37
    %v4627 = vand.u32 %v4429, 2147483648
    %v4628 = vor.u32 1.1754944e-38, %v4627
    %v4629 = vsel %vm4626, %v4628, %v4624
    %v4630 = vmul.f32 1.0, %v4629
    %v4631 = vrcp.pop %v4431
    %v4632 = vmul.f32 %v4431, %v4631
    %v4633 = vsub.f32 1.0, %v4632
    %v4634 = vmul.f32 %v4631, %v4633
    %v4635 = vadd.f32 %v4631, %v4634
    %vm4636 = vweird.f32 %v4431
    %vm4637 = vweird.f32 %v4631
    %vm4638 = vmor %vm4636, %vm4637
    %v4639 = vsel %vm4638, %v4631, %v4635
    %v4640 = vand.u32 2147483647, %v4431
    %vm4641 = vcmp.eq.f32.partialorder %v4640, 8.507059e+37
    %v4642 = vand.u32 %v4431, 2147483648
    %v4643 = vor.u32 1.1754944e-38, %v4642
    %v4644 = vsel %vm4641, %v4643, %v4639
    %v4645 = vmul.f32 1.0, %v4644
    %v4646 = vrcp.pop %v4433
    %v4647 = vmul.f32 %v4433, %v4646
    %v4648 = vsub.f32 1.0, %v4647
    %v4649 = vmul.f32 %v4646, %v4648
    %v4650 = vadd.f32 %v4646, %v4649
    %vm4651 = vweird.f32 %v4433
    %vm4652 = vweird.f32 %v4646
    %vm4653 = vmor %vm4651, %vm4652
    %v4654 = vsel %vm4653, %v4646, %v4650
    %v4655 = vand.u32 2147483647, %v4433
    %vm4656 = vcmp.eq.f32.partialorder %v4655, 8.507059e+37
    %v4657 = vand.u32 %v4433, 2147483648
    %v4658 = vor.u32 1.1754944e-38, %v4657
    %v4659 = vsel %vm4656, %v4658, %v4654
    %v4660 = vmul.f32 1.0, %v4659
    %v4661 = vrcp.pop %v4435
    %v4662 = vmul.f32 %v4435, %v4661
    %v4663 = vsub.f32 1.0, %v4662
    %v4664 = vmul.f32 %v4661, %v4663
    %v4665 = vadd.f32 %v4661, %v4664
    %vm4666 = vweird.f32 %v4435
    %vm4667 = vweird.f32 %v4661
    %vm4668 = vmor %vm4666, %vm4667
    %v4669 = vsel %vm4668, %v4661, %v4665
    %v4670 = vand.u32 2147483647, %v4435
    %vm4671 = vcmp.eq.f32.partialorder %v4670, 8.507059e+37
    %v4672 = vand.u32 %v4435, 2147483648
    %v4673 = vor.u32 1.1754944e-38, %v4672
    %v4674 = vsel %vm4671, %v4673, %v4669
    %v4675 = vmul.f32 1.0, %v4674
    %v4676 = vmul.f32 %v4373, %v4450
    %v4677 = vmul.f32 %v4375, %v4465
    %v4678 = vmul.f32 %v4377, %v4480
    %v4679 = vmul.f32 %v4379, %v4495
    %v4680 = vmul.f32 %v4381, %v4510
    %v4681 = vmul.f32 %v4383, %v4525
    %v4682 = vmul.f32 %v4385, %v4540
    %v4683 = vmul.f32 %v4387, %v4555
    %v4684 = vmul.f32 %v4389, %v4570
    %v4685 = vmul.f32 %v4391, %v4585
    %v4686 = vmul.f32 %v4393, %v4600
    %v4687 = vmul.f32 %v4395, %v4615
    %v4688 = vmul.f32 %v4397, %v4630
    %v4689 = vmul.f32 %v4399, %v4645
    %v4690 = vmul.f32 %v4401, %v4660
    %v4691 = vmul.f32 %v4403, %v4675
    %v4692 = vld [vmem:[#allocation14] sm:$0xff]
    %v4693 = vld [vmem:[#allocation14 + $0x8] sm:$0xff]
    %v4694 = vld [vmem:[#allocation14 + $0x10] sm:$0xff]
    %v4695 = vld [vmem:[#allocation14 + $0x18] sm:$0xff]
    %v4696 = vld [vmem:[#allocation14 + $0x20] sm:$0xff]
    %v4697 = vld [vmem:[#allocation14 + $0x28] sm:$0xff]
    %v4698 = vld [vmem:[#allocation14 + $0x30] sm:$0xff]
    %v4699 = vld [vmem:[#allocation14 + $0x38] sm:$0xff]
    %v4700 = vld [vmem:[#allocation14 + $0x40] sm:$0xff]
    %v4701 = vld [vmem:[#allocation14 + $0x48] sm:$0xff]
    %v4702 = vld [vmem:[#allocation14 + $0x50] sm:$0xff]
    %v4703 = vld [vmem:[#allocation14 + $0x58] sm:$0xff]
    %v4704 = vld [vmem:[#allocation14 + $0x60] sm:$0xff]
    %v4705 = vld [vmem:[#allocation14 + $0x68] sm:$0xff]
    %v4706 = vld [vmem:[#allocation14 + $0x70] sm:$0xff]
    %v4707 = vld [vmem:[#allocation14 + $0x78] sm:$0xff]
    %v4708 = vmul.f32 %v4676, 0.25
    %v4709 = vmul.f32 %v4677, 0.25
    %v4710 = vmul.f32 %v4678, 0.25
    %v4711 = vmul.f32 %v4679, 0.25
    %v4712 = vmul.f32 %v4680, 0.25
    %v4713 = vmul.f32 %v4681, 0.25
    %v4714 = vmul.f32 %v4682, 0.25
    %v4715 = vmul.f32 %v4683, 0.25
    %v4716 = vmul.f32 %v4684, 0.25
    %v4717 = vmul.f32 %v4685, 0.25
    %v4718 = vmul.f32 %v4686, 0.25
    %v4719 = vmul.f32 %v4687, 0.25
    %v4720 = vmul.f32 %v4688, 0.25
    %v4721 = vmul.f32 %v4689, 0.25
    %v4722 = vmul.f32 %v4690, 0.25
    %v4723 = vmul.f32 %v4691, 0.25
    %v4724 = vadd.f32 %v4692, %v4708
    %v4725 = vadd.f32 %v4693, %v4709
    %v4726 = vadd.f32 %v4694, %v4710
    %v4727 = vadd.f32 %v4695, %v4711
    %v4728 = vadd.f32 %v4696, %v4712
    %v4729 = vadd.f32 %v4697, %v4713
    %v4730 = vadd.f32 %v4698, %v4714
    %v4731 = vadd.f32 %v4699, %v4715
    %v4732 = vadd.f32 %v4700, %v4716
    %v4733 = vadd.f32 %v4701, %v4717
    %v4734 = vadd.f32 %v4702, %v4718
    %v4735 = vadd.f32 %v4703, %v4719
    %v4736 = vadd.f32 %v4704, %v4720
    %v4737 = vadd.f32 %v4705, %v4721
    %v4738 = vadd.f32 %v4706, %v4722
    %v4739 = vadd.f32 %v4707, %v4723
    %4740 = vst [vmem:[#allocation14] sm:$0xff] %v4724
    %4741 = vst [vmem:[#allocation14 + $0x8] sm:$0xff] %v4725
    %4742 = vst [vmem:[#allocation14 + $0x10] sm:$0xff] %v4726
    %4743 = vst [vmem:[#allocation14 + $0x18] sm:$0xff] %v4727
    %4744 = vst [vmem:[#allocation14 + $0x20] sm:$0xff] %v4728
    %4745 = vst [vmem:[#allocation14 + $0x28] sm:$0xff] %v4729
    %4746 = vst [vmem:[#allocation14 + $0x30] sm:$0xff] %v4730
    %4747 = vst [vmem:[#allocation14 + $0x38] sm:$0xff] %v4731
    %4748 = vst [vmem:[#allocation14 + $0x40] sm:$0xff] %v4732
    %4749 = vst [vmem:[#allocation14 + $0x48] sm:$0xff] %v4733
    %4750 = vst [vmem:[#allocation14 + $0x50] sm:$0xff] %v4734
    %4751 = vst [vmem:[#allocation14 + $0x58] sm:$0xff] %v4735
    %4752 = vst [vmem:[#allocation14 + $0x60] sm:$0xff] %v4736
    %4753 = vst [vmem:[#allocation14 + $0x68] sm:$0xff] %v4737
    %4754 = vst [vmem:[#allocation14 + $0x70] sm:$0xff] %v4738
    %4755 = vst [vmem:[#allocation14 + $0x78] sm:$0xff] %v4739
    %v4756 = vpack.c.bf16 %v4676, %v4676
    %v4757 = vpack.c.bf16 %v4677, %v4677
    %v4758 = vpack.c.bf16 %v4678, %v4678
    %v4759 = vpack.c.bf16 %v4679, %v4679
    %v4760 = vpack.c.bf16 %v4680, %v4680
    %v4761 = vpack.c.bf16 %v4681, %v4681
    %v4762 = vpack.c.bf16 %v4682, %v4682
    %v4763 = vpack.c.bf16 %v4683, %v4683
    %v4764 = vpack.c.bf16 %v4684, %v4684
    %v4765 = vpack.c.bf16 %v4685, %v4685
    %v4766 = vpack.c.bf16 %v4686, %v4686
    %v4767 = vpack.c.bf16 %v4687, %v4687
    %v4768 = vpack.c.bf16 %v4688, %v4688
    %v4769 = vpack.c.bf16 %v4689, %v4689
    %v4770 = vpack.c.bf16 %v4690, %v4690
    %v4771 = vpack.c.bf16 %v4691, %v4691
    %4772 = vrot.lane.b32.xlu0 %v2277, 88
    %v4773 = vpop.permute.xlu0 %4772
    %4774 = vrot.lane.b32.xlu0 %v2278, 88
    %v4775 = vpop.permute.xlu0 %4774
    %4778 = vmatpush.bf16.msra.mxu0 %v4775
    %4779 = vmatpush.bf16.msra.mxu0 %v4775
    %4780 = vmatpush.bf16.msra.mxu0 %v4775
    %4781 = vmatpush.bf16.msra.mxu0 %v4775
    %4782 = vmatpush.bf16.msra.mxu0 %v4775
    %4783 = vmatpush.bf16.msra.mxu0 %v4775
    %4784 = vmatpush.bf16.msra.mxu0 %v4775
    %4785 = vmatpush.bf16.msra.mxu0 %v4773
    %4786 = vmatmul.bf16.gmra.mxu0 %v4756
    %v4787 = vpop.f32.mrf.mxu0
    %v4788 = vadd.f32 0.0, %v4787
    %v4789 = vpop.f32.mrf.mxu0
    %4790 = vdwg.mxu0
    %4791 = vrot.lane.b32.xlu0 %v2392, 88
    %v4792 = vpop.permute.xlu0 %4791
    %4794 = vmatpush.bf16.msra.mxu0 %v4775
    %4795 = vmatpush.bf16.msra.mxu0 %v4775
    %4796 = vmatpush.bf16.msra.mxu0 %v4775
    %4797 = vmatpush.bf16.msra.mxu0 %v4775
    %4798 = vmatpush.bf16.msra.mxu0 %v4775
    %4799 = vmatpush.bf16.msra.mxu0 %v4775
    %4800 = vmatpush.bf16.msra.mxu0 %v4775
    %4801 = vmatpush.bf16.msra.mxu0 %v4792
    %4802 = vmatmul.bf16.gmra.mxu0 %v4757
    %v4803 = vpop.f32.mrf.mxu0
    %v4804 = vadd.f32 0.0, %v4803
    %v4805 = vpop.f32.mrf.mxu0
    %4806 = vdwg.mxu0
    %4807 = vrot.lane.b32.xlu0 %v2448, 88
    %v4808 = vpop.permute.xlu0 %4807
    %4810 = vmatpush.bf16.msra.mxu0 %v4775
    %4811 = vmatpush.bf16.msra.mxu0 %v4775
    %4812 = vmatpush.bf16.msra.mxu0 %v4775
    %4813 = vmatpush.bf16.msra.mxu0 %v4775
    %4814 = vmatpush.bf16.msra.mxu0 %v4775
    %4815 = vmatpush.bf16.msra.mxu0 %v4775
    %4816 = vmatpush.bf16.msra.mxu0 %v4775
    %4817 = vmatpush.bf16.msra.mxu0 %v4808
    %4818 = vmatmul.bf16.gmra.mxu0 %v4758
    %v4819 = vpop.f32.mrf.mxu0
    %v4820 = vadd.f32 0.0, %v4819
    %v4821 = vpop.f32.mrf.mxu0
    %4822 = vdwg.mxu0
    %4823 = vrot.lane.b32.xlu0 %v2504, 88
    %v4824 = vpop.permute.xlu0 %4823
    %4826 = vmatpush.bf16.msra.mxu0 %v4775
    %4827 = vmatpush.bf16.msra.mxu0 %v4775
    %4828 = vmatpush.bf16.msra.mxu0 %v4775
    %4829 = vmatpush.bf16.msra.mxu0 %v4775
    %4830 = vmatpush.bf16.msra.mxu0 %v4775
    %4831 = vmatpush.bf16.msra.mxu0 %v4775
    %4832 = vmatpush.bf16.msra.mxu0 %v4775
    %4833 = vmatpush.bf16.msra.mxu0 %v4824
    %4834 = vmatmul.bf16.gmra.mxu0 %v4759
    %v4835 = vpop.f32.mrf.mxu0
    %v4836 = vadd.f32 0.0, %v4835
    %v4837 = vpop.f32.mrf.mxu0
    %4838 = vdwg.mxu0
    %4839 = vrot.lane.b32.xlu0 %v2560, 88
    %v4840 = vpop.permute.xlu0 %4839
    %4842 = vmatpush.bf16.msra.mxu0 %v4775
    %4843 = vmatpush.bf16.msra.mxu0 %v4775
    %4844 = vmatpush.bf16.msra.mxu0 %v4775
    %4845 = vmatpush.bf16.msra.mxu0 %v4775
    %4846 = vmatpush.bf16.msra.mxu0 %v4775
    %4847 = vmatpush.bf16.msra.mxu0 %v4775
    %4848 = vmatpush.bf16.msra.mxu0 %v4775
    %4849 = vmatpush.bf16.msra.mxu0 %v4840
    %4850 = vmatmul.bf16.gmra.mxu0 %v4760
    %v4851 = vpop.f32.mrf.mxu0
    %v4852 = vadd.f32 0.0, %v4851
    %v4853 = vpop.f32.mrf.mxu0
    %4854 = vdwg.mxu0
    %4855 = vrot.lane.b32.xlu0 %v2616, 88
    %v4856 = vpop.permute.xlu0 %4855
    %4858 = vmatpush.bf16.msra.mxu0 %v4775
    %4859 = vmatpush.bf16.msra.mxu0 %v4775
    %4860 = vmatpush.bf16.msra.mxu0 %v4775
    %4861 = vmatpush.bf16.msra.mxu0 %v4775
    %4862 = vmatpush.bf16.msra.mxu0 %v4775
    %4863 = vmatpush.bf16.msra.mxu0 %v4775
    %4864 = vmatpush.bf16.msra.mxu0 %v4775
    %4865 = vmatpush.bf16.msra.mxu0 %v4856
    %4866 = vmatmul.bf16.gmra.mxu0 %v4761
    %v4867 = vpop.f32.mrf.mxu0
    %v4868 = vadd.f32 0.0, %v4867
    %v4869 = vpop.f32.mrf.mxu0
    %4870 = vdwg.mxu0
    %4871 = vrot.lane.b32.xlu0 %v2672, 88
    %v4872 = vpop.permute.xlu0 %4871
    %4874 = vmatpush.bf16.msra.mxu0 %v4775
    %4875 = vmatpush.bf16.msra.mxu0 %v4775
    %4876 = vmatpush.bf16.msra.mxu0 %v4775
    %4877 = vmatpush.bf16.msra.mxu0 %v4775
    %4878 = vmatpush.bf16.msra.mxu0 %v4775
    %4879 = vmatpush.bf16.msra.mxu0 %v4775
    %4880 = vmatpush.bf16.msra.mxu0 %v4775
    %4881 = vmatpush.bf16.msra.mxu0 %v4872
    %4882 = vmatmul.bf16.gmra.mxu0 %v4762
    %v4883 = vpop.f32.mrf.mxu0
    %v4884 = vadd.f32 0.0, %v4883
    %v4885 = vpop.f32.mrf.mxu0
    %4886 = vdwg.mxu0
    %4887 = vrot.lane.b32.xlu0 %v2728, 88
    %v4888 = vpop.permute.xlu0 %4887
    %4890 = vmatpush.bf16.msra.mxu0 %v4775
    %4891 = vmatpush.bf16.msra.mxu0 %v4775
    %4892 = vmatpush.bf16.msra.mxu0 %v4775
    %4893 = vmatpush.bf16.msra.mxu0 %v4775
    %4894 = vmatpush.bf16.msra.mxu0 %v4775
    %4895 = vmatpush.bf16.msra.mxu0 %v4775
    %4896 = vmatpush.bf16.msra.mxu0 %v4775
    %4897 = vmatpush.bf16.msra.mxu0 %v4888
    %4898 = vmatmul.bf16.gmra.mxu0 %v4763
    %v4899 = vpop.f32.mrf.mxu0
    %v4900 = vadd.f32 0.0, %v4899
    %v4901 = vpop.f32.mrf.mxu0
    %4902 = vdwg.mxu0
    %4903 = vrot.lane.b32.xlu0 %v2784, 88
    %v4904 = vpop.permute.xlu0 %4903
    %4906 = vmatpush.bf16.msra.mxu0 %v4775
    %4907 = vmatpush.bf16.msra.mxu0 %v4775
    %4908 = vmatpush.bf16.msra.mxu0 %v4775
    %4909 = vmatpush.bf16.msra.mxu0 %v4775
    %4910 = vmatpush.bf16.msra.mxu0 %v4775
    %4911 = vmatpush.bf16.msra.mxu0 %v4775
    %4912 = vmatpush.bf16.msra.mxu0 %v4775
    %4913 = vmatpush.bf16.msra.mxu0 %v4904
    %4914 = vmatmul.bf16.gmra.mxu0 %v4764
    %v4915 = vpop.f32.mrf.mxu0
    %v4916 = vadd.f32 0.0, %v4915
    %v4917 = vpop.f32.mrf.mxu0
    %4918 = vdwg.mxu0
    %4919 = vrot.lane.b32.xlu0 %v2840, 88
    %v4920 = vpop.permute.xlu0 %4919
    %4922 = vmatpush.bf16.msra.mxu0 %v4775
    %4923 = vmatpush.bf16.msra.mxu0 %v4775
    %4924 = vmatpush.bf16.msra.mxu0 %v4775
    %4925 = vmatpush.bf16.msra.mxu0 %v4775
    %4926 = vmatpush.bf16.msra.mxu0 %v4775
    %4927 = vmatpush.bf16.msra.mxu0 %v4775
    %4928 = vmatpush.bf16.msra.mxu0 %v4775
    %4929 = vmatpush.bf16.msra.mxu0 %v4920
    %4930 = vmatmul.bf16.gmra.mxu0 %v4765
    %v4931 = vpop.f32.mrf.mxu0
    %v4932 = vadd.f32 0.0, %v4931
    %v4933 = vpop.f32.mrf.mxu0
    %4934 = vdwg.mxu0
    %4935 = vrot.lane.b32.xlu0 %v2896, 88
    %v4936 = vpop.permute.xlu0 %4935
    %4938 = vmatpush.bf16.msra.mxu0 %v4775
    %4939 = vmatpush.bf16.msra.mxu0 %v4775
    %4940 = vmatpush.bf16.msra.mxu0 %v4775
    %4941 = vmatpush.bf16.msra.mxu0 %v4775
    %4942 = vmatpush.bf16.msra.mxu0 %v4775
    %4943 = vmatpush.bf16.msra.mxu0 %v4775
    %4944 = vmatpush.bf16.msra.mxu0 %v4775
    %4945 = vmatpush.bf16.msra.mxu0 %v4936
    %4946 = vmatmul.bf16.gmra.mxu0 %v4766
    %v4947 = vpop.f32.mrf.mxu0
    %v4948 = vadd.f32 0.0, %v4947
    %v4949 = vpop.f32.mrf.mxu0
    %4950 = vdwg.mxu0
    %4951 = vrot.lane.b32.xlu0 %v2952, 88
    %v4952 = vpop.permute.xlu0 %4951
    %4954 = vmatpush.bf16.msra.mxu0 %v4775
    %4955 = vmatpush.bf16.msra.mxu0 %v4775
    %4956 = vmatpush.bf16.msra.mxu0 %v4775
    %4957 = vmatpush.bf16.msra.mxu0 %v4775
    %4958 = vmatpush.bf16.msra.mxu0 %v4775
    %4959 = vmatpush.bf16.msra.mxu0 %v4775
    %4960 = vmatpush.bf16.msra.mxu0 %v4775
    %4961 = vmatpush.bf16.msra.mxu0 %v4952
    %4962 = vmatmul.bf16.gmra.mxu0 %v4767
    %v4963 = vpop.f32.mrf.mxu0
    %v4964 = vadd.f32 0.0, %v4963
    %v4965 = vpop.f32.mrf.mxu0
    %4966 = vdwg.mxu0
    %4967 = vrot.lane.b32.xlu0 %v3008, 88
    %v4968 = vpop.permute.xlu0 %4967
    %4970 = vmatpush.bf16.msra.mxu0 %v4775
    %4971 = vmatpush.bf16.msra.mxu0 %v4775
    %4972 = vmatpush.bf16.msra.mxu0 %v4775
    %4973 = vmatpush.bf16.msra.mxu0 %v4775
    %4974 = vmatpush.bf16.msra.mxu0 %v4775
    %4975 = vmatpush.bf16.msra.mxu0 %v4775
    %4976 = vmatpush.bf16.msra.mxu0 %v4775
    %4977 = vmatpush.bf16.msra.mxu0 %v4968
    %4978 = vmatmul.bf16.gmra.mxu0 %v4768
    %v4979 = vpop.f32.mrf.mxu0
    %v4980 = vadd.f32 0.0, %v4979
    %v4981 = vpop.f32.mrf.mxu0
    %4982 = vdwg.mxu0
    %4983 = vrot.lane.b32.xlu0 %v3064, 88
    %v4984 = vpop.permute.xlu0 %4983
    %4986 = vmatpush.bf16.msra.mxu0 %v4775
    %4987 = vmatpush.bf16.msra.mxu0 %v4775
    %4988 = vmatpush.bf16.msra.mxu0 %v4775
    %4989 = vmatpush.bf16.msra.mxu0 %v4775
    %4990 = vmatpush.bf16.msra.mxu0 %v4775
    %4991 = vmatpush.bf16.msra.mxu0 %v4775
    %4992 = vmatpush.bf16.msra.mxu0 %v4775
    %4993 = vmatpush.bf16.msra.mxu0 %v4984
    %4994 = vmatmul.bf16.gmra.mxu0 %v4769
    %v4995 = vpop.f32.mrf.mxu0
    %v4996 = vadd.f32 0.0, %v4995
    %v4997 = vpop.f32.mrf.mxu0
    %4998 = vdwg.mxu0
    %4999 = vrot.lane.b32.xlu0 %v3120, 88
    %v5000 = vpop.permute.xlu0 %4999
    %5002 = vmatpush.bf16.msra.mxu0 %v4775
    %5003 = vmatpush.bf16.msra.mxu0 %v4775
    %5004 = vmatpush.bf16.msra.mxu0 %v4775
    %5005 = vmatpush.bf16.msra.mxu0 %v4775
    %5006 = vmatpush.bf16.msra.mxu0 %v4775
    %5007 = vmatpush.bf16.msra.mxu0 %v4775
    %5008 = vmatpush.bf16.msra.mxu0 %v4775
    %5009 = vmatpush.bf16.msra.mxu0 %v5000
    %5010 = vmatmul.bf16.gmra.mxu0 %v4770
    %v5011 = vpop.f32.mrf.mxu0
    %v5012 = vadd.f32 0.0, %v5011
    %v5013 = vpop.f32.mrf.mxu0
    %5014 = vdwg.mxu0
    %5015 = vrot.lane.b32.xlu0 %v3176, 88
    %v5016 = vpop.permute.xlu0 %5015
    %5018 = vmatpush.bf16.msra.mxu0 %v4775
    %5019 = vmatpush.bf16.msra.mxu0 %v4775
    %5020 = vmatpush.bf16.msra.mxu0 %v4775
    %5021 = vmatpush.bf16.msra.mxu0 %v4775
    %5022 = vmatpush.bf16.msra.mxu0 %v4775
    %5023 = vmatpush.bf16.msra.mxu0 %v4775
    %5024 = vmatpush.bf16.msra.mxu0 %v4775
    %5025 = vmatpush.bf16.msra.mxu0 %v5016
    %5026 = vmatmul.bf16.gmra.mxu0 %v4771
    %v5027 = vpop.f32.mrf.mxu0
    %v5028 = vadd.f32 0.0, %v5027
    %v5029 = vpop.f32.mrf.mxu0
    %5030 = vdwg.mxu0
    %5031 = vrot.lane.b32.xlu0 %v3905, 112
    %v5032 = vpop.permute.xlu0 %5031
    %5033 = vrot.lane.b32.xlu0 %v2277, 112
    %v5034 = vpop.permute.xlu0 %5033
    %5035 = vrot.lane.b32.xlu0 %v2278, 112
    %v5036 = vpop.permute.xlu0 %5035
    %v5038 = vsel %vm2365, %v5032, 0
    %v5041 = vsel %vm2365, %v5034, 0
    %v5044 = vsel %vm2365, %v5036, 0
    %5046 = vmatpush.bf16.xpose.msra.mxu0 %v5044
    %5047 = vmatpush.bf16.xpose.msra.mxu0 %v5044
    %5048 = vmatpush.bf16.xpose.msra.mxu0 %v5044
    %5049 = vmatpush.bf16.xpose.msra.mxu0 %v5044
    %5050 = vmatpush.bf16.xpose.msra.mxu0 %v5044
    %5051 = vmatpush.bf16.xpose.msra.mxu0 %v5044
    %5052 = vmatpush.bf16.xpose.msra.mxu0 %v5044
    %5053 = vmatpush.bf16.xpose.msra.mxu0 %v5041
    %5054 = vmatmul.bf16.gmra.mxu0 %v5038
    %v5055 = vpop.f32.mrf.mxu0
    %v5056 = vadd.f32 %v2363, %v5055
    %v5057 = vpop.f32.mrf.mxu0
    %5058 = vdwg.mxu0
    %5059 = vrot.lane.b32.xlu0 %v3936, 112
    %v5060 = vpop.permute.xlu0 %5059
    %5061 = vrot.lane.b32.xlu0 %v2392, 112
    %v5062 = vpop.permute.xlu0 %5061
    %v5064 = vsel %vm2365, %v5060, 0
    %v5067 = vsel %vm2365, %v5062, 0
    %5069 = vmatpush.bf16.xpose.msra.mxu0 %v5044
    %5070 = vmatpush.bf16.xpose.msra.mxu0 %v5044
    %5071 = vmatpush.bf16.xpose.msra.mxu0 %v5044
    %5072 = vmatpush.bf16.xpose.msra.mxu0 %v5044
    %5073 = vmatpush.bf16.xpose.msra.mxu0 %v5044
    %5074 = vmatpush.bf16.xpose.msra.mxu0 %v5044
    %5075 = vmatpush.bf16.xpose.msra.mxu0 %v5044
    %5076 = vmatpush.bf16.xpose.msra.mxu0 %v5067
    %5077 = vmatmul.bf16.gmra.mxu0 %v5064
    %v5078 = vpop.f32.mrf.mxu0
    %v5079 = vadd.f32 %v2423, %v5078
    %v5080 = vpop.f32.mrf.mxu0
    %5081 = vdwg.mxu0
    %5082 = vrot.lane.b32.xlu0 %v3962, 112
    %v5083 = vpop.permute.xlu0 %5082
    %5084 = vrot.lane.b32.xlu0 %v2448, 112
    %v5085 = vpop.permute.xlu0 %5084
    %v5087 = vsel %vm2365, %v5083, 0
    %v5090 = vsel %vm2365, %v5085, 0
    %5092 = vmatpush.bf16.xpose.msra.mxu0 %v5044
    %5093 = vmatpush.bf16.xpose.msra.mxu0 %v5044
    %5094 = vmatpush.bf16.xpose.msra.mxu0 %v5044
    %5095 = vmatpush.bf16.xpose.msra.mxu0 %v5044
    %5096 = vmatpush.bf16.xpose.msra.mxu0 %v5044
    %5097 = vmatpush.bf16.xpose.msra.mxu0 %v5044
    %5098 = vmatpush.bf16.xpose.msra.mxu0 %v5044
    %5099 = vmatpush.bf16.xpose.msra.mxu0 %v5090
    %5100 = vmatmul.bf16.gmra.mxu0 %v5087
    %v5101 = vpop.f32.mrf.mxu0
    %v5102 = vadd.f32 %v2479, %v5101
    %v5103 = vpop.f32.mrf.mxu0
    %5104 = vdwg.mxu0
    %5105 = vrot.lane.b32.xlu0 %v3988, 112
    %v5106 = vpop.permute.xlu0 %5105
    %5107 = vrot.lane.b32.xlu0 %v2504, 112
    %v5108 = vpop.permute.xlu0 %5107
    %v5110 = vsel %vm2365, %v5106, 0
    %v5113 = vsel %vm2365, %v5108, 0
    %5115 = vmatpush.bf16.xpose.msra.mxu0 %v5044
    %5116 = vmatpush.bf16.xpose.msra.mxu0 %v5044
    %5117 = vmatpush.bf16.xpose.msra.mxu0 %v5044
    %5118 = vmatpush.bf16.xpose.msra.mxu0 %v5044
    %5119 = vmatpush.bf16.xpose.msra.mxu0 %v5044
    %5120 = vmatpush.bf16.xpose.msra.mxu0 %v5044
    %5121 = vmatpush.bf16.xpose.msra.mxu0 %v5044
    %5122 = vmatpush.bf16.xpose.msra.mxu0 %v5113
    %5123 = vmatmul.bf16.gmra.mxu0 %v5110
    %v5124 = vpop.f32.mrf.mxu0
    %v5125 = vadd.f32 %v2535, %v5124
    %v5126 = vpop.f32.mrf.mxu0
    %5127 = vdwg.mxu0
    %5128 = vrot.lane.b32.xlu0 %v4014, 112
    %v5129 = vpop.permute.xlu0 %5128
    %5130 = vrot.lane.b32.xlu0 %v2560, 112
    %v5131 = vpop.permute.xlu0 %5130
    %v5133 = vsel %vm2365, %v5129, 0
    %v5136 = vsel %vm2365, %v5131, 0
    %5138 = vmatpush.bf16.xpose.msra.mxu0 %v5044
    %5139 = vmatpush.bf16.xpose.msra.mxu0 %v5044
    %5140 = vmatpush.bf16.xpose.msra.mxu0 %v5044
    %5141 = vmatpush.bf16.xpose.msra.mxu0 %v5044
    %5142 = vmatpush.bf16.xpose.msra.mxu0 %v5044
    %5143 = vmatpush.bf16.xpose.msra.mxu0 %v5044
    %5144 = vmatpush.bf16.xpose.msra.mxu0 %v5044
    %5145 = vmatpush.bf16.xpose.msra.mxu0 %v5136
    %5146 = vmatmul.bf16.gmra.mxu0 %v5133
    %v5147 = vpop.f32.mrf.mxu0
    %v5148 = vadd.f32 %v2591, %v5147
    %v5149 = vpop.f32.mrf.mxu0
    %5150 = vdwg.mxu0
    %5151 = vrot.lane.b32.xlu0 %v4040, 112
    %v5152 = vpop.permute.xlu0 %5151
    %5153 = vrot.lane.b32.xlu0 %v2616, 112
    %v5154 = vpop.permute.xlu0 %5153
    %v5156 = vsel %vm2365, %v5152, 0
    %v5159 = vsel %vm2365, %v5154, 0
    %5161 = vmatpush.bf16.xpose.msra.mxu0 %v5044
    %5162 = vmatpush.bf16.xpose.msra.mxu0 %v5044
    %5163 = vmatpush.bf16.xpose.msra.mxu0 %v5044
    %5164 = vmatpush.bf16.xpose.msra.mxu0 %v5044
    %5165 = vmatpush.bf16.xpose.msra.mxu0 %v5044
    %5166 = vmatpush.bf16.xpose.msra.mxu0 %v5044
    %5167 = vmatpush.bf16.xpose.msra.mxu0 %v5044
    %5168 = vmatpush.bf16.xpose.msra.mxu0 %v5159
    %5169 = vmatmul.bf16.gmra.mxu0 %v5156
    %v5170 = vpop.f32.mrf.mxu0
    %v5171 = vadd.f32 %v2647, %v5170
    %v5172 = vpop.f32.mrf.mxu0
    %5173 = vdwg.mxu0
    %5174 = vrot.lane.b32.xlu0 %v4066, 112
    %v5175 = vpop.permute.xlu0 %5174
    %5176 = vrot.lane.b32.xlu0 %v2672, 112
    %v5177 = vpop.permute.xlu0 %5176
    %v5179 = vsel %vm2365, %v5175, 0
    %v5182 = vsel %vm2365, %v5177, 0
    %5184 = vmatpush.bf16.xpose.msra.mxu0 %v5044
    %5185 = vmatpush.bf16.xpose.msra.mxu0 %v5044
    %5186 = vmatpush.bf16.xpose.msra.mxu0 %v5044
    %5187 = vmatpush.bf16.xpose.msra.mxu0 %v5044
    %5188 = vmatpush.bf16.xpose.msra.mxu0 %v5044
    %5189 = vmatpush.bf16.xpose.msra.mxu0 %v5044
    %5190 = vmatpush.bf16.xpose.msra.mxu0 %v5044
    %5191 = vmatpush.bf16.xpose.msra.mxu0 %v5182
    %5192 = vmatmul.bf16.gmra.mxu0 %v5179
    %v5193 = vpop.f32.mrf.mxu0
    %v5194 = vadd.f32 %v2703, %v5193
    %v5195 = vpop.f32.mrf.mxu0
    %5196 = vdwg.mxu0
    %5197 = vrot.lane.b32.xlu0 %v4092, 112
    %v5198 = vpop.permute.xlu0 %5197
    %5199 = vrot.lane.b32.xlu0 %v2728, 112
    %v5200 = vpop.permute.xlu0 %5199
    %v5202 = vsel %vm2365, %v5198, 0
    %v5205 = vsel %vm2365, %v5200, 0
    %5207 = vmatpush.bf16.xpose.msra.mxu0 %v5044
    %5208 = vmatpush.bf16.xpose.msra.mxu0 %v5044
    %5209 = vmatpush.bf16.xpose.msra.mxu0 %v5044
    %5210 = vmatpush.bf16.xpose.msra.mxu0 %v5044
    %5211 = vmatpush.bf16.xpose.msra.mxu0 %v5044
    %5212 = vmatpush.bf16.xpose.msra.mxu0 %v5044
    %5213 = vmatpush.bf16.xpose.msra.mxu0 %v5044
    %5214 = vmatpush.bf16.xpose.msra.mxu0 %v5205
    %5215 = vmatmul.bf16.gmra.mxu0 %v5202
    %v5216 = vpop.f32.mrf.mxu0
    %v5217 = vadd.f32 %v2759, %v5216
    %v5218 = vpop.f32.mrf.mxu0
    %5219 = vdwg.mxu0
    %5220 = vrot.lane.b32.xlu0 %v4118, 112
    %v5221 = vpop.permute.xlu0 %5220
    %5222 = vrot.lane.b32.xlu0 %v2784, 112
    %v5223 = vpop.permute.xlu0 %5222
    %v5225 = vsel %vm2365, %v5221, 0
    %v5228 = vsel %vm2365, %v5223, 0
    %5230 = vmatpush.bf16.xpose.msra.mxu0 %v5044
    %5231 = vmatpush.bf16.xpose.msra.mxu0 %v5044
    %5232 = vmatpush.bf16.xpose.msra.mxu0 %v5044
    %5233 = vmatpush.bf16.xpose.msra.mxu0 %v5044
    %5234 = vmatpush.bf16.xpose.msra.mxu0 %v5044
    %5235 = vmatpush.bf16.xpose.msra.mxu0 %v5044
    %5236 = vmatpush.bf16.xpose.msra.mxu0 %v5044
    %5237 = vmatpush.bf16.xpose.msra.mxu0 %v5228
    %5238 = vmatmul.bf16.gmra.mxu0 %v5225
    %v5239 = vpop.f32.mrf.mxu0
    %v5240 = vadd.f32 %v2815, %v5239
    %v5241 = vpop.f32.mrf.mxu0
    %5242 = vdwg.mxu0
    %5243 = vrot.lane.b32.xlu0 %v4144, 112
    %v5244 = vpop.permute.xlu0 %5243
    %5245 = vrot.lane.b32.xlu0 %v2840, 112
    %v5246 = vpop.permute.xlu0 %5245
    %v5248 = vsel %vm2365, %v5244, 0
    %v5251 = vsel %vm2365, %v5246, 0
    %5253 = vmatpush.bf16.xpose.msra.mxu0 %v5044
    %5254 = vmatpush.bf16.xpose.msra.mxu0 %v5044
    %5255 = vmatpush.bf16.xpose.msra.mxu0 %v5044
    %5256 = vmatpush.bf16.xpose.msra.mxu0 %v5044
    %5257 = vmatpush.bf16.xpose.msra.mxu0 %v5044
    %5258 = vmatpush.bf16.xpose.msra.mxu0 %v5044
    %5259 = vmatpush.bf16.xpose.msra.mxu0 %v5044
    %5260 = vmatpush.bf16.xpose.msra.mxu0 %v5251
    %5261 = vmatmul.bf16.gmra.mxu0 %v5248
    %v5262 = vpop.f32.mrf.mxu0
    %v5263 = vadd.f32 %v2871, %v5262
    %v5264 = vpop.f32.mrf.mxu0
    %5265 = vdwg.mxu0
    %5266 = vrot.lane.b32.xlu0 %v4170, 112
    %v5267 = vpop.permute.xlu0 %5266
    %5268 = vrot.lane.b32.xlu0 %v2896, 112
    %v5269 = vpop.permute.xlu0 %5268
    %v5271 = vsel %vm2365, %v5267, 0
    %v5274 = vsel %vm2365, %v5269, 0
    %5276 = vmatpush.bf16.xpose.msra.mxu0 %v5044
    %5277 = vmatpush.bf16.xpose.msra.mxu0 %v5044
    %5278 = vmatpush.bf16.xpose.msra.mxu0 %v5044
    %5279 = vmatpush.bf16.xpose.msra.mxu0 %v5044
    %5280 = vmatpush.bf16.xpose.msra.mxu0 %v5044
    %5281 = vmatpush.bf16.xpose.msra.mxu0 %v5044
    %5282 = vmatpush.bf16.xpose.msra.mxu0 %v5044
    %5283 = vmatpush.bf16.xpose.msra.mxu0 %v5274
    %5284 = vmatmul.bf16.gmra.mxu0 %v5271
    %v5285 = vpop.f32.mrf.mxu0
    %v5286 = vadd.f32 %v2927, %v5285
    %v5287 = vpop.f32.mrf.mxu0
    %5288 = vdwg.mxu0
    %5289 = vrot.lane.b32.xlu0 %v4196, 112
    %v5290 = vpop.permute.xlu0 %5289
    %5291 = vrot.lane.b32.xlu0 %v2952, 112
    %v5292 = vpop.permute.xlu0 %5291
    %v5294 = vsel %vm2365, %v5290, 0
    %v5297 = vsel %vm2365, %v5292, 0
    %5299 = vmatpush.bf16.xpose.msra.mxu0 %v5044
    %5300 = vmatpush.bf16.xpose.msra.mxu0 %v5044
    %5301 = vmatpush.bf16.xpose.msra.mxu0 %v5044
    %5302 = vmatpush.bf16.xpose.msra.mxu0 %v5044
    %5303 = vmatpush.bf16.xpose.msra.mxu0 %v5044
    %5304 = vmatpush.bf16.xpose.msra.mxu0 %v5044
    %5305 = vmatpush.bf16.xpose.msra.mxu0 %v5044
    %5306 = vmatpush.bf16.xpose.msra.mxu0 %v5297
    %5307 = vmatmul.bf16.gmra.mxu0 %v5294
    %v5308 = vpop.f32.mrf.mxu0
    %v5309 = vadd.f32 %v2983, %v5308
    %v5310 = vpop.f32.mrf.mxu0
    %5311 = vdwg.mxu0
    %5312 = vrot.lane.b32.xlu0 %v4222, 112
    %v5313 = vpop.permute.xlu0 %5312
    %5314 = vrot.lane.b32.xlu0 %v3008, 112
    %v5315 = vpop.permute.xlu0 %5314
    %v5317 = vsel %vm2365, %v5313, 0
    %v5320 = vsel %vm2365, %v5315, 0
    %5322 = vmatpush.bf16.xpose.msra.mxu0 %v5044
    %5323 = vmatpush.bf16.xpose.msra.mxu0 %v5044
    %5324 = vmatpush.bf16.xpose.msra.mxu0 %v5044
    %5325 = vmatpush.bf16.xpose.msra.mxu0 %v5044
    %5326 = vmatpush.bf16.xpose.msra.mxu0 %v5044
    %5327 = vmatpush.bf16.xpose.msra.mxu0 %v5044
    %5328 = vmatpush.bf16.xpose.msra.mxu0 %v5044
    %5329 = vmatpush.bf16.xpose.msra.mxu0 %v5320
    %5330 = vmatmul.bf16.gmra.mxu0 %v5317
    %v5331 = vpop.f32.mrf.mxu0
    %v5332 = vadd.f32 %v3039, %v5331
    %v5333 = vpop.f32.mrf.mxu0
    %5334 = vdwg.mxu0
    %5335 = vrot.lane.b32.xlu0 %v4248, 112
    %v5336 = vpop.permute.xlu0 %5335
    %5337 = vrot.lane.b32.xlu0 %v3064, 112
    %v5338 = vpop.permute.xlu0 %5337
    %v5340 = vsel %vm2365, %v5336, 0
    %v5343 = vsel %vm2365, %v5338, 0
    %5345 = vmatpush.bf16.xpose.msra.mxu0 %v5044
    %5346 = vmatpush.bf16.xpose.msra.mxu0 %v5044
    %5347 = vmatpush.bf16.xpose.msra.mxu0 %v5044
    %5348 = vmatpush.bf16.xpose.msra.mxu0 %v5044
    %5349 = vmatpush.bf16.xpose.msra.mxu0 %v5044
    %5350 = vmatpush.bf16.xpose.msra.mxu0 %v5044
    %5351 = vmatpush.bf16.xpose.msra.mxu0 %v5044
    %5352 = vmatpush.bf16.xpose.msra.mxu0 %v5343
    %5353 = vmatmul.bf16.gmra.mxu0 %v5340
    %v5354 = vpop.f32.mrf.mxu0
    %v5355 = vadd.f32 %v3095, %v5354
    %v5356 = vpop.f32.mrf.mxu0
    %5357 = vdwg.mxu0
    %5358 = vrot.lane.b32.xlu0 %v4274, 112
    %v5359 = vpop.permute.xlu0 %5358
    %5360 = vrot.lane.b32.xlu0 %v3120, 112
    %v5361 = vpop.permute.xlu0 %5360
    %v5363 = vsel %vm2365, %v5359, 0
    %v5366 = vsel %vm2365, %v5361, 0
    %5368 = vmatpush.bf16.xpose.msra.mxu0 %v5044
    %5369 = vmatpush.bf16.xpose.msra.mxu0 %v5044
    %5370 = vmatpush.bf16.xpose.msra.mxu0 %v5044
    %5371 = vmatpush.bf16.xpose.msra.mxu0 %v5044
    %5372 = vmatpush.bf16.xpose.msra.mxu0 %v5044
    %5373 = vmatpush.bf16.xpose.msra.mxu0 %v5044
    %5374 = vmatpush.bf16.xpose.msra.mxu0 %v5044
    %5375 = vmatpush.bf16.xpose.msra.mxu0 %v5366
    %5376 = vmatmul.bf16.gmra.mxu0 %v5363
    %v5377 = vpop.f32.mrf.mxu0
    %v5378 = vadd.f32 %v3151, %v5377
    %v5379 = vpop.f32.mrf.mxu0
    %5380 = vdwg.mxu0
    %5381 = vrot.lane.b32.xlu0 %v4300, 112
    %v5382 = vpop.permute.xlu0 %5381
    %5383 = vrot.lane.b32.xlu0 %v3176, 112
    %v5384 = vpop.permute.xlu0 %5383
    %v5386 = vsel %vm2365, %v5382, 0
    %v5389 = vsel %vm2365, %v5384, 0
    %5391 = vmatpush.bf16.xpose.msra.mxu0 %v5044
    %5392 = vmatpush.bf16.xpose.msra.mxu0 %v5044
    %5393 = vmatpush.bf16.xpose.msra.mxu0 %v5044
    %5394 = vmatpush.bf16.xpose.msra.mxu0 %v5044
    %5395 = vmatpush.bf16.xpose.msra.mxu0 %v5044
    %5396 = vmatpush.bf16.xpose.msra.mxu0 %v5044
    %5397 = vmatpush.bf16.xpose.msra.mxu0 %v5044
    %5398 = vmatpush.bf16.xpose.msra.mxu0 %v5389
    %5399 = vmatmul.bf16.gmra.mxu0 %v5386
    %v5400 = vpop.f32.mrf.mxu0
    %v5401 = vadd.f32 %v3207, %v5400
    %v5402 = vpop.f32.mrf.mxu0
    %5403 = vdwg.mxu0
    %5404 = vmax.xlane.f32.xlu0 %v5056
    %v5405 = vpop.xlane.xlu0 %5404
    %5406 = vmax.xlane.f32.xlu0 %v5079
    %v5407 = vpop.xlane.xlu0 %5406
    %5408 = vmax.xlane.f32.xlu0 %v5102
    %v5409 = vpop.xlane.xlu0 %5408
    %5410 = vmax.xlane.f32.xlu0 %v5125
    %v5411 = vpop.xlane.xlu0 %5410
    %5412 = vmax.xlane.f32.xlu0 %v5148
    %v5413 = vpop.xlane.xlu0 %5412
    %5414 = vmax.xlane.f32.xlu0 %v5171
    %v5415 = vpop.xlane.xlu0 %5414
    %5416 = vmax.xlane.f32.xlu0 %v5194
    %v5417 = vpop.xlane.xlu0 %5416
    %5418 = vmax.xlane.f32.xlu0 %v5217
    %v5419 = vpop.xlane.xlu0 %5418
    %5420 = vmax.xlane.f32.xlu0 %v5240
    %v5421 = vpop.xlane.xlu0 %5420
    %5422 = vmax.xlane.f32.xlu0 %v5263
    %v5423 = vpop.xlane.xlu0 %5422
    %5424 = vmax.xlane.f32.xlu0 %v5286
    %v5425 = vpop.xlane.xlu0 %5424
    %5426 = vmax.xlane.f32.xlu0 %v5309
    %v5427 = vpop.xlane.xlu0 %5426
    %5428 = vmax.xlane.f32.xlu0 %v5332
    %v5429 = vpop.xlane.xlu0 %5428
    %5430 = vmax.xlane.f32.xlu0 %v5355
    %v5431 = vpop.xlane.xlu0 %5430
    %5432 = vmax.xlane.f32.xlu0 %v5378
    %v5433 = vpop.xlane.xlu0 %5432
    %5434 = vmax.xlane.f32.xlu0 %v5401
    %v5435 = vpop.xlane.xlu0 %5434
    %v5436 = vsub.f32 %v5056, %v5405
    %v5437 = vsub.f32 %v5079, %v5407
    %v5438 = vsub.f32 %v5102, %v5409
    %v5439 = vsub.f32 %v5125, %v5411
    %v5440 = vsub.f32 %v5148, %v5413
    %v5441 = vsub.f32 %v5171, %v5415
    %v5442 = vsub.f32 %v5194, %v5417
    %v5443 = vsub.f32 %v5217, %v5419
    %v5444 = vsub.f32 %v5240, %v5421
    %v5445 = vsub.f32 %v5263, %v5423
    %v5446 = vsub.f32 %v5286, %v5425
    %v5447 = vsub.f32 %v5309, %v5427
    %v5448 = vsub.f32 %v5332, %v5429
    %v5449 = vsub.f32 %v5355, %v5431
    %v5450 = vsub.f32 %v5378, %v5433
    %v5451 = vsub.f32 %v5401, %v5435
    %v5452 = vmul.f32 %v5436, 1.442695
    %v5453 = vpow.pop %v5452
    %v5454 = vmul.f32 %v5437, 1.442695
    %v5455 = vpow.pop %v5454
    %v5456 = vmul.f32 %v5438, 1.442695
    %v5457 = vpow.pop %v5456
    %v5458 = vmul.f32 %v5439, 1.442695
    %v5459 = vpow.pop %v5458
    %v5460 = vmul.f32 %v5440, 1.442695
    %v5461 = vpow.pop %v5460
    %v5462 = vmul.f32 %v5441, 1.442695
    %v5463 = vpow.pop %v5462
    %v5464 = vmul.f32 %v5442, 1.442695
    %v5465 = vpow.pop %v5464
    %v5466 = vmul.f32 %v5443, 1.442695
    %v5467 = vpow.pop %v5466
    %v5468 = vmul.f32 %v5444, 1.442695
    %v5469 = vpow.pop %v5468
    %v5470 = vmul.f32 %v5445, 1.442695
    %v5471 = vpow.pop %v5470
    %v5472 = vmul.f32 %v5446, 1.442695
    %v5473 = vpow.pop %v5472
    %v5474 = vmul.f32 %v5447, 1.442695
    %v5475 = vpow.pop %v5474
    %v5476 = vmul.f32 %v5448, 1.442695
    %v5477 = vpow.pop %v5476
    %v5478 = vmul.f32 %v5449, 1.442695
    %v5479 = vpow.pop %v5478
    %v5480 = vmul.f32 %v5450, 1.442695
    %v5481 = vpow.pop %v5480
    %v5482 = vmul.f32 %v5451, 1.442695
    %v5483 = vpow.pop %v5482
    %5484 = vadd.xlane.f32.xlu0 %v5453
    %v5485 = vpop.xlane.xlu0 %5484
    %5486 = vadd.xlane.f32.xlu0 %v5455
    %v5487 = vpop.xlane.xlu0 %5486
    %5488 = vadd.xlane.f32.xlu0 %v5457
    %v5489 = vpop.xlane.xlu0 %5488
    %5490 = vadd.xlane.f32.xlu0 %v5459
    %v5491 = vpop.xlane.xlu0 %5490
    %5492 = vadd.xlane.f32.xlu0 %v5461
    %v5493 = vpop.xlane.xlu0 %5492
    %5494 = vadd.xlane.f32.xlu0 %v5463
    %v5495 = vpop.xlane.xlu0 %5494
    %5496 = vadd.xlane.f32.xlu0 %v5465
    %v5497 = vpop.xlane.xlu0 %5496
    %5498 = vadd.xlane.f32.xlu0 %v5467
    %v5499 = vpop.xlane.xlu0 %5498
    %5500 = vadd.xlane.f32.xlu0 %v5469
    %v5501 = vpop.xlane.xlu0 %5500
    %5502 = vadd.xlane.f32.xlu0 %v5471
    %v5503 = vpop.xlane.xlu0 %5502
    %5504 = vadd.xlane.f32.xlu0 %v5473
    %v5505 = vpop.xlane.xlu0 %5504
    %5506 = vadd.xlane.f32.xlu0 %v5475
    %v5507 = vpop.xlane.xlu0 %5506
    %5508 = vadd.xlane.f32.xlu0 %v5477
    %v5509 = vpop.xlane.xlu0 %5508
    %5510 = vadd.xlane.f32.xlu0 %v5479
    %v5511 = vpop.xlane.xlu0 %5510
    %5512 = vadd.xlane.f32.xlu0 %v5481
    %v5513 = vpop.xlane.xlu0 %5512
    %5514 = vadd.xlane.f32.xlu0 %v5483
    %v5515 = vpop.xlane.xlu0 %5514
    %v5516 = vrcp.pop %v5485
    %v5517 = vmul.f32 %v5485, %v5516
    %v5518 = vsub.f32 1.0, %v5517
    %v5519 = vmul.f32 %v5516, %v5518
    %v5520 = vadd.f32 %v5516, %v5519
    %vm5521 = vweird.f32 %v5485
    %vm5522 = vweird.f32 %v5516
    %vm5523 = vmor %vm5521, %vm5522
    %v5524 = vsel %vm5523, %v5516, %v5520
    %v5525 = vand.u32 2147483647, %v5485
    %vm5526 = vcmp.eq.f32.partialorder %v5525, 8.507059e+37
    %v5527 = vand.u32 %v5485, 2147483648
    %v5528 = vor.u32 1.1754944e-38, %v5527
    %v5529 = vsel %vm5526, %v5528, %v5524
    %v5530 = vmul.f32 1.0, %v5529
    %v5531 = vrcp.pop %v5487
    %v5532 = vmul.f32 %v5487, %v5531
    %v5533 = vsub.f32 1.0, %v5532
    %v5534 = vmul.f32 %v5531, %v5533
    %v5535 = vadd.f32 %v5531, %v5534
    %vm5536 = vweird.f32 %v5487
    %vm5537 = vweird.f32 %v5531
    %vm5538 = vmor %vm5536, %vm5537
    %v5539 = vsel %vm5538, %v5531, %v5535
    %v5540 = vand.u32 2147483647, %v5487
    %vm5541 = vcmp.eq.f32.partialorder %v5540, 8.507059e+37
    %v5542 = vand.u32 %v5487, 2147483648
    %v5543 = vor.u32 1.1754944e-38, %v5542
    %v5544 = vsel %vm5541, %v5543, %v5539
    %v5545 = vmul.f32 1.0, %v5544
    %v5546 = vrcp.pop %v5489
    %v5547 = vmul.f32 %v5489, %v5546
    %v5548 = vsub.f32 1.0, %v5547
    %v5549 = vmul.f32 %v5546, %v5548
    %v5550 = vadd.f32 %v5546, %v5549
    %vm5551 = vweird.f32 %v5489
    %vm5552 = vweird.f32 %v5546
    %vm5553 = vmor %vm5551, %vm5552
    %v5554 = vsel %vm5553, %v5546, %v5550
    %v5555 = vand.u32 2147483647, %v5489
    %vm5556 = vcmp.eq.f32.partialorder %v5555, 8.507059e+37
    %v5557 = vand.u32 %v5489, 2147483648
    %v5558 = vor.u32 1.1754944e-38, %v5557
    %v5559 = vsel %vm5556, %v5558, %v5554
    %v5560 = vmul.f32 1.0, %v5559
    %v5561 = vrcp.pop %v5491
    %v5562 = vmul.f32 %v5491, %v5561
    %v5563 = vsub.f32 1.0, %v5562
    %v5564 = vmul.f32 %v5561, %v5563
    %v5565 = vadd.f32 %v5561, %v5564
    %vm5566 = vweird.f32 %v5491
    %vm5567 = vweird.f32 %v5561
    %vm5568 = vmor %vm5566, %vm5567
    %v5569 = vsel %vm5568, %v5561, %v5565
    %v5570 = vand.u32 2147483647, %v5491
    %vm5571 = vcmp.eq.f32.partialorder %v5570, 8.507059e+37
    %v5572 = vand.u32 %v5491, 2147483648
    %v5573 = vor.u32 1.1754944e-38, %v5572
    %v5574 = vsel %vm5571, %v5573, %v5569
    %v5575 = vmul.f32 1.0, %v5574
    %v5576 = vrcp.pop %v5493
    %v5577 = vmul.f32 %v5493, %v5576
    %v5578 = vsub.f32 1.0, %v5577
    %v5579 = vmul.f32 %v5576, %v5578
    %v5580 = vadd.f32 %v5576, %v5579
    %vm5581 = vweird.f32 %v5493
    %vm5582 = vweird.f32 %v5576
    %vm5583 = vmor %vm5581, %vm5582
    %v5584 = vsel %vm5583, %v5576, %v5580
    %v5585 = vand.u32 2147483647, %v5493
    %vm5586 = vcmp.eq.f32.partialorder %v5585, 8.507059e+37
    %v5587 = vand.u32 %v5493, 2147483648
    %v5588 = vor.u32 1.1754944e-38, %v5587
    %v5589 = vsel %vm5586, %v5588, %v5584
    %v5590 = vmul.f32 1.0, %v5589
    %v5591 = vrcp.pop %v5495
    %v5592 = vmul.f32 %v5495, %v5591
    %v5593 = vsub.f32 1.0, %v5592
    %v5594 = vmul.f32 %v5591, %v5593
    %v5595 = vadd.f32 %v5591, %v5594
    %vm5596 = vweird.f32 %v5495
    %vm5597 = vweird.f32 %v5591
    %vm5598 = vmor %vm5596, %vm5597
    %v5599 = vsel %vm5598, %v5591, %v5595
    %v5600 = vand.u32 2147483647, %v5495
    %vm5601 = vcmp.eq.f32.partialorder %v5600, 8.507059e+37
    %v5602 = vand.u32 %v5495, 2147483648
    %v5603 = vor.u32 1.1754944e-38, %v5602
    %v5604 = vsel %vm5601, %v5603, %v5599
    %v5605 = vmul.f32 1.0, %v5604
    %v5606 = vrcp.pop %v5497
    %v5607 = vmul.f32 %v5497, %v5606
    %v5608 = vsub.f32 1.0, %v5607
    %v5609 = vmul.f32 %v5606, %v5608
    %v5610 = vadd.f32 %v5606, %v5609
    %vm5611 = vweird.f32 %v5497
    %vm5612 = vweird.f32 %v5606
    %vm5613 = vmor %vm5611, %vm5612
    %v5614 = vsel %vm5613, %v5606, %v5610
    %v5615 = vand.u32 2147483647, %v5497
    %vm5616 = vcmp.eq.f32.partialorder %v5615, 8.507059e+37
    %v5617 = vand.u32 %v5497, 2147483648
    %v5618 = vor.u32 1.1754944e-38, %v5617
    %v5619 = vsel %vm5616, %v5618, %v5614
    %v5620 = vmul.f32 1.0, %v5619
    %v5621 = vrcp.pop %v5499
    %v5622 = vmul.f32 %v5499, %v5621
    %v5623 = vsub.f32 1.0, %v5622
    %v5624 = vmul.f32 %v5621, %v5623
    %v5625 = vadd.f32 %v5621, %v5624
    %vm5626 = vweird.f32 %v5499
    %vm5627 = vweird.f32 %v5621
    %vm5628 = vmor %vm5626, %vm5627
    %v5629 = vsel %vm5628, %v5621, %v5625
    %v5630 = vand.u32 2147483647, %v5499
    %vm5631 = vcmp.eq.f32.partialorder %v5630, 8.507059e+37
    %v5632 = vand.u32 %v5499, 2147483648
    %v5633 = vor.u32 1.1754944e-38, %v5632
    %v5634 = vsel %vm5631, %v5633, %v5629
    %v5635 = vmul.f32 1.0, %v5634
    %v5636 = vrcp.pop %v5501
    %v5637 = vmul.f32 %v5501, %v5636
    %v5638 = vsub.f32 1.0, %v5637
    %v5639 = vmul.f32 %v5636, %v5638
    %v5640 = vadd.f32 %v5636, %v5639
    %vm5641 = vweird.f32 %v5501
    %vm5642 = vweird.f32 %v5636
    %vm5643 = vmor %vm5641, %vm5642
    %v5644 = vsel %vm5643, %v5636, %v5640
    %v5645 = vand.u32 2147483647, %v5501
    %vm5646 = vcmp.eq.f32.partialorder %v5645, 8.507059e+37
    %v5647 = vand.u32 %v5501, 2147483648
    %v5648 = vor.u32 1.1754944e-38, %v5647
    %v5649 = vsel %vm5646, %v5648, %v5644
    %v5650 = vmul.f32 1.0, %v5649
    %v5651 = vrcp.pop %v5503
    %v5652 = vmul.f32 %v5503, %v5651
    %v5653 = vsub.f32 1.0, %v5652
    %v5654 = vmul.f32 %v5651, %v5653
    %v5655 = vadd.f32 %v5651, %v5654
    %vm5656 = vweird.f32 %v5503
    %vm5657 = vweird.f32 %v5651
    %vm5658 = vmor %vm5656, %vm5657
    %v5659 = vsel %vm5658, %v5651, %v5655
    %v5660 = vand.u32 2147483647, %v5503
    %vm5661 = vcmp.eq.f32.partialorder %v5660, 8.507059e+37
    %v5662 = vand.u32 %v5503, 2147483648
    %v5663 = vor.u32 1.1754944e-38, %v5662
    %v5664 = vsel %vm5661, %v5663, %v5659
    %v5665 = vmul.f32 1.0, %v5664
    %v5666 = vrcp.pop %v5505
    %v5667 = vmul.f32 %v5505, %v5666
    %v5668 = vsub.f32 1.0, %v5667
    %v5669 = vmul.f32 %v5666, %v5668
    %v5670 = vadd.f32 %v5666, %v5669
    %vm5671 = vweird.f32 %v5505
    %vm5672 = vweird.f32 %v5666
    %vm5673 = vmor %vm5671, %vm5672
    %v5674 = vsel %vm5673, %v5666, %v5670
    %v5675 = vand.u32 2147483647, %v5505
    %vm5676 = vcmp.eq.f32.partialorder %v5675, 8.507059e+37
    %v5677 = vand.u32 %v5505, 2147483648
    %v5678 = vor.u32 1.1754944e-38, %v5677
    %v5679 = vsel %vm5676, %v5678, %v5674
    %v5680 = vmul.f32 1.0, %v5679
    %v5681 = vrcp.pop %v5507
    %v5682 = vmul.f32 %v5507, %v5681
    %v5683 = vsub.f32 1.0, %v5682
    %v5684 = vmul.f32 %v5681, %v5683
    %v5685 = vadd.f32 %v5681, %v5684
    %vm5686 = vweird.f32 %v5507
    %vm5687 = vweird.f32 %v5681
    %vm5688 = vmor %vm5686, %vm5687
    %v5689 = vsel %vm5688, %v5681, %v5685
    %v5690 = vand.u32 2147483647, %v5507
    %vm5691 = vcmp.eq.f32.partialorder %v5690, 8.507059e+37
    %v5692 = vand.u32 %v5507, 2147483648
    %v5693 = vor.u32 1.1754944e-38, %v5692
    %v5694 = vsel %vm5691, %v5693, %v5689
    %v5695 = vmul.f32 1.0, %v5694
    %v5696 = vrcp.pop %v5509
    %v5697 = vmul.f32 %v5509, %v5696
    %v5698 = vsub.f32 1.0, %v5697
    %v5699 = vmul.f32 %v5696, %v5698
    %v5700 = vadd.f32 %v5696, %v5699
    %vm5701 = vweird.f32 %v5509
    %vm5702 = vweird.f32 %v5696
    %vm5703 = vmor %vm5701, %vm5702
    %v5704 = vsel %vm5703, %v5696, %v5700
    %v5705 = vand.u32 2147483647, %v5509
    %vm5706 = vcmp.eq.f32.partialorder %v5705, 8.507059e+37
    %v5707 = vand.u32 %v5509, 2147483648
    %v5708 = vor.u32 1.1754944e-38, %v5707
    %v5709 = vsel %vm5706, %v5708, %v5704
    %v5710 = vmul.f32 1.0, %v5709
    %v5711 = vrcp.pop %v5511
    %v5712 = vmul.f32 %v5511, %v5711
    %v5713 = vsub.f32 1.0, %v5712
    %v5714 = vmul.f32 %v5711, %v5713
    %v5715 = vadd.f32 %v5711, %v5714
    %vm5716 = vweird.f32 %v5511
    %vm5717 = vweird.f32 %v5711
    %vm5718 = vmor %vm5716, %vm5717
    %v5719 = vsel %vm5718, %v5711, %v5715
    %v5720 = vand.u32 2147483647, %v5511
    %vm5721 = vcmp.eq.f32.partialorder %v5720, 8.507059e+37
    %v5722 = vand.u32 %v5511, 2147483648
    %v5723 = vor.u32 1.1754944e-38, %v5722
    %v5724 = vsel %vm5721, %v5723, %v5719
    %v5725 = vmul.f32 1.0, %v5724
    %v5726 = vrcp.pop %v5513
    %v5727 = vmul.f32 %v5513, %v5726
    %v5728 = vsub.f32 1.0, %v5727
    %v5729 = vmul.f32 %v5726, %v5728
    %v5730 = vadd.f32 %v5726, %v5729
    %vm5731 = vweird.f32 %v5513
    %vm5732 = vweird.f32 %v5726
    %vm5733 = vmor %vm5731, %vm5732
    %v5734 = vsel %vm5733, %v5726, %v5730
    %v5735 = vand.u32 2147483647, %v5513
    %vm5736 = vcmp.eq.f32.partialorder %v5735, 8.507059e+37
    %v5737 = vand.u32 %v5513, 2147483648
    %v5738 = vor.u32 1.1754944e-38, %v5737
    %v5739 = vsel %vm5736, %v5738, %v5734
    %v5740 = vmul.f32 1.0, %v5739
    %v5741 = vrcp.pop %v5515
    %v5742 = vmul.f32 %v5515, %v5741
    %v5743 = vsub.f32 1.0, %v5742
    %v5744 = vmul.f32 %v5741, %v5743
    %v5745 = vadd.f32 %v5741, %v5744
    %vm5746 = vweird.f32 %v5515
    %vm5747 = vweird.f32 %v5741
    %vm5748 = vmor %vm5746, %vm5747
    %v5749 = vsel %vm5748, %v5741, %v5745
    %v5750 = vand.u32 2147483647, %v5515
    %vm5751 = vcmp.eq.f32.partialorder %v5750, 8.507059e+37
    %v5752 = vand.u32 %v5515, 2147483648
    %v5753 = vor.u32 1.1754944e-38, %v5752
    %v5754 = vsel %vm5751, %v5753, %v5749
    %v5755 = vmul.f32 1.0, %v5754
    %v5756 = vmul.f32 %v5453, %v5530
    %v5757 = vmul.f32 %v5455, %v5545
    %v5758 = vmul.f32 %v5457, %v5560
    %v5759 = vmul.f32 %v5459, %v5575
    %v5760 = vmul.f32 %v5461, %v5590
    %v5761 = vmul.f32 %v5463, %v5605
    %v5762 = vmul.f32 %v5465, %v5620
    %v5763 = vmul.f32 %v5467, %v5635
    %v5764 = vmul.f32 %v5469, %v5650
    %v5765 = vmul.f32 %v5471, %v5665
    %v5766 = vmul.f32 %v5473, %v5680
    %v5767 = vmul.f32 %v5475, %v5695
    %v5768 = vmul.f32 %v5477, %v5710
    %v5769 = vmul.f32 %v5479, %v5725
    %v5770 = vmul.f32 %v5481, %v5740
    %v5771 = vmul.f32 %v5483, %v5755
    %v5772 = vld [vmem:[#allocation14] sm:$0xff]
    %v5773 = vld [vmem:[#allocation14 + $0x8] sm:$0xff]
    %v5774 = vld [vmem:[#allocation14 + $0x10] sm:$0xff]
    %v5775 = vld [vmem:[#allocation14 + $0x18] sm:$0xff]
    %v5776 = vld [vmem:[#allocation14 + $0x20] sm:$0xff]
    %v5777 = vld [vmem:[#allocation14 + $0x28] sm:$0xff]
    %v5778 = vld [vmem:[#allocation14 + $0x30] sm:$0xff]
    %v5779 = vld [vmem:[#allocation14 + $0x38] sm:$0xff]
    %v5780 = vld [vmem:[#allocation14 + $0x40] sm:$0xff]
    %v5781 = vld [vmem:[#allocation14 + $0x48] sm:$0xff]
    %v5782 = vld [vmem:[#allocation14 + $0x50] sm:$0xff]
    %v5783 = vld [vmem:[#allocation14 + $0x58] sm:$0xff]
    %v5784 = vld [vmem:[#allocation14 + $0x60] sm:$0xff]
    %v5785 = vld [vmem:[#allocation14 + $0x68] sm:$0xff]
    %v5786 = vld [vmem:[#allocation14 + $0x70] sm:$0xff]
    %v5787 = vld [vmem:[#allocation14 + $0x78] sm:$0xff]
    %v5788 = vmul.f32 %v5756, 0.25
    %v5789 = vmul.f32 %v5757, 0.25
    %v5790 = vmul.f32 %v5758, 0.25
    %v5791 = vmul.f32 %v5759, 0.25
    %v5792 = vmul.f32 %v5760, 0.25
    %v5793 = vmul.f32 %v5761, 0.25
    %v5794 = vmul.f32 %v5762, 0.25
    %v5795 = vmul.f32 %v5763, 0.25
    %v5796 = vmul.f32 %v5764, 0.25
    %v5797 = vmul.f32 %v5765, 0.25
    %v5798 = vmul.f32 %v5766, 0.25
    %v5799 = vmul.f32 %v5767, 0.25
    %v5800 = vmul.f32 %v5768, 0.25
    %v5801 = vmul.f32 %v5769, 0.25
    %v5802 = vmul.f32 %v5770, 0.25
    %v5803 = vmul.f32 %v5771, 0.25
    %v5804 = vadd.f32 %v5772, %v5788
    %v5805 = vadd.f32 %v5773, %v5789
    %v5806 = vadd.f32 %v5774, %v5790
    %v5807 = vadd.f32 %v5775, %v5791
    %v5808 = vadd.f32 %v5776, %v5792
    %v5809 = vadd.f32 %v5777, %v5793
    %v5810 = vadd.f32 %v5778, %v5794
    %v5811 = vadd.f32 %v5779, %v5795
    %v5812 = vadd.f32 %v5780, %v5796
    %v5813 = vadd.f32 %v5781, %v5797
    %v5814 = vadd.f32 %v5782, %v5798
    %v5815 = vadd.f32 %v5783, %v5799
    %v5816 = vadd.f32 %v5784, %v5800
    %v5817 = vadd.f32 %v5785, %v5801
    %v5818 = vadd.f32 %v5786, %v5802
    %v5819 = vadd.f32 %v5787, %v5803
    %5820 = vst [vmem:[#allocation14] sm:$0xff] %v5804
    %5821 = vst [vmem:[#allocation14 + $0x8] sm:$0xff] %v5805
    %5822 = vst [vmem:[#allocation14 + $0x10] sm:$0xff] %v5806
    %5823 = vst [vmem:[#allocation14 + $0x18] sm:$0xff] %v5807
    %5824 = vst [vmem:[#allocation14 + $0x20] sm:$0xff] %v5808
    %5825 = vst [vmem:[#allocation14 + $0x28] sm:$0xff] %v5809
    %5826 = vst [vmem:[#allocation14 + $0x30] sm:$0xff] %v5810
    %5827 = vst [vmem:[#allocation14 + $0x38] sm:$0xff] %v5811
    %5828 = vst [vmem:[#allocation14 + $0x40] sm:$0xff] %v5812
    %5829 = vst [vmem:[#allocation14 + $0x48] sm:$0xff] %v5813
    %5830 = vst [vmem:[#allocation14 + $0x50] sm:$0xff] %v5814
    %5831 = vst [vmem:[#allocation14 + $0x58] sm:$0xff] %v5815
    %5832 = vst [vmem:[#allocation14 + $0x60] sm:$0xff] %v5816
    %5833 = vst [vmem:[#allocation14 + $0x68] sm:$0xff] %v5817
    %5834 = vst [vmem:[#allocation14 + $0x70] sm:$0xff] %v5818
    %5835 = vst [vmem:[#allocation14 + $0x78] sm:$0xff] %v5819
    %v5836 = vpack.c.bf16 %v5756, %v5756
    %v5837 = vpack.c.bf16 %v5757, %v5757
    %v5838 = vpack.c.bf16 %v5758, %v5758
    %v5839 = vpack.c.bf16 %v5759, %v5759
    %v5840 = vpack.c.bf16 %v5760, %v5760
    %v5841 = vpack.c.bf16 %v5761, %v5761
    %v5842 = vpack.c.bf16 %v5762, %v5762
    %v5843 = vpack.c.bf16 %v5763, %v5763
    %v5844 = vpack.c.bf16 %v5764, %v5764
    %v5845 = vpack.c.bf16 %v5765, %v5765
    %v5846 = vpack.c.bf16 %v5766, %v5766
    %v5847 = vpack.c.bf16 %v5767, %v5767
    %v5848 = vpack.c.bf16 %v5768, %v5768
    %v5849 = vpack.c.bf16 %v5769, %v5769
    %v5850 = vpack.c.bf16 %v5770, %v5770
    %v5851 = vpack.c.bf16 %v5771, %v5771
    %5852 = vrot.lane.b32.xlu0 %v2277, 80
    %v5853 = vpop.permute.xlu0 %5852
    %5854 = vrot.lane.b32.xlu0 %v2278, 80
    %v5855 = vpop.permute.xlu0 %5854
    %5858 = vmatpush.bf16.msra.mxu0 %v5855
    %5859 = vmatpush.bf16.msra.mxu0 %v5855
    %5860 = vmatpush.bf16.msra.mxu0 %v5855
    %5861 = vmatpush.bf16.msra.mxu0 %v5855
    %5862 = vmatpush.bf16.msra.mxu0 %v5855
    %5863 = vmatpush.bf16.msra.mxu0 %v5855
    %5864 = vmatpush.bf16.msra.mxu0 %v5855
    %5865 = vmatpush.bf16.msra.mxu0 %v5853
    %5866 = vmatmul.bf16.gmra.mxu0 %v5836
    %v5867 = vpop.f32.mrf.mxu0
    %v5868 = vadd.f32 0.0, %v5867
    %v5869 = vpop.f32.mrf.mxu0
    %5870 = vdwg.mxu0
    %5871 = vrot.lane.b32.xlu0 %v2392, 80
    %v5872 = vpop.permute.xlu0 %5871
    %5874 = vmatpush.bf16.msra.mxu0 %v5855
    %5875 = vmatpush.bf16.msra.mxu0 %v5855
    %5876 = vmatpush.bf16.msra.mxu0 %v5855
    %5877 = vmatpush.bf16.msra.mxu0 %v5855
    %5878 = vmatpush.bf16.msra.mxu0 %v5855
    %5879 = vmatpush.bf16.msra.mxu0 %v5855
    %5880 = vmatpush.bf16.msra.mxu0 %v5855
    %5881 = vmatpush.bf16.msra.mxu0 %v5872
    %5882 = vmatmul.bf16.gmra.mxu0 %v5837
    %v5883 = vpop.f32.mrf.mxu0
    %v5884 = vadd.f32 0.0, %v5883
    %v5885 = vpop.f32.mrf.mxu0
    %5886 = vdwg.mxu0
    %5887 = vrot.lane.b32.xlu0 %v2448, 80
    %v5888 = vpop.permute.xlu0 %5887
    %5890 = vmatpush.bf16.msra.mxu0 %v5855
    %5891 = vmatpush.bf16.msra.mxu0 %v5855
    %5892 = vmatpush.bf16.msra.mxu0 %v5855
    %5893 = vmatpush.bf16.msra.mxu0 %v5855
    %5894 = vmatpush.bf16.msra.mxu0 %v5855
    %5895 = vmatpush.bf16.msra.mxu0 %v5855
    %5896 = vmatpush.bf16.msra.mxu0 %v5855
    %5897 = vmatpush.bf16.msra.mxu0 %v5888
    %5898 = vmatmul.bf16.gmra.mxu0 %v5838
    %v5899 = vpop.f32.mrf.mxu0
    %v5900 = vadd.f32 0.0, %v5899
    %v5901 = vpop.f32.mrf.mxu0
    %5902 = vdwg.mxu0
    %5903 = vrot.lane.b32.xlu0 %v2504, 80
    %v5904 = vpop.permute.xlu0 %5903
    %5906 = vmatpush.bf16.msra.mxu0 %v5855
    %5907 = vmatpush.bf16.msra.mxu0 %v5855
    %5908 = vmatpush.bf16.msra.mxu0 %v5855
    %5909 = vmatpush.bf16.msra.mxu0 %v5855
    %5910 = vmatpush.bf16.msra.mxu0 %v5855
    %5911 = vmatpush.bf16.msra.mxu0 %v5855
    %5912 = vmatpush.bf16.msra.mxu0 %v5855
    %5913 = vmatpush.bf16.msra.mxu0 %v5904
    %5914 = vmatmul.bf16.gmra.mxu0 %v5839
    %v5915 = vpop.f32.mrf.mxu0
    %v5916 = vadd.f32 0.0, %v5915
    %v5917 = vpop.f32.mrf.mxu0
    %5918 = vdwg.mxu0
    %5919 = vrot.lane.b32.xlu0 %v2560, 80
    %v5920 = vpop.permute.xlu0 %5919
    %5922 = vmatpush.bf16.msra.mxu0 %v5855
    %5923 = vmatpush.bf16.msra.mxu0 %v5855
    %5924 = vmatpush.bf16.msra.mxu0 %v5855
    %5925 = vmatpush.bf16.msra.mxu0 %v5855
    %5926 = vmatpush.bf16.msra.mxu0 %v5855
    %5927 = vmatpush.bf16.msra.mxu0 %v5855
    %5928 = vmatpush.bf16.msra.mxu0 %v5855
    %5929 = vmatpush.bf16.msra.mxu0 %v5920
    %5930 = vmatmul.bf16.gmra.mxu0 %v5840
    %v5931 = vpop.f32.mrf.mxu0
    %v5932 = vadd.f32 0.0, %v5931
    %v5933 = vpop.f32.mrf.mxu0
    %5934 = vdwg.mxu0
    %5935 = vrot.lane.b32.xlu0 %v2616, 80
    %v5936 = vpop.permute.xlu0 %5935
    %5938 = vmatpush.bf16.msra.mxu0 %v5855
    %5939 = vmatpush.bf16.msra.mxu0 %v5855
    %5940 = vmatpush.bf16.msra.mxu0 %v5855
    %5941 = vmatpush.bf16.msra.mxu0 %v5855
    %5942 = vmatpush.bf16.msra.mxu0 %v5855
    %5943 = vmatpush.bf16.msra.mxu0 %v5855
    %5944 = vmatpush.bf16.msra.mxu0 %v5855
    %5945 = vmatpush.bf16.msra.mxu0 %v5936
    %5946 = vmatmul.bf16.gmra.mxu0 %v5841
    %v5947 = vpop.f32.mrf.mxu0
    %v5948 = vadd.f32 0.0, %v5947
    %v5949 = vpop.f32.mrf.mxu0
    %5950 = vdwg.mxu0
    %5951 = vrot.lane.b32.xlu0 %v2672, 80
    %v5952 = vpop.permute.xlu0 %5951
    %5954 = vmatpush.bf16.msra.mxu0 %v5855
    %5955 = vmatpush.bf16.msra.mxu0 %v5855
    %5956 = vmatpush.bf16.msra.mxu0 %v5855
    %5957 = vmatpush.bf16.msra.mxu0 %v5855
    %5958 = vmatpush.bf16.msra.mxu0 %v5855
    %5959 = vmatpush.bf16.msra.mxu0 %v5855
    %5960 = vmatpush.bf16.msra.mxu0 %v5855
    %5961 = vmatpush.bf16.msra.mxu0 %v5952
    %5962 = vmatmul.bf16.gmra.mxu0 %v5842
    %v5963 = vpop.f32.mrf.mxu0
    %v5964 = vadd.f32 0.0, %v5963
    %v5965 = vpop.f32.mrf.mxu0
    %5966 = vdwg.mxu0
    %5967 = vrot.lane.b32.xlu0 %v2728, 80
    %v5968 = vpop.permute.xlu0 %5967
    %5970 = vmatpush.bf16.msra.mxu0 %v5855
    %5971 = vmatpush.bf16.msra.mxu0 %v5855
    %5972 = vmatpush.bf16.msra.mxu0 %v5855
    %5973 = vmatpush.bf16.msra.mxu0 %v5855
    %5974 = vmatpush.bf16.msra.mxu0 %v5855
    %5975 = vmatpush.bf16.msra.mxu0 %v5855
    %5976 = vmatpush.bf16.msra.mxu0 %v5855
    %5977 = vmatpush.bf16.msra.mxu0 %v5968
    %5978 = vmatmul.bf16.gmra.mxu0 %v5843
    %v5979 = vpop.f32.mrf.mxu0
    %v5980 = vadd.f32 0.0, %v5979
    %v5981 = vpop.f32.mrf.mxu0
    %5982 = vdwg.mxu0
    %5983 = vrot.lane.b32.xlu0 %v2784, 80
    %v5984 = vpop.permute.xlu0 %5983
    %5986 = vmatpush.bf16.msra.mxu0 %v5855
    %5987 = vmatpush.bf16.msra.mxu0 %v5855
    %5988 = vmatpush.bf16.msra.mxu0 %v5855
    %5989 = vmatpush.bf16.msra.mxu0 %v5855
    %5990 = vmatpush.bf16.msra.mxu0 %v5855
    %5991 = vmatpush.bf16.msra.mxu0 %v5855
    %5992 = vmatpush.bf16.msra.mxu0 %v5855
    %5993 = vmatpush.bf16.msra.mxu0 %v5984
    %5994 = vmatmul.bf16.gmra.mxu0 %v5844
    %v5995 = vpop.f32.mrf.mxu0
    %v5996 = vadd.f32 0.0, %v5995
    %v5997 = vpop.f32.mrf.mxu0
    %5998 = vdwg.mxu0
    %5999 = vrot.lane.b32.xlu0 %v2840, 80
    %v6000 = vpop.permute.xlu0 %5999
    %6002 = vmatpush.bf16.msra.mxu0 %v5855
    %6003 = vmatpush.bf16.msra.mxu0 %v5855
    %6004 = vmatpush.bf16.msra.mxu0 %v5855
    %6005 = vmatpush.bf16.msra.mxu0 %v5855
    %6006 = vmatpush.bf16.msra.mxu0 %v5855
    %6007 = vmatpush.bf16.msra.mxu0 %v5855
    %6008 = vmatpush.bf16.msra.mxu0 %v5855
    %6009 = vmatpush.bf16.msra.mxu0 %v6000
    %6010 = vmatmul.bf16.gmra.mxu0 %v5845
    %v6011 = vpop.f32.mrf.mxu0
    %v6012 = vadd.f32 0.0, %v6011
    %v6013 = vpop.f32.mrf.mxu0
    %6014 = vdwg.mxu0
    %6015 = vrot.lane.b32.xlu0 %v2896, 80
    %v6016 = vpop.permute.xlu0 %6015
    %6018 = vmatpush.bf16.msra.mxu0 %v5855
    %6019 = vmatpush.bf16.msra.mxu0 %v5855
    %6020 = vmatpush.bf16.msra.mxu0 %v5855
    %6021 = vmatpush.bf16.msra.mxu0 %v5855
    %6022 = vmatpush.bf16.msra.mxu0 %v5855
    %6023 = vmatpush.bf16.msra.mxu0 %v5855
    %6024 = vmatpush.bf16.msra.mxu0 %v5855
    %6025 = vmatpush.bf16.msra.mxu0 %v6016
    %6026 = vmatmul.bf16.gmra.mxu0 %v5846
    %v6027 = vpop.f32.mrf.mxu0
    %v6028 = vadd.f32 0.0, %v6027
    %v6029 = vpop.f32.mrf.mxu0
    %6030 = vdwg.mxu0
    %6031 = vrot.lane.b32.xlu0 %v2952, 80
    %v6032 = vpop.permute.xlu0 %6031
    %6034 = vmatpush.bf16.msra.mxu0 %v5855
    %6035 = vmatpush.bf16.msra.mxu0 %v5855
    %6036 = vmatpush.bf16.msra.mxu0 %v5855
    %6037 = vmatpush.bf16.msra.mxu0 %v5855
    %6038 = vmatpush.bf16.msra.mxu0 %v5855
    %6039 = vmatpush.bf16.msra.mxu0 %v5855
    %6040 = vmatpush.bf16.msra.mxu0 %v5855
    %6041 = vmatpush.bf16.msra.mxu0 %v6032
    %6042 = vmatmul.bf16.gmra.mxu0 %v5847
    %v6043 = vpop.f32.mrf.mxu0
    %v6044 = vadd.f32 0.0, %v6043
    %v6045 = vpop.f32.mrf.mxu0
    %6046 = vdwg.mxu0
    %6047 = vrot.lane.b32.xlu0 %v3008, 80
    %v6048 = vpop.permute.xlu0 %6047
    %6050 = vmatpush.bf16.msra.mxu0 %v5855
    %6051 = vmatpush.bf16.msra.mxu0 %v5855
    %6052 = vmatpush.bf16.msra.mxu0 %v5855
    %6053 = vmatpush.bf16.msra.mxu0 %v5855
    %6054 = vmatpush.bf16.msra.mxu0 %v5855
    %6055 = vmatpush.bf16.msra.mxu0 %v5855
    %6056 = vmatpush.bf16.msra.mxu0 %v5855
    %6057 = vmatpush.bf16.msra.mxu0 %v6048
    %6058 = vmatmul.bf16.gmra.mxu0 %v5848
    %v6059 = vpop.f32.mrf.mxu0
    %v6060 = vadd.f32 0.0, %v6059
    %v6061 = vpop.f32.mrf.mxu0
    %6062 = vdwg.mxu0
    %6063 = vrot.lane.b32.xlu0 %v3064, 80
    %v6064 = vpop.permute.xlu0 %6063
    %6066 = vmatpush.bf16.msra.mxu0 %v5855
    %6067 = vmatpush.bf16.msra.mxu0 %v5855
    %6068 = vmatpush.bf16.msra.mxu0 %v5855
    %6069 = vmatpush.bf16.msra.mxu0 %v5855
    %6070 = vmatpush.bf16.msra.mxu0 %v5855
    %6071 = vmatpush.bf16.msra.mxu0 %v5855
    %6072 = vmatpush.bf16.msra.mxu0 %v5855
    %6073 = vmatpush.bf16.msra.mxu0 %v6064
    %6074 = vmatmul.bf16.gmra.mxu0 %v5849
    %v6075 = vpop.f32.mrf.mxu0
    %v6076 = vadd.f32 0.0, %v6075
    %v6077 = vpop.f32.mrf.mxu0
    %6078 = vdwg.mxu0
    %6079 = vrot.lane.b32.xlu0 %v3120, 80
    %v6080 = vpop.permute.xlu0 %6079
    %6082 = vmatpush.bf16.msra.mxu0 %v5855
    %6083 = vmatpush.bf16.msra.mxu0 %v5855
    %6084 = vmatpush.bf16.msra.mxu0 %v5855
    %6085 = vmatpush.bf16.msra.mxu0 %v5855
    %6086 = vmatpush.bf16.msra.mxu0 %v5855
    %6087 = vmatpush.bf16.msra.mxu0 %v5855
    %6088 = vmatpush.bf16.msra.mxu0 %v5855
    %6089 = vmatpush.bf16.msra.mxu0 %v6080
    %6090 = vmatmul.bf16.gmra.mxu0 %v5850
    %v6091 = vpop.f32.mrf.mxu0
    %v6092 = vadd.f32 0.0, %v6091
    %v6093 = vpop.f32.mrf.mxu0
    %6094 = vdwg.mxu0
    %6095 = vrot.lane.b32.xlu0 %v3176, 80
    %v6096 = vpop.permute.xlu0 %6095
    %6098 = vmatpush.bf16.msra.mxu0 %v5855
    %6099 = vmatpush.bf16.msra.mxu0 %v5855
    %6100 = vmatpush.bf16.msra.mxu0 %v5855
    %6101 = vmatpush.bf16.msra.mxu0 %v5855
    %6102 = vmatpush.bf16.msra.mxu0 %v5855
    %6103 = vmatpush.bf16.msra.mxu0 %v5855
    %6104 = vmatpush.bf16.msra.mxu0 %v5855
    %6105 = vmatpush.bf16.msra.mxu0 %v6096
    %6106 = vmatmul.bf16.gmra.mxu0 %v5851
    %v6107 = vpop.f32.mrf.mxu0
    %v6108 = vadd.f32 0.0, %v6107
    %v6109 = vpop.f32.mrf.mxu0
    %6110 = vdwg.mxu0
    %6111 = vrot.lane.b32.xlu0 %v3905, 104
    %v6112 = vpop.permute.xlu0 %6111
    %6113 = vrot.lane.b32.xlu0 %v2277, 104
    %v6114 = vpop.permute.xlu0 %6113
    %6115 = vrot.lane.b32.xlu0 %v2278, 104
    %v6116 = vpop.permute.xlu0 %6115
    %v6118 = vsel %vm2365, %v6112, 0
    %v6121 = vsel %vm2365, %v6114, 0
    %v6124 = vsel %vm2365, %v6116, 0
    %6126 = vmatpush.bf16.xpose.msra.mxu0 %v6124
    %6127 = vmatpush.bf16.xpose.msra.mxu0 %v6124
    %6128 = vmatpush.bf16.xpose.msra.mxu0 %v6124
    %6129 = vmatpush.bf16.xpose.msra.mxu0 %v6124
    %6130 = vmatpush.bf16.xpose.msra.mxu0 %v6124
    %6131 = vmatpush.bf16.xpose.msra.mxu0 %v6124
    %6132 = vmatpush.bf16.xpose.msra.mxu0 %v6124
    %6133 = vmatpush.bf16.xpose.msra.mxu0 %v6121
    %6134 = vmatmul.bf16.gmra.mxu0 %v6118
    %v6135 = vpop.f32.mrf.mxu0
    %v6136 = vadd.f32 %v2363, %v6135
    %v6137 = vpop.f32.mrf.mxu0
    %6138 = vdwg.mxu0
    %6139 = vrot.lane.b32.xlu0 %v3936, 104
    %v6140 = vpop.permute.xlu0 %6139
    %6141 = vrot.lane.b32.xlu0 %v2392, 104
    %v6142 = vpop.permute.xlu0 %6141
    %v6144 = vsel %vm2365, %v6140, 0
    %v6147 = vsel %vm2365, %v6142, 0
    %6149 = vmatpush.bf16.xpose.msra.mxu0 %v6124
    %6150 = vmatpush.bf16.xpose.msra.mxu0 %v6124
    %6151 = vmatpush.bf16.xpose.msra.mxu0 %v6124
    %6152 = vmatpush.bf16.xpose.msra.mxu0 %v6124
    %6153 = vmatpush.bf16.xpose.msra.mxu0 %v6124
    %6154 = vmatpush.bf16.xpose.msra.mxu0 %v6124
    %6155 = vmatpush.bf16.xpose.msra.mxu0 %v6124
    %6156 = vmatpush.bf16.xpose.msra.mxu0 %v6147
    %6157 = vmatmul.bf16.gmra.mxu0 %v6144
    %v6158 = vpop.f32.mrf.mxu0
    %v6159 = vadd.f32 %v2423, %v6158
    %v6160 = vpop.f32.mrf.mxu0
    %6161 = vdwg.mxu0
    %6162 = vrot.lane.b32.xlu0 %v3962, 104
    %v6163 = vpop.permute.xlu0 %6162
    %6164 = vrot.lane.b32.xlu0 %v2448, 104
    %v6165 = vpop.permute.xlu0 %6164
    %v6167 = vsel %vm2365, %v6163, 0
    %v6170 = vsel %vm2365, %v6165, 0
    %6172 = vmatpush.bf16.xpose.msra.mxu0 %v6124
    %6173 = vmatpush.bf16.xpose.msra.mxu0 %v6124
    %6174 = vmatpush.bf16.xpose.msra.mxu0 %v6124
    %6175 = vmatpush.bf16.xpose.msra.mxu0 %v6124
    %6176 = vmatpush.bf16.xpose.msra.mxu0 %v6124
    %6177 = vmatpush.bf16.xpose.msra.mxu0 %v6124
    %6178 = vmatpush.bf16.xpose.msra.mxu0 %v6124
    %6179 = vmatpush.bf16.xpose.msra.mxu0 %v6170
    %6180 = vmatmul.bf16.gmra.mxu0 %v6167
    %v6181 = vpop.f32.mrf.mxu0
    %v6182 = vadd.f32 %v2479, %v6181
    %v6183 = vpop.f32.mrf.mxu0
    %6184 = vdwg.mxu0
    %6185 = vrot.lane.b32.xlu0 %v3988, 104
    %v6186 = vpop.permute.xlu0 %6185
    %6187 = vrot.lane.b32.xlu0 %v2504, 104
    %v6188 = vpop.permute.xlu0 %6187
    %v6190 = vsel %vm2365, %v6186, 0
    %v6193 = vsel %vm2365, %v6188, 0
    %6195 = vmatpush.bf16.xpose.msra.mxu0 %v6124
    %6196 = vmatpush.bf16.xpose.msra.mxu0 %v6124
    %6197 = vmatpush.bf16.xpose.msra.mxu0 %v6124
    %6198 = vmatpush.bf16.xpose.msra.mxu0 %v6124
    %6199 = vmatpush.bf16.xpose.msra.mxu0 %v6124
    %6200 = vmatpush.bf16.xpose.msra.mxu0 %v6124
    %6201 = vmatpush.bf16.xpose.msra.mxu0 %v6124
    %6202 = vmatpush.bf16.xpose.msra.mxu0 %v6193
    %6203 = vmatmul.bf16.gmra.mxu0 %v6190
    %v6204 = vpop.f32.mrf.mxu0
    %v6205 = vadd.f32 %v2535, %v6204
    %v6206 = vpop.f32.mrf.mxu0
    %6207 = vdwg.mxu0
    %6208 = vrot.lane.b32.xlu0 %v4014, 104
    %v6209 = vpop.permute.xlu0 %6208
    %6210 = vrot.lane.b32.xlu0 %v2560, 104
    %v6211 = vpop.permute.xlu0 %6210
    %v6213 = vsel %vm2365, %v6209, 0
    %v6216 = vsel %vm2365, %v6211, 0
    %6218 = vmatpush.bf16.xpose.msra.mxu0 %v6124
    %6219 = vmatpush.bf16.xpose.msra.mxu0 %v6124
    %6220 = vmatpush.bf16.xpose.msra.mxu0 %v6124
    %6221 = vmatpush.bf16.xpose.msra.mxu0 %v6124
    %6222 = vmatpush.bf16.xpose.msra.mxu0 %v6124
    %6223 = vmatpush.bf16.xpose.msra.mxu0 %v6124
    %6224 = vmatpush.bf16.xpose.msra.mxu0 %v6124
    %6225 = vmatpush.bf16.xpose.msra.mxu0 %v6216
    %6226 = vmatmul.bf16.gmra.mxu0 %v6213
    %v6227 = vpop.f32.mrf.mxu0
    %v6228 = vadd.f32 %v2591, %v6227
    %v6229 = vpop.f32.mrf.mxu0
    %6230 = vdwg.mxu0
    %6231 = vrot.lane.b32.xlu0 %v4040, 104
    %v6232 = vpop.permute.xlu0 %6231
    %6233 = vrot.lane.b32.xlu0 %v2616, 104
    %v6234 = vpop.permute.xlu0 %6233
    %v6236 = vsel %vm2365, %v6232, 0
    %v6239 = vsel %vm2365, %v6234, 0
    %6241 = vmatpush.bf16.xpose.msra.mxu0 %v6124
    %6242 = vmatpush.bf16.xpose.msra.mxu0 %v6124
    %6243 = vmatpush.bf16.xpose.msra.mxu0 %v6124
    %6244 = vmatpush.bf16.xpose.msra.mxu0 %v6124
    %6245 = vmatpush.bf16.xpose.msra.mxu0 %v6124
    %6246 = vmatpush.bf16.xpose.msra.mxu0 %v6124
    %6247 = vmatpush.bf16.xpose.msra.mxu0 %v6124
    %6248 = vmatpush.bf16.xpose.msra.mxu0 %v6239
    %6249 = vmatmul.bf16.gmra.mxu0 %v6236
    %v6250 = vpop.f32.mrf.mxu0
    %v6251 = vadd.f32 %v2647, %v6250
    %v6252 = vpop.f32.mrf.mxu0
    %6253 = vdwg.mxu0
    %6254 = vrot.lane.b32.xlu0 %v4066, 104
    %v6255 = vpop.permute.xlu0 %6254
    %6256 = vrot.lane.b32.xlu0 %v2672, 104
    %v6257 = vpop.permute.xlu0 %6256
    %v6259 = vsel %vm2365, %v6255, 0
    %v6262 = vsel %vm2365, %v6257, 0
    %6264 = vmatpush.bf16.xpose.msra.mxu0 %v6124
    %6265 = vmatpush.bf16.xpose.msra.mxu0 %v6124
    %6266 = vmatpush.bf16.xpose.msra.mxu0 %v6124
    %6267 = vmatpush.bf16.xpose.msra.mxu0 %v6124
    %6268 = vmatpush.bf16.xpose.msra.mxu0 %v6124
    %6269 = vmatpush.bf16.xpose.msra.mxu0 %v6124
    %6270 = vmatpush.bf16.xpose.msra.mxu0 %v6124
    %6271 = vmatpush.bf16.xpose.msra.mxu0 %v6262
    %6272 = vmatmul.bf16.gmra.mxu0 %v6259
    %v6273 = vpop.f32.mrf.mxu0
    %v6274 = vadd.f32 %v2703, %v6273
    %v6275 = vpop.f32.mrf.mxu0
    %6276 = vdwg.mxu0
    %6277 = vrot.lane.b32.xlu0 %v4092, 104
    %v6278 = vpop.permute.xlu0 %6277
    %6279 = vrot.lane.b32.xlu0 %v2728, 104
    %v6280 = vpop.permute.xlu0 %6279
    %v6282 = vsel %vm2365, %v6278, 0
    %v6285 = vsel %vm2365, %v6280, 0
    %6287 = vmatpush.bf16.xpose.msra.mxu0 %v6124
    %6288 = vmatpush.bf16.xpose.msra.mxu0 %v6124
    %6289 = vmatpush.bf16.xpose.msra.mxu0 %v6124
    %6290 = vmatpush.bf16.xpose.msra.mxu0 %v6124
    %6291 = vmatpush.bf16.xpose.msra.mxu0 %v6124
    %6292 = vmatpush.bf16.xpose.msra.mxu0 %v6124
    %6293 = vmatpush.bf16.xpose.msra.mxu0 %v6124
    %6294 = vmatpush.bf16.xpose.msra.mxu0 %v6285
    %6295 = vmatmul.bf16.gmra.mxu0 %v6282
    %v6296 = vpop.f32.mrf.mxu0
    %v6297 = vadd.f32 %v2759, %v6296
    %v6298 = vpop.f32.mrf.mxu0
    %6299 = vdwg.mxu0
    %6300 = vrot.lane.b32.xlu0 %v4118, 104
    %v6301 = vpop.permute.xlu0 %6300
    %6302 = vrot.lane.b32.xlu0 %v2784, 104
    %v6303 = vpop.permute.xlu0 %6302
    %v6305 = vsel %vm2365, %v6301, 0
    %v6308 = vsel %vm2365, %v6303, 0
    %6310 = vmatpush.bf16.xpose.msra.mxu0 %v6124
    %6311 = vmatpush.bf16.xpose.msra.mxu0 %v6124
    %6312 = vmatpush.bf16.xpose.msra.mxu0 %v6124
    %6313 = vmatpush.bf16.xpose.msra.mxu0 %v6124
    %6314 = vmatpush.bf16.xpose.msra.mxu0 %v6124
    %6315 = vmatpush.bf16.xpose.msra.mxu0 %v6124
    %6316 = vmatpush.bf16.xpose.msra.mxu0 %v6124
    %6317 = vmatpush.bf16.xpose.msra.mxu0 %v6308
    %6318 = vmatmul.bf16.gmra.mxu0 %v6305
    %v6319 = vpop.f32.mrf.mxu0
    %v6320 = vadd.f32 %v2815, %v6319
    %v6321 = vpop.f32.mrf.mxu0
    %6322 = vdwg.mxu0
    %6323 = vrot.lane.b32.xlu0 %v4144, 104
    %v6324 = vpop.permute.xlu0 %6323
    %6325 = vrot.lane.b32.xlu0 %v2840, 104
    %v6326 = vpop.permute.xlu0 %6325
    %v6328 = vsel %vm2365, %v6324, 0
    %v6331 = vsel %vm2365, %v6326, 0
    %6333 = vmatpush.bf16.xpose.msra.mxu0 %v6124
    %6334 = vmatpush.bf16.xpose.msra.mxu0 %v6124
    %6335 = vmatpush.bf16.xpose.msra.mxu0 %v6124
    %6336 = vmatpush.bf16.xpose.msra.mxu0 %v6124
    %6337 = vmatpush.bf16.xpose.msra.mxu0 %v6124
    %6338 = vmatpush.bf16.xpose.msra.mxu0 %v6124
    %6339 = vmatpush.bf16.xpose.msra.mxu0 %v6124
    %6340 = vmatpush.bf16.xpose.msra.mxu0 %v6331
    %6341 = vmatmul.bf16.gmra.mxu0 %v6328
    %v6342 = vpop.f32.mrf.mxu0
    %v6343 = vadd.f32 %v2871, %v6342
    %v6344 = vpop.f32.mrf.mxu0
    %6345 = vdwg.mxu0
    %6346 = vrot.lane.b32.xlu0 %v4170, 104
    %v6347 = vpop.permute.xlu0 %6346
    %6348 = vrot.lane.b32.xlu0 %v2896, 104
    %v6349 = vpop.permute.xlu0 %6348
    %v6351 = vsel %vm2365, %v6347, 0
    %v6354 = vsel %vm2365, %v6349, 0
    %6356 = vmatpush.bf16.xpose.msra.mxu0 %v6124
    %6357 = vmatpush.bf16.xpose.msra.mxu0 %v6124
    %6358 = vmatpush.bf16.xpose.msra.mxu0 %v6124
    %6359 = vmatpush.bf16.xpose.msra.mxu0 %v6124
    %6360 = vmatpush.bf16.xpose.msra.mxu0 %v6124
    %6361 = vmatpush.bf16.xpose.msra.mxu0 %v6124
    %6362 = vmatpush.bf16.xpose.msra.mxu0 %v6124
    %6363 = vmatpush.bf16.xpose.msra.mxu0 %v6354
    %6364 = vmatmul.bf16.gmra.mxu0 %v6351
    %v6365 = vpop.f32.mrf.mxu0
    %v6366 = vadd.f32 %v2927, %v6365
    %v6367 = vpop.f32.mrf.mxu0
    %6368 = vdwg.mxu0
    %6369 = vrot.lane.b32.xlu0 %v4196, 104
    %v6370 = vpop.permute.xlu0 %6369
    %6371 = vrot.lane.b32.xlu0 %v2952, 104
    %v6372 = vpop.permute.xlu0 %6371
    %v6374 = vsel %vm2365, %v6370, 0
    %v6377 = vsel %vm2365, %v6372, 0
    %6379 = vmatpush.bf16.xpose.msra.mxu0 %v6124
    %6380 = vmatpush.bf16.xpose.msra.mxu0 %v6124
    %6381 = vmatpush.bf16.xpose.msra.mxu0 %v6124
    %6382 = vmatpush.bf16.xpose.msra.mxu0 %v6124
    %6383 = vmatpush.bf16.xpose.msra.mxu0 %v6124
    %6384 = vmatpush.bf16.xpose.msra.mxu0 %v6124
    %6385 = vmatpush.bf16.xpose.msra.mxu0 %v6124
    %6386 = vmatpush.bf16.xpose.msra.mxu0 %v6377
    %6387 = vmatmul.bf16.gmra.mxu0 %v6374
    %v6388 = vpop.f32.mrf.mxu0
    %v6389 = vadd.f32 %v2983, %v6388
    %v6390 = vpop.f32.mrf.mxu0
    %6391 = vdwg.mxu0
    %6392 = vrot.lane.b32.xlu0 %v4222, 104
    %v6393 = vpop.permute.xlu0 %6392
    %6394 = vrot.lane.b32.xlu0 %v3008, 104
    %v6395 = vpop.permute.xlu0 %6394
    %v6397 = vsel %vm2365, %v6393, 0
    %v6400 = vsel %vm2365, %v6395, 0
    %6402 = vmatpush.bf16.xpose.msra.mxu0 %v6124
    %6403 = vmatpush.bf16.xpose.msra.mxu0 %v6124
    %6404 = vmatpush.bf16.xpose.msra.mxu0 %v6124
    %6405 = vmatpush.bf16.xpose.msra.mxu0 %v6124
    %6406 = vmatpush.bf16.xpose.msra.mxu0 %v6124
    %6407 = vmatpush.bf16.xpose.msra.mxu0 %v6124
    %6408 = vmatpush.bf16.xpose.msra.mxu0 %v6124
    %6409 = vmatpush.bf16.xpose.msra.mxu0 %v6400
    %6410 = vmatmul.bf16.gmra.mxu0 %v6397
    %v6411 = vpop.f32.mrf.mxu0
    %v6412 = vadd.f32 %v3039, %v6411
    %v6413 = vpop.f32.mrf.mxu0
    %6414 = vdwg.mxu0
    %6415 = vrot.lane.b32.xlu0 %v4248, 104
    %v6416 = vpop.permute.xlu0 %6415
    %6417 = vrot.lane.b32.xlu0 %v3064, 104
    %v6418 = vpop.permute.xlu0 %6417
    %v6420 = vsel %vm2365, %v6416, 0
    %v6423 = vsel %vm2365, %v6418, 0
    %6425 = vmatpush.bf16.xpose.msra.mxu0 %v6124
    %6426 = vmatpush.bf16.xpose.msra.mxu0 %v6124
    %6427 = vmatpush.bf16.xpose.msra.mxu0 %v6124
    %6428 = vmatpush.bf16.xpose.msra.mxu0 %v6124
    %6429 = vmatpush.bf16.xpose.msra.mxu0 %v6124
    %6430 = vmatpush.bf16.xpose.msra.mxu0 %v6124
    %6431 = vmatpush.bf16.xpose.msra.mxu0 %v6124
    %6432 = vmatpush.bf16.xpose.msra.mxu0 %v6423
    %6433 = vmatmul.bf16.gmra.mxu0 %v6420
    %v6434 = vpop.f32.mrf.mxu0
    %v6435 = vadd.f32 %v3095, %v6434
    %v6436 = vpop.f32.mrf.mxu0
    %6437 = vdwg.mxu0
    %6438 = vrot.lane.b32.xlu0 %v4274, 104
    %v6439 = vpop.permute.xlu0 %6438
    %6440 = vrot.lane.b32.xlu0 %v3120, 104
    %v6441 = vpop.permute.xlu0 %6440
    %v6443 = vsel %vm2365, %v6439, 0
    %v6446 = vsel %vm2365, %v6441, 0
    %6448 = vmatpush.bf16.xpose.msra.mxu0 %v6124
    %6449 = vmatpush.bf16.xpose.msra.mxu0 %v6124
    %6450 = vmatpush.bf16.xpose.msra.mxu0 %v6124
    %6451 = vmatpush.bf16.xpose.msra.mxu0 %v6124
    %6452 = vmatpush.bf16.xpose.msra.mxu0 %v6124
    %6453 = vmatpush.bf16.xpose.msra.mxu0 %v6124
    %6454 = vmatpush.bf16.xpose.msra.mxu0 %v6124
    %6455 = vmatpush.bf16.xpose.msra.mxu0 %v6446
    %6456 = vmatmul.bf16.gmra.mxu0 %v6443
    %v6457 = vpop.f32.mrf.mxu0
    %v6458 = vadd.f32 %v3151, %v6457
    %v6459 = vpop.f32.mrf.mxu0
    %6460 = vdwg.mxu0
    %6461 = vrot.lane.b32.xlu0 %v4300, 104
    %v6462 = vpop.permute.xlu0 %6461
    %6463 = vrot.lane.b32.xlu0 %v3176, 104
    %v6464 = vpop.permute.xlu0 %6463
    %v6466 = vsel %vm2365, %v6462, 0
    %v6469 = vsel %vm2365, %v6464, 0
    %6471 = vmatpush.bf16.xpose.msra.mxu0 %v6124
    %6472 = vmatpush.bf16.xpose.msra.mxu0 %v6124
    %6473 = vmatpush.bf16.xpose.msra.mxu0 %v6124
    %6474 = vmatpush.bf16.xpose.msra.mxu0 %v6124
    %6475 = vmatpush.bf16.xpose.msra.mxu0 %v6124
    %6476 = vmatpush.bf16.xpose.msra.mxu0 %v6124
    %6477 = vmatpush.bf16.xpose.msra.mxu0 %v6124
    %6478 = vmatpush.bf16.xpose.msra.mxu0 %v6469
    %6479 = vmatmul.bf16.gmra.mxu0 %v6466
    %v6480 = vpop.f32.mrf.mxu0
    %v6481 = vadd.f32 %v3207, %v6480
    %v6482 = vpop.f32.mrf.mxu0
    %6483 = vdwg.mxu0
    %6484 = vmax.xlane.f32.xlu0 %v6136
    %v6485 = vpop.xlane.xlu0 %6484
    %6486 = vmax.xlane.f32.xlu0 %v6159
    %v6487 = vpop.xlane.xlu0 %6486
    %6488 = vmax.xlane.f32.xlu0 %v6182
    %v6489 = vpop.xlane.xlu0 %6488
    %6490 = vmax.xlane.f32.xlu0 %v6205
    %v6491 = vpop.xlane.xlu0 %6490
    %6492 = vmax.xlane.f32.xlu0 %v6228
    %v6493 = vpop.xlane.xlu0 %6492
    %6494 = vmax.xlane.f32.xlu0 %v6251
    %v6495 = vpop.xlane.xlu0 %6494
    %6496 = vmax.xlane.f32.xlu0 %v6274
    %v6497 = vpop.xlane.xlu0 %6496
    %6498 = vmax.xlane.f32.xlu0 %v6297
    %v6499 = vpop.xlane.xlu0 %6498
    %6500 = vmax.xlane.f32.xlu0 %v6320
    %v6501 = vpop.xlane.xlu0 %6500
    %6502 = vmax.xlane.f32.xlu0 %v6343
    %v6503 = vpop.xlane.xlu0 %6502
    %6504 = vmax.xlane.f32.xlu0 %v6366
    %v6505 = vpop.xlane.xlu0 %6504
    %6506 = vmax.xlane.f32.xlu0 %v6389
    %v6507 = vpop.xlane.xlu0 %6506
    %6508 = vmax.xlane.f32.xlu0 %v6412
    %v6509 = vpop.xlane.xlu0 %6508
    %6510 = vmax.xlane.f32.xlu0 %v6435
    %v6511 = vpop.xlane.xlu0 %6510
    %6512 = vmax.xlane.f32.xlu0 %v6458
    %v6513 = vpop.xlane.xlu0 %6512
    %6514 = vmax.xlane.f32.xlu0 %v6481
    %v6515 = vpop.xlane.xlu0 %6514
    %v6516 = vsub.f32 %v6136, %v6485
    %v6517 = vsub.f32 %v6159, %v6487
    %v6518 = vsub.f32 %v6182, %v6489
    %v6519 = vsub.f32 %v6205, %v6491
    %v6520 = vsub.f32 %v6228, %v6493
    %v6521 = vsub.f32 %v6251, %v6495
    %v6522 = vsub.f32 %v6274, %v6497
    %v6523 = vsub.f32 %v6297, %v6499
    %v6524 = vsub.f32 %v6320, %v6501
    %v6525 = vsub.f32 %v6343, %v6503
    %v6526 = vsub.f32 %v6366, %v6505
    %v6527 = vsub.f32 %v6389, %v6507
    %v6528 = vsub.f32 %v6412, %v6509
    %v6529 = vsub.f32 %v6435, %v6511
    %v6530 = vsub.f32 %v6458, %v6513
    %v6531 = vsub.f32 %v6481, %v6515
    %v6532 = vmul.f32 %v6516, 1.442695
    %v6533 = vpow.pop %v6532
    %v6534 = vmul.f32 %v6517, 1.442695
    %v6535 = vpow.pop %v6534
    %v6536 = vmul.f32 %v6518, 1.442695
    %v6537 = vpow.pop %v6536
    %v6538 = vmul.f32 %v6519, 1.442695
    %v6539 = vpow.pop %v6538
    %v6540 = vmul.f32 %v6520, 1.442695
    %v6541 = vpow.pop %v6540
    %v6542 = vmul.f32 %v6521, 1.442695
    %v6543 = vpow.pop %v6542
    %v6544 = vmul.f32 %v6522, 1.442695
    %v6545 = vpow.pop %v6544
    %v6546 = vmul.f32 %v6523, 1.442695
    %v6547 = vpow.pop %v6546
    %v6548 = vmul.f32 %v6524, 1.442695
    %v6549 = vpow.pop %v6548
    %v6550 = vmul.f32 %v6525, 1.442695
    %v6551 = vpow.pop %v6550
    %v6552 = vmul.f32 %v6526, 1.442695
    %v6553 = vpow.pop %v6552
    %v6554 = vmul.f32 %v6527, 1.442695
    %v6555 = vpow.pop %v6554
    %v6556 = vmul.f32 %v6528, 1.442695
    %v6557 = vpow.pop %v6556
    %v6558 = vmul.f32 %v6529, 1.442695
    %v6559 = vpow.pop %v6558
    %v6560 = vmul.f32 %v6530, 1.442695
    %v6561 = vpow.pop %v6560
    %v6562 = vmul.f32 %v6531, 1.442695
    %v6563 = vpow.pop %v6562
    %6564 = vadd.xlane.f32.xlu0 %v6533
    %v6565 = vpop.xlane.xlu0 %6564
    %6566 = vadd.xlane.f32.xlu0 %v6535
    %v6567 = vpop.xlane.xlu0 %6566
    %6568 = vadd.xlane.f32.xlu0 %v6537
    %v6569 = vpop.xlane.xlu0 %6568
    %6570 = vadd.xlane.f32.xlu0 %v6539
    %v6571 = vpop.xlane.xlu0 %6570
    %6572 = vadd.xlane.f32.xlu0 %v6541
    %v6573 = vpop.xlane.xlu0 %6572
    %6574 = vadd.xlane.f32.xlu0 %v6543
    %v6575 = vpop.xlane.xlu0 %6574
    %6576 = vadd.xlane.f32.xlu0 %v6545
    %v6577 = vpop.xlane.xlu0 %6576
    %6578 = vadd.xlane.f32.xlu0 %v6547
    %v6579 = vpop.xlane.xlu0 %6578
    %6580 = vadd.xlane.f32.xlu0 %v6549
    %v6581 = vpop.xlane.xlu0 %6580
    %6582 = vadd.xlane.f32.xlu0 %v6551
    %v6583 = vpop.xlane.xlu0 %6582
    %6584 = vadd.xlane.f32.xlu0 %v6553
    %v6585 = vpop.xlane.xlu0 %6584
    %6586 = vadd.xlane.f32.xlu0 %v6555
    %v6587 = vpop.xlane.xlu0 %6586
    %6588 = vadd.xlane.f32.xlu0 %v6557
    %v6589 = vpop.xlane.xlu0 %6588
    %6590 = vadd.xlane.f32.xlu0 %v6559
    %v6591 = vpop.xlane.xlu0 %6590
    %6592 = vadd.xlane.f32.xlu0 %v6561
    %v6593 = vpop.xlane.xlu0 %6592
    %6594 = vadd.xlane.f32.xlu0 %v6563
    %v6595 = vpop.xlane.xlu0 %6594
    %v6596 = vrcp.pop %v6565
    %v6597 = vmul.f32 %v6565, %v6596
    %v6598 = vsub.f32 1.0, %v6597
    %v6599 = vmul.f32 %v6596, %v6598
    %v6600 = vadd.f32 %v6596, %v6599
    %vm6601 = vweird.f32 %v6565
    %vm6602 = vweird.f32 %v6596
    %vm6603 = vmor %vm6601, %vm6602
    %v6604 = vsel %vm6603, %v6596, %v6600
    %v6605 = vand.u32 2147483647, %v6565
    %vm6606 = vcmp.eq.f32.partialorder %v6605, 8.507059e+37
    %v6607 = vand.u32 %v6565, 2147483648
    %v6608 = vor.u32 1.1754944e-38, %v6607
    %v6609 = vsel %vm6606, %v6608, %v6604
    %v6610 = vmul.f32 1.0, %v6609
    %v6611 = vrcp.pop %v6567
    %v6612 = vmul.f32 %v6567, %v6611
    %v6613 = vsub.f32 1.0, %v6612
    %v6614 = vmul.f32 %v6611, %v6613
    %v6615 = vadd.f32 %v6611, %v6614
    %vm6616 = vweird.f32 %v6567
    %vm6617 = vweird.f32 %v6611
    %vm6618 = vmor %vm6616, %vm6617
    %v6619 = vsel %vm6618, %v6611, %v6615
    %v6620 = vand.u32 2147483647, %v6567
    %vm6621 = vcmp.eq.f32.partialorder %v6620, 8.507059e+37
    %v6622 = vand.u32 %v6567, 2147483648
    %v6623 = vor.u32 1.1754944e-38, %v6622
    %v6624 = vsel %vm6621, %v6623, %v6619
    %v6625 = vmul.f32 1.0, %v6624
    %v6626 = vrcp.pop %v6569
    %v6627 = vmul.f32 %v6569, %v6626
    %v6628 = vsub.f32 1.0, %v6627
    %v6629 = vmul.f32 %v6626, %v6628
    %v6630 = vadd.f32 %v6626, %v6629
    %vm6631 = vweird.f32 %v6569
    %vm6632 = vweird.f32 %v6626
    %vm6633 = vmor %vm6631, %vm6632
    %v6634 = vsel %vm6633, %v6626, %v6630
    %v6635 = vand.u32 2147483647, %v6569
    %vm6636 = vcmp.eq.f32.partialorder %v6635, 8.507059e+37
    %v6637 = vand.u32 %v6569, 2147483648
    %v6638 = vor.u32 1.1754944e-38, %v6637
    %v6639 = vsel %vm6636, %v6638, %v6634
    %v6640 = vmul.f32 1.0, %v6639
    %v6641 = vrcp.pop %v6571
    %v6642 = vmul.f32 %v6571, %v6641
    %v6643 = vsub.f32 1.0, %v6642
    %v6644 = vmul.f32 %v6641, %v6643
    %v6645 = vadd.f32 %v6641, %v6644
    %vm6646 = vweird.f32 %v6571
    %vm6647 = vweird.f32 %v6641
    %vm6648 = vmor %vm6646, %vm6647
    %v6649 = vsel %vm6648, %v6641, %v6645
    %v6650 = vand.u32 2147483647, %v6571
    %vm6651 = vcmp.eq.f32.partialorder %v6650, 8.507059e+37
    %v6652 = vand.u32 %v6571, 2147483648
    %v6653 = vor.u32 1.1754944e-38, %v6652
    %v6654 = vsel %vm6651, %v6653, %v6649
    %v6655 = vmul.f32 1.0, %v6654
    %v6656 = vrcp.pop %v6573
    %v6657 = vmul.f32 %v6573, %v6656
    %v6658 = vsub.f32 1.0, %v6657
    %v6659 = vmul.f32 %v6656, %v6658
    %v6660 = vadd.f32 %v6656, %v6659
    %vm6661 = vweird.f32 %v6573
    %vm6662 = vweird.f32 %v6656
    %vm6663 = vmor %vm6661, %vm6662
    %v6664 = vsel %vm6663, %v6656, %v6660
    %v6665 = vand.u32 2147483647, %v6573
    %vm6666 = vcmp.eq.f32.partialorder %v6665, 8.507059e+37
    %v6667 = vand.u32 %v6573, 2147483648
    %v6668 = vor.u32 1.1754944e-38, %v6667
    %v6669 = vsel %vm6666, %v6668, %v6664
    %v6670 = vmul.f32 1.0, %v6669
    %v6671 = vrcp.pop %v6575
    %v6672 = vmul.f32 %v6575, %v6671
    %v6673 = vsub.f32 1.0, %v6672
    %v6674 = vmul.f32 %v6671, %v6673
    %v6675 = vadd.f32 %v6671, %v6674
    %vm6676 = vweird.f32 %v6575
    %vm6677 = vweird.f32 %v6671
    %vm6678 = vmor %vm6676, %vm6677
    %v6679 = vsel %vm6678, %v6671, %v6675
    %v6680 = vand.u32 2147483647, %v6575
    %vm6681 = vcmp.eq.f32.partialorder %v6680, 8.507059e+37
    %v6682 = vand.u32 %v6575, 2147483648
    %v6683 = vor.u32 1.1754944e-38, %v6682
    %v6684 = vsel %vm6681, %v6683, %v6679
    %v6685 = vmul.f32 1.0, %v6684
    %v6686 = vrcp.pop %v6577
    %v6687 = vmul.f32 %v6577, %v6686
    %v6688 = vsub.f32 1.0, %v6687
    %v6689 = vmul.f32 %v6686, %v6688
    %v6690 = vadd.f32 %v6686, %v6689
    %vm6691 = vweird.f32 %v6577
    %vm6692 = vweird.f32 %v6686
    %vm6693 = vmor %vm6691, %vm6692
    %v6694 = vsel %vm6693, %v6686, %v6690
    %v6695 = vand.u32 2147483647, %v6577
    %vm6696 = vcmp.eq.f32.partialorder %v6695, 8.507059e+37
    %v6697 = vand.u32 %v6577, 2147483648
    %v6698 = vor.u32 1.1754944e-38, %v6697
    %v6699 = vsel %vm6696, %v6698, %v6694
    %v6700 = vmul.f32 1.0, %v6699
    %v6701 = vrcp.pop %v6579
    %v6702 = vmul.f32 %v6579, %v6701
    %v6703 = vsub.f32 1.0, %v6702
    %v6704 = vmul.f32 %v6701, %v6703
    %v6705 = vadd.f32 %v6701, %v6704
    %vm6706 = vweird.f32 %v6579
    %vm6707 = vweird.f32 %v6701
    %vm6708 = vmor %vm6706, %vm6707
    %v6709 = vsel %vm6708, %v6701, %v6705
    %v6710 = vand.u32 2147483647, %v6579
    %vm6711 = vcmp.eq.f32.partialorder %v6710, 8.507059e+37
    %v6712 = vand.u32 %v6579, 2147483648
    %v6713 = vor.u32 1.1754944e-38, %v6712
    %v6714 = vsel %vm6711, %v6713, %v6709
    %v6715 = vmul.f32 1.0, %v6714
    %v6716 = vrcp.pop %v6581
    %v6717 = vmul.f32 %v6581, %v6716
    %v6718 = vsub.f32 1.0, %v6717
    %v6719 = vmul.f32 %v6716, %v6718
    %v6720 = vadd.f32 %v6716, %v6719
    %vm6721 = vweird.f32 %v6581
    %vm6722 = vweird.f32 %v6716
    %vm6723 = vmor %vm6721, %vm6722
    %v6724 = vsel %vm6723, %v6716, %v6720
    %v6725 = vand.u32 2147483647, %v6581
    %vm6726 = vcmp.eq.f32.partialorder %v6725, 8.507059e+37
    %v6727 = vand.u32 %v6581, 2147483648
    %v6728 = vor.u32 1.1754944e-38, %v6727
    %v6729 = vsel %vm6726, %v6728, %v6724
    %v6730 = vmul.f32 1.0, %v6729
    %v6731 = vrcp.pop %v6583
    %v6732 = vmul.f32 %v6583, %v6731
    %v6733 = vsub.f32 1.0, %v6732
    %v6734 = vmul.f32 %v6731, %v6733
    %v6735 = vadd.f32 %v6731, %v6734
    %vm6736 = vweird.f32 %v6583
    %vm6737 = vweird.f32 %v6731
    %vm6738 = vmor %vm6736, %vm6737
    %v6739 = vsel %vm6738, %v6731, %v6735
    %v6740 = vand.u32 2147483647, %v6583
    %vm6741 = vcmp.eq.f32.partialorder %v6740, 8.507059e+37
    %v6742 = vand.u32 %v6583, 2147483648
    %v6743 = vor.u32 1.1754944e-38, %v6742
    %v6744 = vsel %vm6741, %v6743, %v6739
    %v6745 = vmul.f32 1.0, %v6744
    %v6746 = vrcp.pop %v6585
    %v6747 = vmul.f32 %v6585, %v6746
    %v6748 = vsub.f32 1.0, %v6747
    %v6749 = vmul.f32 %v6746, %v6748
    %v6750 = vadd.f32 %v6746, %v6749
    %vm6751 = vweird.f32 %v6585
    %vm6752 = vweird.f32 %v6746
    %vm6753 = vmor %vm6751, %vm6752
    %v6754 = vsel %vm6753, %v6746, %v6750
    %v6755 = vand.u32 2147483647, %v6585
    %vm6756 = vcmp.eq.f32.partialorder %v6755, 8.507059e+37
    %v6757 = vand.u32 %v6585, 2147483648
    %v6758 = vor.u32 1.1754944e-38, %v6757
    %v6759 = vsel %vm6756, %v6758, %v6754
    %v6760 = vmul.f32 1.0, %v6759
    %v6761 = vrcp.pop %v6587
    %v6762 = vmul.f32 %v6587, %v6761
    %v6763 = vsub.f32 1.0, %v6762
    %v6764 = vmul.f32 %v6761, %v6763
    %v6765 = vadd.f32 %v6761, %v6764
    %vm6766 = vweird.f32 %v6587
    %vm6767 = vweird.f32 %v6761
    %vm6768 = vmor %vm6766, %vm6767
    %v6769 = vsel %vm6768, %v6761, %v6765
    %v6770 = vand.u32 2147483647, %v6587
    %vm6771 = vcmp.eq.f32.partialorder %v6770, 8.507059e+37
    %v6772 = vand.u32 %v6587, 2147483648
    %v6773 = vor.u32 1.1754944e-38, %v6772
    %v6774 = vsel %vm6771, %v6773, %v6769
    %v6775 = vmul.f32 1.0, %v6774
    %v6776 = vrcp.pop %v6589
    %v6777 = vmul.f32 %v6589, %v6776
    %v6778 = vsub.f32 1.0, %v6777
    %v6779 = vmul.f32 %v6776, %v6778
    %v6780 = vadd.f32 %v6776, %v6779
    %vm6781 = vweird.f32 %v6589
    %vm6782 = vweird.f32 %v6776
    %vm6783 = vmor %vm6781, %vm6782
    %v6784 = vsel %vm6783, %v6776, %v6780
    %v6785 = vand.u32 2147483647, %v6589
    %vm6786 = vcmp.eq.f32.partialorder %v6785, 8.507059e+37
    %v6787 = vand.u32 %v6589, 2147483648
    %v6788 = vor.u32 1.1754944e-38, %v6787
    %v6789 = vsel %vm6786, %v6788, %v6784
    %v6790 = vmul.f32 1.0, %v6789
    %v6791 = vrcp.pop %v6591
    %v6792 = vmul.f32 %v6591, %v6791
    %v6793 = vsub.f32 1.0, %v6792
    %v6794 = vmul.f32 %v6791, %v6793
    %v6795 = vadd.f32 %v6791, %v6794
    %vm6796 = vweird.f32 %v6591
    %vm6797 = vweird.f32 %v6791
    %vm6798 = vmor %vm6796, %vm6797
    %v6799 = vsel %vm6798, %v6791, %v6795
    %v6800 = vand.u32 2147483647, %v6591
    %vm6801 = vcmp.eq.f32.partialorder %v6800, 8.507059e+37
    %v6802 = vand.u32 %v6591, 2147483648
    %v6803 = vor.u32 1.1754944e-38, %v6802
    %v6804 = vsel %vm6801, %v6803, %v6799
    %v6805 = vmul.f32 1.0, %v6804
    %v6806 = vrcp.pop %v6593
    %v6807 = vmul.f32 %v6593, %v6806
    %v6808 = vsub.f32 1.0, %v6807
    %v6809 = vmul.f32 %v6806, %v6808
    %v6810 = vadd.f32 %v6806, %v6809
    %vm6811 = vweird.f32 %v6593
    %vm6812 = vweird.f32 %v6806
    %vm6813 = vmor %vm6811, %vm6812
    %v6814 = vsel %vm6813, %v6806, %v6810
    %v6815 = vand.u32 2147483647, %v6593
    %vm6816 = vcmp.eq.f32.partialorder %v6815, 8.507059e+37
    %v6817 = vand.u32 %v6593, 2147483648
    %v6818 = vor.u32 1.1754944e-38, %v6817
    %v6819 = vsel %vm6816, %v6818, %v6814
    %v6820 = vmul.f32 1.0, %v6819
    %v6821 = vrcp.pop %v6595
    %v6822 = vmul.f32 %v6595, %v6821
    %v6823 = vsub.f32 1.0, %v6822
    %v6824 = vmul.f32 %v6821, %v6823
    %v6825 = vadd.f32 %v6821, %v6824
    %vm6826 = vweird.f32 %v6595
    %vm6827 = vweird.f32 %v6821
    %vm6828 = vmor %vm6826, %vm6827
    %v6829 = vsel %vm6828, %v6821, %v6825
    %v6830 = vand.u32 2147483647, %v6595
    %vm6831 = vcmp.eq.f32.partialorder %v6830, 8.507059e+37
    %v6832 = vand.u32 %v6595, 2147483648
    %v6833 = vor.u32 1.1754944e-38, %v6832
    %v6834 = vsel %vm6831, %v6833, %v6829
    %v6835 = vmul.f32 1.0, %v6834
    %v6836 = vmul.f32 %v6533, %v6610
    %v6837 = vmul.f32 %v6535, %v6625
    %v6838 = vmul.f32 %v6537, %v6640
    %v6839 = vmul.f32 %v6539, %v6655
    %v6840 = vmul.f32 %v6541, %v6670
    %v6841 = vmul.f32 %v6543, %v6685
    %v6842 = vmul.f32 %v6545, %v6700
    %v6843 = vmul.f32 %v6547, %v6715
    %v6844 = vmul.f32 %v6549, %v6730
    %v6845 = vmul.f32 %v6551, %v6745
    %v6846 = vmul.f32 %v6553, %v6760
    %v6847 = vmul.f32 %v6555, %v6775
    %v6848 = vmul.f32 %v6557, %v6790
    %v6849 = vmul.f32 %v6559, %v6805
    %v6850 = vmul.f32 %v6561, %v6820
    %v6851 = vmul.f32 %v6563, %v6835
    %v6852 = vld [vmem:[#allocation14] sm:$0xff]
    %v6853 = vld [vmem:[#allocation14 + $0x8] sm:$0xff]
    %v6854 = vld [vmem:[#allocation14 + $0x10] sm:$0xff]
    %v6855 = vld [vmem:[#allocation14 + $0x18] sm:$0xff]
    %v6856 = vld [vmem:[#allocation14 + $0x20] sm:$0xff]
    %v6857 = vld [vmem:[#allocation14 + $0x28] sm:$0xff]
    %v6858 = vld [vmem:[#allocation14 + $0x30] sm:$0xff]
    %v6859 = vld [vmem:[#allocation14 + $0x38] sm:$0xff]
    %v6860 = vld [vmem:[#allocation14 + $0x40] sm:$0xff]
    %v6861 = vld [vmem:[#allocation14 + $0x48] sm:$0xff]
    %v6862 = vld [vmem:[#allocation14 + $0x50] sm:$0xff]
    %v6863 = vld [vmem:[#allocation14 + $0x58] sm:$0xff]
    %v6864 = vld [vmem:[#allocation14 + $0x60] sm:$0xff]
    %v6865 = vld [vmem:[#allocation14 + $0x68] sm:$0xff]
    %v6866 = vld [vmem:[#allocation14 + $0x70] sm:$0xff]
    %v6867 = vld [vmem:[#allocation14 + $0x78] sm:$0xff]
    %v6868 = vmul.f32 %v6836, 0.25
    %v6869 = vmul.f32 %v6837, 0.25
    %v6870 = vmul.f32 %v6838, 0.25
    %v6871 = vmul.f32 %v6839, 0.25
    %v6872 = vmul.f32 %v6840, 0.25
    %v6873 = vmul.f32 %v6841, 0.25
    %v6874 = vmul.f32 %v6842, 0.25
    %v6875 = vmul.f32 %v6843, 0.25
    %v6876 = vmul.f32 %v6844, 0.25
    %v6877 = vmul.f32 %v6845, 0.25
    %v6878 = vmul.f32 %v6846, 0.25
    %v6879 = vmul.f32 %v6847, 0.25
    %v6880 = vmul.f32 %v6848, 0.25
    %v6881 = vmul.f32 %v6849, 0.25
    %v6882 = vmul.f32 %v6850, 0.25
    %v6883 = vmul.f32 %v6851, 0.25
    %v6884 = vadd.f32 %v6852, %v6868
    %v6885 = vadd.f32 %v6853, %v6869
    %v6886 = vadd.f32 %v6854, %v6870
    %v6887 = vadd.f32 %v6855, %v6871
    %v6888 = vadd.f32 %v6856, %v6872
    %v6889 = vadd.f32 %v6857, %v6873
    %v6890 = vadd.f32 %v6858, %v6874
    %v6891 = vadd.f32 %v6859, %v6875
    %v6892 = vadd.f32 %v6860, %v6876
    %v6893 = vadd.f32 %v6861, %v6877
    %v6894 = vadd.f32 %v6862, %v6878
    %v6895 = vadd.f32 %v6863, %v6879
    %v6896 = vadd.f32 %v6864, %v6880
    %v6897 = vadd.f32 %v6865, %v6881
    %v6898 = vadd.f32 %v6866, %v6882
    %v6899 = vadd.f32 %v6867, %v6883
    %6900 = vst [vmem:[#allocation14] sm:$0xff] %v6884
    %6901 = vst [vmem:[#allocation14 + $0x8] sm:$0xff] %v6885
    %6902 = vst [vmem:[#allocation14 + $0x10] sm:$0xff] %v6886
    %6903 = vst [vmem:[#allocation14 + $0x18] sm:$0xff] %v6887
    %6904 = vst [vmem:[#allocation14 + $0x20] sm:$0xff] %v6888
    %6905 = vst [vmem:[#allocation14 + $0x28] sm:$0xff] %v6889
    %6906 = vst [vmem:[#allocation14 + $0x30] sm:$0xff] %v6890
    %6907 = vst [vmem:[#allocation14 + $0x38] sm:$0xff] %v6891
    %6908 = vst [vmem:[#allocation14 + $0x40] sm:$0xff] %v6892
    %6909 = vst [vmem:[#allocation14 + $0x48] sm:$0xff] %v6893
    %6910 = vst [vmem:[#allocation14 + $0x50] sm:$0xff] %v6894
    %6911 = vst [vmem:[#allocation14 + $0x58] sm:$0xff] %v6895
    %6912 = vst [vmem:[#allocation14 + $0x60] sm:$0xff] %v6896
    %6913 = vst [vmem:[#allocation14 + $0x68] sm:$0xff] %v6897
    %6914 = vst [vmem:[#allocation14 + $0x70] sm:$0xff] %v6898
    %6915 = vst [vmem:[#allocation14 + $0x78] sm:$0xff] %v6899
    %v6916 = vpack.c.bf16 %v6836, %v6836
    %v6917 = vpack.c.bf16 %v6837, %v6837
    %v6918 = vpack.c.bf16 %v6838, %v6838
    %v6919 = vpack.c.bf16 %v6839, %v6839
    %v6920 = vpack.c.bf16 %v6840, %v6840
    %v6921 = vpack.c.bf16 %v6841, %v6841
    %v6922 = vpack.c.bf16 %v6842, %v6842
    %v6923 = vpack.c.bf16 %v6843, %v6843
    %v6924 = vpack.c.bf16 %v6844, %v6844
    %v6925 = vpack.c.bf16 %v6845, %v6845
    %v6926 = vpack.c.bf16 %v6846, %v6846
    %v6927 = vpack.c.bf16 %v6847, %v6847
    %v6928 = vpack.c.bf16 %v6848, %v6848
    %v6929 = vpack.c.bf16 %v6849, %v6849
    %v6930 = vpack.c.bf16 %v6850, %v6850
    %v6931 = vpack.c.bf16 %v6851, %v6851
    %6932 = vrot.lane.b32.xlu0 %v2277, 72
    %v6933 = vpop.permute.xlu0 %6932
    %6934 = vrot.lane.b32.xlu0 %v2278, 72
    %v6935 = vpop.permute.xlu0 %6934
    %6938 = vmatpush.bf16.msra.mxu0 %v6935
    %6939 = vmatpush.bf16.msra.mxu0 %v6935
    %6940 = vmatpush.bf16.msra.mxu0 %v6935
    %6941 = vmatpush.bf16.msra.mxu0 %v6935
    %6942 = vmatpush.bf16.msra.mxu0 %v6935
    %6943 = vmatpush.bf16.msra.mxu0 %v6935
    %6944 = vmatpush.bf16.msra.mxu0 %v6935
    %6945 = vmatpush.bf16.msra.mxu0 %v6933
    %6946 = vmatmul.bf16.gmra.mxu0 %v6916
    %v6947 = vpop.f32.mrf.mxu0
    %v6948 = vadd.f32 0.0, %v6947
    %v6949 = vpop.f32.mrf.mxu0
    %6950 = vdwg.mxu0
    %6951 = vrot.lane.b32.xlu0 %v2392, 72
    %v6952 = vpop.permute.xlu0 %6951
    %6954 = vmatpush.bf16.msra.mxu0 %v6935
    %6955 = vmatpush.bf16.msra.mxu0 %v6935
    %6956 = vmatpush.bf16.msra.mxu0 %v6935
    %6957 = vmatpush.bf16.msra.mxu0 %v6935
    %6958 = vmatpush.bf16.msra.mxu0 %v6935
    %6959 = vmatpush.bf16.msra.mxu0 %v6935
    %6960 = vmatpush.bf16.msra.mxu0 %v6935
    %6961 = vmatpush.bf16.msra.mxu0 %v6952
    %6962 = vmatmul.bf16.gmra.mxu0 %v6917
    %v6963 = vpop.f32.mrf.mxu0
    %v6964 = vadd.f32 0.0, %v6963
    %v6965 = vpop.f32.mrf.mxu0
    %6966 = vdwg.mxu0
    %6967 = vrot.lane.b32.xlu0 %v2448, 72
    %v6968 = vpop.permute.xlu0 %6967
    %6970 = vmatpush.bf16.msra.mxu0 %v6935
    %6971 = vmatpush.bf16.msra.mxu0 %v6935
    %6972 = vmatpush.bf16.msra.mxu0 %v6935
    %6973 = vmatpush.bf16.msra.mxu0 %v6935
    %6974 = vmatpush.bf16.msra.mxu0 %v6935
    %6975 = vmatpush.bf16.msra.mxu0 %v6935
    %6976 = vmatpush.bf16.msra.mxu0 %v6935
    %6977 = vmatpush.bf16.msra.mxu0 %v6968
    %6978 = vmatmul.bf16.gmra.mxu0 %v6918
    %v6979 = vpop.f32.mrf.mxu0
    %v6980 = vadd.f32 0.0, %v6979
    %v6981 = vpop.f32.mrf.mxu0
    %6982 = vdwg.mxu0
    %6983 = vrot.lane.b32.xlu0 %v2504, 72
    %v6984 = vpop.permute.xlu0 %6983
    %6986 = vmatpush.bf16.msra.mxu0 %v6935
    %6987 = vmatpush.bf16.msra.mxu0 %v6935
    %6988 = vmatpush.bf16.msra.mxu0 %v6935
    %6989 = vmatpush.bf16.msra.mxu0 %v6935
    %6990 = vmatpush.bf16.msra.mxu0 %v6935
    %6991 = vmatpush.bf16.msra.mxu0 %v6935
    %6992 = vmatpush.bf16.msra.mxu0 %v6935
    %6993 = vmatpush.bf16.msra.mxu0 %v6984
    %6994 = vmatmul.bf16.gmra.mxu0 %v6919
    %v6995 = vpop.f32.mrf.mxu0
    %v6996 = vadd.f32 0.0, %v6995
    %v6997 = vpop.f32.mrf.mxu0
    %6998 = vdwg.mxu0
    %6999 = vrot.lane.b32.xlu0 %v2560, 72
    %v7000 = vpop.permute.xlu0 %6999
    %7002 = vmatpush.bf16.msra.mxu0 %v6935
    %7003 = vmatpush.bf16.msra.mxu0 %v6935
    %7004 = vmatpush.bf16.msra.mxu0 %v6935
    %7005 = vmatpush.bf16.msra.mxu0 %v6935
    %7006 = vmatpush.bf16.msra.mxu0 %v6935
    %7007 = vmatpush.bf16.msra.mxu0 %v6935
    %7008 = vmatpush.bf16.msra.mxu0 %v6935
    %7009 = vmatpush.bf16.msra.mxu0 %v7000
    %7010 = vmatmul.bf16.gmra.mxu0 %v6920
    %v7011 = vpop.f32.mrf.mxu0
    %v7012 = vadd.f32 0.0, %v7011
    %v7013 = vpop.f32.mrf.mxu0
    %7014 = vdwg.mxu0
    %7015 = vrot.lane.b32.xlu0 %v2616, 72
    %v7016 = vpop.permute.xlu0 %7015
    %7018 = vmatpush.bf16.msra.mxu0 %v6935
    %7019 = vmatpush.bf16.msra.mxu0 %v6935
    %7020 = vmatpush.bf16.msra.mxu0 %v6935
    %7021 = vmatpush.bf16.msra.mxu0 %v6935
    %7022 = vmatpush.bf16.msra.mxu0 %v6935
    %7023 = vmatpush.bf16.msra.mxu0 %v6935
    %7024 = vmatpush.bf16.msra.mxu0 %v6935
    %7025 = vmatpush.bf16.msra.mxu0 %v7016
    %7026 = vmatmul.bf16.gmra.mxu0 %v6921
    %v7027 = vpop.f32.mrf.mxu0
    %v7028 = vadd.f32 0.0, %v7027
    %v7029 = vpop.f32.mrf.mxu0
    %7030 = vdwg.mxu0
    %7031 = vrot.lane.b32.xlu0 %v2672, 72
    %v7032 = vpop.permute.xlu0 %7031
    %7034 = vmatpush.bf16.msra.mxu0 %v6935
    %7035 = vmatpush.bf16.msra.mxu0 %v6935
    %7036 = vmatpush.bf16.msra.mxu0 %v6935
    %7037 = vmatpush.bf16.msra.mxu0 %v6935
    %7038 = vmatpush.bf16.msra.mxu0 %v6935
    %7039 = vmatpush.bf16.msra.mxu0 %v6935
    %7040 = vmatpush.bf16.msra.mxu0 %v6935
    %7041 = vmatpush.bf16.msra.mxu0 %v7032
    %7042 = vmatmul.bf16.gmra.mxu0 %v6922
    %v7043 = vpop.f32.mrf.mxu0
    %v7044 = vadd.f32 0.0, %v7043
    %v7045 = vpop.f32.mrf.mxu0
    %7046 = vdwg.mxu0
    %7047 = vrot.lane.b32.xlu0 %v2728, 72
    %v7048 = vpop.permute.xlu0 %7047
    %7050 = vmatpush.bf16.msra.mxu0 %v6935
    %7051 = vmatpush.bf16.msra.mxu0 %v6935
    %7052 = vmatpush.bf16.msra.mxu0 %v6935
    %7053 = vmatpush.bf16.msra.mxu0 %v6935
    %7054 = vmatpush.bf16.msra.mxu0 %v6935
    %7055 = vmatpush.bf16.msra.mxu0 %v6935
    %7056 = vmatpush.bf16.msra.mxu0 %v6935
    %7057 = vmatpush.bf16.msra.mxu0 %v7048
    %7058 = vmatmul.bf16.gmra.mxu0 %v6923
    %v7059 = vpop.f32.mrf.mxu0
    %v7060 = vadd.f32 0.0, %v7059
    %v7061 = vpop.f32.mrf.mxu0
    %7062 = vdwg.mxu0
    %7063 = vrot.lane.b32.xlu0 %v2784, 72
    %v7064 = vpop.permute.xlu0 %7063
    %7066 = vmatpush.bf16.msra.mxu0 %v6935
    %7067 = vmatpush.bf16.msra.mxu0 %v6935
    %7068 = vmatpush.bf16.msra.mxu0 %v6935
    %7069 = vmatpush.bf16.msra.mxu0 %v6935
    %7070 = vmatpush.bf16.msra.mxu0 %v6935
    %7071 = vmatpush.bf16.msra.mxu0 %v6935
    %7072 = vmatpush.bf16.msra.mxu0 %v6935
    %7073 = vmatpush.bf16.msra.mxu0 %v7064
    %7074 = vmatmul.bf16.gmra.mxu0 %v6924
    %v7075 = vpop.f32.mrf.mxu0
    %v7076 = vadd.f32 0.0, %v7075
    %v7077 = vpop.f32.mrf.mxu0
    %7078 = vdwg.mxu0
    %7079 = vrot.lane.b32.xlu0 %v2840, 72
    %v7080 = vpop.permute.xlu0 %7079
    %7082 = vmatpush.bf16.msra.mxu0 %v6935
    %7083 = vmatpush.bf16.msra.mxu0 %v6935
    %7084 = vmatpush.bf16.msra.mxu0 %v6935
    %7085 = vmatpush.bf16.msra.mxu0 %v6935
    %7086 = vmatpush.bf16.msra.mxu0 %v6935
    %7087 = vmatpush.bf16.msra.mxu0 %v6935
    %7088 = vmatpush.bf16.msra.mxu0 %v6935
    %7089 = vmatpush.bf16.msra.mxu0 %v7080
    %7090 = vmatmul.bf16.gmra.mxu0 %v6925
    %v7091 = vpop.f32.mrf.mxu0
    %v7092 = vadd.f32 0.0, %v7091
    %v7093 = vpop.f32.mrf.mxu0
    %7094 = vdwg.mxu0
    %7095 = vrot.lane.b32.xlu0 %v2896, 72
    %v7096 = vpop.permute.xlu0 %7095
    %7098 = vmatpush.bf16.msra.mxu0 %v6935
    %7099 = vmatpush.bf16.msra.mxu0 %v6935
    %7100 = vmatpush.bf16.msra.mxu0 %v6935
    %7101 = vmatpush.bf16.msra.mxu0 %v6935
    %7102 = vmatpush.bf16.msra.mxu0 %v6935
    %7103 = vmatpush.bf16.msra.mxu0 %v6935
    %7104 = vmatpush.bf16.msra.mxu0 %v6935
    %7105 = vmatpush.bf16.msra.mxu0 %v7096
    %7106 = vmatmul.bf16.gmra.mxu0 %v6926
    %v7107 = vpop.f32.mrf.mxu0
    %v7108 = vadd.f32 0.0, %v7107
    %v7109 = vpop.f32.mrf.mxu0
    %7110 = vdwg.mxu0
    %7111 = vrot.lane.b32.xlu0 %v2952, 72
    %v7112 = vpop.permute.xlu0 %7111
    %7114 = vmatpush.bf16.msra.mxu0 %v6935
    %7115 = vmatpush.bf16.msra.mxu0 %v6935
    %7116 = vmatpush.bf16.msra.mxu0 %v6935
    %7117 = vmatpush.bf16.msra.mxu0 %v6935
    %7118 = vmatpush.bf16.msra.mxu0 %v6935
    %7119 = vmatpush.bf16.msra.mxu0 %v6935
    %7120 = vmatpush.bf16.msra.mxu0 %v6935
    %7121 = vmatpush.bf16.msra.mxu0 %v7112
    %7122 = vmatmul.bf16.gmra.mxu0 %v6927
    %v7123 = vpop.f32.mrf.mxu0
    %v7124 = vadd.f32 0.0, %v7123
    %v7125 = vpop.f32.mrf.mxu0
    %7126 = vdwg.mxu0
    %7127 = vrot.lane.b32.xlu0 %v3008, 72
    %v7128 = vpop.permute.xlu0 %7127
    %7130 = vmatpush.bf16.msra.mxu0 %v6935
    %7131 = vmatpush.bf16.msra.mxu0 %v6935
    %7132 = vmatpush.bf16.msra.mxu0 %v6935
    %7133 = vmatpush.bf16.msra.mxu0 %v6935
    %7134 = vmatpush.bf16.msra.mxu0 %v6935
    %7135 = vmatpush.bf16.msra.mxu0 %v6935
    %7136 = vmatpush.bf16.msra.mxu0 %v6935
    %7137 = vmatpush.bf16.msra.mxu0 %v7128
    %7138 = vmatmul.bf16.gmra.mxu0 %v6928
    %v7139 = vpop.f32.mrf.mxu0
    %v7140 = vadd.f32 0.0, %v7139
    %v7141 = vpop.f32.mrf.mxu0
    %7142 = vdwg.mxu0
    %7143 = vrot.lane.b32.xlu0 %v3064, 72
    %v7144 = vpop.permute.xlu0 %7143
    %7146 = vmatpush.bf16.msra.mxu0 %v6935
    %7147 = vmatpush.bf16.msra.mxu0 %v6935
    %7148 = vmatpush.bf16.msra.mxu0 %v6935
    %7149 = vmatpush.bf16.msra.mxu0 %v6935
    %7150 = vmatpush.bf16.msra.mxu0 %v6935
    %7151 = vmatpush.bf16.msra.mxu0 %v6935
    %7152 = vmatpush.bf16.msra.mxu0 %v6935
    %7153 = vmatpush.bf16.msra.mxu0 %v7144
    %7154 = vmatmul.bf16.gmra.mxu0 %v6929
    %v7155 = vpop.f32.mrf.mxu0
    %v7156 = vadd.f32 0.0, %v7155
    %v7157 = vpop.f32.mrf.mxu0
    %7158 = vdwg.mxu0
    %7159 = vrot.lane.b32.xlu0 %v3120, 72
    %v7160 = vpop.permute.xlu0 %7159
    %7162 = vmatpush.bf16.msra.mxu0 %v6935
    %7163 = vmatpush.bf16.msra.mxu0 %v6935
    %7164 = vmatpush.bf16.msra.mxu0 %v6935
    %7165 = vmatpush.bf16.msra.mxu0 %v6935
    %7166 = vmatpush.bf16.msra.mxu0 %v6935
    %7167 = vmatpush.bf16.msra.mxu0 %v6935
    %7168 = vmatpush.bf16.msra.mxu0 %v6935
    %7169 = vmatpush.bf16.msra.mxu0 %v7160
    %7170 = vmatmul.bf16.gmra.mxu0 %v6930
    %v7171 = vpop.f32.mrf.mxu0
    %v7172 = vadd.f32 0.0, %v7171
    %v7173 = vpop.f32.mrf.mxu0
    %7174 = vdwg.mxu0
    %7175 = vrot.lane.b32.xlu0 %v3176, 72
    %v7176 = vpop.permute.xlu0 %7175
    %7178 = vmatpush.bf16.msra.mxu0 %v6935
    %7179 = vmatpush.bf16.msra.mxu0 %v6935
    %7180 = vmatpush.bf16.msra.mxu0 %v6935
    %7181 = vmatpush.bf16.msra.mxu0 %v6935
    %7182 = vmatpush.bf16.msra.mxu0 %v6935
    %7183 = vmatpush.bf16.msra.mxu0 %v6935
    %7184 = vmatpush.bf16.msra.mxu0 %v6935
    %7185 = vmatpush.bf16.msra.mxu0 %v7176
    %7186 = vmatmul.bf16.gmra.mxu0 %v6931
    %v7187 = vpop.f32.mrf.mxu0
    %v7188 = vadd.f32 0.0, %v7187
    %v7189 = vpop.f32.mrf.mxu0
    %7190 = vdwg.mxu0
    %7207 = vrot.lane.b32.xlu0 %v4788, 8
    %v7208 = vpop.permute.xlu0 %7207
    %7209 = vrot.lane.b32.xlu0 %v4804, 8
    %v7210 = vpop.permute.xlu0 %7209
    %7211 = vrot.lane.b32.xlu0 %v4820, 8
    %v7212 = vpop.permute.xlu0 %7211
    %7213 = vrot.lane.b32.xlu0 %v4836, 8
    %v7214 = vpop.permute.xlu0 %7213
    %7215 = vrot.lane.b32.xlu0 %v4852, 8
    %v7216 = vpop.permute.xlu0 %7215
    %7217 = vrot.lane.b32.xlu0 %v4868, 8
    %v7218 = vpop.permute.xlu0 %7217
    %7219 = vrot.lane.b32.xlu0 %v4884, 8
    %v7220 = vpop.permute.xlu0 %7219
    %7221 = vrot.lane.b32.xlu0 %v4900, 8
    %v7222 = vpop.permute.xlu0 %7221
    %7223 = vrot.lane.b32.xlu0 %v4916, 8
    %v7224 = vpop.permute.xlu0 %7223
    %7225 = vrot.lane.b32.xlu0 %v4932, 8
    %v7226 = vpop.permute.xlu0 %7225
    %7227 = vrot.lane.b32.xlu0 %v4948, 8
    %v7228 = vpop.permute.xlu0 %7227
    %7229 = vrot.lane.b32.xlu0 %v4964, 8
    %v7230 = vpop.permute.xlu0 %7229
    %7231 = vrot.lane.b32.xlu0 %v4980, 8
    %v7232 = vpop.permute.xlu0 %7231
    %7233 = vrot.lane.b32.xlu0 %v4996, 8
    %v7234 = vpop.permute.xlu0 %7233
    %7235 = vrot.lane.b32.xlu0 %v5012, 8
    %v7236 = vpop.permute.xlu0 %7235
    %7237 = vrot.lane.b32.xlu0 %v5028, 8
    %v7238 = vpop.permute.xlu0 %7237
    %7271 = vrot.lane.b32.xlu0 %v5868, 16
    %v7272 = vpop.permute.xlu0 %7271
    %7273 = vrot.lane.b32.xlu0 %v5884, 16
    %v7274 = vpop.permute.xlu0 %7273
    %7275 = vrot.lane.b32.xlu0 %v5900, 16
    %v7276 = vpop.permute.xlu0 %7275
    %7277 = vrot.lane.b32.xlu0 %v5916, 16
    %v7278 = vpop.permute.xlu0 %7277
    %7279 = vrot.lane.b32.xlu0 %v5932, 16
    %v7280 = vpop.permute.xlu0 %7279
    %7281 = vrot.lane.b32.xlu0 %v5948, 16
    %v7282 = vpop.permute.xlu0 %7281
    %7283 = vrot.lane.b32.xlu0 %v5964, 16
    %v7284 = vpop.permute.xlu0 %7283
    %7285 = vrot.lane.b32.xlu0 %v5980, 16
    %v7286 = vpop.permute.xlu0 %7285
    %7287 = vrot.lane.b32.xlu0 %v5996, 16
    %v7288 = vpop.permute.xlu0 %7287
    %7289 = vrot.lane.b32.xlu0 %v6012, 16
    %v7290 = vpop.permute.xlu0 %7289
    %7291 = vrot.lane.b32.xlu0 %v6028, 16
    %v7292 = vpop.permute.xlu0 %7291
    %7293 = vrot.lane.b32.xlu0 %v6044, 16
    %v7294 = vpop.permute.xlu0 %7293
    %7295 = vrot.lane.b32.xlu0 %v6060, 16
    %v7296 = vpop.permute.xlu0 %7295
    %7297 = vrot.lane.b32.xlu0 %v6076, 16
    %v7298 = vpop.permute.xlu0 %7297
    %7299 = vrot.lane.b32.xlu0 %v6092, 16
    %v7300 = vpop.permute.xlu0 %7299
    %7301 = vrot.lane.b32.xlu0 %v6108, 16
    %v7302 = vpop.permute.xlu0 %7301
    %7335 = vrot.lane.b32.xlu0 %v6948, 24
    %v7336 = vpop.permute.xlu0 %7335
    %7337 = vrot.lane.b32.xlu0 %v6964, 24
    %v7338 = vpop.permute.xlu0 %7337
    %7339 = vrot.lane.b32.xlu0 %v6980, 24
    %v7340 = vpop.permute.xlu0 %7339
    %7341 = vrot.lane.b32.xlu0 %v6996, 24
    %v7342 = vpop.permute.xlu0 %7341
    %7343 = vrot.lane.b32.xlu0 %v7012, 24
    %v7344 = vpop.permute.xlu0 %7343
    %7345 = vrot.lane.b32.xlu0 %v7028, 24
    %v7346 = vpop.permute.xlu0 %7345
    %7347 = vrot.lane.b32.xlu0 %v7044, 24
    %v7348 = vpop.permute.xlu0 %7347
    %7349 = vrot.lane.b32.xlu0 %v7060, 24
    %v7350 = vpop.permute.xlu0 %7349
    %7351 = vrot.lane.b32.xlu0 %v7076, 24
    %v7352 = vpop.permute.xlu0 %7351
    %7353 = vrot.lane.b32.xlu0 %v7092, 24
    %v7354 = vpop.permute.xlu0 %7353
    %7355 = vrot.lane.b32.xlu0 %v7108, 24
    %v7356 = vpop.permute.xlu0 %7355
    %7357 = vrot.lane.b32.xlu0 %v7124, 24
    %v7358 = vpop.permute.xlu0 %7357
    %7359 = vrot.lane.b32.xlu0 %v7140, 24
    %v7360 = vpop.permute.xlu0 %7359
    %7361 = vrot.lane.b32.xlu0 %v7156, 24
    %v7362 = vpop.permute.xlu0 %7361
    %7363 = vrot.lane.b32.xlu0 %v7172, 24
    %v7364 = vpop.permute.xlu0 %7363
    %7365 = vrot.lane.b32.xlu0 %v7188, 24
    %v7366 = vpop.permute.xlu0 %7365
    %v7383 = vsel %vm2365, %v3660, %v7208
    %v7384 = vsel %vm2365, %v3676, %v7210
    %v7385 = vsel %vm2365, %v3692, %v7212
    %v7386 = vsel %vm2365, %v3708, %v7214
    %v7387 = vsel %vm2365, %v3724, %v7216
    %v7388 = vsel %vm2365, %v3740, %v7218
    %v7389 = vsel %vm2365, %v3756, %v7220
    %v7390 = vsel %vm2365, %v3772, %v7222
    %v7391 = vsel %vm2365, %v3788, %v7224
    %v7392 = vsel %vm2365, %v3804, %v7226
    %v7393 = vsel %vm2365, %v3820, %v7228
    %v7394 = vsel %vm2365, %v3836, %v7230
    %v7395 = vsel %vm2365, %v3852, %v7232
    %v7396 = vsel %vm2365, %v3868, %v7234
    %v7397 = vsel %vm2365, %v3884, %v7236
    %v7398 = vsel %vm2365, %v3900, %v7238
    %v7399 = vsel %vm1573, %v7383, %v7272
    %v7400 = vsel %vm1573, %v7384, %v7274
    %v7401 = vsel %vm1573, %v7385, %v7276
    %v7402 = vsel %vm1573, %v7386, %v7278
    %v7403 = vsel %vm1573, %v7387, %v7280
    %v7404 = vsel %vm1573, %v7388, %v7282
    %v7405 = vsel %vm1573, %v7389, %v7284
    %v7406 = vsel %vm1573, %v7390, %v7286
    %v7407 = vsel %vm1573, %v7391, %v7288
    %v7408 = vsel %vm1573, %v7392, %v7290
    %v7409 = vsel %vm1573, %v7393, %v7292
    %v7410 = vsel %vm1573, %v7394, %v7294
    %v7411 = vsel %vm1573, %v7395, %v7296
    %v7412 = vsel %vm1573, %v7396, %v7298
    %v7413 = vsel %vm1573, %v7397, %v7300
    %v7414 = vsel %vm1573, %v7398, %v7302
    %vm7415 = vcmask 195584
    %v7416 = vsel %vm7415, %v7399, %v7336
    %v7417 = vsel %vm7415, %v7400, %v7338
    %v7418 = vsel %vm7415, %v7401, %v7340
    %v7419 = vsel %vm7415, %v7402, %v7342
    %v7420 = vsel %vm7415, %v7403, %v7344
    %v7421 = vsel %vm7415, %v7404, %v7346
    %v7422 = vsel %vm7415, %v7405, %v7348
    %v7423 = vsel %vm7415, %v7406, %v7350
    %v7424 = vsel %vm7415, %v7407, %v7352
    %v7425 = vsel %vm7415, %v7408, %v7354
    %v7426 = vsel %vm7415, %v7409, %v7356
    %v7427 = vsel %vm7415, %v7410, %v7358
    %v7428 = vsel %vm7415, %v7411, %v7360
    %v7429 = vsel %vm7415, %v7412, %v7362
    %v7430 = vsel %vm7415, %v7413, %v7364
    %v7431 = vsel %vm7415, %v7414, %v7366
    %v7432 = vpack.c.bf16 %v7417, %v7416
    %v7433 = vpack.c.bf16 %v7419, %v7418
    %v7434 = vpack.c.bf16 %v7421, %v7420
    %v7435 = vpack.c.bf16 %v7423, %v7422
    %v7436 = vpack.c.bf16 %v7425, %v7424
    %v7437 = vpack.c.bf16 %v7427, %v7426
    %v7438 = vpack.c.bf16 %v7429, %v7428
    %v7439 = vpack.c.bf16 %v7431, %v7430
    %v7440 = vld [vmem:[%s8] sm:$0xf]
    %v7441 = vld [vmem:[%s8 + $0x4] sm:$0xf]
    %v7442 = vld [vmem:[%s8 + $0x8] sm:$0xf]
    %v7443 = vld [vmem:[%s8 + $0xc] sm:$0xf]
    %v7444 = vld [vmem:[#allocation10] sm:$0x1]
    %v7446 = vperm.slane %v7444, 0
    %v7452 = vunpack.c.l.b16 %v7440
    %v7453 = vunpack.c.l.b16 %v7441
    %v7454 = vunpack.c.l.b16 %v7442
    %v7455 = vunpack.c.l.b16 %v7443
    %v7456 = vpack.c.b16 %v7453, %v7452
    %v7457 = vpack.c.b16 %v7455, %v7454
    %v7461 = vsel %vm450, %v7432, 0
    %v7464 = vsel %vm450, %v7433, 0
    %v7467 = vsel %vm450, %v7434, 0
    %v7470 = vsel %vm450, %v7435, 0
    %v7473 = vsel %vm450, %v7436, 0
    %v7476 = vsel %vm450, %v7437, 0
    %v7479 = vsel %vm450, %v7438, 0
    %v7482 = vsel %vm450, %v7439, 0
    %7484 = vmatpush.bf16.msra.mxu0 0
    %7485 = vmatpush.bf16.msra.mxu0 0
    %7486 = vmatpush.bf16.msra.mxu0 0
    %7487 = vmatpush.bf16.msra.mxu0 0
    %7488 = vmatpush.bf16.msra.mxu0 0
    %7489 = vmatpush.bf16.msra.mxu0 0
    %7490 = vmatpush.bf16.msra.mxu0 %v7457
    %7491 = vmatpush.bf16.msra.mxu0 %v7456
    %7492 = vmatmul.bf16.gmra.mxu0 %v7461
    %v7493 = vpop.f32.mrf.mxu0
    %v7494 = vadd.f32 %v7446, %v7493
    %v7495 = vpop.f32.mrf.mxu0
    %v7496 = vadd.f32 %v7446, %v7495
    %7497 = vmatmul.bf16.gmra.mxu0 %v7464
    %v7498 = vpop.f32.mrf.mxu0
    %v7499 = vadd.f32 %v7446, %v7498
    %v7500 = vpop.f32.mrf.mxu0
    %v7501 = vadd.f32 %v7446, %v7500
    %7502 = vmatmul.bf16.gmra.mxu0 %v7467
    %v7503 = vpop.f32.mrf.mxu0
    %v7504 = vadd.f32 %v7446, %v7503
    %v7505 = vpop.f32.mrf.mxu0
    %v7506 = vadd.f32 %v7446, %v7505
    %7507 = vmatmul.bf16.gmra.mxu0 %v7470
    %v7508 = vpop.f32.mrf.mxu0
    %v7509 = vadd.f32 %v7446, %v7508
    %v7510 = vpop.f32.mrf.mxu0
    %v7511 = vadd.f32 %v7446, %v7510
    %7512 = vmatmul.bf16.gmra.mxu0 %v7473
    %v7513 = vpop.f32.mrf.mxu0
    %v7514 = vadd.f32 %v7446, %v7513
    %v7515 = vpop.f32.mrf.mxu0
    %v7516 = vadd.f32 %v7446, %v7515
    %7517 = vmatmul.bf16.gmra.mxu0 %v7476
    %v7518 = vpop.f32.mrf.mxu0
    %v7519 = vadd.f32 %v7446, %v7518
    %v7520 = vpop.f32.mrf.mxu0
    %v7521 = vadd.f32 %v7446, %v7520
    %7522 = vmatmul.bf16.gmra.mxu0 %v7479
    %v7523 = vpop.f32.mrf.mxu0
    %v7524 = vadd.f32 %v7446, %v7523
    %v7525 = vpop.f32.mrf.mxu0
    %v7526 = vadd.f32 %v7446, %v7525
    %7527 = vmatmul.bf16.gmra.mxu0 %v7482
    %v7528 = vpop.f32.mrf.mxu0
    %v7529 = vadd.f32 %v7446, %v7528
    %v7530 = vpop.f32.mrf.mxu0
    %v7531 = vadd.f32 %v7446, %v7530
    %7532 = vdwg.mxu0
    %v7533 = vadd.f32 %v263, %v7494
    %v7534 = vadd.f32 %v265, %v7496
    %v7535 = vadd.f32 %v267, %v7499
    %v7536 = vadd.f32 %v269, %v7501
    %v7537 = vadd.f32 %v271, %v7504
    %v7538 = vadd.f32 %v273, %v7506
    %v7539 = vadd.f32 %v275, %v7509
    %v7540 = vadd.f32 %v277, %v7511
    %v7541 = vadd.f32 %v375, %v7514
    %v7542 = vadd.f32 %v377, %v7516
    %v7543 = vadd.f32 %v379, %v7519
    %v7544 = vadd.f32 %v381, %v7521
    %v7545 = vadd.f32 %v383, %v7524
    %v7546 = vadd.f32 %v385, %v7526
    %v7547 = vadd.f32 %v387, %v7529
    %v7548 = vadd.f32 %v389, %v7531
    %v7549 = vsel %vm450, %v7533, 0.0
    %7550 = vadd.xlane.f32.xlu0 %v7549
    %v7551 = vpop.xlane.xlu0 %7550
    %v7552 = vsel %vm450, %v7534, 0.0
    %7553 = vadd.xlane.f32.xlu0 %v7552
    %v7554 = vpop.xlane.xlu0 %7553
    %v7555 = vsel %vm450, %v7535, 0.0
    %7556 = vadd.xlane.f32.xlu0 %v7555
    %v7557 = vpop.xlane.xlu0 %7556
    %v7558 = vsel %vm450, %v7536, 0.0
    %7559 = vadd.xlane.f32.xlu0 %v7558
    %v7560 = vpop.xlane.xlu0 %7559
    %v7561 = vsel %vm450, %v7537, 0.0
    %7562 = vadd.xlane.f32.xlu0 %v7561
    %v7563 = vpop.xlane.xlu0 %7562
    %v7564 = vsel %vm450, %v7538, 0.0
    %7565 = vadd.xlane.f32.xlu0 %v7564
    %v7566 = vpop.xlane.xlu0 %7565
    %v7567 = vsel %vm450, %v7539, 0.0
    %7568 = vadd.xlane.f32.xlu0 %v7567
    %v7569 = vpop.xlane.xlu0 %7568
    %v7570 = vsel %vm450, %v7540, 0.0
    %7571 = vadd.xlane.f32.xlu0 %v7570
    %v7572 = vpop.xlane.xlu0 %7571
    %v7573 = vsel %vm450, %v7541, 0.0
    %7574 = vadd.xlane.f32.xlu0 %v7573
    %v7575 = vpop.xlane.xlu0 %7574
    %v7576 = vsel %vm450, %v7542, 0.0
    %7577 = vadd.xlane.f32.xlu0 %v7576
    %v7578 = vpop.xlane.xlu0 %7577
    %v7579 = vsel %vm450, %v7543, 0.0
    %7580 = vadd.xlane.f32.xlu0 %v7579
    %v7581 = vpop.xlane.xlu0 %7580
    %v7582 = vsel %vm450, %v7544, 0.0
    %7583 = vadd.xlane.f32.xlu0 %v7582
    %v7584 = vpop.xlane.xlu0 %7583
    %v7585 = vsel %vm450, %v7545, 0.0
    %7586 = vadd.xlane.f32.xlu0 %v7585
    %v7587 = vpop.xlane.xlu0 %7586
    %v7588 = vsel %vm450, %v7546, 0.0
    %7589 = vadd.xlane.f32.xlu0 %v7588
    %v7590 = vpop.xlane.xlu0 %7589
    %v7591 = vsel %vm450, %v7547, 0.0
    %7592 = vadd.xlane.f32.xlu0 %v7591
    %v7593 = vpop.xlane.xlu0 %7592
    %v7594 = vsel %vm450, %v7548, 0.0
    %7595 = vadd.xlane.f32.xlu0 %v7594
    %v7596 = vpop.xlane.xlu0 %7595
    %v7597 = vrcp.pop 32.0
    %v7598 = vmul.f32 32.0, %v7597
    %v7599 = vsub.f32 1.0, %v7598
    %v7600 = vmul.f32 %v7597, %v7599
    %v7601 = vadd.f32 %v7597, %v7600
    %vm7602 = vweird.f32 %v7597
    %v7603 = vsel %vm7602, %v7597, %v7601
    %v7604 = vmul.f32 %v7551, %v7603
    %v7605 = vmul.f32 %v7554, %v7603
    %v7606 = vmul.f32 %v7557, %v7603
    %v7607 = vmul.f32 %v7560, %v7603
    %v7608 = vmul.f32 %v7563, %v7603
    %v7609 = vmul.f32 %v7566, %v7603
    %v7610 = vmul.f32 %v7569, %v7603
    %v7611 = vmul.f32 %v7572, %v7603
    %v7612 = vmul.f32 %v7575, %v7603
    %v7613 = vmul.f32 %v7578, %v7603
    %v7614 = vmul.f32 %v7581, %v7603
    %v7615 = vmul.f32 %v7584, %v7603
    %v7616 = vmul.f32 %v7587, %v7603
    %v7617 = vmul.f32 %v7590, %v7603
    %v7618 = vmul.f32 %v7593, %v7603
    %v7619 = vmul.f32 %v7596, %v7603
    %v7620 = vsub.f32 %v7533, %v7604
    %v7621 = vsub.f32 %v7534, %v7605
    %v7622 = vsub.f32 %v7535, %v7606
    %v7623 = vsub.f32 %v7536, %v7607
    %v7624 = vsub.f32 %v7537, %v7608
    %v7625 = vsub.f32 %v7538, %v7609
    %v7626 = vsub.f32 %v7539, %v7610
    %v7627 = vsub.f32 %v7540, %v7611
    %v7628 = vsub.f32 %v7541, %v7612
    %v7629 = vsub.f32 %v7542, %v7613
    %v7630 = vsub.f32 %v7543, %v7614
    %v7631 = vsub.f32 %v7544, %v7615
    %v7632 = vsub.f32 %v7545, %v7616
    %v7633 = vsub.f32 %v7546, %v7617
    %v7634 = vsub.f32 %v7547, %v7618
    %v7635 = vsub.f32 %v7548, %v7619
    %v7636 = vmul.f32 %v7620, %v7620
    %v7637 = vmul.f32 %v7621, %v7621
    %v7638 = vmul.f32 %v7622, %v7622
    %v7639 = vmul.f32 %v7623, %v7623
    %v7640 = vmul.f32 %v7624, %v7624
    %v7641 = vmul.f32 %v7625, %v7625
    %v7642 = vmul.f32 %v7626, %v7626
    %v7643 = vmul.f32 %v7627, %v7627
    %v7644 = vmul.f32 %v7628, %v7628
    %v7645 = vmul.f32 %v7629, %v7629
    %v7646 = vmul.f32 %v7630, %v7630
    %v7647 = vmul.f32 %v7631, %v7631
    %v7648 = vmul.f32 %v7632, %v7632
    %v7649 = vmul.f32 %v7633, %v7633
    %v7650 = vmul.f32 %v7634, %v7634
    %v7651 = vmul.f32 %v7635, %v7635
    %v7652 = vsel %vm450, %v7636, 0.0
    %7653 = vadd.xlane.f32.xlu0 %v7652
    %v7654 = vpop.xlane.xlu0 %7653
    %v7655 = vsel %vm450, %v7637, 0.0
    %7656 = vadd.xlane.f32.xlu0 %v7655
    %v7657 = vpop.xlane.xlu0 %7656
    %v7658 = vsel %vm450, %v7638, 0.0
    %7659 = vadd.xlane.f32.xlu0 %v7658
    %v7660 = vpop.xlane.xlu0 %7659
    %v7661 = vsel %vm450, %v7639, 0.0
    %7662 = vadd.xlane.f32.xlu0 %v7661
    %v7663 = vpop.xlane.xlu0 %7662
    %v7664 = vsel %vm450, %v7640, 0.0
    %7665 = vadd.xlane.f32.xlu0 %v7664
    %v7666 = vpop.xlane.xlu0 %7665
    %v7667 = vsel %vm450, %v7641, 0.0
    %7668 = vadd.xlane.f32.xlu0 %v7667
    %v7669 = vpop.xlane.xlu0 %7668
    %v7670 = vsel %vm450, %v7642, 0.0
    %7671 = vadd.xlane.f32.xlu0 %v7670
    %v7672 = vpop.xlane.xlu0 %7671
    %v7673 = vsel %vm450, %v7643, 0.0
    %7674 = vadd.xlane.f32.xlu0 %v7673
    %v7675 = vpop.xlane.xlu0 %7674
    %v7676 = vsel %vm450, %v7644, 0.0
    %7677 = vadd.xlane.f32.xlu0 %v7676
    %v7678 = vpop.xlane.xlu0 %7677
    %v7679 = vsel %vm450, %v7645, 0.0
    %7680 = vadd.xlane.f32.xlu0 %v7679
    %v7681 = vpop.xlane.xlu0 %7680
    %v7682 = vsel %vm450, %v7646, 0.0
    %7683 = vadd.xlane.f32.xlu0 %v7682
    %v7684 = vpop.xlane.xlu0 %7683
    %v7685 = vsel %vm450, %v7647, 0.0
    %7686 = vadd.xlane.f32.xlu0 %v7685
    %v7687 = vpop.xlane.xlu0 %7686
    %v7688 = vsel %vm450, %v7648, 0.0
    %7689 = vadd.xlane.f32.xlu0 %v7688
    %v7690 = vpop.xlane.xlu0 %7689
    %v7691 = vsel %vm450, %v7649, 0.0
    %7692 = vadd.xlane.f32.xlu0 %v7691
    %v7693 = vpop.xlane.xlu0 %7692
    %v7694 = vsel %vm450, %v7650, 0.0
    %7695 = vadd.xlane.f32.xlu0 %v7694
    %v7696 = vpop.xlane.xlu0 %7695
    %v7697 = vsel %vm450, %v7651, 0.0
    %7698 = vadd.xlane.f32.xlu0 %v7697
    %v7699 = vpop.xlane.xlu0 %7698
    %v7700 = vmul.f32 %v7654, %v7603
    %v7701 = vmul.f32 %v7657, %v7603
    %v7702 = vmul.f32 %v7660, %v7603
    %v7703 = vmul.f32 %v7663, %v7603
    %v7704 = vmul.f32 %v7666, %v7603
    %v7705 = vmul.f32 %v7669, %v7603
    %v7706 = vmul.f32 %v7672, %v7603
    %v7707 = vmul.f32 %v7675, %v7603
    %v7708 = vmul.f32 %v7678, %v7603
    %v7709 = vmul.f32 %v7681, %v7603
    %v7710 = vmul.f32 %v7684, %v7603
    %v7711 = vmul.f32 %v7687, %v7603
    %v7712 = vmul.f32 %v7690, %v7603
    %v7713 = vmul.f32 %v7693, %v7603
    %v7714 = vmul.f32 %v7696, %v7603
    %v7715 = vmul.f32 %v7699, %v7603
    %v7716 = vadd.f32 %v7700, 1e-05
    %v7717 = vadd.f32 %v7701, 1e-05
    %v7718 = vadd.f32 %v7702, 1e-05
    %v7719 = vadd.f32 %v7703, 1e-05
    %v7720 = vadd.f32 %v7704, 1e-05
    %v7721 = vadd.f32 %v7705, 1e-05
    %v7722 = vadd.f32 %v7706, 1e-05
    %v7723 = vadd.f32 %v7707, 1e-05
    %v7724 = vadd.f32 %v7708, 1e-05
    %v7725 = vadd.f32 %v7709, 1e-05
    %v7726 = vadd.f32 %v7710, 1e-05
    %v7727 = vadd.f32 %v7711, 1e-05
    %v7728 = vadd.f32 %v7712, 1e-05
    %v7729 = vadd.f32 %v7713, 1e-05
    %v7730 = vadd.f32 %v7714, 1e-05
    %v7731 = vadd.f32 %v7715, 1e-05
    %v7732 = vrsqrt.pop %v7716
    %v7733 = vmul.f32 %v7732, %v7716
    %v7734 = vmul.f32 %v7733, %v7732
    %v7735 = vmul.f32 0.5, %v7734
    %v7736 = vsub.f32 1.5, %v7735
    %v7737 = vmul.f32 %v7732, %v7736
    %vm7738 = vweird.f32 %v7716
    %vm7739 = vweird.f32 %v7732
    %vm7740 = vmor %vm7738, %vm7739
    %v7741 = vsel %vm7740, %v7732, %v7737
    %v7742 = vrsqrt.pop %v7717
    %v7743 = vmul.f32 %v7742, %v7717
    %v7744 = vmul.f32 %v7743, %v7742
    %v7745 = vmul.f32 0.5, %v7744
    %v7746 = vsub.f32 1.5, %v7745
    %v7747 = vmul.f32 %v7742, %v7746
    %vm7748 = vweird.f32 %v7717
    %vm7749 = vweird.f32 %v7742
    %vm7750 = vmor %vm7748, %vm7749
    %v7751 = vsel %vm7750, %v7742, %v7747
    %v7752 = vrsqrt.pop %v7718
    %v7753 = vmul.f32 %v7752, %v7718
    %v7754 = vmul.f32 %v7753, %v7752
    %v7755 = vmul.f32 0.5, %v7754
    %v7756 = vsub.f32 1.5, %v7755
    %v7757 = vmul.f32 %v7752, %v7756
    %vm7758 = vweird.f32 %v7718
    %vm7759 = vweird.f32 %v7752
    %vm7760 = vmor %vm7758, %vm7759
    %v7761 = vsel %vm7760, %v7752, %v7757
    %v7762 = vrsqrt.pop %v7719
    %v7763 = vmul.f32 %v7762, %v7719
    %v7764 = vmul.f32 %v7763, %v7762
    %v7765 = vmul.f32 0.5, %v7764
    %v7766 = vsub.f32 1.5, %v7765
    %v7767 = vmul.f32 %v7762, %v7766
    %vm7768 = vweird.f32 %v7719
    %vm7769 = vweird.f32 %v7762
    %vm7770 = vmor %vm7768, %vm7769
    %v7771 = vsel %vm7770, %v7762, %v7767
    %v7772 = vrsqrt.pop %v7720
    %v7773 = vmul.f32 %v7772, %v7720
    %v7774 = vmul.f32 %v7773, %v7772
    %v7775 = vmul.f32 0.5, %v7774
    %v7776 = vsub.f32 1.5, %v7775
    %v7777 = vmul.f32 %v7772, %v7776
    %vm7778 = vweird.f32 %v7720
    %vm7779 = vweird.f32 %v7772
    %vm7780 = vmor %vm7778, %vm7779
    %v7781 = vsel %vm7780, %v7772, %v7777
    %v7782 = vrsqrt.pop %v7721
    %v7783 = vmul.f32 %v7782, %v7721
    %v7784 = vmul.f32 %v7783, %v7782
    %v7785 = vmul.f32 0.5, %v7784
    %v7786 = vsub.f32 1.5, %v7785
    %v7787 = vmul.f32 %v7782, %v7786
    %vm7788 = vweird.f32 %v7721
    %vm7789 = vweird.f32 %v7782
    %vm7790 = vmor %vm7788, %vm7789
    %v7791 = vsel %vm7790, %v7782, %v7787
    %v7792 = vrsqrt.pop %v7722
    %v7793 = vmul.f32 %v7792, %v7722
    %v7794 = vmul.f32 %v7793, %v7792
    %v7795 = vmul.f32 0.5, %v7794
    %v7796 = vsub.f32 1.5, %v7795
    %v7797 = vmul.f32 %v7792, %v7796
    %vm7798 = vweird.f32 %v7722
    %vm7799 = vweird.f32 %v7792
    %vm7800 = vmor %vm7798, %vm7799
    %v7801 = vsel %vm7800, %v7792, %v7797
    %v7802 = vrsqrt.pop %v7723
    %v7803 = vmul.f32 %v7802, %v7723
    %v7804 = vmul.f32 %v7803, %v7802
    %v7805 = vmul.f32 0.5, %v7804
    %v7806 = vsub.f32 1.5, %v7805
    %v7807 = vmul.f32 %v7802, %v7806
    %vm7808 = vweird.f32 %v7723
    %vm7809 = vweird.f32 %v7802
    %vm7810 = vmor %vm7808, %vm7809
    %v7811 = vsel %vm7810, %v7802, %v7807
    %v7812 = vrsqrt.pop %v7724
    %v7813 = vmul.f32 %v7812, %v7724
    %v7814 = vmul.f32 %v7813, %v7812
    %v7815 = vmul.f32 0.5, %v7814
    %v7816 = vsub.f32 1.5, %v7815
    %v7817 = vmul.f32 %v7812, %v7816
    %vm7818 = vweird.f32 %v7724
    %vm7819 = vweird.f32 %v7812
    %vm7820 = vmor %vm7818, %vm7819
    %v7821 = vsel %vm7820, %v7812, %v7817
    %v7822 = vrsqrt.pop %v7725
    %v7823 = vmul.f32 %v7822, %v7725
    %v7824 = vmul.f32 %v7823, %v7822
    %v7825 = vmul.f32 0.5, %v7824
    %v7826 = vsub.f32 1.5, %v7825
    %v7827 = vmul.f32 %v7822, %v7826
    %vm7828 = vweird.f32 %v7725
    %vm7829 = vweird.f32 %v7822
    %vm7830 = vmor %vm7828, %vm7829
    %v7831 = vsel %vm7830, %v7822, %v7827
    %v7832 = vrsqrt.pop %v7726
    %v7833 = vmul.f32 %v7832, %v7726
    %v7834 = vmul.f32 %v7833, %v7832
    %v7835 = vmul.f32 0.5, %v7834
    %v7836 = vsub.f32 1.5, %v7835
    %v7837 = vmul.f32 %v7832, %v7836
    %vm7838 = vweird.f32 %v7726
    %vm7839 = vweird.f32 %v7832
    %vm7840 = vmor %vm7838, %vm7839
    %v7841 = vsel %vm7840, %v7832, %v7837
    %v7842 = vrsqrt.pop %v7727
    %v7843 = vmul.f32 %v7842, %v7727
    %v7844 = vmul.f32 %v7843, %v7842
    %v7845 = vmul.f32 0.5, %v7844
    %v7846 = vsub.f32 1.5, %v7845
    %v7847 = vmul.f32 %v7842, %v7846
    %vm7848 = vweird.f32 %v7727
    %vm7849 = vweird.f32 %v7842
    %vm7850 = vmor %vm7848, %vm7849
    %v7851 = vsel %vm7850, %v7842, %v7847
    %v7852 = vrsqrt.pop %v7728
    %v7853 = vmul.f32 %v7852, %v7728
    %v7854 = vmul.f32 %v7853, %v7852
    %v7855 = vmul.f32 0.5, %v7854
    %v7856 = vsub.f32 1.5, %v7855
    %v7857 = vmul.f32 %v7852, %v7856
    %vm7858 = vweird.f32 %v7728
    %vm7859 = vweird.f32 %v7852
    %vm7860 = vmor %vm7858, %vm7859
    %v7861 = vsel %vm7860, %v7852, %v7857
    %v7862 = vrsqrt.pop %v7729
    %v7863 = vmul.f32 %v7862, %v7729
    %v7864 = vmul.f32 %v7863, %v7862
    %v7865 = vmul.f32 0.5, %v7864
    %v7866 = vsub.f32 1.5, %v7865
    %v7867 = vmul.f32 %v7862, %v7866
    %vm7868 = vweird.f32 %v7729
    %vm7869 = vweird.f32 %v7862
    %vm7870 = vmor %vm7868, %vm7869
    %v7871 = vsel %vm7870, %v7862, %v7867
    %v7872 = vrsqrt.pop %v7730
    %v7873 = vmul.f32 %v7872, %v7730
    %v7874 = vmul.f32 %v7873, %v7872
    %v7875 = vmul.f32 0.5, %v7874
    %v7876 = vsub.f32 1.5, %v7875
    %v7877 = vmul.f32 %v7872, %v7876
    %vm7878 = vweird.f32 %v7730
    %vm7879 = vweird.f32 %v7872
    %vm7880 = vmor %vm7878, %vm7879
    %v7881 = vsel %vm7880, %v7872, %v7877
    %v7882 = vrsqrt.pop %v7731
    %v7883 = vmul.f32 %v7882, %v7731
    %v7884 = vmul.f32 %v7883, %v7882
    %v7885 = vmul.f32 0.5, %v7884
    %v7886 = vsub.f32 1.5, %v7885
    %v7887 = vmul.f32 %v7882, %v7886
    %vm7888 = vweird.f32 %v7731
    %vm7889 = vweird.f32 %v7882
    %vm7890 = vmor %vm7888, %vm7889
    %v7891 = vsel %vm7890, %v7882, %v7887
    %v7892 = vmul.f32 %v7620, %v7741
    %v7893 = vmul.f32 %v7621, %v7751
    %v7894 = vmul.f32 %v7622, %v7761
    %v7895 = vmul.f32 %v7623, %v7771
    %v7896 = vmul.f32 %v7624, %v7781
    %v7897 = vmul.f32 %v7625, %v7791
    %v7898 = vmul.f32 %v7626, %v7801
    %v7899 = vmul.f32 %v7627, %v7811
    %v7900 = vmul.f32 %v7628, %v7821
    %v7901 = vmul.f32 %v7629, %v7831
    %v7902 = vmul.f32 %v7630, %v7841
    %v7903 = vmul.f32 %v7631, %v7851
    %v7904 = vmul.f32 %v7632, %v7861
    %v7905 = vmul.f32 %v7633, %v7871
    %v7906 = vmul.f32 %v7634, %v7881
    %v7907 = vmul.f32 %v7635, %v7891
    %v7908 = vld [vmem:[%s14] sm:$0x1]
    %v7910 = vperm.slane %v7908, 0
    %v7912 = vmul.f32 %v7892, %v7910
    %v7913 = vmul.f32 %v7893, %v7910
    %v7914 = vmul.f32 %v7894, %v7910
    %v7915 = vmul.f32 %v7895, %v7910
    %v7916 = vmul.f32 %v7896, %v7910
    %v7917 = vmul.f32 %v7897, %v7910
    %v7918 = vmul.f32 %v7898, %v7910
    %v7919 = vmul.f32 %v7899, %v7910
    %v7920 = vmul.f32 %v7900, %v7910
    %v7921 = vmul.f32 %v7901, %v7910
    %v7922 = vmul.f32 %v7902, %v7910
    %v7923 = vmul.f32 %v7903, %v7910
    %v7924 = vmul.f32 %v7904, %v7910
    %v7925 = vmul.f32 %v7905, %v7910
    %v7926 = vmul.f32 %v7906, %v7910
    %v7927 = vmul.f32 %v7907, %v7910
    %v7928 = vld [vmem:[%s15] sm:$0x1]
    %v7930 = vperm.slane %v7928, 0
    %v7932 = vadd.f32 %v7912, %v7930
    %v7933 = vadd.f32 %v7913, %v7930
    %v7934 = vadd.f32 %v7914, %v7930
    %v7935 = vadd.f32 %v7915, %v7930
    %v7936 = vadd.f32 %v7916, %v7930
    %v7937 = vadd.f32 %v7917, %v7930
    %v7938 = vadd.f32 %v7918, %v7930
    %v7939 = vadd.f32 %v7919, %v7930
    %v7940 = vadd.f32 %v7920, %v7930
    %v7941 = vadd.f32 %v7921, %v7930
    %v7942 = vadd.f32 %v7922, %v7930
    %v7943 = vadd.f32 %v7923, %v7930
    %v7944 = vadd.f32 %v7924, %v7930
    %v7945 = vadd.f32 %v7925, %v7930
    %v7946 = vadd.f32 %v7926, %v7930
    %v7947 = vadd.f32 %v7927, %v7930
    %v7948 = vpack.c.bf16 %v7933, %v7932
    %v7949 = vpack.c.bf16 %v7935, %v7934
    %v7950 = vpack.c.bf16 %v7937, %v7936
    %v7951 = vpack.c.bf16 %v7939, %v7938
    %v7952 = vpack.c.bf16 %v7941, %v7940
    %v7953 = vpack.c.bf16 %v7943, %v7942
    %v7954 = vpack.c.bf16 %v7945, %v7944
    %v7955 = vpack.c.bf16 %v7947, %v7946
    %v7956 = vld [vmem:[%s10] sm:$0xf]
    %v7957 = vld [vmem:[%s10 + $0x4] sm:$0xf]
    %v7958 = vld [vmem:[%s10 + $0x8] sm:$0xf]
    %v7959 = vld [vmem:[%s10 + $0xc] sm:$0xf]
    %v7960 = vld [vmem:[#allocation11] sm:$0x1]
    %v7962 = vperm.slane %v7960, 0
    %v7968 = vunpack.c.l.b16 %v7956
    %v7969 = vunpack.c.l.b16 %v7957
    %v7970 = vunpack.c.l.b16 %v7958
    %v7971 = vunpack.c.l.b16 %v7959
    %v7972 = vpack.c.b16 %v7969, %v7968
    %v7973 = vpack.c.b16 %v7971, %v7970
    %v7977 = vsel %vm450, %v7948, 0
    %v7980 = vsel %vm450, %v7949, 0
    %v7983 = vsel %vm450, %v7950, 0
    %v7986 = vsel %vm450, %v7951, 0
    %v7989 = vsel %vm450, %v7952, 0
    %v7992 = vsel %vm450, %v7953, 0
    %v7995 = vsel %vm450, %v7954, 0
    %v7998 = vsel %vm450, %v7955, 0
    %8000 = vmatpush.bf16.msra.mxu0 0
    %8001 = vmatpush.bf16.msra.mxu0 0
    %8002 = vmatpush.bf16.msra.mxu0 0
    %8003 = vmatpush.bf16.msra.mxu0 0
    %8004 = vmatpush.bf16.msra.mxu0 0
    %8005 = vmatpush.bf16.msra.mxu0 0
    %8006 = vmatpush.bf16.msra.mxu0 %v7973
    %8007 = vmatpush.bf16.msra.mxu0 %v7972
    %8008 = vmatmul.bf16.gmra.mxu0 %v7977
    %v8009 = vpop.f32.mrf.mxu0
    %v8010 = vadd.f32 %v7962, %v8009
    %v8011 = vpop.f32.mrf.mxu0
    %v8012 = vadd.f32 %v7962, %v8011
    %8013 = vmatmul.bf16.gmra.mxu0 %v7980
    %v8014 = vpop.f32.mrf.mxu0
    %v8015 = vadd.f32 %v7962, %v8014
    %v8016 = vpop.f32.mrf.mxu0
    %v8017 = vadd.f32 %v7962, %v8016
    %8018 = vmatmul.bf16.gmra.mxu0 %v7983
    %v8019 = vpop.f32.mrf.mxu0
    %v8020 = vadd.f32 %v7962, %v8019
    %v8021 = vpop.f32.mrf.mxu0
    %v8022 = vadd.f32 %v7962, %v8021
    %8023 = vmatmul.bf16.gmra.mxu0 %v7986
    %v8024 = vpop.f32.mrf.mxu0
    %v8025 = vadd.f32 %v7962, %v8024
    %v8026 = vpop.f32.mrf.mxu0
    %v8027 = vadd.f32 %v7962, %v8026
    %8028 = vmatmul.bf16.gmra.mxu0 %v7989
    %v8029 = vpop.f32.mrf.mxu0
    %v8030 = vadd.f32 %v7962, %v8029
    %v8031 = vpop.f32.mrf.mxu0
    %v8032 = vadd.f32 %v7962, %v8031
    %8033 = vmatmul.bf16.gmra.mxu0 %v7992
    %v8034 = vpop.f32.mrf.mxu0
    %v8035 = vadd.f32 %v7962, %v8034
    %v8036 = vpop.f32.mrf.mxu0
    %v8037 = vadd.f32 %v7962, %v8036
    %8038 = vmatmul.bf16.gmra.mxu0 %v7995
    %v8039 = vpop.f32.mrf.mxu0
    %v8040 = vadd.f32 %v7962, %v8039
    %v8041 = vpop.f32.mrf.mxu0
    %v8042 = vadd.f32 %v7962, %v8041
    %8043 = vmatmul.bf16.gmra.mxu0 %v7998
    %v8044 = vpop.f32.mrf.mxu0
    %v8045 = vadd.f32 %v7962, %v8044
    %v8046 = vpop.f32.mrf.mxu0
    %v8047 = vadd.f32 %v7962, %v8046
    %8048 = vdwg.mxu0
    %v8049 = vmax.f32 %v8010, 0.0
    %v8050 = vmax.f32 %v8012, 0.0
    %v8051 = vmax.f32 %v8015, 0.0
    %v8052 = vmax.f32 %v8017, 0.0
    %v8053 = vmax.f32 %v8020, 0.0
    %v8054 = vmax.f32 %v8022, 0.0
    %v8055 = vmax.f32 %v8025, 0.0
    %v8056 = vmax.f32 %v8027, 0.0
    %v8057 = vmax.f32 %v8030, 0.0
    %v8058 = vmax.f32 %v8032, 0.0
    %v8059 = vmax.f32 %v8035, 0.0
    %v8060 = vmax.f32 %v8037, 0.0
    %v8061 = vmax.f32 %v8040, 0.0
    %v8062 = vmax.f32 %v8042, 0.0
    %v8063 = vmax.f32 %v8045, 0.0
    %v8064 = vmax.f32 %v8047, 0.0
    %v8065 = vpack.c.bf16 %v8050, %v8049
    %v8066 = vpack.c.bf16 %v8052, %v8051
    %v8067 = vpack.c.bf16 %v8054, %v8053
    %v8068 = vpack.c.bf16 %v8056, %v8055
    %v8069 = vpack.c.bf16 %v8058, %v8057
    %v8070 = vpack.c.bf16 %v8060, %v8059
    %v8071 = vpack.c.bf16 %v8062, %v8061
    %v8072 = vpack.c.bf16 %v8064, %v8063
    %v8073 = vld [vmem:[%s12] sm:$0xf]
    %v8074 = vld [vmem:[%s12 + $0x4] sm:$0xf]
    %v8075 = vld [vmem:[%s12 + $0x8] sm:$0xf]
    %v8076 = vld [vmem:[%s12 + $0xc] sm:$0xf]
    %v8077 = vld [vmem:[%s12 + $0x10] sm:$0xf]
    %v8078 = vld [vmem:[%s12 + $0x14] sm:$0xf]
    %v8079 = vld [vmem:[%s12 + $0x18] sm:$0xf]
    %v8080 = vld [vmem:[%s12 + $0x1c] sm:$0xf]
    %v8081 = vld [vmem:[%s13] sm:$0x1]
    %v8083 = vperm.slane %v8081, 0
    %v8093 = vunpack.c.l.b16 %v8073
    %v8094 = vunpack.c.l.b16 %v8074
    %v8095 = vunpack.c.l.b16 %v8075
    %v8096 = vunpack.c.l.b16 %v8076
    %v8097 = vunpack.c.l.b16 %v8077
    %v8098 = vunpack.c.l.b16 %v8078
    %v8099 = vunpack.c.l.b16 %v8079
    %v8100 = vunpack.c.l.b16 %v8080
    %v8101 = vpack.c.b16 %v8094, %v8093
    %v8102 = vpack.c.b16 %v8096, %v8095
    %v8103 = vpack.c.b16 %v8098, %v8097
    %v8104 = vpack.c.b16 %v8100, %v8099
    %vm8109 = vcmask 523264
    %v8111 = vsel %vm8109, %v8065, 0
    %v8114 = vsel %vm8109, %v8066, 0
    %v8117 = vsel %vm8109, %v8067, 0
    %v8120 = vsel %vm8109, %v8068, 0
    %v8123 = vsel %vm8109, %v8069, 0
    %v8126 = vsel %vm8109, %v8070, 0
    %v8129 = vsel %vm8109, %v8071, 0
    %v8132 = vsel %vm8109, %v8072, 0
    %8134 = vmatpush.bf16.msra.mxu0 0
    %8135 = vmatpush.bf16.msra.mxu0 0
    %8136 = vmatpush.bf16.msra.mxu0 0
    %8137 = vmatpush.bf16.msra.mxu0 0
    %8138 = vmatpush.bf16.msra.mxu0 %v8104
    %8139 = vmatpush.bf16.msra.mxu0 %v8103
    %8140 = vmatpush.bf16.msra.mxu0 %v8102
    %8141 = vmatpush.bf16.msra.mxu0 %v8101
    %8142 = vmatmul.bf16.gmra.mxu0 %v8111
    %v8143 = vpop.f32.mrf.mxu0
    %v8144 = vadd.f32 %v8083, %v8143
    %v8145 = vpop.f32.mrf.mxu0
    %v8146 = vadd.f32 %v8083, %v8145
    %8147 = vmatmul.bf16.gmra.mxu0 %v8114
    %v8148 = vpop.f32.mrf.mxu0
    %v8149 = vadd.f32 %v8083, %v8148
    %v8150 = vpop.f32.mrf.mxu0
    %v8151 = vadd.f32 %v8083, %v8150
    %8152 = vmatmul.bf16.gmra.mxu0 %v8117
    %v8153 = vpop.f32.mrf.mxu0
    %v8154 = vadd.f32 %v8083, %v8153
    %v8155 = vpop.f32.mrf.mxu0
    %v8156 = vadd.f32 %v8083, %v8155
    %8157 = vmatmul.bf16.gmra.mxu0 %v8120
    %v8158 = vpop.f32.mrf.mxu0
    %v8159 = vadd.f32 %v8083, %v8158
    %v8160 = vpop.f32.mrf.mxu0
    %v8161 = vadd.f32 %v8083, %v8160
    %8162 = vmatmul.bf16.gmra.mxu0 %v8123
    %v8163 = vpop.f32.mrf.mxu0
    %v8164 = vadd.f32 %v8083, %v8163
    %v8165 = vpop.f32.mrf.mxu0
    %v8166 = vadd.f32 %v8083, %v8165
    %8167 = vmatmul.bf16.gmra.mxu0 %v8126
    %v8168 = vpop.f32.mrf.mxu0
    %v8169 = vadd.f32 %v8083, %v8168
    %v8170 = vpop.f32.mrf.mxu0
    %v8171 = vadd.f32 %v8083, %v8170
    %8172 = vmatmul.bf16.gmra.mxu0 %v8129
    %v8173 = vpop.f32.mrf.mxu0
    %v8174 = vadd.f32 %v8083, %v8173
    %v8175 = vpop.f32.mrf.mxu0
    %v8176 = vadd.f32 %v8083, %v8175
    %8177 = vmatmul.bf16.gmra.mxu0 %v8132
    %v8178 = vpop.f32.mrf.mxu0
    %v8179 = vadd.f32 %v8083, %v8178
    %v8180 = vpop.f32.mrf.mxu0
    %v8181 = vadd.f32 %v8083, %v8180
    %8182 = vdwg.mxu0
    %v8183 = vadd.f32 %v7932, %v8144
    %v8184 = vadd.f32 %v7933, %v8146
    %v8185 = vadd.f32 %v7934, %v8149
    %v8186 = vadd.f32 %v7935, %v8151
    %v8187 = vadd.f32 %v7936, %v8154
    %v8188 = vadd.f32 %v7937, %v8156
    %v8189 = vadd.f32 %v7938, %v8159
    %v8190 = vadd.f32 %v7939, %v8161
    %v8191 = vadd.f32 %v7940, %v8164
    %v8192 = vadd.f32 %v7941, %v8166
    %v8193 = vadd.f32 %v7942, %v8169
    %v8194 = vadd.f32 %v7943, %v8171
    %v8195 = vadd.f32 %v7944, %v8174
    %v8196 = vadd.f32 %v7945, %v8176
    %v8197 = vadd.f32 %v7946, %v8179
    %v8198 = vadd.f32 %v7947, %v8181
    %v8199 = vsel %vm450, %v8183, 0.0
    %8200 = vadd.xlane.f32.xlu0 %v8199
    %v8201 = vpop.xlane.xlu0 %8200
    %v8202 = vsel %vm450, %v8184, 0.0
    %8203 = vadd.xlane.f32.xlu0 %v8202
    %v8204 = vpop.xlane.xlu0 %8203
    %v8205 = vsel %vm450, %v8185, 0.0
    %8206 = vadd.xlane.f32.xlu0 %v8205
    %v8207 = vpop.xlane.xlu0 %8206
    %v8208 = vsel %vm450, %v8186, 0.0
    %8209 = vadd.xlane.f32.xlu0 %v8208
    %v8210 = vpop.xlane.xlu0 %8209
    %v8211 = vsel %vm450, %v8187, 0.0
    %8212 = vadd.xlane.f32.xlu0 %v8211
    %v8213 = vpop.xlane.xlu0 %8212
    %v8214 = vsel %vm450, %v8188, 0.0
    %8215 = vadd.xlane.f32.xlu0 %v8214
    %v8216 = vpop.xlane.xlu0 %8215
    %v8217 = vsel %vm450, %v8189, 0.0
    %8218 = vadd.xlane.f32.xlu0 %v8217
    %v8219 = vpop.xlane.xlu0 %8218
    %v8220 = vsel %vm450, %v8190, 0.0
    %8221 = vadd.xlane.f32.xlu0 %v8220
    %v8222 = vpop.xlane.xlu0 %8221
    %v8223 = vsel %vm450, %v8191, 0.0
    %8224 = vadd.xlane.f32.xlu0 %v8223
    %v8225 = vpop.xlane.xlu0 %8224
    %v8226 = vsel %vm450, %v8192, 0.0
    %8227 = vadd.xlane.f32.xlu0 %v8226
    %v8228 = vpop.xlane.xlu0 %8227
    %v8229 = vsel %vm450, %v8193, 0.0
    %8230 = vadd.xlane.f32.xlu0 %v8229
    %v8231 = vpop.xlane.xlu0 %8230
    %v8232 = vsel %vm450, %v8194, 0.0
    %8233 = vadd.xlane.f32.xlu0 %v8232
    %v8234 = vpop.xlane.xlu0 %8233
    %v8235 = vsel %vm450, %v8195, 0.0
    %8236 = vadd.xlane.f32.xlu0 %v8235
    %v8237 = vpop.xlane.xlu0 %8236
    %v8238 = vsel %vm450, %v8196, 0.0
    %8239 = vadd.xlane.f32.xlu0 %v8238
    %v8240 = vpop.xlane.xlu0 %8239
    %v8241 = vsel %vm450, %v8197, 0.0
    %8242 = vadd.xlane.f32.xlu0 %v8241
    %v8243 = vpop.xlane.xlu0 %8242
    %v8244 = vsel %vm450, %v8198, 0.0
    %8245 = vadd.xlane.f32.xlu0 %v8244
    %v8246 = vpop.xlane.xlu0 %8245
    %v8247 = vmul.f32 %v8201, %v7603
    %v8248 = vmul.f32 %v8204, %v7603
    %v8249 = vmul.f32 %v8207, %v7603
    %v8250 = vmul.f32 %v8210, %v7603
    %v8251 = vmul.f32 %v8213, %v7603
    %v8252 = vmul.f32 %v8216, %v7603
    %v8253 = vmul.f32 %v8219, %v7603
    %v8254 = vmul.f32 %v8222, %v7603
    %v8255 = vmul.f32 %v8225, %v7603
    %v8256 = vmul.f32 %v8228, %v7603
    %v8257 = vmul.f32 %v8231, %v7603
    %v8258 = vmul.f32 %v8234, %v7603
    %v8259 = vmul.f32 %v8237, %v7603
    %v8260 = vmul.f32 %v8240, %v7603
    %v8261 = vmul.f32 %v8243, %v7603
    %v8262 = vmul.f32 %v8246, %v7603
    %v8263 = vsub.f32 %v8183, %v8247
    %v8264 = vsub.f32 %v8184, %v8248
    %v8265 = vsub.f32 %v8185, %v8249
    %v8266 = vsub.f32 %v8186, %v8250
    %v8267 = vsub.f32 %v8187, %v8251
    %v8268 = vsub.f32 %v8188, %v8252
    %v8269 = vsub.f32 %v8189, %v8253
    %v8270 = vsub.f32 %v8190, %v8254
    %v8271 = vsub.f32 %v8191, %v8255
    %v8272 = vsub.f32 %v8192, %v8256
    %v8273 = vsub.f32 %v8193, %v8257
    %v8274 = vsub.f32 %v8194, %v8258
    %v8275 = vsub.f32 %v8195, %v8259
    %v8276 = vsub.f32 %v8196, %v8260
    %v8277 = vsub.f32 %v8197, %v8261
    %v8278 = vsub.f32 %v8198, %v8262
    %v8279 = vmul.f32 %v8263, %v8263
    %v8280 = vmul.f32 %v8264, %v8264
    %v8281 = vmul.f32 %v8265, %v8265
    %v8282 = vmul.f32 %v8266, %v8266
    %v8283 = vmul.f32 %v8267, %v8267
    %v8284 = vmul.f32 %v8268, %v8268
    %v8285 = vmul.f32 %v8269, %v8269
    %v8286 = vmul.f32 %v8270, %v8270
    %v8287 = vmul.f32 %v8271, %v8271
    %v8288 = vmul.f32 %v8272, %v8272
    %v8289 = vmul.f32 %v8273, %v8273
    %v8290 = vmul.f32 %v8274, %v8274
    %v8291 = vmul.f32 %v8275, %v8275
    %v8292 = vmul.f32 %v8276, %v8276
    %v8293 = vmul.f32 %v8277, %v8277
    %v8294 = vmul.f32 %v8278, %v8278
    %v8295 = vsel %vm450, %v8279, 0.0
    %8296 = vadd.xlane.f32.xlu0 %v8295
    %v8297 = vpop.xlane.xlu0 %8296
    %v8298 = vsel %vm450, %v8280, 0.0
    %8299 = vadd.xlane.f32.xlu0 %v8298
    %v8300 = vpop.xlane.xlu0 %8299
    %v8301 = vsel %vm450, %v8281, 0.0
    %8302 = vadd.xlane.f32.xlu0 %v8301
    %v8303 = vpop.xlane.xlu0 %8302
    %v8304 = vsel %vm450, %v8282, 0.0
    %8305 = vadd.xlane.f32.xlu0 %v8304
    %v8306 = vpop.xlane.xlu0 %8305
    %v8307 = vsel %vm450, %v8283, 0.0
    %8308 = vadd.xlane.f32.xlu0 %v8307
    %v8309 = vpop.xlane.xlu0 %8308
    %v8310 = vsel %vm450, %v8284, 0.0
    %8311 = vadd.xlane.f32.xlu0 %v8310
    %v8312 = vpop.xlane.xlu0 %8311
    %v8313 = vsel %vm450, %v8285, 0.0
    %8314 = vadd.xlane.f32.xlu0 %v8313
    %v8315 = vpop.xlane.xlu0 %8314
    %v8316 = vsel %vm450, %v8286, 0.0
    %8317 = vadd.xlane.f32.xlu0 %v8316
    %v8318 = vpop.xlane.xlu0 %8317
    %v8319 = vsel %vm450, %v8287, 0.0
    %8320 = vadd.xlane.f32.xlu0 %v8319
    %v8321 = vpop.xlane.xlu0 %8320
    %v8322 = vsel %vm450, %v8288, 0.0
    %8323 = vadd.xlane.f32.xlu0 %v8322
    %v8324 = vpop.xlane.xlu0 %8323
    %v8325 = vsel %vm450, %v8289, 0.0
    %8326 = vadd.xlane.f32.xlu0 %v8325
    %v8327 = vpop.xlane.xlu0 %8326
    %v8328 = vsel %vm450, %v8290, 0.0
    %8329 = vadd.xlane.f32.xlu0 %v8328
    %v8330 = vpop.xlane.xlu0 %8329
    %v8331 = vsel %vm450, %v8291, 0.0
    %8332 = vadd.xlane.f32.xlu0 %v8331
    %v8333 = vpop.xlane.xlu0 %8332
    %v8334 = vsel %vm450, %v8292, 0.0
    %8335 = vadd.xlane.f32.xlu0 %v8334
    %v8336 = vpop.xlane.xlu0 %8335
    %v8337 = vsel %vm450, %v8293, 0.0
    %8338 = vadd.xlane.f32.xlu0 %v8337
    %v8339 = vpop.xlane.xlu0 %8338
    %v8340 = vsel %vm450, %v8294, 0.0
    %8341 = vadd.xlane.f32.xlu0 %v8340
    %v8342 = vpop.xlane.xlu0 %8341
    %v8343 = vmul.f32 %v8297, %v7603
    %v8344 = vmul.f32 %v8300, %v7603
    %v8345 = vmul.f32 %v8303, %v7603
    %v8346 = vmul.f32 %v8306, %v7603
    %v8347 = vmul.f32 %v8309, %v7603
    %v8348 = vmul.f32 %v8312, %v7603
    %v8349 = vmul.f32 %v8315, %v7603
    %v8350 = vmul.f32 %v8318, %v7603
    %v8351 = vmul.f32 %v8321, %v7603
    %v8352 = vmul.f32 %v8324, %v7603
    %v8353 = vmul.f32 %v8327, %v7603
    %v8354 = vmul.f32 %v8330, %v7603
    %v8355 = vmul.f32 %v8333, %v7603
    %v8356 = vmul.f32 %v8336, %v7603
    %v8357 = vmul.f32 %v8339, %v7603
    %v8358 = vmul.f32 %v8342, %v7603
    %v8359 = vadd.f32 %v8343, 1e-05
    %v8360 = vadd.f32 %v8344, 1e-05
    %v8361 = vadd.f32 %v8345, 1e-05
    %v8362 = vadd.f32 %v8346, 1e-05
    %v8363 = vadd.f32 %v8347, 1e-05
    %v8364 = vadd.f32 %v8348, 1e-05
    %v8365 = vadd.f32 %v8349, 1e-05
    %v8366 = vadd.f32 %v8350, 1e-05
    %v8367 = vadd.f32 %v8351, 1e-05
    %v8368 = vadd.f32 %v8352, 1e-05
    %v8369 = vadd.f32 %v8353, 1e-05
    %v8370 = vadd.f32 %v8354, 1e-05
    %v8371 = vadd.f32 %v8355, 1e-05
    %v8372 = vadd.f32 %v8356, 1e-05
    %v8373 = vadd.f32 %v8357, 1e-05
    %v8374 = vadd.f32 %v8358, 1e-05
    %v8375 = vrsqrt.pop %v8359
    %v8376 = vmul.f32 %v8375, %v8359
    %v8377 = vmul.f32 %v8376, %v8375
    %v8378 = vmul.f32 0.5, %v8377
    %v8379 = vsub.f32 1.5, %v8378
    %v8380 = vmul.f32 %v8375, %v8379
    %vm8381 = vweird.f32 %v8359
    %vm8382 = vweird.f32 %v8375
    %vm8383 = vmor %vm8381, %vm8382
    %v8384 = vsel %vm8383, %v8375, %v8380
    %v8385 = vrsqrt.pop %v8360
    %v8386 = vmul.f32 %v8385, %v8360
    %v8387 = vmul.f32 %v8386, %v8385
    %v8388 = vmul.f32 0.5, %v8387
    %v8389 = vsub.f32 1.5, %v8388
    %v8390 = vmul.f32 %v8385, %v8389
    %vm8391 = vweird.f32 %v8360
    %vm8392 = vweird.f32 %v8385
    %vm8393 = vmor %vm8391, %vm8392
    %v8394 = vsel %vm8393, %v8385, %v8390
    %v8395 = vrsqrt.pop %v8361
    %v8396 = vmul.f32 %v8395, %v8361
    %v8397 = vmul.f32 %v8396, %v8395
    %v8398 = vmul.f32 0.5, %v8397
    %v8399 = vsub.f32 1.5, %v8398
    %v8400 = vmul.f32 %v8395, %v8399
    %vm8401 = vweird.f32 %v8361
    %vm8402 = vweird.f32 %v8395
    %vm8403 = vmor %vm8401, %vm8402
    %v8404 = vsel %vm8403, %v8395, %v8400
    %v8405 = vrsqrt.pop %v8362
    %v8406 = vmul.f32 %v8405, %v8362
    %v8407 = vmul.f32 %v8406, %v8405
    %v8408 = vmul.f32 0.5, %v8407
    %v8409 = vsub.f32 1.5, %v8408
    %v8410 = vmul.f32 %v8405, %v8409
    %vm8411 = vweird.f32 %v8362
    %vm8412 = vweird.f32 %v8405
    %vm8413 = vmor %vm8411, %vm8412
    %v8414 = vsel %vm8413, %v8405, %v8410
    %v8415 = vrsqrt.pop %v8363
    %v8416 = vmul.f32 %v8415, %v8363
    %v8417 = vmul.f32 %v8416, %v8415
    %v8418 = vmul.f32 0.5, %v8417
    %v8419 = vsub.f32 1.5, %v8418
    %v8420 = vmul.f32 %v8415, %v8419
    %vm8421 = vweird.f32 %v8363
    %vm8422 = vweird.f32 %v8415
    %vm8423 = vmor %vm8421, %vm8422
    %v8424 = vsel %vm8423, %v8415, %v8420
    %v8425 = vrsqrt.pop %v8364
    %v8426 = vmul.f32 %v8425, %v8364
    %v8427 = vmul.f32 %v8426, %v8425
    %v8428 = vmul.f32 0.5, %v8427
    %v8429 = vsub.f32 1.5, %v8428
    %v8430 = vmul.f32 %v8425, %v8429
    %vm8431 = vweird.f32 %v8364
    %vm8432 = vweird.f32 %v8425
    %vm8433 = vmor %vm8431, %vm8432
    %v8434 = vsel %vm8433, %v8425, %v8430
    %v8435 = vrsqrt.pop %v8365
    %v8436 = vmul.f32 %v8435, %v8365
    %v8437 = vmul.f32 %v8436, %v8435
    %v8438 = vmul.f32 0.5, %v8437
    %v8439 = vsub.f32 1.5, %v8438
    %v8440 = vmul.f32 %v8435, %v8439
    %vm8441 = vweird.f32 %v8365
    %vm8442 = vweird.f32 %v8435
    %vm8443 = vmor %vm8441, %vm8442
    %v8444 = vsel %vm8443, %v8435, %v8440
    %v8445 = vrsqrt.pop %v8366
    %v8446 = vmul.f32 %v8445, %v8366
    %v8447 = vmul.f32 %v8446, %v8445
    %v8448 = vmul.f32 0.5, %v8447
    %v8449 = vsub.f32 1.5, %v8448
    %v8450 = vmul.f32 %v8445, %v8449
    %vm8451 = vweird.f32 %v8366
    %vm8452 = vweird.f32 %v8445
    %vm8453 = vmor %vm8451, %vm8452
    %v8454 = vsel %vm8453, %v8445, %v8450
    %v8455 = vrsqrt.pop %v8367
    %v8456 = vmul.f32 %v8455, %v8367
    %v8457 = vmul.f32 %v8456, %v8455
    %v8458 = vmul.f32 0.5, %v8457
    %v8459 = vsub.f32 1.5, %v8458
    %v8460 = vmul.f32 %v8455, %v8459
    %vm8461 = vweird.f32 %v8367
    %vm8462 = vweird.f32 %v8455
    %vm8463 = vmor %vm8461, %vm8462
    %v8464 = vsel %vm8463, %v8455, %v8460
    %v8465 = vrsqrt.pop %v8368
    %v8466 = vmul.f32 %v8465, %v8368
    %v8467 = vmul.f32 %v8466, %v8465
    %v8468 = vmul.f32 0.5, %v8467
    %v8469 = vsub.f32 1.5, %v8468
    %v8470 = vmul.f32 %v8465, %v8469
    %vm8471 = vweird.f32 %v8368
    %vm8472 = vweird.f32 %v8465
    %vm8473 = vmor %vm8471, %vm8472
    %v8474 = vsel %vm8473, %v8465, %v8470
    %v8475 = vrsqrt.pop %v8369
    %v8476 = vmul.f32 %v8475, %v8369
    %v8477 = vmul.f32 %v8476, %v8475
    %v8478 = vmul.f32 0.5, %v8477
    %v8479 = vsub.f32 1.5, %v8478
    %v8480 = vmul.f32 %v8475, %v8479
    %vm8481 = vweird.f32 %v8369
    %vm8482 = vweird.f32 %v8475
    %vm8483 = vmor %vm8481, %vm8482
    %v8484 = vsel %vm8483, %v8475, %v8480
    %v8485 = vrsqrt.pop %v8370
    %v8486 = vmul.f32 %v8485, %v8370
    %v8487 = vmul.f32 %v8486, %v8485
    %v8488 = vmul.f32 0.5, %v8487
    %v8489 = vsub.f32 1.5, %v8488
    %v8490 = vmul.f32 %v8485, %v8489
    %vm8491 = vweird.f32 %v8370
    %vm8492 = vweird.f32 %v8485
    %vm8493 = vmor %vm8491, %vm8492
    %v8494 = vsel %vm8493, %v8485, %v8490
    %v8495 = vrsqrt.pop %v8371
    %v8496 = vmul.f32 %v8495, %v8371
    %v8497 = vmul.f32 %v8496, %v8495
    %v8498 = vmul.f32 0.5, %v8497
    %v8499 = vsub.f32 1.5, %v8498
    %v8500 = vmul.f32 %v8495, %v8499
    %vm8501 = vweird.f32 %v8371
    %vm8502 = vweird.f32 %v8495
    %vm8503 = vmor %vm8501, %vm8502
    %v8504 = vsel %vm8503, %v8495, %v8500
    %v8505 = vrsqrt.pop %v8372
    %v8506 = vmul.f32 %v8505, %v8372
    %v8507 = vmul.f32 %v8506, %v8505
    %v8508 = vmul.f32 0.5, %v8507
    %v8509 = vsub.f32 1.5, %v8508
    %v8510 = vmul.f32 %v8505, %v8509
    %vm8511 = vweird.f32 %v8372
    %vm8512 = vweird.f32 %v8505
    %vm8513 = vmor %vm8511, %vm8512
    %v8514 = vsel %vm8513, %v8505, %v8510
    %v8515 = vrsqrt.pop %v8373
    %v8516 = vmul.f32 %v8515, %v8373
    %v8517 = vmul.f32 %v8516, %v8515
    %v8518 = vmul.f32 0.5, %v8517
    %v8519 = vsub.f32 1.5, %v8518
    %v8520 = vmul.f32 %v8515, %v8519
    %vm8521 = vweird.f32 %v8373
    %vm8522 = vweird.f32 %v8515
    %vm8523 = vmor %vm8521, %vm8522
    %v8524 = vsel %vm8523, %v8515, %v8520
    %v8525 = vrsqrt.pop %v8374
    %v8526 = vmul.f32 %v8525, %v8374
    %v8527 = vmul.f32 %v8526, %v8525
    %v8528 = vmul.f32 0.5, %v8527
    %v8529 = vsub.f32 1.5, %v8528
    %v8530 = vmul.f32 %v8525, %v8529
    %vm8531 = vweird.f32 %v8374
    %vm8532 = vweird.f32 %v8525
    %vm8533 = vmor %vm8531, %vm8532
    %v8534 = vsel %vm8533, %v8525, %v8530
    %v8535 = vmul.f32 %v8263, %v8384
    %v8536 = vmul.f32 %v8264, %v8394
    %v8537 = vmul.f32 %v8265, %v8404
    %v8538 = vmul.f32 %v8266, %v8414
    %v8539 = vmul.f32 %v8267, %v8424
    %v8540 = vmul.f32 %v8268, %v8434
    %v8541 = vmul.f32 %v8269, %v8444
    %v8542 = vmul.f32 %v8270, %v8454
    %v8543 = vmul.f32 %v8271, %v8464
    %v8544 = vmul.f32 %v8272, %v8474
    %v8545 = vmul.f32 %v8273, %v8484
    %v8546 = vmul.f32 %v8274, %v8494
    %v8547 = vmul.f32 %v8275, %v8504
    %v8548 = vmul.f32 %v8276, %v8514
    %v8549 = vmul.f32 %v8277, %v8524
    %v8550 = vmul.f32 %v8278, %v8534
    %v8551 = vld [vmem:[%s16] sm:$0x1]
    %v8553 = vperm.slane %v8551, 0
    %v8555 = vmul.f32 %v8535, %v8553
    %v8556 = vmul.f32 %v8536, %v8553
    %v8557 = vmul.f32 %v8537, %v8553
    %v8558 = vmul.f32 %v8538, %v8553
    %v8559 = vmul.f32 %v8539, %v8553
    %v8560 = vmul.f32 %v8540, %v8553
    %v8561 = vmul.f32 %v8541, %v8553
    %v8562 = vmul.f32 %v8542, %v8553
    %v8563 = vmul.f32 %v8543, %v8553
    %v8564 = vmul.f32 %v8544, %v8553
    %v8565 = vmul.f32 %v8545, %v8553
    %v8566 = vmul.f32 %v8546, %v8553
    %v8567 = vmul.f32 %v8547, %v8553
    %v8568 = vmul.f32 %v8548, %v8553
    %v8569 = vmul.f32 %v8549, %v8553
    %v8570 = vmul.f32 %v8550, %v8553
    %v8571 = vld [vmem:[%s17] sm:$0x1]
    %v8573 = vperm.slane %v8571, 0
    %v8575 = vadd.f32 %v8555, %v8573
    %v8576 = vadd.f32 %v8556, %v8573
    %v8577 = vadd.f32 %v8557, %v8573
    %v8578 = vadd.f32 %v8558, %v8573
    %v8579 = vadd.f32 %v8559, %v8573
    %v8580 = vadd.f32 %v8560, %v8573
    %v8581 = vadd.f32 %v8561, %v8573
    %v8582 = vadd.f32 %v8562, %v8573
    %v8583 = vadd.f32 %v8563, %v8573
    %v8584 = vadd.f32 %v8564, %v8573
    %v8585 = vadd.f32 %v8565, %v8573
    %v8586 = vadd.f32 %v8566, %v8573
    %v8587 = vadd.f32 %v8567, %v8573
    %v8588 = vadd.f32 %v8568, %v8573
    %v8589 = vadd.f32 %v8569, %v8573
    %v8590 = vadd.f32 %v8570, %v8573
    %v8591 = vrot.slane %v8577, 4
    %v8592 = vsel %vm166, %v8591, %v8575
    %v8593 = vrot.slane %v8575, 4
    %v8594 = vsel %vm166, %v8577, %v8593
    %v8596 = vunpack.c.l.s4 1983009808
    %v8597 = vunpack.c.0.s8 %v8596
    %v8598 = vperm.slane %v8592, %v8597
    %v8600 = vunpack.c.l.s4 1983009808
    %v8601 = vunpack.c.0.s8 %v8600
    %v8602 = vperm.slane %v8594, %v8601
    %v8603 = vrot.slane %v8578, 4
    %v8604 = vsel %vm166, %v8603, %v8576
    %v8605 = vrot.slane %v8576, 4
    %v8606 = vsel %vm166, %v8578, %v8605
    %v8608 = vunpack.c.l.s4 1983009808
    %v8609 = vunpack.c.0.s8 %v8608
    %v8610 = vperm.slane %v8604, %v8609
    %v8612 = vunpack.c.l.s4 1983009808
    %v8613 = vunpack.c.0.s8 %v8612
    %v8614 = vperm.slane %v8606, %v8613
    %v8615 = vrot.slane %v8581, 4
    %v8616 = vsel %vm166, %v8615, %v8579
    %v8617 = vrot.slane %v8579, 4
    %v8618 = vsel %vm166, %v8581, %v8617
    %v8620 = vunpack.c.l.s4 1983009808
    %v8621 = vunpack.c.0.s8 %v8620
    %v8622 = vperm.slane %v8616, %v8621
    %v8624 = vunpack.c.l.s4 1983009808
    %v8625 = vunpack.c.0.s8 %v8624
    %v8626 = vperm.slane %v8618, %v8625
    %v8627 = vrot.slane %v8582, 4
    %v8628 = vsel %vm166, %v8627, %v8580
    %v8629 = vrot.slane %v8580, 4
    %v8630 = vsel %vm166, %v8582, %v8629
    %v8632 = vunpack.c.l.s4 1983009808
    %v8633 = vunpack.c.0.s8 %v8632
    %v8634 = vperm.slane %v8628, %v8633
    %v8636 = vunpack.c.l.s4 1983009808
    %v8637 = vunpack.c.0.s8 %v8636
    %v8638 = vperm.slane %v8630, %v8637
    %v8639 = vrot.slane %v8610, 4
    %v8640 = vsel %vm166, %v8639, %v8598
    %v8641 = vrot.slane %v8598, 4
    %v8642 = vsel %vm166, %v8610, %v8641
    %v8644 = vunpack.c.l.s4 1934713408
    %v8645 = vunpack.c.0.s8 %v8644
    %v8646 = vperm.slane %v8640, %v8645
    %v8648 = vunpack.c.l.s4 1934713408
    %v8649 = vunpack.c.0.s8 %v8648
    %v8650 = vperm.slane %v8642, %v8649
    %v8651 = vrot.slane %v8614, 4
    %v8652 = vsel %vm166, %v8651, %v8602
    %v8653 = vrot.slane %v8602, 4
    %v8654 = vsel %vm166, %v8614, %v8653
    %v8656 = vunpack.c.l.s4 1934713408
    %v8657 = vunpack.c.0.s8 %v8656
    %v8658 = vperm.slane %v8652, %v8657
    %v8660 = vunpack.c.l.s4 1934713408
    %v8661 = vunpack.c.0.s8 %v8660
    %v8662 = vperm.slane %v8654, %v8661
    %v8663 = vrot.slane %v8634, 4
    %v8664 = vsel %vm166, %v8663, %v8622
    %v8665 = vrot.slane %v8622, 4
    %v8666 = vsel %vm166, %v8634, %v8665
    %v8668 = vunpack.c.l.s4 1934713408
    %v8669 = vunpack.c.0.s8 %v8668
    %v8670 = vperm.slane %v8664, %v8669
    %v8672 = vunpack.c.l.s4 1934713408
    %v8673 = vunpack.c.0.s8 %v8672
    %v8674 = vperm.slane %v8666, %v8673
    %v8675 = vrot.slane %v8638, 4
    %v8676 = vsel %vm166, %v8675, %v8626
    %v8677 = vrot.slane %v8626, 4
    %v8678 = vsel %vm166, %v8638, %v8677
    %v8680 = vunpack.c.l.s4 1934713408
    %v8681 = vunpack.c.0.s8 %v8680
    %v8682 = vperm.slane %v8676, %v8681
    %v8684 = vunpack.c.l.s4 1934713408
    %v8685 = vunpack.c.0.s8 %v8684
    %v8686 = vperm.slane %v8678, %v8685
    %v8687 = vrot.slane %v8670, 4
    %v8688 = vsel %vm166, %v8687, %v8646
    %v8689 = vrot.slane %v8646, 4
    %v8690 = vsel %vm166, %v8670, %v8689
    %v8691 = vrot.slane %v8674, 4
    %v8692 = vsel %vm166, %v8691, %v8650
    %v8693 = vrot.slane %v8650, 4
    %v8694 = vsel %vm166, %v8674, %v8693
    %v8695 = vrot.slane %v8682, 4
    %v8696 = vsel %vm166, %v8695, %v8658
    %v8697 = vrot.slane %v8658, 4
    %v8698 = vsel %vm166, %v8682, %v8697
    %v8699 = vrot.slane %v8686, 4
    %v8700 = vsel %vm166, %v8699, %v8662
    %v8701 = vrot.slane %v8662, 4
    %v8702 = vsel %vm166, %v8686, %v8701
    %v8703 = vrot.slane %v8585, 4
    %v8704 = vsel %vm166, %v8703, %v8583
    %v8705 = vrot.slane %v8583, 4
    %v8706 = vsel %vm166, %v8585, %v8705
    %v8708 = vunpack.c.l.s4 1983009808
    %v8709 = vunpack.c.0.s8 %v8708
    %v8710 = vperm.slane %v8704, %v8709
    %v8712 = vunpack.c.l.s4 1983009808
    %v8713 = vunpack.c.0.s8 %v8712
    %v8714 = vperm.slane %v8706, %v8713
    %v8715 = vrot.slane %v8586, 4
    %v8716 = vsel %vm166, %v8715, %v8584
    %v8717 = vrot.slane %v8584, 4
    %v8718 = vsel %vm166, %v8586, %v8717
    %v8720 = vunpack.c.l.s4 1983009808
    %v8721 = vunpack.c.0.s8 %v8720
    %v8722 = vperm.slane %v8716, %v8721
    %v8724 = vunpack.c.l.s4 1983009808
    %v8725 = vunpack.c.0.s8 %v8724
    %v8726 = vperm.slane %v8718, %v8725
    %v8727 = vrot.slane %v8589, 4
    %v8728 = vsel %vm166, %v8727, %v8587
    %v8729 = vrot.slane %v8587, 4
    %v8730 = vsel %vm166, %v8589, %v8729
    %v8732 = vunpack.c.l.s4 1983009808
    %v8733 = vunpack.c.0.s8 %v8732
    %v8734 = vperm.slane %v8728, %v8733
    %v8736 = vunpack.c.l.s4 1983009808
    %v8737 = vunpack.c.0.s8 %v8736
    %v8738 = vperm.slane %v8730, %v8737
    %v8739 = vrot.slane %v8590, 4
    %v8740 = vsel %vm166, %v8739, %v8588
    %v8741 = vrot.slane %v8588, 4
    %v8742 = vsel %vm166, %v8590, %v8741
    %v8744 = vunpack.c.l.s4 1983009808
    %v8745 = vunpack.c.0.s8 %v8744
    %v8746 = vperm.slane %v8740, %v8745
    %v8748 = vunpack.c.l.s4 1983009808
    %v8749 = vunpack.c.0.s8 %v8748
    %v8750 = vperm.slane %v8742, %v8749
    %v8751 = vrot.slane %v8722, 4
    %v8752 = vsel %vm166, %v8751, %v8710
    %v8753 = vrot.slane %v8710, 4
    %v8754 = vsel %vm166, %v8722, %v8753
    %v8756 = vunpack.c.l.s4 1934713408
    %v8757 = vunpack.c.0.s8 %v8756
    %v8758 = vperm.slane %v8752, %v8757
    %v8760 = vunpack.c.l.s4 1934713408
    %v8761 = vunpack.c.0.s8 %v8760
    %v8762 = vperm.slane %v8754, %v8761
    %v8763 = vrot.slane %v8726, 4
    %v8764 = vsel %vm166, %v8763, %v8714
    %v8765 = vrot.slane %v8714, 4
    %v8766 = vsel %vm166, %v8726, %v8765
    %v8768 = vunpack.c.l.s4 1934713408
    %v8769 = vunpack.c.0.s8 %v8768
    %v8770 = vperm.slane %v8764, %v8769
    %v8772 = vunpack.c.l.s4 1934713408
    %v8773 = vunpack.c.0.s8 %v8772
    %v8774 = vperm.slane %v8766, %v8773
    %v8775 = vrot.slane %v8746, 4
    %v8776 = vsel %vm166, %v8775, %v8734
    %v8777 = vrot.slane %v8734, 4
    %v8778 = vsel %vm166, %v8746, %v8777
    %v8780 = vunpack.c.l.s4 1934713408
    %v8781 = vunpack.c.0.s8 %v8780
    %v8782 = vperm.slane %v8776, %v8781
    %v8784 = vunpack.c.l.s4 1934713408
    %v8785 = vunpack.c.0.s8 %v8784
    %v8786 = vperm.slane %v8778, %v8785
    %v8787 = vrot.slane %v8750, 4
    %v8788 = vsel %vm166, %v8787, %v8738
    %v8789 = vrot.slane %v8738, 4
    %v8790 = vsel %vm166, %v8750, %v8789
    %v8792 = vunpack.c.l.s4 1934713408
    %v8793 = vunpack.c.0.s8 %v8792
    %v8794 = vperm.slane %v8788, %v8793
    %v8796 = vunpack.c.l.s4 1934713408
    %v8797 = vunpack.c.0.s8 %v8796
    %v8798 = vperm.slane %v8790, %v8797
    %v8799 = vrot.slane %v8782, 4
    %v8800 = vsel %vm166, %v8799, %v8758
    %v8801 = vrot.slane %v8758, 4
    %v8802 = vsel %vm166, %v8782, %v8801
    %v8803 = vrot.slane %v8786, 4
    %v8804 = vsel %vm166, %v8803, %v8762
    %v8805 = vrot.slane %v8762, 4
    %v8806 = vsel %vm166, %v8786, %v8805
    %v8807 = vrot.slane %v8794, 4
    %v8808 = vsel %vm166, %v8807, %v8770
    %v8809 = vrot.slane %v8770, 4
    %v8810 = vsel %vm166, %v8794, %v8809
    %v8811 = vrot.slane %v8798, 4
    %v8812 = vsel %vm166, %v8811, %v8774
    %v8813 = vrot.slane %v8774, 4
    %v8814 = vsel %vm166, %v8798, %v8813
    %8815 = vst.msk [vmem:[#allocation13] sm:$0xff] %vm450, %v8688
    %8816 = vst.msk [vmem:[#allocation13 + $0x8] sm:$0xff] %vm450, %v8800
    %8817 = vst.msk [vmem:[#allocation13 + $0x10] sm:$0xff] %vm450, %v8690
    %8818 = vst.msk [vmem:[#allocation13 + $0x18] sm:$0xff] %vm450, %v8802
    %8819 = vst.msk [vmem:[#allocation13 + $0x20] sm:$0xff] %vm450, %v8692
    %8820 = vst.msk [vmem:[#allocation13 + $0x28] sm:$0xff] %vm450, %v8804
    %8821 = vst.msk [vmem:[#allocation13 + $0x30] sm:$0xff] %vm450, %v8694
    %8822 = vst.msk [vmem:[#allocation13 + $0x38] sm:$0xff] %vm450, %v8806
    %8823 = vst.msk [vmem:[#allocation13 + $0x40] sm:$0xff] %vm450, %v8696
    %8824 = vst.msk [vmem:[#allocation13 + $0x48] sm:$0xff] %vm450, %v8808
    %8825 = vst.msk [vmem:[#allocation13 + $0x50] sm:$0xff] %vm450, %v8698
    %8826 = vst.msk [vmem:[#allocation13 + $0x58] sm:$0xff] %vm450, %v8810
    %8827 = vst.msk [vmem:[#allocation13 + $0x60] sm:$0xff] %vm450, %v8700
    %8828 = vst.msk [vmem:[#allocation13 + $0x68] sm:$0xff] %vm450, %v8812
    %8829 = vst.msk [vmem:[#allocation13 + $0x70] sm:$0xff] %vm450, %v8702
    %8830 = vst.msk [vmem:[#allocation13 + $0x78] sm:$0xff] %vm450, %v8814
    // Predicated region
    $region98: #{tpu_custom_call.1} parent=1 // pred_check
      _
    $region99: #{tpu_custom_call.1} parent=1 // pred_check_branch
      %8832 = sbr.rel (0) target = $region101
    $region100: #{tpu_custom_call.1} parent=1 // pred_region
      %8834 = vsyncadd [#allocation4], 0
      %s8835 = sshll.u32 [#allocation13], 4
      %s8836 = int_to_ptr.vmem [resolvable:$true] %s8835
      %s8837 = sshll.u32 %s18, 4
      %s8838 = int_to_ptr.hbm [resolvable:$true] %s8837
      %8843 = dma.vmem_to_hbm [thread:$0]  %s8836, 2048, %s8838, [#allocation4], 128, 128, 8
    $region101: #{tpu_custom_call.1} parent=1 // pred_fallthru
      _
    // Predicated region
    $region102: #{tpu_custom_call.1} parent=1 // pred_check
      _
    $region103: #{tpu_custom_call.1} parent=1 // pred_check_branch
      %8845 = sbr.rel (0) target = $region105
    $region104: #{tpu_custom_call.1} parent=1 // pred_region
      %8847 = vsyncadd [#allocation15], 0
      %s8848 = sshll.u32 [#allocation14], 4
      %s8849 = int_to_ptr.vmem [resolvable:$true] %s8848
      %s8850 = sshll.u32 %s19, 4
      %s8851 = int_to_ptr.hbm [resolvable:$true] %s8850
      %8856 = dma.vmem_to_hbm [thread:$0]  %s8849, 2048, %s8851, [#allocation15], 128, 128, 8
    $region105: #{tpu_custom_call.1} parent=1 // pred_fallthru
      _
    // Predicated region
    $region106: #{tpu_custom_call.1} parent=1 // pred_check
      _
    $region107: #{tpu_custom_call.1} parent=1 // pred_check_branch
      %8858 = sbr.rel (0) target = $region109
    $region108: #{tpu_custom_call.1} parent=1 // pred_region
      %8860 = vsyncadd [#allocation15], 0
      %s8861 = sshll.u32 [#allocation16], 4
      %s8862 = int_to_ptr.vmem [resolvable:$true] %s8861
      %s8863 = sshll.u32 %s20, 4
      %s8864 = int_to_ptr.hbm [resolvable:$true] %s8863
      %8869 = dma.vmem_to_hbm [thread:$0]  %s8862, 2304, %s8864, [#allocation15], 128, 128, 8
    $region109: #{tpu_custom_call.1} parent=1 // pred_fallthru
      _
    // Predicated region
    $region110: #{tpu_custom_call.1} parent=1 // pred_check
      _
    $region111: #{tpu_custom_call.1} parent=1 // pred_check_branch
      %8871 = sbr.rel (0) target = $region113
    $region112: #{tpu_custom_call.1} parent=1 // pred_region
      %8873 = dma.done [#allocation4], 2048
    $region113: #{tpu_custom_call.1} parent=1 // pred_fallthru
      _
    // Predicated region
    $region114: #{tpu_custom_call.1} parent=1 // pred_check
      _
    $region115: #{tpu_custom_call.1} parent=1 // pred_check_branch
      %8875 = sbr.rel (0) target = $region117
    $region116: #{tpu_custom_call.1} parent=1 // pred_region
      %8877 = dma.done [#allocation15], 2048
    $region117: #{tpu_custom_call.1} parent=1 // pred_fallthru
      _
    // Predicated region
    $region118: #{tpu_custom_call.1} parent=1 // pred_check
      _
    $region119: #{tpu_custom_call.1} parent=1 // pred_check_branch
      %8879 = sbr.rel (0) target = $region121
    $region120: #{tpu_custom_call.1} parent=1 // pred_region
      %8881 = dma.done [#allocation15], 2304
    $region121: #{tpu_custom_call.1} parent=1 // pred_fallthru
      _
    %8882 = vsyncpa [#allocation3], 1
    %8883 = vsyncpa [#allocation6], 1
    %8884 = vsyncpa [#allocation9], 1
    %8885 = vsyncpa [#allocation12], 1
    %8886 = vsyncpa [#allocation4], 1
    %8887 = vsyncpa [#allocation15], 1

</llo_original>
